<compile_context>
chip_gen: v7x
topology: tpu7x:2x2x1
jax: 0.10.0
libtpu: 0.0.40
codegen_flags: <defaults>
</compile_context>

<pallas_src>
import jax
import jax.numpy as jnp
from jax.experimental import pallas as pl
from jax.experimental.pallas import tpu as pltpu

_BN_EPS = 1e-5
_NEG_BIG = -1e30  # stands in for -inf in the max-pool halo


# ----------------------------------------------------------------------------
# Pallas kernels
# ----------------------------------------------------------------------------
def stage1_kernel(x_ref, wmain_ref, wpool_ref,
                  y1_ref, y2r_ref, y3r_ref, y4_ref, stats_ref, pad_ref):
    """Fused branch heads: 1x1 convs (b1, b2red, b3red) + maxpool3x3 -> 1x1 (b4).

    x_ref     : (bb, H, W, Cin)      f32   bb images, un-padded NHWC
    wmain_ref : (Cin, n1+r2+r3)      bf16  [b1 | b2red | b3red] 1x1 weights
    wpool_ref : (Cin, npool)         bf16  b4 1x1 weights (on max-pooled x)
    y*_ref    : (bb, HW, C_branch)   bf16  pre-BN conv outputs, one per branch
    stats_ref : (2, n1+r2+r3+npool)  f32   per-step [sum; sum_sq] partials
    pad_ref   : (bb, H+2, W+2, Cin)  f32   VMEM scratch, -inf halo for max-pool
    """
    bb, h, w, cin = x_ref.shape
    hw = h * w
    n1 = y1_ref.shape[-1]
    r2 = y2r_ref.shape[-1]
    r3 = y3r_ref.shape[-1]
    npool = y4_ref.shape[-1]
    cm = n1 + r2 + r3

    # Refresh only the thin -inf halo ring (interior fully overwritten below).
    pad_ref[:, 0:1, :, :] = jnp.full((bb, 1, w + 2, cin), _NEG_BIG, jnp.float32)
    pad_ref[:, h + 1:h + 2, :, :] = jnp.full((bb, 1, w + 2, cin), _NEG_BIG,
                                             jnp.float32)
    pad_ref[:, :, 0:1, :] = jnp.full((bb, h + 2, 1, cin), _NEG_BIG, jnp.float32)
    pad_ref[:, :, w + 1:w + 2, :] = jnp.full((bb, h + 2, 1, cin), _NEG_BIG,
                                             jnp.float32)

    x = x_ref[...]                                      # (bb, h, w, cin) f32
    pad_ref[:, 1:1 + h, 1:1 + w, :] = x

    # Separable 3x3/s1/p1 max-pool: row-max over W, then col-max over H.
    rowm = jnp.maximum(jnp.maximum(pad_ref[:, :, 0:w, :],
                                   pad_ref[:, :, 1:1 + w, :]),
                       pad_ref[:, :, 2:2 + w, :])       # (bb, h+2, w, cin)
    pooled = jnp.maximum(jnp.maximum(rowm[:, 0:h], rowm[:, 1:1 + h]),
                         rowm[:, 2:2 + h])              # (bb, h, w, cin)

    center2 = x.reshape(bb * hw, cin).astype(jnp.bfloat16)
    pooled2 = pooled.reshape(bb * hw, cin).astype(jnp.bfloat16)

    # Two MXU matmuls with f32 accumulation (no [center|pooled] lane concat).
    y_main = jnp.dot(center2, wmain_ref[...],
                     preferred_element_type=jnp.float32)   # (bb*hw, cm)
    y_pool = jnp.dot(pooled2, wpool_ref[...],
                     preferred_element_type=jnp.float32)   # (bb*hw, npool)

    # BN partial stats from the f32 accumulator, before the bf16 downcast.
    stats_ref[0:1, 0:cm] = jnp.sum(y_main, axis=0, keepdims=True)
    stats_ref[1:2, 0:cm] = jnp.sum(y_main * y_main, axis=0, keepdims=True)
    stats_ref[0:1, cm:cm + npool] = jnp.sum(y_pool, axis=0, keepdims=True)
    stats_ref[1:2, cm:cm + npool] = jnp.sum(y_pool * y_pool, axis=0,
                                            keepdims=True)

    y_main = y_main.reshape(bb, hw, cm).astype(jnp.bfloat16)
    y1_ref[...] = y_main[:, :, 0:n1]
    y2r_ref[...] = y_main[:, :, n1:n1 + r2]
    y3r_ref[...] = y_main[:, :, n1 + r2:cm]
    y4_ref[...] = y_pool.reshape(bb, hw, npool).astype(jnp.bfloat16)


def bnrelu_conv3x3_kernel(y_ref, scale_ref, shift_ref, w_ref,
                          o_ref, stats_ref, pad_ref):
    """BN(affine)+ReLU prologue of the previous conv, then 3x3 conv (pad=1).

    y_ref    : (bb, HW, Cp)        bf16  pre-BN activations of the previous conv
    scale_ref: (1, Cp)             f32   gamma * rsqrt(var + eps) of prev BN
    shift_ref: (1, Cp)             f32   beta - mean * scale of prev BN
    w_ref    : (9, Cp, Cout)       bf16  3x3 weights, tap index = ky*3 + kx
    o_ref    : (bb, HW, Cout)      bf16  pre-BN output of this conv
    stats_ref: (2, Cout)           f32   per-step [sum; sum_sq] partials
    pad_ref  : (bb, H+2, W+2, Cp)  f32   VMEM scratch, zero halo
    """
    bb, hw, cp = y_ref.shape
    _, hp, wp, _ = pad_ref.shape
    h, w = hp - 2, wp - 2
    cout = o_ref.shape[-1]

    # Refresh only the thin zero halo ring (interior fully overwritten below).
    pad_ref[:, 0:1, :, :] = jnp.zeros((bb, 1, wp, cp), jnp.float32)
    pad_ref[:, h + 1:h + 2, :, :] = jnp.zeros((bb, 1, wp, cp), jnp.float32)
    pad_ref[:, :, 0:1, :] = jnp.zeros((bb, hp, 1, cp), jnp.float32)
    pad_ref[:, :, w + 1:w + 2, :] = jnp.zeros((bb, hp, 1, cp), jnp.float32)

    # Prologue: previous layer's BN affine + ReLU, in f32.
    a = jnp.maximum(
        y_ref[...].astype(jnp.float32) * scale_ref[...] + shift_ref[...], 0.0)
    pad_ref[:, 1:1 + h, 1:1 + w, :] = a.reshape(bb, h, w, cp)
    # TODO(synk): interior store / tap reads are sublane-unaligned; a
    # pltpu.roll-based halo layout would move the shifts onto the XLU slot.

    # 3x3 conv: 9 accumulating per-tap MXU matmuls (no (HW, 9*Cp) concat temp).
    acc = None
    for dy in range(3):
        for dx in range(3):
            tap = pad_ref[:, dy:dy + h, dx:dx + w, :]
            tap = tap.reshape(bb * hw, cp).astype(jnp.bfloat16)
            part = jnp.dot(tap, w_ref[dy * 3 + dx],
                           preferred_element_type=jnp.float32)
            acc = part if acc is None else acc + part

    stats_ref[0:1, :] = jnp.sum(acc, axis=0, keepdims=True)
    stats_ref[1:2, :] = jnp.sum(acc * acc, axis=0, keepdims=True)
    o_ref[...] = acc.reshape(bb, hw, cout).astype(jnp.bfloat16)


def finalize_kernel(y1_ref, y2_ref, y3_ref, y4_ref, scale_ref, shift_ref,
                    o_ref):
    """Per-branch BN(affine)+ReLU; each branch written straight into its
    channel slice of the concatenated output (no concat temp)."""
    c1 = y1_ref.shape[-1]
    c2 = y2_ref.shape[-1]
    c3 = y3_ref.shape[-1]
    c4 = y4_ref.shape[-1]
    o1, o2, o3 = c1, c1 + c2, c1 + c2 + c3

    def bn_relu(branch_ref, lo, hi):
        y = branch_ref[...].astype(jnp.float32)
        return jnp.maximum(y * scale_ref[:, lo:hi] + shift_ref[:, lo:hi], 0.0)

    o_ref[:, :, 0:o1] = bn_relu(y1_ref, 0, o1)
    o_ref[:, :, o1:o2] = bn_relu(y2_ref, o1, o2)
    o_ref[:, :, o2:o3] = bn_relu(y3_ref, o2, o3)
    o_ref[:, :, o3:o3 + c4] = bn_relu(y4_ref, o3, o3 + c4)


# ----------------------------------------------------------------------------
# pallas_call wrappers
# ----------------------------------------------------------------------------
def _pick_batch_block(n, hw):
    """Images per grid step: enough rows to amortize per-step overhead and
    fill the MXU, but keep >=2 grid steps when possible (double-buffering and
    v7x 2-TC sharding) and keep blocks far below v7x's 64 MiB VMEM budget."""
    bb = 1
    for d in range(1, n + 1):
        if n % d:
            continue
        if d * hw > 2048:
            break
        if n // d >= 2 or n == 1:
            bb = d
    return bb


def _stage1_call(x_nhwc, w_main, w_pool, bb, n1, r2, r3):
    n, h, w, cin = x_nhwc.shape
    hw = h * w
    cm = n1 + r2 + r3
    npool = w_pool.shape[-1]
    c1tot = cm + npool
    steps = n // bb
    return pl.pallas_call(
        stage1_kernel,
        out_shape=(
            jax.ShapeDtypeStruct((n, hw, n1), jnp.bfloat16),
            jax.ShapeDtypeStruct((n, hw, r2), jnp.bfloat16),
            jax.ShapeDtypeStruct((n, hw, r3), jnp.bfloat16),
            jax.ShapeDtypeStruct((n, hw, npool), jnp.bfloat16),
            jax.ShapeDtypeStruct((steps, 2, c1tot), jnp.float32),
        ),
        grid=(steps,),
        in_specs=[
            pl.BlockSpec((bb, h, w, cin), lambda i: (i, 0, 0, 0)),
            pl.BlockSpec((cin, cm), lambda i: (0, 0)),
            pl.BlockSpec((cin, npool), lambda i: (0, 0)),
        ],
        out_specs=(
            pl.BlockSpec((bb, hw, n1), lambda i: (i, 0, 0)),
            pl.BlockSpec((bb, hw, r2), lambda i: (i, 0, 0)),
            pl.BlockSpec((bb, hw, r3), lambda i: (i, 0, 0)),
            pl.BlockSpec((bb, hw, npool), lambda i: (i, 0, 0)),
            pl.BlockSpec((None, 2, c1tot), lambda i: (i, 0, 0)),
        ),
        scratch_shapes=[pltpu.VMEM((bb, h + 2, w + 2, cin), jnp.float32)],
        compiler_params=pltpu.CompilerParams(
            dimension_semantics=("parallel",)),
    )(x_nhwc, w_main, w_pool)


def _conv3x3_call(y_prev, scale, shift, w9, h, w, bb):
    n, hw, cp = y_prev.shape
    cout = w9.shape[-1]
    steps = n // bb
    return pl.pallas_call(
        bnrelu_conv3x3_kernel,
        out_shape=(
            jax.ShapeDtypeStruct((n, hw, cout), jnp.bfloat16),
            jax.ShapeDtypeStruct((steps, 2, cout), jnp.float32),
        ),
        grid=(steps,),
        in_specs=[
            pl.BlockSpec((bb, hw, cp), lambda i: (i, 0, 0)),
            pl.BlockSpec((1, cp), lambda i: (0, 0)),
            pl.BlockSpec((1, cp), lambda i: (0, 0)),
            pl.BlockSpec((9, cp, cout), lambda i: (0, 0, 0)),
        ],
        out_specs=(
            pl.BlockSpec((bb, hw, cout), lambda i: (i, 0, 0)),
            pl.BlockSpec((None, 2, cout), lambda i: (i, 0, 0)),
        ),
        scratch_shapes=[pltpu.VMEM((bb, h + 2, w + 2, cp), jnp.float32)],
        compiler_params=pltpu.CompilerParams(
            dimension_semantics=("parallel",)),
    )(y_prev, scale, shift, w9)


def _finalize_call(y1, y2, y3, y4, scale_cat, shift_cat, bb):
    n, hw, _ = y1.shape
    ctot = scale_cat.shape[-1]
    steps = n // bb
    return pl.pallas_call(
        finalize_kernel,
        out_shape=jax.ShapeDtypeStruct((n, hw, ctot), jnp.float32),
        grid=(steps,),
        in_specs=[
            pl.BlockSpec((bb, hw, y1.shape[-1]), lambda i: (i, 0, 0)),
            pl.BlockSpec((bb, hw, y2.shape[-1]), lambda i: (i, 0, 0)),
            pl.BlockSpec((bb, hw, y3.shape[-1]), lambda i: (i, 0, 0)),
            pl.BlockSpec((bb, hw, y4.shape[-1]), lambda i: (i, 0, 0)),
            pl.BlockSpec((1, ctot), lambda i: (0, 0)),
            pl.BlockSpec((1, ctot), lambda i: (0, 0)),
        ],
        out_specs=pl.BlockSpec((bb, hw, ctot), lambda i: (i, 0, 0)),
        compiler_params=pltpu.CompilerParams(
            dimension_semantics=("parallel",)),
    )(y1, y2, y3, y4, scale_cat, shift_cat)


# ----------------------------------------------------------------------------
# Plain-JAX glue: BN stats reduction, weight prep, parameter init
# ----------------------------------------------------------------------------
def _bn_scale_shift(stats, count, gamma, beta, eps=_BN_EPS):
    """stats: (steps, 2, C) per-step [sum, sum_sq] -> per-channel affine."""
    s = jnp.sum(stats[:, 0, :], axis=0)
    ss = jnp.sum(stats[:, 1, :], axis=0)
    mean = s / count
    var = jnp.maximum(ss / count - mean * mean, 0.0)  # biased (train-mode) var
    scale = gamma * jax.lax.rsqrt(var + eps)
    shift = beta - mean * scale
    return scale, shift


def _w1x1_2d(wt):
    """(Cout, Cin, 1, 1) -> (Cin, Cout)."""
    return jnp.transpose(wt[:, :, 0, 0], (1, 0))


def _w3x3_taps(wt):
    """(Cout, Cin, 3, 3) -> (9, Cin, Cout), tap order = ky*3 + kx."""
    co, ci = wt.shape[0], wt.shape[1]
    return jnp.transpose(wt, (2, 3, 1, 0)).reshape(9, ci, co)


def _init_conv(key, cin, cout, k):
    kw_, kb_ = jax.random.split(key)
    bound = 1.0 / float(cin * k * k) ** 0.5
    w = jax.random.uniform(kw_, (cout, cin, k, k), jnp.float32, -bound, bound)
    b = jax.random.uniform(kb_, (cout,), jnp.float32, -bound, bound)
    return w, b


def _init_bn(key, c):
    kg, kb = jax.random.split(key)
    gamma = jax.random.uniform(kg, (c,), jnp.float32, 0.5, 1.5)
    beta = jax.random.uniform(kb, (c,), jnp.float32, -0.5, 0.5)
    return gamma, beta


def init_inception_params(key, in_planes, n1x1, n3x3red, n3x3, n5x5red, n5x5,
                          pool_planes):
    keys = jax.random.split(key, 16)
    p = {}
    p["b1_conv"] = _init_conv(keys[0], in_planes, n1x1, 1)
    p["b1_bn"] = _init_bn(keys[1], n1x1)
    p["b2_conv1"] = _init_conv(keys[2], in_planes, n3x3red, 1)
    p["b2_bn1"] = _init_bn(keys[3], n3x3red)
    p["b2_conv2"] = _init_conv(keys[4], n3x3red, n3x3, 3)
    p["b2_bn2"] = _init_bn(keys[5], n3x3)
    p["b3_conv1"] = _init_conv(keys[6], in_planes, n5x5red, 1)
    p["b3_bn1"] = _init_bn(keys[7], n5x5red)
    p["b3_conv2"] = _init_conv(keys[8], n5x5red, n5x5, 3)
    p["b3_bn2"] = _init_bn(keys[9], n5x5)
    p["b3_conv3"] = _init_conv(keys[10], n5x5, n5x5, 3)
    p["b3_bn3"] = _init_bn(keys[11], n5x5)
    p["b4_conv"] = _init_conv(keys[12], in_planes, pool_planes, 1)
    p["b4_bn"] = _init_bn(keys[13], pool_planes)
    return p


# ----------------------------------------------------------------------------
# Forward pass
# ----------------------------------------------------------------------------
def inception_forward(x_nchw, params):
    n, cin, h, w = x_nchw.shape
    hw = h * w
    count = float(n * hw)
    bb = _pick_batch_block(n, hw)

    w_b1 = params["b1_conv"][0];  g1, be1 = params["b1_bn"]
    w_b2r = params["b2_conv1"][0]; g2r, be2r = params["b2_bn1"]
    w_b2 = params["b2_conv2"][0]; g2, be2 = params["b2_bn2"]
    w_b3r = params["b3_conv1"][0]; g3r, be3r = params["b3_bn1"]
    w_b3a = params["b3_conv2"][0]; g3a, be3a = params["b3_bn2"]
    w_b3b = params["b3_conv3"][0]; g3b, be3b = params["b3_bn3"]
    w_b4 = params["b4_conv"][0];  g4, be4 = params["b4_bn"]
    # Conv biases are intentionally unused: a per-channel constant bias is
    # exactly cancelled by the train-mode BatchNorm mean subtraction.

    n1, r2, r3 = w_b1.shape[0], w_b2r.shape[0], w_b3r.shape[0]
    npool = w_b4.shape[0]
    cm = n1 + r2 + r3

    # Fused stage-1 weights in branch order [b1 | b2red | b3red]; pool-proj
    # weight kept separate (accumulating dots instead of a lane concat).
    w_main = jnp.concatenate(
        [_w1x1_2d(w_b1), _w1x1_2d(w_b2r), _w1x1_2d(w_b3r)],
        axis=1).astype(jnp.bfloat16)
    w_pool = _w1x1_2d(w_b4).astype(jnp.bfloat16)
    w2 = _w3x3_taps(w_b2).astype(jnp.bfloat16)
    w3a = _w3x3_taps(w_b3a).astype(jnp.bfloat16)
    w3b = _w3x3_taps(w_b3b).astype(jnp.bfloat16)

    # NHWC input; the max-pool halo is built inside the kernel (no HBM pad).
    x_nhwc = jnp.transpose(x_nchw, (0, 2, 3, 1)).astype(jnp.float32)

    # Stage 1: all four branch heads, separate per-branch outputs.
    y1, y2r, y3r, y4, st1 = _stage1_call(x_nhwc, w_main, w_pool, bb, n1, r2, r3)
    gamma1 = jnp.concatenate([g1, g2r, g3r, g4])
    beta1 = jnp.concatenate([be1, be2r, be3r, be4])
    scale1, shift1 = _bn_scale_shift(st1, count, gamma1, beta1)

    sc_b2r, sh_b2r = scale1[n1:n1 + r2][None], shift1[n1:n1 + r2][None]
    sc_b3r, sh_b3r = scale1[n1 + r2:cm][None], shift1[n1 + r2:cm][None]

    # Branch 2: BN+ReLU prologue fused into the 3x3 conv.
    y2, st2 = _conv3x3_call(y2r, sc_b2r, sh_b2r, w2, h, w, bb)
    scale2, shift2 = _bn_scale_shift(st2, count, g2, be2)

    # Branch 3: two chained 3x3 convs.
    y3a, st3a = _conv3x3_call(y3r, sc_b3r, sh_b3r, w3a, h, w, bb)
    scale3a, shift3a = _bn_scale_shift(st3a, count, g3a, be3a)
    y3b, st3b = _conv3x3_call(y3a, scale3a[None], shift3a[None], w3b, h, w, bb)
    scale3b, shift3b = _bn_scale_shift(st3b, count, g3b, be3b)

    # Finalize: per-branch BN+ReLU, written per channel-slice into the output.
    scale_cat = jnp.concatenate(
        [scale1[:n1], scale2, scale3b, scale1[cm:]])[None]
    shift_cat = jnp.concatenate(
        [shift1[:n1], shift2, shift3b, shift1[cm:]])[None]
    out_flat = _finalize_call(y1, y2, y3b, y4, scale_cat, shift_cat, bb)
    out_nhwc = out_flat.reshape(n, h, w, out_flat.shape[-1])
    return jnp.transpose(out_nhwc, (0, 3, 1, 2))  # back to NCHW


if __name__ == "__main__":
    N, C, H, W = 2, 4, 16, 16
    n1x1, n3x3red, n3x3, n5x5red, n5x5, pool_planes = 8, 4, 8, 4, 8, 8

    key = jax.random.PRNGKey(0)
    kx, kp = jax.random.split(key)
    x = jax.random.normal(kx, (N, C, H, W), jnp.float32)
    params = init_inception_params(kp, C, n1x1, n3x3red, n3x3, n5x5red, n5x5,
                                   pool_planes)

    out = jax.jit(inception_forward)(x, params)
    out = jax.block_until_ready(out)

    expected_c = n1x1 + n3x3 + n5x5 + pool_planes
    assert out.shape == (N, expected_c, H, W), out.shape
    assert out.dtype == jnp.float32
    assert bool(jnp.all(jnp.isfinite(out)))
    print("KERNEL_OK")
</pallas_src>

<mosaic_0001>
module attributes {stable_mosaic.version = 11 : i64} {
  func.func @stage1_kernel(%arg0: i32, %arg1: memref<1x16x16x4xf32, #tpu.memory_space<vmem>>, %arg2: memref<4x16xbf16, #tpu.memory_space<vmem>>, %arg3: memref<4x8xbf16, #tpu.memory_space<vmem>>, %arg4: memref<1x256x8xbf16, #tpu.memory_space<vmem>>, %arg5: memref<1x256x4xbf16, #tpu.memory_space<vmem>>, %arg6: memref<1x256x4xbf16, #tpu.memory_space<vmem>>, %arg7: memref<1x256x8xbf16, #tpu.memory_space<vmem>>, %arg8: memref<1x2x24xf32, #tpu.memory_space<vmem>>, %arg9: memref<1x18x18x4xf32, #tpu.memory_space<vmem>>) attributes {dimension_semantics = [#tpu.dimension_semantics<parallel>], iteration_bounds = array<i64: 2>, scalar_prefetch = 0 : i64, scratch_operands = 1 : i64, tpu.core_type = #tpu.core_type<tc>, window_params = [{transform_indices = @transform_0, window_bounds = array<i64: 1, 16, 16, 4>}, {pipeline_mode = #tpu.pipeline_mode<synchronous>, transform_indices = @transform_1, window_bounds = array<i64: 4, 16>}, {pipeline_mode = #tpu.pipeline_mode<synchronous>, transform_indices = @transform_2, window_bounds = array<i64: 4, 8>}, {transform_indices = @transform_3, window_bounds = array<i64: 1, 256, 8>}, {transform_indices = @transform_4, window_bounds = array<i64: 1, 256, 4>}, {transform_indices = @transform_5, window_bounds = array<i64: 1, 256, 4>}, {transform_indices = @transform_6, window_bounds = array<i64: 1, 256, 8>}, {transform_indices = @transform_7, window_bounds = array<i64: 1, 2, 24>}]} {
    %cst = arith.constant -1.000000e+30 : f32
    %0 = vector.broadcast %cst : f32 to vector<1x1x18x4xf32>
    %c0 = arith.constant 0 : index
    %c0_0 = arith.constant 0 : index
    %c0_1 = arith.constant 0 : index
    %c0_2 = arith.constant 0 : index
    %1 = vector.load %arg9[%c0, %c0_0, %c0_1, %c0_2] : memref<1x18x18x4xf32, #tpu.memory_space<vmem>>, vector<1x1x18x4xf32>
    tpu.vector_store %arg9[%c0, %c0_0, %c0_1, %c0_2], %0 {strides = array<i32>} : memref<1x18x18x4xf32, #tpu.memory_space<vmem>>, vector<1x1x18x4xf32>,
    %cst_3 = arith.constant -1.000000e+30 : f32
    %2 = vector.broadcast %cst_3 : f32 to vector<1x1x18x4xf32>
    %c0_4 = arith.constant 0 : index
    %c17 = arith.constant 17 : index
    %c0_5 = arith.constant 0 : index
    %c0_6 = arith.constant 0 : index
    %3 = vector.load %arg9[%c0_4, %c17, %c0_5, %c0_6] : memref<1x18x18x4xf32, #tpu.memory_space<vmem>>, vector<1x1x18x4xf32>
    tpu.vector_store %arg9[%c0_4, %c17, %c0_5, %c0_6], %2 {strides = array<i32>} : memref<1x18x18x4xf32, #tpu.memory_space<vmem>>, vector<1x1x18x4xf32>,
    %cst_7 = arith.constant -1.000000e+30 : f32
    %4 = vector.broadcast %cst_7 : f32 to vector<1x18x1x4xf32>
    %c0_8 = arith.constant 0 : index
    %c0_9 = arith.constant 0 : index
    %c0_10 = arith.constant 0 : index
    %c0_11 = arith.constant 0 : index
    %5 = vector.load %arg9[%c0_8, %c0_9, %c0_10, %c0_11] : memref<1x18x18x4xf32, #tpu.memory_space<vmem>>, vector<1x18x1x4xf32>
    tpu.vector_store %arg9[%c0_8, %c0_9, %c0_10, %c0_11], %4 {strides = array<i32>} : memref<1x18x18x4xf32, #tpu.memory_space<vmem>>, vector<1x18x1x4xf32>,
    %cst_12 = arith.constant -1.000000e+30 : f32
    %6 = vector.broadcast %cst_12 : f32 to vector<1x18x1x4xf32>
    %c0_13 = arith.constant 0 : index
    %c0_14 = arith.constant 0 : index
    %c17_15 = arith.constant 17 : index
    %c0_16 = arith.constant 0 : index
    %7 = vector.load %arg9[%c0_13, %c0_14, %c17_15, %c0_16] : memref<1x18x18x4xf32, #tpu.memory_space<vmem>>, vector<1x18x1x4xf32>
    tpu.vector_store %arg9[%c0_13, %c0_14, %c17_15, %c0_16], %6 {strides = array<i32>} : memref<1x18x18x4xf32, #tpu.memory_space<vmem>>, vector<1x18x1x4xf32>,
    %c0_17 = arith.constant 0 : index
    %c0_18 = arith.constant 0 : index
    %c0_19 = arith.constant 0 : index
    %c0_20 = arith.constant 0 : index
    %8 = vector.load %arg1[%c0_17, %c0_18, %c0_19, %c0_20] : memref<1x16x16x4xf32, #tpu.memory_space<vmem>>, vector<1x16x16x4xf32>
    %c0_21 = arith.constant 0 : index
    %c1 = arith.constant 1 : index
    %c1_22 = arith.constant 1 : index
    %c0_23 = arith.constant 0 : index
    %9 = vector.load %arg9[%c0_21, %c1, %c1_22, %c0_23] : memref<1x18x18x4xf32, #tpu.memory_space<vmem>>, vector<1x16x16x4xf32>
    tpu.vector_store %arg9[%c0_21, %c1, %c1_22, %c0_23], %8 {strides = array<i32>} : memref<1x18x18x4xf32, #tpu.memory_space<vmem>>, vector<1x16x16x4xf32>,
    %c0_24 = arith.constant 0 : index
    %c0_25 = arith.constant 0 : index
    %c0_26 = arith.constant 0 : index
    %c0_27 = arith.constant 0 : index
    %10 = vector.load %arg9[%c0_24, %c0_25, %c0_26, %c0_27] : memref<1x18x18x4xf32, #tpu.memory_space<vmem>>, vector<1x18x16x4xf32>
    %c0_28 = arith.constant 0 : index
    %c0_29 = arith.constant 0 : index
    %c1_30 = arith.constant 1 : index
    %c0_31 = arith.constant 0 : index
    %11 = vector.load %arg9[%c0_28, %c0_29, %c1_30, %c0_31] : memref<1x18x18x4xf32, #tpu.memory_space<vmem>>, vector<1x18x16x4xf32>
    %12 = arith.maximumf %10, %11 : vector<1x18x16x4xf32>
    %c0_32 = arith.constant 0 : index
    %c0_33 = arith.constant 0 : index
    %c2 = arith.constant 2 : index
    %c0_34 = arith.constant 0 : index
    %13 = vector.load %arg9[%c0_32, %c0_33, %c2, %c0_34] : memref<1x18x18x4xf32, #tpu.memory_space<vmem>>, vector<1x18x16x4xf32>
    %14 = arith.maximumf %12, %13 : vector<1x18x16x4xf32>
    %15 = vector.extract_strided_slice %14 {offsets = [0, 0, 0, 0], sizes = [1, 16, 16, 4], strides = [1, 1, 1, 1]} : vector<1x18x16x4xf32> to vector<1x16x16x4xf32>
    %16 = vector.extract_strided_slice %14 {offsets = [0, 1, 0, 0], sizes = [1, 16, 16, 4], strides = [1, 1, 1, 1]} : vector<1x18x16x4xf32> to vector<1x16x16x4xf32>
    %17 = arith.maximumf %15, %16 : vector<1x16x16x4xf32>
    %18 = vector.extract_strided_slice %14 {offsets = [0, 2, 0, 0], sizes = [1, 16, 16, 4], strides = [1, 1, 1, 1]} : vector<1x18x16x4xf32> to vector<1x16x16x4xf32>
    %19 = arith.maximumf %17, %18 : vector<1x16x16x4xf32>
    %20 = vector.shape_cast %8 : vector<1x16x16x4xf32> to vector<256x4xf32>
    %21 = arith.truncf %20 : vector<256x4xf32> to vector<256x4xbf16>
    %22 = vector.shape_cast %19 : vector<1x16x16x4xf32> to vector<256x4xf32>
    %23 = arith.truncf %22 : vector<256x4xf32> to vector<256x4xbf16>
    %c0_35 = arith.constant 0 : index
    %c0_36 = arith.constant 0 : index
    %24 = vector.load %arg2[%c0_35, %c0_36] : memref<4x16xbf16, #tpu.memory_space<vmem>>, vector<4x16xbf16>
    %cst_37 = arith.constant dense<0.000000e+00> : vector<256x16xf32>
    %25 = tpu.matmul %21, %24, %cst_37 {dimension_numbers = #tpu.dot_dimension_numbers<[1], [0], [0], [1], [0, 0, 1, 1], [], []>} : vector<256x4xbf16>, vector<4x16xbf16>, vector<256x16xf32> -> vector<256x16xf32>
    %c0_38 = arith.constant 0 : index
    %c0_39 = arith.constant 0 : index
    %26 = vector.load %arg3[%c0_38, %c0_39] : memref<4x8xbf16, #tpu.memory_space<vmem>>, vector<4x8xbf16>
    %cst_40 = arith.constant dense<0.000000e+00> : vector<256x8xf32>
    %27 = tpu.matmul %23, %26, %cst_40 {dimension_numbers = #tpu.dot_dimension_numbers<[1], [0], [0], [1], [0, 0, 1, 1], [], []>} : vector<256x4xbf16>, vector<4x8xbf16>, vector<256x8xf32> -> vector<256x8xf32>
    %cst_41 = arith.constant dense<0.000000e+00> : vector<16xf32>
    %28 = vector.multi_reduction <add>, %25, %cst_41 [0] : vector<256x16xf32> to vector<16xf32>
    %29 = vector.shape_cast %28 : vector<16xf32> to vector<1x16xf32>
    %c0_42 = arith.constant 0 : index
    %c0_43 = arith.constant 0 : index
    %c0_44 = arith.constant 0 : index
    %30 = vector.load %arg8[%c0_42, %c0_43, %c0_44] : memref<1x2x24xf32, #tpu.memory_space<vmem>>, vector<1x1x16xf32>
    %31 = vector.shape_cast %30 : vector<1x1x16xf32> to vector<1x16xf32>
    %32 = vector.shape_cast %29 : vector<1x16xf32> to vector<1x1x16xf32>
    tpu.vector_store %arg8[%c0_42, %c0_43, %c0_44], %32 {strides = array<i32>} : memref<1x2x24xf32, #tpu.memory_space<vmem>>, vector<1x1x16xf32>,
    %33 = arith.mulf %25, %25 : vector<256x16xf32>
    %cst_45 = arith.constant dense<0.000000e+00> : vector<16xf32>
    %34 = vector.multi_reduction <add>, %33, %cst_45 [0] : vector<256x16xf32> to vector<16xf32>
    %35 = vector.shape_cast %34 : vector<16xf32> to vector<1x16xf32>
    %c0_46 = arith.constant 0 : index
    %c1_47 = arith.constant 1 : index
    %c0_48 = arith.constant 0 : index
    %36 = vector.load %arg8[%c0_46, %c1_47, %c0_48] : memref<1x2x24xf32, #tpu.memory_space<vmem>>, vector<1x1x16xf32>
    %37 = vector.shape_cast %36 : vector<1x1x16xf32> to vector<1x16xf32>
    %38 = vector.shape_cast %35 : vector<1x16xf32> to vector<1x1x16xf32>
    tpu.vector_store %arg8[%c0_46, %c1_47, %c0_48], %38 {strides = array<i32>} : memref<1x2x24xf32, #tpu.memory_space<vmem>>, vector<1x1x16xf32>,
    %cst_49 = arith.constant dense<0.000000e+00> : vector<8xf32>
    %39 = vector.multi_reduction <add>, %27, %cst_49 [0] : vector<256x8xf32> to vector<8xf32>
    %40 = vector.shape_cast %39 : vector<8xf32> to vector<1x8xf32>
    %c0_50 = arith.constant 0 : index
    %c0_51 = arith.constant 0 : index
    %c16 = arith.constant 16 : index
    %41 = vector.load %arg8[%c0_50, %c0_51, %c16] : memref<1x2x24xf32, #tpu.memory_space<vmem>>, vector<1x1x8xf32>
    %42 = vector.shape_cast %41 : vector<1x1x8xf32> to vector<1x8xf32>
    %43 = vector.shape_cast %40 : vector<1x8xf32> to vector<1x1x8xf32>
    tpu.vector_store %arg8[%c0_50, %c0_51, %c16], %43 {strides = array<i32>} : memref<1x2x24xf32, #tpu.memory_space<vmem>>, vector<1x1x8xf32>,
    %44 = arith.mulf %27, %27 : vector<256x8xf32>
    %cst_52 = arith.constant dense<0.000000e+00> : vector<8xf32>
    %45 = vector.multi_reduction <add>, %44, %cst_52 [0] : vector<256x8xf32> to vector<8xf32>
    %46 = vector.shape_cast %45 : vector<8xf32> to vector<1x8xf32>
    %c0_53 = arith.constant 0 : index
    %c1_54 = arith.constant 1 : index
    %c16_55 = arith.constant 16 : index
    %47 = vector.load %arg8[%c0_53, %c1_54, %c16_55] : memref<1x2x24xf32, #tpu.memory_space<vmem>>, vector<1x1x8xf32>
    %48 = vector.shape_cast %47 : vector<1x1x8xf32> to vector<1x8xf32>
    %49 = vector.shape_cast %46 : vector<1x8xf32> to vector<1x1x8xf32>
    tpu.vector_store %arg8[%c0_53, %c1_54, %c16_55], %49 {strides = array<i32>} : memref<1x2x24xf32, #tpu.memory_space<vmem>>, vector<1x1x8xf32>,
    %50 = vector.shape_cast %25 : vector<256x16xf32> to vector<1x256x16xf32>
    %51 = arith.truncf %50 : vector<1x256x16xf32> to vector<1x256x16xbf16>
    %52 = vector.extract_strided_slice %51 {offsets = [0, 0, 0], sizes = [1, 256, 8], strides = [1, 1, 1]} : vector<1x256x16xbf16> to vector<1x256x8xbf16>
    %c0_56 = arith.constant 0 : index
    %c0_57 = arith.constant 0 : index
    %c0_58 = arith.constant 0 : index
    %53 = vector.load %arg4[%c0_56, %c0_57, %c0_58] : memref<1x256x8xbf16, #tpu.memory_space<vmem>>, vector<1x256x8xbf16>
    tpu.vector_store %arg4[%c0_56, %c0_57, %c0_58], %52 {strides = array<i32>} : memref<1x256x8xbf16, #tpu.memory_space<vmem>>, vector<1x256x8xbf16>,
    %54 = vector.extract_strided_slice %51 {offsets = [0, 0, 8], sizes = [1, 256, 4], strides = [1, 1, 1]} : vector<1x256x16xbf16> to vector<1x256x4xbf16>
    %c0_59 = arith.constant 0 : index
    %c0_60 = arith.constant 0 : index
    %c0_61 = arith.constant 0 : index
    %55 = vector.load %arg5[%c0_59, %c0_60, %c0_61] : memref<1x256x4xbf16, #tpu.memory_space<vmem>>, vector<1x256x4xbf16>
    tpu.vector_store %arg5[%c0_59, %c0_60, %c0_61], %54 {strides = array<i32>} : memref<1x256x4xbf16, #tpu.memory_space<vmem>>, vector<1x256x4xbf16>,
    %56 = vector.extract_strided_slice %51 {offsets = [0, 0, 12], sizes = [1, 256, 4], strides = [1, 1, 1]} : vector<1x256x16xbf16> to vector<1x256x4xbf16>
    %c0_62 = arith.constant 0 : index
    %c0_63 = arith.constant 0 : index
    %c0_64 = arith.constant 0 : index
    %57 = vector.load %arg6[%c0_62, %c0_63, %c0_64] : memref<1x256x4xbf16, #tpu.memory_space<vmem>>, vector<1x256x4xbf16>
    tpu.vector_store %arg6[%c0_62, %c0_63, %c0_64], %56 {strides = array<i32>} : memref<1x256x4xbf16, #tpu.memory_space<vmem>>, vector<1x256x4xbf16>,
    %58 = vector.shape_cast %27 : vector<256x8xf32> to vector<1x256x8xf32>
    %59 = arith.truncf %58 : vector<1x256x8xf32> to vector<1x256x8xbf16>
    %c0_65 = arith.constant 0 : index
    %c0_66 = arith.constant 0 : index
    %c0_67 = arith.constant 0 : index
    %60 = vector.load %arg7[%c0_65, %c0_66, %c0_67] : memref<1x256x8xbf16, #tpu.memory_space<vmem>>, vector<1x256x8xbf16>
    tpu.vector_store %arg7[%c0_65, %c0_66, %c0_67], %59 {strides = array<i32>} : memref<1x256x8xbf16, #tpu.memory_space<vmem>>, vector<1x256x8xbf16>,
    return
  }
  func.func @transform_0(%arg0: i32) -> (i32, i32, i32, i32) {
    %c0_i32 = arith.constant 0 : i32
    %c0_i32_0 = arith.constant 0 : i32
    %c0_i32_1 = arith.constant 0 : i32
    %c0_i32_2 = arith.constant 0 : i32
    return %arg0, %c0_i32, %c0_i32_0, %c0_i32_1 : i32, i32, i32, i32
  }
  func.func @transform_1(%arg0: i32) -> (i32, i32) {
    %c0_i32 = arith.constant 0 : i32
    %c0_i32_0 = arith.constant 0 : i32
    %c0_i32_1 = arith.constant 0 : i32
    return %c0_i32, %c0_i32_0 : i32, i32
  }
  func.func @transform_2(%arg0: i32) -> (i32, i32) {
    %c0_i32 = arith.constant 0 : i32
    %c0_i32_0 = arith.constant 0 : i32
    %c0_i32_1 = arith.constant 0 : i32
    return %c0_i32, %c0_i32_0 : i32, i32
  }
  func.func @transform_3(%arg0: i32) -> (i32, i32, i32) {
    %c0_i32 = arith.constant 0 : i32
    %c0_i32_0 = arith.constant 0 : i32
    %c0_i32_1 = arith.constant 0 : i32
    return %arg0, %c0_i32, %c0_i32_0 : i32, i32, i32
  }
  func.func @transform_4(%arg0: i32) -> (i32, i32, i32) {
    %c0_i32 = arith.constant 0 : i32
    %c0_i32_0 = arith.constant 0 : i32
    %c0_i32_1 = arith.constant 0 : i32
    return %arg0, %c0_i32, %c0_i32_0 : i32, i32, i32
  }
  func.func @transform_5(%arg0: i32) -> (i32, i32, i32) {
    %c0_i32 = arith.constant 0 : i32
    %c0_i32_0 = arith.constant 0 : i32
    %c0_i32_1 = arith.constant 0 : i32
    return %arg0, %c0_i32, %c0_i32_0 : i32, i32, i32
  }
  func.func @transform_6(%arg0: i32) -> (i32, i32, i32) {
    %c0_i32 = arith.constant 0 : i32
    %c0_i32_0 = arith.constant 0 : i32
    %c0_i32_1 = arith.constant 0 : i32
    return %arg0, %c0_i32, %c0_i32_0 : i32, i32, i32
  }
  func.func @transform_7(%arg0: i32) -> (i32, i32, i32) {
    %c0_i32 = arith.constant 0 : i32
    %c0_i32_0 = arith.constant 0 : i32
    %c0_i32_1 = arith.constant 0 : i32
    return %arg0, %c0_i32, %c0_i32_0 : i32, i32, i32
  }
}

module attributes {stable_mosaic.version = 11 : i64} {
  func.func @bnrelu_conv3x3_kernel(%arg0: i32, %arg1: memref<1x256x4xbf16, #tpu.memory_space<vmem>>, %arg2: memref<1x4xf32, #tpu.memory_space<vmem>>, %arg3: memref<1x4xf32, #tpu.memory_space<vmem>>, %arg4: memref<9x4x8xbf16, #tpu.memory_space<vmem>>, %arg5: memref<1x256x8xbf16, #tpu.memory_space<vmem>>, %arg6: memref<1x2x8xf32, #tpu.memory_space<vmem>>, %arg7: memref<1x18x18x4xf32, #tpu.memory_space<vmem>>) attributes {dimension_semantics = [#tpu.dimension_semantics<parallel>], iteration_bounds = array<i64: 2>, scalar_prefetch = 0 : i64, scratch_operands = 1 : i64, tpu.core_type = #tpu.core_type<tc>, window_params = [{transform_indices = @transform_0, window_bounds = array<i64: 1, 256, 4>}, {pipeline_mode = #tpu.pipeline_mode<synchronous>, transform_indices = @transform_1, window_bounds = array<i64: 1, 4>}, {pipeline_mode = #tpu.pipeline_mode<synchronous>, transform_indices = @transform_2, window_bounds = array<i64: 1, 4>}, {pipeline_mode = #tpu.pipeline_mode<synchronous>, transform_indices = @transform_3, window_bounds = array<i64: 9, 4, 8>}, {transform_indices = @transform_4, window_bounds = array<i64: 1, 256, 8>}, {transform_indices = @transform_5, window_bounds = array<i64: 1, 2, 8>}]} {
    %cst = arith.constant 0.000000e+00 : f32
    %0 = vector.broadcast %cst : f32 to vector<1x1x18x4xf32>
    %c0 = arith.constant 0 : index
    %c0_0 = arith.constant 0 : index
    %c0_1 = arith.constant 0 : index
    %c0_2 = arith.constant 0 : index
    %1 = vector.load %arg7[%c0, %c0_0, %c0_1, %c0_2] : memref<1x18x18x4xf32, #tpu.memory_space<vmem>>, vector<1x1x18x4xf32>
    tpu.vector_store %arg7[%c0, %c0_0, %c0_1, %c0_2], %0 {strides = array<i32>} : memref<1x18x18x4xf32, #tpu.memory_space<vmem>>, vector<1x1x18x4xf32>,
    %cst_3 = arith.constant 0.000000e+00 : f32
    %2 = vector.broadcast %cst_3 : f32 to vector<1x1x18x4xf32>
    %c0_4 = arith.constant 0 : index
    %c17 = arith.constant 17 : index
    %c0_5 = arith.constant 0 : index
    %c0_6 = arith.constant 0 : index
    %3 = vector.load %arg7[%c0_4, %c17, %c0_5, %c0_6] : memref<1x18x18x4xf32, #tpu.memory_space<vmem>>, vector<1x1x18x4xf32>
    tpu.vector_store %arg7[%c0_4, %c17, %c0_5, %c0_6], %2 {strides = array<i32>} : memref<1x18x18x4xf32, #tpu.memory_space<vmem>>, vector<1x1x18x4xf32>,
    %cst_7 = arith.constant 0.000000e+00 : f32
    %4 = vector.broadcast %cst_7 : f32 to vector<1x18x1x4xf32>
    %c0_8 = arith.constant 0 : index
    %c0_9 = arith.constant 0 : index
    %c0_10 = arith.constant 0 : index
    %c0_11 = arith.constant 0 : index
    %5 = vector.load %arg7[%c0_8, %c0_9, %c0_10, %c0_11] : memref<1x18x18x4xf32, #tpu.memory_space<vmem>>, vector<1x18x1x4xf32>
    tpu.vector_store %arg7[%c0_8, %c0_9, %c0_10, %c0_11], %4 {strides = array<i32>} : memref<1x18x18x4xf32, #tpu.memory_space<vmem>>, vector<1x18x1x4xf32>,
    %cst_12 = arith.constant 0.000000e+00 : f32
    %6 = vector.broadcast %cst_12 : f32 to vector<1x18x1x4xf32>
    %c0_13 = arith.constant 0 : index
    %c0_14 = arith.constant 0 : index
    %c17_15 = arith.constant 17 : index
    %c0_16 = arith.constant 0 : index
    %7 = vector.load %arg7[%c0_13, %c0_14, %c17_15, %c0_16] : memref<1x18x18x4xf32, #tpu.memory_space<vmem>>, vector<1x18x1x4xf32>
    tpu.vector_store %arg7[%c0_13, %c0_14, %c17_15, %c0_16], %6 {strides = array<i32>} : memref<1x18x18x4xf32, #tpu.memory_space<vmem>>, vector<1x18x1x4xf32>,
    %c0_17 = arith.constant 0 : index
    %c0_18 = arith.constant 0 : index
    %c0_19 = arith.constant 0 : index
    %8 = vector.load %arg1[%c0_17, %c0_18, %c0_19] : memref<1x256x4xbf16, #tpu.memory_space<vmem>>, vector<1x256x4xbf16>
    %9 = arith.extf %8 : vector<1x256x4xbf16> to vector<1x256x4xf32>
    %c0_20 = arith.constant 0 : index
    %c0_21 = arith.constant 0 : index
    %10 = vector.load %arg2[%c0_20, %c0_21] : memref<1x4xf32, #tpu.memory_space<vmem>>, vector<1x4xf32>
    %11 = vector.shape_cast %10 : vector<1x4xf32> to vector<1x1x4xf32>
    %12 = vector.broadcast %11 : vector<1x1x4xf32> to vector<1x256x4xf32>
    %13 = arith.mulf %9, %12 : vector<1x256x4xf32>
    %c0_22 = arith.constant 0 : index
    %c0_23 = arith.constant 0 : index
    %14 = vector.load %arg3[%c0_22, %c0_23] : memref<1x4xf32, #tpu.memory_space<vmem>>, vector<1x4xf32>
    %15 = vector.shape_cast %14 : vector<1x4xf32> to vector<1x1x4xf32>
    %16 = vector.broadcast %15 : vector<1x1x4xf32> to vector<1x256x4xf32>
    %17 = arith.addf %13, %16 : vector<1x256x4xf32>
    %cst_24 = arith.constant 0.000000e+00 : f32
    %18 = vector.broadcast %cst_24 : f32 to vector<1x256x4xf32>
    %19 = arith.maximumf %17, %18 : vector<1x256x4xf32>
    %20 = vector.shape_cast %19 : vector<1x256x4xf32> to vector<1x16x16x4xf32>
    %c0_25 = arith.constant 0 : index
    %c1 = arith.constant 1 : index
    %c1_26 = arith.constant 1 : index
    %c0_27 = arith.constant 0 : index
    %21 = vector.load %arg7[%c0_25, %c1, %c1_26, %c0_27] : memref<1x18x18x4xf32, #tpu.memory_space<vmem>>, vector<1x16x16x4xf32>
    tpu.vector_store %arg7[%c0_25, %c1, %c1_26, %c0_27], %20 {strides = array<i32>} : memref<1x18x18x4xf32, #tpu.memory_space<vmem>>, vector<1x16x16x4xf32>,
    %c0_28 = arith.constant 0 : index
    %c0_29 = arith.constant 0 : index
    %c0_30 = arith.constant 0 : index
    %c0_31 = arith.constant 0 : index
    %22 = vector.load %arg7[%c0_28, %c0_29, %c0_30, %c0_31] : memref<1x18x18x4xf32, #tpu.memory_space<vmem>>, vector<1x16x16x4xf32>
    %23 = vector.shape_cast %22 : vector<1x16x16x4xf32> to vector<256x4xf32>
    %24 = arith.truncf %23 : vector<256x4xf32> to vector<256x4xbf16>
    %c0_32 = arith.constant 0 : index
    %c0_33 = arith.constant 0 : index
    %c0_34 = arith.constant 0 : index
    %25 = vector.load %arg4[%c0_32, %c0_33, %c0_34] : memref<9x4x8xbf16, #tpu.memory_space<vmem>>, vector<1x4x8xbf16>
    %26 = vector.shape_cast %25 : vector<1x4x8xbf16> to vector<4x8xbf16>
    %cst_35 = arith.constant dense<0.000000e+00> : vector<256x8xf32>
    %27 = tpu.matmul %24, %26, %cst_35 {dimension_numbers = #tpu.dot_dimension_numbers<[1], [0], [0], [1], [0, 0, 1, 1], [], []>} : vector<256x4xbf16>, vector<4x8xbf16>, vector<256x8xf32> -> vector<256x8xf32>
    %c0_36 = arith.constant 0 : index
    %c0_37 = arith.constant 0 : index
    %c1_38 = arith.constant 1 : index
    %c0_39 = arith.constant 0 : index
    %28 = vector.load %arg7[%c0_36, %c0_37, %c1_38, %c0_39] : memref<1x18x18x4xf32, #tpu.memory_space<vmem>>, vector<1x16x16x4xf32>
    %29 = vector.shape_cast %28 : vector<1x16x16x4xf32> to vector<256x4xf32>
    %30 = arith.truncf %29 : vector<256x4xf32> to vector<256x4xbf16>
    %c1_40 = arith.constant 1 : index
    %c0_41 = arith.constant 0 : index
    %c0_42 = arith.constant 0 : index
    %31 = vector.load %arg4[%c1_40, %c0_41, %c0_42] : memref<9x4x8xbf16, #tpu.memory_space<vmem>>, vector<1x4x8xbf16>
    %32 = vector.shape_cast %31 : vector<1x4x8xbf16> to vector<4x8xbf16>
    %cst_43 = arith.constant dense<0.000000e+00> : vector<256x8xf32>
    %33 = tpu.matmul %30, %32, %cst_43 {dimension_numbers = #tpu.dot_dimension_numbers<[1], [0], [0], [1], [0, 0, 1, 1], [], []>} : vector<256x4xbf16>, vector<4x8xbf16>, vector<256x8xf32> -> vector<256x8xf32>
    %34 = arith.addf %27, %33 : vector<256x8xf32>
    %c0_44 = arith.constant 0 : index
    %c0_45 = arith.constant 0 : index
    %c2 = arith.constant 2 : index
    %c0_46 = arith.constant 0 : index
    %35 = vector.load %arg7[%c0_44, %c0_45, %c2, %c0_46] : memref<1x18x18x4xf32, #tpu.memory_space<vmem>>, vector<1x16x16x4xf32>
    %36 = vector.shape_cast %35 : vector<1x16x16x4xf32> to vector<256x4xf32>
    %37 = arith.truncf %36 : vector<256x4xf32> to vector<256x4xbf16>
    %c2_47 = arith.constant 2 : index
    %c0_48 = arith.constant 0 : index
    %c0_49 = arith.constant 0 : index
    %38 = vector.load %arg4[%c2_47, %c0_48, %c0_49] : memref<9x4x8xbf16, #tpu.memory_space<vmem>>, vector<1x4x8xbf16>
    %39 = vector.shape_cast %38 : vector<1x4x8xbf16> to vector<4x8xbf16>
    %cst_50 = arith.constant dense<0.000000e+00> : vector<256x8xf32>
    %40 = tpu.matmul %37, %39, %cst_50 {dimension_numbers = #tpu.dot_dimension_numbers<[1], [0], [0], [1], [0, 0, 1, 1], [], []>} : vector<256x4xbf16>, vector<4x8xbf16>, vector<256x8xf32> -> vector<256x8xf32>
    %41 = arith.addf %34, %40 : vector<256x8xf32>
    %c0_51 = arith.constant 0 : index
    %c1_52 = arith.constant 1 : index
    %c0_53 = arith.constant 0 : index
    %c0_54 = arith.constant 0 : index
    %42 = vector.load %arg7[%c0_51, %c1_52, %c0_53, %c0_54] : memref<1x18x18x4xf32, #tpu.memory_space<vmem>>, vector<1x16x16x4xf32>
    %43 = vector.shape_cast %42 : vector<1x16x16x4xf32> to vector<256x4xf32>
    %44 = arith.truncf %43 : vector<256x4xf32> to vector<256x4xbf16>
    %c3 = arith.constant 3 : index
    %c0_55 = arith.constant 0 : index
    %c0_56 = arith.constant 0 : index
    %45 = vector.load %arg4[%c3, %c0_55, %c0_56] : memref<9x4x8xbf16, #tpu.memory_space<vmem>>, vector<1x4x8xbf16>
    %46 = vector.shape_cast %45 : vector<1x4x8xbf16> to vector<4x8xbf16>
    %cst_57 = arith.constant dense<0.000000e+00> : vector<256x8xf32>
    %47 = tpu.matmul %44, %46, %cst_57 {dimension_numbers = #tpu.dot_dimension_numbers<[1], [0], [0], [1], [0, 0, 1, 1], [], []>} : vector<256x4xbf16>, vector<4x8xbf16>, vector<256x8xf32> -> vector<256x8xf32>
    %48 = arith.addf %41, %47 : vector<256x8xf32>
    %c0_58 = arith.constant 0 : index
    %c1_59 = arith.constant 1 : index
    %c1_60 = arith.constant 1 : index
    %c0_61 = arith.constant 0 : index
    %49 = vector.load %arg7[%c0_58, %c1_59, %c1_60, %c0_61] : memref<1x18x18x4xf32, #tpu.memory_space<vmem>>, vector<1x16x16x4xf32>
    %50 = vector.shape_cast %49 : vector<1x16x16x4xf32> to vector<256x4xf32>
    %51 = arith.truncf %50 : vector<256x4xf32> to vector<256x4xbf16>
    %c4 = arith.constant 4 : index
    %c0_62 = arith.constant 0 : index
    %c0_63 = arith.constant 0 : index
    %52 = vector.load %arg4[%c4, %c0_62, %c0_63] : memref<9x4x8xbf16, #tpu.memory_space<vmem>>, vector<1x4x8xbf16>
    %53 = vector.shape_cast %52 : vector<1x4x8xbf16> to vector<4x8xbf16>
    %cst_64 = arith.constant dense<0.000000e+00> : vector<256x8xf32>
    %54 = tpu.matmul %51, %53, %cst_64 {dimension_numbers = #tpu.dot_dimension_numbers<[1], [0], [0], [1], [0, 0, 1, 1], [], []>} : vector<256x4xbf16>, vector<4x8xbf16>, vector<256x8xf32> -> vector<256x8xf32>
    %55 = arith.addf %48, %54 : vector<256x8xf32>
    %c0_65 = arith.constant 0 : index
    %c1_66 = arith.constant 1 : index
    %c2_67 = arith.constant 2 : index
    %c0_68 = arith.constant 0 : index
    %56 = vector.load %arg7[%c0_65, %c1_66, %c2_67, %c0_68] : memref<1x18x18x4xf32, #tpu.memory_space<vmem>>, vector<1x16x16x4xf32>
    %57 = vector.shape_cast %56 : vector<1x16x16x4xf32> to vector<256x4xf32>
    %58 = arith.truncf %57 : vector<256x4xf32> to vector<256x4xbf16>
    %c5 = arith.constant 5 : index
    %c0_69 = arith.constant 0 : index
    %c0_70 = arith.constant 0 : index
    %59 = vector.load %arg4[%c5, %c0_69, %c0_70] : memref<9x4x8xbf16, #tpu.memory_space<vmem>>, vector<1x4x8xbf16>
    %60 = vector.shape_cast %59 : vector<1x4x8xbf16> to vector<4x8xbf16>
    %cst_71 = arith.constant dense<0.000000e+00> : vector<256x8xf32>
    %61 = tpu.matmul %58, %60, %cst_71 {dimension_numbers = #tpu.dot_dimension_numbers<[1], [0], [0], [1], [0, 0, 1, 1], [], []>} : vector<256x4xbf16>, vector<4x8xbf16>, vector<256x8xf32> -> vector<256x8xf32>
    %62 = arith.addf %55, %61 : vector<256x8xf32>
    %c0_72 = arith.constant 0 : index
    %c2_73 = arith.constant 2 : index
    %c0_74 = arith.constant 0 : index
    %c0_75 = arith.constant 0 : index
    %63 = vector.load %arg7[%c0_72, %c2_73, %c0_74, %c0_75] : memref<1x18x18x4xf32, #tpu.memory_space<vmem>>, vector<1x16x16x4xf32>
    %64 = vector.shape_cast %63 : vector<1x16x16x4xf32> to vector<256x4xf32>
    %65 = arith.truncf %64 : vector<256x4xf32> to vector<256x4xbf16>
    %c6 = arith.constant 6 : index
    %c0_76 = arith.constant 0 : index
    %c0_77 = arith.constant 0 : index
    %66 = vector.load %arg4[%c6, %c0_76, %c0_77] : memref<9x4x8xbf16, #tpu.memory_space<vmem>>, vector<1x4x8xbf16>
    %67 = vector.shape_cast %66 : vector<1x4x8xbf16> to vector<4x8xbf16>
    %cst_78 = arith.constant dense<0.000000e+00> : vector<256x8xf32>
    %68 = tpu.matmul %65, %67, %cst_78 {dimension_numbers = #tpu.dot_dimension_numbers<[1], [0], [0], [1], [0, 0, 1, 1], [], []>} : vector<256x4xbf16>, vector<4x8xbf16>, vector<256x8xf32> -> vector<256x8xf32>
    %69 = arith.addf %62, %68 : vector<256x8xf32>
    %c0_79 = arith.constant 0 : index
    %c2_80 = arith.constant 2 : index
    %c1_81 = arith.constant 1 : index
    %c0_82 = arith.constant 0 : index
    %70 = vector.load %arg7[%c0_79, %c2_80, %c1_81, %c0_82] : memref<1x18x18x4xf32, #tpu.memory_space<vmem>>, vector<1x16x16x4xf32>
    %71 = vector.shape_cast %70 : vector<1x16x16x4xf32> to vector<256x4xf32>
    %72 = arith.truncf %71 : vector<256x4xf32> to vector<256x4xbf16>
    %c7 = arith.constant 7 : index
    %c0_83 = arith.constant 0 : index
    %c0_84 = arith.constant 0 : index
    %73 = vector.load %arg4[%c7, %c0_83, %c0_84] : memref<9x4x8xbf16, #tpu.memory_space<vmem>>, vector<1x4x8xbf16>
    %74 = vector.shape_cast %73 : vector<1x4x8xbf16> to vector<4x8xbf16>
    %cst_85 = arith.constant dense<0.000000e+00> : vector<256x8xf32>
    %75 = tpu.matmul %72, %74, %cst_85 {dimension_numbers = #tpu.dot_dimension_numbers<[1], [0], [0], [1], [0, 0, 1, 1], [], []>} : vector<256x4xbf16>, vector<4x8xbf16>, vector<256x8xf32> -> vector<256x8xf32>
    %76 = arith.addf %69, %75 : vector<256x8xf32>
    %c0_86 = arith.constant 0 : index
    %c2_87 = arith.constant 2 : index
    %c2_88 = arith.constant 2 : index
    %c0_89 = arith.constant 0 : index
    %77 = vector.load %arg7[%c0_86, %c2_87, %c2_88, %c0_89] : memref<1x18x18x4xf32, #tpu.memory_space<vmem>>, vector<1x16x16x4xf32>
    %78 = vector.shape_cast %77 : vector<1x16x16x4xf32> to vector<256x4xf32>
    %79 = arith.truncf %78 : vector<256x4xf32> to vector<256x4xbf16>
    %c8 = arith.constant 8 : index
    %c0_90 = arith.constant 0 : index
    %c0_91 = arith.constant 0 : index
    %80 = vector.load %arg4[%c8, %c0_90, %c0_91] : memref<9x4x8xbf16, #tpu.memory_space<vmem>>, vector<1x4x8xbf16>
    %81 = vector.shape_cast %80 : vector<1x4x8xbf16> to vector<4x8xbf16>
    %cst_92 = arith.constant dense<0.000000e+00> : vector<256x8xf32>
    %82 = tpu.matmul %79, %81, %cst_92 {dimension_numbers = #tpu.dot_dimension_numbers<[1], [0], [0], [1], [0, 0, 1, 1], [], []>} : vector<256x4xbf16>, vector<4x8xbf16>, vector<256x8xf32> -> vector<256x8xf32>
    %83 = arith.addf %76, %82 : vector<256x8xf32>
    %cst_93 = arith.constant dense<0.000000e+00> : vector<8xf32>
    %84 = vector.multi_reduction <add>, %83, %cst_93 [0] : vector<256x8xf32> to vector<8xf32>
    %85 = vector.shape_cast %84 : vector<8xf32> to vector<1x8xf32>
    %c0_94 = arith.constant 0 : index
    %c0_95 = arith.constant 0 : index
    %c0_96 = arith.constant 0 : index
    %86 = vector.load %arg6[%c0_94, %c0_95, %c0_96] : memref<1x2x8xf32, #tpu.memory_space<vmem>>, vector<1x1x8xf32>
    %87 = vector.shape_cast %86 : vector<1x1x8xf32> to vector<1x8xf32>
    %88 = vector.shape_cast %85 : vector<1x8xf32> to vector<1x1x8xf32>
    tpu.vector_store %arg6[%c0_94, %c0_95, %c0_96], %88 {strides = array<i32>} : memref<1x2x8xf32, #tpu.memory_space<vmem>>, vector<1x1x8xf32>,
    %89 = arith.mulf %83, %83 : vector<256x8xf32>
    %cst_97 = arith.constant dense<0.000000e+00> : vector<8xf32>
    %90 = vector.multi_reduction <add>, %89, %cst_97 [0] : vector<256x8xf32> to vector<8xf32>
    %91 = vector.shape_cast %90 : vector<8xf32> to vector<1x8xf32>
    %c0_98 = arith.constant 0 : index
    %c1_99 = arith.constant 1 : index
    %c0_100 = arith.constant 0 : index
    %92 = vector.load %arg6[%c0_98, %c1_99, %c0_100] : memref<1x2x8xf32, #tpu.memory_space<vmem>>, vector<1x1x8xf32>
    %93 = vector.shape_cast %92 : vector<1x1x8xf32> to vector<1x8xf32>
    %94 = vector.shape_cast %91 : vector<1x8xf32> to vector<1x1x8xf32>
    tpu.vector_store %arg6[%c0_98, %c1_99, %c0_100], %94 {strides = array<i32>} : memref<1x2x8xf32, #tpu.memory_space<vmem>>, vector<1x1x8xf32>,
    %95 = vector.shape_cast %83 : vector<256x8xf32> to vector<1x256x8xf32>
    %96 = arith.truncf %95 : vector<1x256x8xf32> to vector<1x256x8xbf16>
    %c0_101 = arith.constant 0 : index
    %c0_102 = arith.constant 0 : index
    %c0_103 = arith.constant 0 : index
    %97 = vector.load %arg5[%c0_101, %c0_102, %c0_103] : memref<1x256x8xbf16, #tpu.memory_space<vmem>>, vector<1x256x8xbf16>
    tpu.vector_store %arg5[%c0_101, %c0_102, %c0_103], %96 {strides = array<i32>} : memref<1x256x8xbf16, #tpu.memory_space<vmem>>, vector<1x256x8xbf16>,
    return
  }
  func.func @transform_0(%arg0: i32) -> (i32, i32, i32) {
    %c0_i32 = arith.constant 0 : i32
    %c0_i32_0 = arith.constant 0 : i32
    %c0_i32_1 = arith.constant 0 : i32
    return %arg0, %c0_i32, %c0_i32_0 : i32, i32, i32
  }
  func.func @transform_1(%arg0: i32) -> (i32, i32) {
    %c0_i32 = arith.constant 0 : i32
    %c0_i32_0 = arith.constant 0 : i32
    %c0_i32_1 = arith.constant 0 : i32
    return %c0_i32, %c0_i32_0 : i32, i32
  }
  func.func @transform_2(%arg0: i32) -> (i32, i32) {
    %c0_i32 = arith.constant 0 : i32
    %c0_i32_0 = arith.constant 0 : i32
    %c0_i32_1 = arith.constant 0 : i32
    return %c0_i32, %c0_i32_0 : i32, i32
  }
  func.func @transform_3(%arg0: i32) -> (i32, i32, i32) {
    %c0_i32 = arith.constant 0 : i32
    %c0_i32_0 = arith.constant 0 : i32
    %c0_i32_1 = arith.constant 0 : i32
    %c0_i32_2 = arith.constant 0 : i32
    return %c0_i32, %c0_i32_0, %c0_i32_1 : i32, i32, i32
  }
  func.func @transform_4(%arg0: i32) -> (i32, i32, i32) {
    %c0_i32 = arith.constant 0 : i32
    %c0_i32_0 = arith.constant 0 : i32
    %c0_i32_1 = arith.constant 0 : i32
    return %arg0, %c0_i32, %c0_i32_0 : i32, i32, i32
  }
  func.func @transform_5(%arg0: i32) -> (i32, i32, i32) {
    %c0_i32 = arith.constant 0 : i32
    %c0_i32_0 = arith.constant 0 : i32
    %c0_i32_1 = arith.constant 0 : i32
    return %arg0, %c0_i32, %c0_i32_0 : i32, i32, i32
  }
}

module attributes {stable_mosaic.version = 11 : i64} {
  func.func @bnrelu_conv3x3_kernel(%arg0: i32, %arg1: memref<1x256x8xbf16, #tpu.memory_space<vmem>>, %arg2: memref<1x8xf32, #tpu.memory_space<vmem>>, %arg3: memref<1x8xf32, #tpu.memory_space<vmem>>, %arg4: memref<9x8x8xbf16, #tpu.memory_space<vmem>>, %arg5: memref<1x256x8xbf16, #tpu.memory_space<vmem>>, %arg6: memref<1x2x8xf32, #tpu.memory_space<vmem>>, %arg7: memref<1x18x18x8xf32, #tpu.memory_space<vmem>>) attributes {dimension_semantics = [#tpu.dimension_semantics<parallel>], iteration_bounds = array<i64: 2>, scalar_prefetch = 0 : i64, scratch_operands = 1 : i64, tpu.core_type = #tpu.core_type<tc>, window_params = [{transform_indices = @transform_0, window_bounds = array<i64: 1, 256, 8>}, {pipeline_mode = #tpu.pipeline_mode<synchronous>, transform_indices = @transform_1, window_bounds = array<i64: 1, 8>}, {pipeline_mode = #tpu.pipeline_mode<synchronous>, transform_indices = @transform_2, window_bounds = array<i64: 1, 8>}, {pipeline_mode = #tpu.pipeline_mode<synchronous>, transform_indices = @transform_3, window_bounds = array<i64: 9, 8, 8>}, {transform_indices = @transform_4, window_bounds = array<i64: 1, 256, 8>}, {transform_indices = @transform_5, window_bounds = array<i64: 1, 2, 8>}]} {
    %cst = arith.constant 0.000000e+00 : f32
    %0 = vector.broadcast %cst : f32 to vector<1x1x18x8xf32>
    %c0 = arith.constant 0 : index
    %c0_0 = arith.constant 0 : index
    %c0_1 = arith.constant 0 : index
    %c0_2 = arith.constant 0 : index
    %1 = vector.load %arg7[%c0, %c0_0, %c0_1, %c0_2] : memref<1x18x18x8xf32, #tpu.memory_space<vmem>>, vector<1x1x18x8xf32>
    tpu.vector_store %arg7[%c0, %c0_0, %c0_1, %c0_2], %0 {strides = array<i32>} : memref<1x18x18x8xf32, #tpu.memory_space<vmem>>, vector<1x1x18x8xf32>,
    %cst_3 = arith.constant 0.000000e+00 : f32
    %2 = vector.broadcast %cst_3 : f32 to vector<1x1x18x8xf32>
    %c0_4 = arith.constant 0 : index
    %c17 = arith.constant 17 : index
    %c0_5 = arith.constant 0 : index
    %c0_6 = arith.constant 0 : index
    %3 = vector.load %arg7[%c0_4, %c17, %c0_5, %c0_6] : memref<1x18x18x8xf32, #tpu.memory_space<vmem>>, vector<1x1x18x8xf32>
    tpu.vector_store %arg7[%c0_4, %c17, %c0_5, %c0_6], %2 {strides = array<i32>} : memref<1x18x18x8xf32, #tpu.memory_space<vmem>>, vector<1x1x18x8xf32>,
    %cst_7 = arith.constant 0.000000e+00 : f32
    %4 = vector.broadcast %cst_7 : f32 to vector<1x18x1x8xf32>
    %c0_8 = arith.constant 0 : index
    %c0_9 = arith.constant 0 : index
    %c0_10 = arith.constant 0 : index
    %c0_11 = arith.constant 0 : index
    %5 = vector.load %arg7[%c0_8, %c0_9, %c0_10, %c0_11] : memref<1x18x18x8xf32, #tpu.memory_space<vmem>>, vector<1x18x1x8xf32>
    tpu.vector_store %arg7[%c0_8, %c0_9, %c0_10, %c0_11], %4 {strides = array<i32>} : memref<1x18x18x8xf32, #tpu.memory_space<vmem>>, vector<1x18x1x8xf32>,
    %cst_12 = arith.constant 0.000000e+00 : f32
    %6 = vector.broadcast %cst_12 : f32 to vector<1x18x1x8xf32>
    %c0_13 = arith.constant 0 : index
    %c0_14 = arith.constant 0 : index
    %c17_15 = arith.constant 17 : index
    %c0_16 = arith.constant 0 : index
    %7 = vector.load %arg7[%c0_13, %c0_14, %c17_15, %c0_16] : memref<1x18x18x8xf32, #tpu.memory_space<vmem>>, vector<1x18x1x8xf32>
    tpu.vector_store %arg7[%c0_13, %c0_14, %c17_15, %c0_16], %6 {strides = array<i32>} : memref<1x18x18x8xf32, #tpu.memory_space<vmem>>, vector<1x18x1x8xf32>,
    %c0_17 = arith.constant 0 : index
    %c0_18 = arith.constant 0 : index
    %c0_19 = arith.constant 0 : index
    %8 = vector.load %arg1[%c0_17, %c0_18, %c0_19] : memref<1x256x8xbf16, #tpu.memory_space<vmem>>, vector<1x256x8xbf16>
    %9 = arith.extf %8 : vector<1x256x8xbf16> to vector<1x256x8xf32>
    %c0_20 = arith.constant 0 : index
    %c0_21 = arith.constant 0 : index
    %10 = vector.load %arg2[%c0_20, %c0_21] : memref<1x8xf32, #tpu.memory_space<vmem>>, vector<1x8xf32>
    %11 = vector.shape_cast %10 : vector<1x8xf32> to vector<1x1x8xf32>
    %12 = vector.broadcast %11 : vector<1x1x8xf32> to vector<1x256x8xf32>
    %13 = arith.mulf %9, %12 : vector<1x256x8xf32>
    %c0_22 = arith.constant 0 : index
    %c0_23 = arith.constant 0 : index
    %14 = vector.load %arg3[%c0_22, %c0_23] : memref<1x8xf32, #tpu.memory_space<vmem>>, vector<1x8xf32>
    %15 = vector.shape_cast %14 : vector<1x8xf32> to vector<1x1x8xf32>
    %16 = vector.broadcast %15 : vector<1x1x8xf32> to vector<1x256x8xf32>
    %17 = arith.addf %13, %16 : vector<1x256x8xf32>
    %cst_24 = arith.constant 0.000000e+00 : f32
    %18 = vector.broadcast %cst_24 : f32 to vector<1x256x8xf32>
    %19 = arith.maximumf %17, %18 : vector<1x256x8xf32>
    %20 = vector.shape_cast %19 : vector<1x256x8xf32> to vector<1x16x16x8xf32>
    %c0_25 = arith.constant 0 : index
    %c1 = arith.constant 1 : index
    %c1_26 = arith.constant 1 : index
    %c0_27 = arith.constant 0 : index
    %21 = vector.load %arg7[%c0_25, %c1, %c1_26, %c0_27] : memref<1x18x18x8xf32, #tpu.memory_space<vmem>>, vector<1x16x16x8xf32>
    tpu.vector_store %arg7[%c0_25, %c1, %c1_26, %c0_27], %20 {strides = array<i32>} : memref<1x18x18x8xf32, #tpu.memory_space<vmem>>, vector<1x16x16x8xf32>,
    %c0_28 = arith.constant 0 : index
    %c0_29 = arith.constant 0 : index
    %c0_30 = arith.constant 0 : index
    %c0_31 = arith.constant 0 : index
    %22 = vector.load %arg7[%c0_28, %c0_29, %c0_30, %c0_31] : memref<1x18x18x8xf32, #tpu.memory_space<vmem>>, vector<1x16x16x8xf32>
    %23 = vector.shape_cast %22 : vector<1x16x16x8xf32> to vector<256x8xf32>
    %24 = arith.truncf %23 : vector<256x8xf32> to vector<256x8xbf16>
    %c0_32 = arith.constant 0 : index
    %c0_33 = arith.constant 0 : index
    %c0_34 = arith.constant 0 : index
    %25 = vector.load %arg4[%c0_32, %c0_33, %c0_34] : memref<9x8x8xbf16, #tpu.memory_space<vmem>>, vector<1x8x8xbf16>
    %26 = vector.shape_cast %25 : vector<1x8x8xbf16> to vector<8x8xbf16>
    %cst_35 = arith.constant dense<0.000000e+00> : vector<256x8xf32>
    %27 = tpu.matmul %24, %26, %cst_35 {dimension_numbers = #tpu.dot_dimension_numbers<[1], [0], [0], [1], [0, 0, 1, 1], [], []>} : vector<256x8xbf16>, vector<8x8xbf16>, vector<256x8xf32> -> vector<256x8xf32>
    %c0_36 = arith.constant 0 : index
    %c0_37 = arith.constant 0 : index
    %c1_38 = arith.constant 1 : index
    %c0_39 = arith.constant 0 : index
    %28 = vector.load %arg7[%c0_36, %c0_37, %c1_38, %c0_39] : memref<1x18x18x8xf32, #tpu.memory_space<vmem>>, vector<1x16x16x8xf32>
    %29 = vector.shape_cast %28 : vector<1x16x16x8xf32> to vector<256x8xf32>
    %30 = arith.truncf %29 : vector<256x8xf32> to vector<256x8xbf16>
    %c1_40 = arith.constant 1 : index
    %c0_41 = arith.constant 0 : index
    %c0_42 = arith.constant 0 : index
    %31 = vector.load %arg4[%c1_40, %c0_41, %c0_42] : memref<9x8x8xbf16, #tpu.memory_space<vmem>>, vector<1x8x8xbf16>
    %32 = vector.shape_cast %31 : vector<1x8x8xbf16> to vector<8x8xbf16>
    %cst_43 = arith.constant dense<0.000000e+00> : vector<256x8xf32>
    %33 = tpu.matmul %30, %32, %cst_43 {dimension_numbers = #tpu.dot_dimension_numbers<[1], [0], [0], [1], [0, 0, 1, 1], [], []>} : vector<256x8xbf16>, vector<8x8xbf16>, vector<256x8xf32> -> vector<256x8xf32>
    %34 = arith.addf %27, %33 : vector<256x8xf32>
    %c0_44 = arith.constant 0 : index
    %c0_45 = arith.constant 0 : index
    %c2 = arith.constant 2 : index
    %c0_46 = arith.constant 0 : index
    %35 = vector.load %arg7[%c0_44, %c0_45, %c2, %c0_46] : memref<1x18x18x8xf32, #tpu.memory_space<vmem>>, vector<1x16x16x8xf32>
    %36 = vector.shape_cast %35 : vector<1x16x16x8xf32> to vector<256x8xf32>
    %37 = arith.truncf %36 : vector<256x8xf32> to vector<256x8xbf16>
    %c2_47 = arith.constant 2 : index
    %c0_48 = arith.constant 0 : index
    %c0_49 = arith.constant 0 : index
    %38 = vector.load %arg4[%c2_47, %c0_48, %c0_49] : memref<9x8x8xbf16, #tpu.memory_space<vmem>>, vector<1x8x8xbf16>
    %39 = vector.shape_cast %38 : vector<1x8x8xbf16> to vector<8x8xbf16>
    %cst_50 = arith.constant dense<0.000000e+00> : vector<256x8xf32>
    %40 = tpu.matmul %37, %39, %cst_50 {dimension_numbers = #tpu.dot_dimension_numbers<[1], [0], [0], [1], [0, 0, 1, 1], [], []>} : vector<256x8xbf16>, vector<8x8xbf16>, vector<256x8xf32> -> vector<256x8xf32>
    %41 = arith.addf %34, %40 : vector<256x8xf32>
    %c0_51 = arith.constant 0 : index
    %c1_52 = arith.constant 1 : index
    %c0_53 = arith.constant 0 : index
    %c0_54 = arith.constant 0 : index
    %42 = vector.load %arg7[%c0_51, %c1_52, %c0_53, %c0_54] : memref<1x18x18x8xf32, #tpu.memory_space<vmem>>, vector<1x16x16x8xf32>
    %43 = vector.shape_cast %42 : vector<1x16x16x8xf32> to vector<256x8xf32>
    %44 = arith.truncf %43 : vector<256x8xf32> to vector<256x8xbf16>
    %c3 = arith.constant 3 : index
    %c0_55 = arith.constant 0 : index
    %c0_56 = arith.constant 0 : index
    %45 = vector.load %arg4[%c3, %c0_55, %c0_56] : memref<9x8x8xbf16, #tpu.memory_space<vmem>>, vector<1x8x8xbf16>
    %46 = vector.shape_cast %45 : vector<1x8x8xbf16> to vector<8x8xbf16>
    %cst_57 = arith.constant dense<0.000000e+00> : vector<256x8xf32>
    %47 = tpu.matmul %44, %46, %cst_57 {dimension_numbers = #tpu.dot_dimension_numbers<[1], [0], [0], [1], [0, 0, 1, 1], [], []>} : vector<256x8xbf16>, vector<8x8xbf16>, vector<256x8xf32> -> vector<256x8xf32>
    %48 = arith.addf %41, %47 : vector<256x8xf32>
    %c0_58 = arith.constant 0 : index
    %c1_59 = arith.constant 1 : index
    %c1_60 = arith.constant 1 : index
    %c0_61 = arith.constant 0 : index
    %49 = vector.load %arg7[%c0_58, %c1_59, %c1_60, %c0_61] : memref<1x18x18x8xf32, #tpu.memory_space<vmem>>, vector<1x16x16x8xf32>
    %50 = vector.shape_cast %49 : vector<1x16x16x8xf32> to vector<256x8xf32>
    %51 = arith.truncf %50 : vector<256x8xf32> to vector<256x8xbf16>
    %c4 = arith.constant 4 : index
    %c0_62 = arith.constant 0 : index
    %c0_63 = arith.constant 0 : index
    %52 = vector.load %arg4[%c4, %c0_62, %c0_63] : memref<9x8x8xbf16, #tpu.memory_space<vmem>>, vector<1x8x8xbf16>
    %53 = vector.shape_cast %52 : vector<1x8x8xbf16> to vector<8x8xbf16>
    %cst_64 = arith.constant dense<0.000000e+00> : vector<256x8xf32>
    %54 = tpu.matmul %51, %53, %cst_64 {dimension_numbers = #tpu.dot_dimension_numbers<[1], [0], [0], [1], [0, 0, 1, 1], [], []>} : vector<256x8xbf16>, vector<8x8xbf16>, vector<256x8xf32> -> vector<256x8xf32>
    %55 = arith.addf %48, %54 : vector<256x8xf32>
    %c0_65 = arith.constant 0 : index
    %c1_66 = arith.constant 1 : index
    %c2_67 = arith.constant 2 : index
    %c0_68 = arith.constant 0 : index
    %56 = vector.load %arg7[%c0_65, %c1_66, %c2_67, %c0_68] : memref<1x18x18x8xf32, #tpu.memory_space<vmem>>, vector<1x16x16x8xf32>
    %57 = vector.shape_cast %56 : vector<1x16x16x8xf32> to vector<256x8xf32>
    %58 = arith.truncf %57 : vector<256x8xf32> to vector<256x8xbf16>
    %c5 = arith.constant 5 : index
    %c0_69 = arith.constant 0 : index
    %c0_70 = arith.constant 0 : index
    %59 = vector.load %arg4[%c5, %c0_69, %c0_70] : memref<9x8x8xbf16, #tpu.memory_space<vmem>>, vector<1x8x8xbf16>
    %60 = vector.shape_cast %59 : vector<1x8x8xbf16> to vector<8x8xbf16>
    %cst_71 = arith.constant dense<0.000000e+00> : vector<256x8xf32>
    %61 = tpu.matmul %58, %60, %cst_71 {dimension_numbers = #tpu.dot_dimension_numbers<[1], [0], [0], [1], [0, 0, 1, 1], [], []>} : vector<256x8xbf16>, vector<8x8xbf16>, vector<256x8xf32> -> vector<256x8xf32>
    %62 = arith.addf %55, %61 : vector<256x8xf32>
    %c0_72 = arith.constant 0 : index
    %c2_73 = arith.constant 2 : index
    %c0_74 = arith.constant 0 : index
    %c0_75 = arith.constant 0 : index
    %63 = vector.load %arg7[%c0_72, %c2_73, %c0_74, %c0_75] : memref<1x18x18x8xf32, #tpu.memory_space<vmem>>, vector<1x16x16x8xf32>
    %64 = vector.shape_cast %63 : vector<1x16x16x8xf32> to vector<256x8xf32>
    %65 = arith.truncf %64 : vector<256x8xf32> to vector<256x8xbf16>
    %c6 = arith.constant 6 : index
    %c0_76 = arith.constant 0 : index
    %c0_77 = arith.constant 0 : index
    %66 = vector.load %arg4[%c6, %c0_76, %c0_77] : memref<9x8x8xbf16, #tpu.memory_space<vmem>>, vector<1x8x8xbf16>
    %67 = vector.shape_cast %66 : vector<1x8x8xbf16> to vector<8x8xbf16>
    %cst_78 = arith.constant dense<0.000000e+00> : vector<256x8xf32>
    %68 = tpu.matmul %65, %67, %cst_78 {dimension_numbers = #tpu.dot_dimension_numbers<[1], [0], [0], [1], [0, 0, 1, 1], [], []>} : vector<256x8xbf16>, vector<8x8xbf16>, vector<256x8xf32> -> vector<256x8xf32>
    %69 = arith.addf %62, %68 : vector<256x8xf32>
    %c0_79 = arith.constant 0 : index
    %c2_80 = arith.constant 2 : index
    %c1_81 = arith.constant 1 : index
    %c0_82 = arith.constant 0 : index
    %70 = vector.load %arg7[%c0_79, %c2_80, %c1_81, %c0_82] : memref<1x18x18x8xf32, #tpu.memory_space<vmem>>, vector<1x16x16x8xf32>
    %71 = vector.shape_cast %70 : vector<1x16x16x8xf32> to vector<256x8xf32>
    %72 = arith.truncf %71 : vector<256x8xf32> to vector<256x8xbf16>
    %c7 = arith.constant 7 : index
    %c0_83 = arith.constant 0 : index
    %c0_84 = arith.constant 0 : index
    %73 = vector.load %arg4[%c7, %c0_83, %c0_84] : memref<9x8x8xbf16, #tpu.memory_space<vmem>>, vector<1x8x8xbf16>
    %74 = vector.shape_cast %73 : vector<1x8x8xbf16> to vector<8x8xbf16>
    %cst_85 = arith.constant dense<0.000000e+00> : vector<256x8xf32>
    %75 = tpu.matmul %72, %74, %cst_85 {dimension_numbers = #tpu.dot_dimension_numbers<[1], [0], [0], [1], [0, 0, 1, 1], [], []>} : vector<256x8xbf16>, vector<8x8xbf16>, vector<256x8xf32> -> vector<256x8xf32>
    %76 = arith.addf %69, %75 : vector<256x8xf32>
    %c0_86 = arith.constant 0 : index
    %c2_87 = arith.constant 2 : index
    %c2_88 = arith.constant 2 : index
    %c0_89 = arith.constant 0 : index
    %77 = vector.load %arg7[%c0_86, %c2_87, %c2_88, %c0_89] : memref<1x18x18x8xf32, #tpu.memory_space<vmem>>, vector<1x16x16x8xf32>
    %78 = vector.shape_cast %77 : vector<1x16x16x8xf32> to vector<256x8xf32>
    %79 = arith.truncf %78 : vector<256x8xf32> to vector<256x8xbf16>
    %c8 = arith.constant 8 : index
    %c0_90 = arith.constant 0 : index
    %c0_91 = arith.constant 0 : index
    %80 = vector.load %arg4[%c8, %c0_90, %c0_91] : memref<9x8x8xbf16, #tpu.memory_space<vmem>>, vector<1x8x8xbf16>
    %81 = vector.shape_cast %80 : vector<1x8x8xbf16> to vector<8x8xbf16>
    %cst_92 = arith.constant dense<0.000000e+00> : vector<256x8xf32>
    %82 = tpu.matmul %79, %81, %cst_92 {dimension_numbers = #tpu.dot_dimension_numbers<[1], [0], [0], [1], [0, 0, 1, 1], [], []>} : vector<256x8xbf16>, vector<8x8xbf16>, vector<256x8xf32> -> vector<256x8xf32>
    %83 = arith.addf %76, %82 : vector<256x8xf32>
    %cst_93 = arith.constant dense<0.000000e+00> : vector<8xf32>
    %84 = vector.multi_reduction <add>, %83, %cst_93 [0] : vector<256x8xf32> to vector<8xf32>
    %85 = vector.shape_cast %84 : vector<8xf32> to vector<1x8xf32>
    %c0_94 = arith.constant 0 : index
    %c0_95 = arith.constant 0 : index
    %c0_96 = arith.constant 0 : index
    %86 = vector.load %arg6[%c0_94, %c0_95, %c0_96] : memref<1x2x8xf32, #tpu.memory_space<vmem>>, vector<1x1x8xf32>
    %87 = vector.shape_cast %86 : vector<1x1x8xf32> to vector<1x8xf32>
    %88 = vector.shape_cast %85 : vector<1x8xf32> to vector<1x1x8xf32>
    tpu.vector_store %arg6[%c0_94, %c0_95, %c0_96], %88 {strides = array<i32>} : memref<1x2x8xf32, #tpu.memory_space<vmem>>, vector<1x1x8xf32>,
    %89 = arith.mulf %83, %83 : vector<256x8xf32>
    %cst_97 = arith.constant dense<0.000000e+00> : vector<8xf32>
    %90 = vector.multi_reduction <add>, %89, %cst_97 [0] : vector<256x8xf32> to vector<8xf32>
    %91 = vector.shape_cast %90 : vector<8xf32> to vector<1x8xf32>
    %c0_98 = arith.constant 0 : index
    %c1_99 = arith.constant 1 : index
    %c0_100 = arith.constant 0 : index
    %92 = vector.load %arg6[%c0_98, %c1_99, %c0_100] : memref<1x2x8xf32, #tpu.memory_space<vmem>>, vector<1x1x8xf32>
    %93 = vector.shape_cast %92 : vector<1x1x8xf32> to vector<1x8xf32>
    %94 = vector.shape_cast %91 : vector<1x8xf32> to vector<1x1x8xf32>
    tpu.vector_store %arg6[%c0_98, %c1_99, %c0_100], %94 {strides = array<i32>} : memref<1x2x8xf32, #tpu.memory_space<vmem>>, vector<1x1x8xf32>,
    %95 = vector.shape_cast %83 : vector<256x8xf32> to vector<1x256x8xf32>
    %96 = arith.truncf %95 : vector<1x256x8xf32> to vector<1x256x8xbf16>
    %c0_101 = arith.constant 0 : index
    %c0_102 = arith.constant 0 : index
    %c0_103 = arith.constant 0 : index
    %97 = vector.load %arg5[%c0_101, %c0_102, %c0_103] : memref<1x256x8xbf16, #tpu.memory_space<vmem>>, vector<1x256x8xbf16>
    tpu.vector_store %arg5[%c0_101, %c0_102, %c0_103], %96 {strides = array<i32>} : memref<1x256x8xbf16, #tpu.memory_space<vmem>>, vector<1x256x8xbf16>,
    return
  }
  func.func @transform_0(%arg0: i32) -> (i32, i32, i32) {
    %c0_i32 = arith.constant 0 : i32
    %c0_i32_0 = arith.constant 0 : i32
    %c0_i32_1 = arith.constant 0 : i32
    return %arg0, %c0_i32, %c0_i32_0 : i32, i32, i32
  }
  func.func @transform_1(%arg0: i32) -> (i32, i32) {
    %c0_i32 = arith.constant 0 : i32
    %c0_i32_0 = arith.constant 0 : i32
    %c0_i32_1 = arith.constant 0 : i32
    return %c0_i32, %c0_i32_0 : i32, i32
  }
  func.func @transform_2(%arg0: i32) -> (i32, i32) {
    %c0_i32 = arith.constant 0 : i32
    %c0_i32_0 = arith.constant 0 : i32
    %c0_i32_1 = arith.constant 0 : i32
    return %c0_i32, %c0_i32_0 : i32, i32
  }
  func.func @transform_3(%arg0: i32) -> (i32, i32, i32) {
    %c0_i32 = arith.constant 0 : i32
    %c0_i32_0 = arith.constant 0 : i32
    %c0_i32_1 = arith.constant 0 : i32
    %c0_i32_2 = arith.constant 0 : i32
    return %c0_i32, %c0_i32_0, %c0_i32_1 : i32, i32, i32
  }
  func.func @transform_4(%arg0: i32) -> (i32, i32, i32) {
    %c0_i32 = arith.constant 0 : i32
    %c0_i32_0 = arith.constant 0 : i32
    %c0_i32_1 = arith.constant 0 : i32
    return %arg0, %c0_i32, %c0_i32_0 : i32, i32, i32
  }
  func.func @transform_5(%arg0: i32) -> (i32, i32, i32) {
    %c0_i32 = arith.constant 0 : i32
    %c0_i32_0 = arith.constant 0 : i32
    %c0_i32_1 = arith.constant 0 : i32
    return %arg0, %c0_i32, %c0_i32_0 : i32, i32, i32
  }
}

module attributes {stable_mosaic.version = 11 : i64} {
  func.func @finalize_kernel(%arg0: i32, %arg1: memref<1x256x8xbf16, #tpu.memory_space<vmem>>, %arg2: memref<1x256x8xbf16, #tpu.memory_space<vmem>>, %arg3: memref<1x256x8xbf16, #tpu.memory_space<vmem>>, %arg4: memref<1x256x8xbf16, #tpu.memory_space<vmem>>, %arg5: memref<1x32xf32, #tpu.memory_space<vmem>>, %arg6: memref<1x32xf32, #tpu.memory_space<vmem>>, %arg7: memref<1x256x32xf32, #tpu.memory_space<vmem>>) attributes {dimension_semantics = [#tpu.dimension_semantics<parallel>], iteration_bounds = array<i64: 2>, scalar_prefetch = 0 : i64, scratch_operands = 0 : i64, tpu.core_type = #tpu.core_type<tc>, window_params = [{transform_indices = @transform_0, window_bounds = array<i64: 1, 256, 8>}, {transform_indices = @transform_1, window_bounds = array<i64: 1, 256, 8>}, {transform_indices = @transform_2, window_bounds = array<i64: 1, 256, 8>}, {transform_indices = @transform_3, window_bounds = array<i64: 1, 256, 8>}, {pipeline_mode = #tpu.pipeline_mode<synchronous>, transform_indices = @transform_4, window_bounds = array<i64: 1, 32>}, {pipeline_mode = #tpu.pipeline_mode<synchronous>, transform_indices = @transform_5, window_bounds = array<i64: 1, 32>}, {transform_indices = @transform_6, window_bounds = array<i64: 1, 256, 32>}]} {
    %c0 = arith.constant 0 : index
    %c0_0 = arith.constant 0 : index
    %c0_1 = arith.constant 0 : index
    %0 = vector.load %arg1[%c0, %c0_0, %c0_1] : memref<1x256x8xbf16, #tpu.memory_space<vmem>>, vector<1x256x8xbf16>
    %1 = arith.extf %0 : vector<1x256x8xbf16> to vector<1x256x8xf32>
    %c0_2 = arith.constant 0 : index
    %c0_3 = arith.constant 0 : index
    %2 = vector.load %arg5[%c0_2, %c0_3] : memref<1x32xf32, #tpu.memory_space<vmem>>, vector<1x8xf32>
    %3 = vector.shape_cast %2 : vector<1x8xf32> to vector<1x1x8xf32>
    %4 = vector.broadcast %3 : vector<1x1x8xf32> to vector<1x256x8xf32>
    %5 = arith.mulf %1, %4 : vector<1x256x8xf32>
    %c0_4 = arith.constant 0 : index
    %c0_5 = arith.constant 0 : index
    %6 = vector.load %arg6[%c0_4, %c0_5] : memref<1x32xf32, #tpu.memory_space<vmem>>, vector<1x8xf32>
    %7 = vector.shape_cast %6 : vector<1x8xf32> to vector<1x1x8xf32>
    %8 = vector.broadcast %7 : vector<1x1x8xf32> to vector<1x256x8xf32>
    %9 = arith.addf %5, %8 : vector<1x256x8xf32>
    %cst = arith.constant 0.000000e+00 : f32
    %10 = vector.broadcast %cst : f32 to vector<1x256x8xf32>
    %11 = arith.maximumf %9, %10 : vector<1x256x8xf32>
    %c0_6 = arith.constant 0 : index
    %c0_7 = arith.constant 0 : index
    %c0_8 = arith.constant 0 : index
    %12 = vector.load %arg7[%c0_6, %c0_7, %c0_8] : memref<1x256x32xf32, #tpu.memory_space<vmem>>, vector<1x256x8xf32>
    tpu.vector_store %arg7[%c0_6, %c0_7, %c0_8], %11 {strides = array<i32>} : memref<1x256x32xf32, #tpu.memory_space<vmem>>, vector<1x256x8xf32>,
    %c0_9 = arith.constant 0 : index
    %c0_10 = arith.constant 0 : index
    %c0_11 = arith.constant 0 : index
    %13 = vector.load %arg2[%c0_9, %c0_10, %c0_11] : memref<1x256x8xbf16, #tpu.memory_space<vmem>>, vector<1x256x8xbf16>
    %14 = arith.extf %13 : vector<1x256x8xbf16> to vector<1x256x8xf32>
    %c0_12 = arith.constant 0 : index
    %c8 = arith.constant 8 : index
    %15 = vector.load %arg5[%c0_12, %c8] : memref<1x32xf32, #tpu.memory_space<vmem>>, vector<1x8xf32>
    %16 = vector.shape_cast %15 : vector<1x8xf32> to vector<1x1x8xf32>
    %17 = vector.broadcast %16 : vector<1x1x8xf32> to vector<1x256x8xf32>
    %18 = arith.mulf %14, %17 : vector<1x256x8xf32>
    %c0_13 = arith.constant 0 : index
    %c8_14 = arith.constant 8 : index
    %19 = vector.load %arg6[%c0_13, %c8_14] : memref<1x32xf32, #tpu.memory_space<vmem>>, vector<1x8xf32>
    %20 = vector.shape_cast %19 : vector<1x8xf32> to vector<1x1x8xf32>
    %21 = vector.broadcast %20 : vector<1x1x8xf32> to vector<1x256x8xf32>
    %22 = arith.addf %18, %21 : vector<1x256x8xf32>
    %cst_15 = arith.constant 0.000000e+00 : f32
    %23 = vector.broadcast %cst_15 : f32 to vector<1x256x8xf32>
    %24 = arith.maximumf %22, %23 : vector<1x256x8xf32>
    %c0_16 = arith.constant 0 : index
    %c0_17 = arith.constant 0 : index
    %c8_18 = arith.constant 8 : index
    %25 = vector.load %arg7[%c0_16, %c0_17, %c8_18] : memref<1x256x32xf32, #tpu.memory_space<vmem>>, vector<1x256x8xf32>
    tpu.vector_store %arg7[%c0_16, %c0_17, %c8_18], %24 {strides = array<i32>} : memref<1x256x32xf32, #tpu.memory_space<vmem>>, vector<1x256x8xf32>,
    %c0_19 = arith.constant 0 : index
    %c0_20 = arith.constant 0 : index
    %c0_21 = arith.constant 0 : index
    %26 = vector.load %arg3[%c0_19, %c0_20, %c0_21] : memref<1x256x8xbf16, #tpu.memory_space<vmem>>, vector<1x256x8xbf16>
    %27 = arith.extf %26 : vector<1x256x8xbf16> to vector<1x256x8xf32>
    %c0_22 = arith.constant 0 : index
    %c16 = arith.constant 16 : index
    %28 = vector.load %arg5[%c0_22, %c16] : memref<1x32xf32, #tpu.memory_space<vmem>>, vector<1x8xf32>
    %29 = vector.shape_cast %28 : vector<1x8xf32> to vector<1x1x8xf32>
    %30 = vector.broadcast %29 : vector<1x1x8xf32> to vector<1x256x8xf32>
    %31 = arith.mulf %27, %30 : vector<1x256x8xf32>
    %c0_23 = arith.constant 0 : index
    %c16_24 = arith.constant 16 : index
    %32 = vector.load %arg6[%c0_23, %c16_24] : memref<1x32xf32, #tpu.memory_space<vmem>>, vector<1x8xf32>
    %33 = vector.shape_cast %32 : vector<1x8xf32> to vector<1x1x8xf32>
    %34 = vector.broadcast %33 : vector<1x1x8xf32> to vector<1x256x8xf32>
    %35 = arith.addf %31, %34 : vector<1x256x8xf32>
    %cst_25 = arith.constant 0.000000e+00 : f32
    %36 = vector.broadcast %cst_25 : f32 to vector<1x256x8xf32>
    %37 = arith.maximumf %35, %36 : vector<1x256x8xf32>
    %c0_26 = arith.constant 0 : index
    %c0_27 = arith.constant 0 : index
    %c16_28 = arith.constant 16 : index
    %38 = vector.load %arg7[%c0_26, %c0_27, %c16_28] : memref<1x256x32xf32, #tpu.memory_space<vmem>>, vector<1x256x8xf32>
    tpu.vector_store %arg7[%c0_26, %c0_27, %c16_28], %37 {strides = array<i32>} : memref<1x256x32xf32, #tpu.memory_space<vmem>>, vector<1x256x8xf32>,
    %c0_29 = arith.constant 0 : index
    %c0_30 = arith.constant 0 : index
    %c0_31 = arith.constant 0 : index
    %39 = vector.load %arg4[%c0_29, %c0_30, %c0_31] : memref<1x256x8xbf16, #tpu.memory_space<vmem>>, vector<1x256x8xbf16>
    %40 = arith.extf %39 : vector<1x256x8xbf16> to vector<1x256x8xf32>
    %c0_32 = arith.constant 0 : index
    %c24 = arith.constant 24 : index
    %41 = vector.load %arg5[%c0_32, %c24] : memref<1x32xf32, #tpu.memory_space<vmem>>, vector<1x8xf32>
    %42 = vector.shape_cast %41 : vector<1x8xf32> to vector<1x1x8xf32>
    %43 = vector.broadcast %42 : vector<1x1x8xf32> to vector<1x256x8xf32>
    %44 = arith.mulf %40, %43 : vector<1x256x8xf32>
    %c0_33 = arith.constant 0 : index
    %c24_34 = arith.constant 24 : index
    %45 = vector.load %arg6[%c0_33, %c24_34] : memref<1x32xf32, #tpu.memory_space<vmem>>, vector<1x8xf32>
    %46 = vector.shape_cast %45 : vector<1x8xf32> to vector<1x1x8xf32>
    %47 = vector.broadcast %46 : vector<1x1x8xf32> to vector<1x256x8xf32>
    %48 = arith.addf %44, %47 : vector<1x256x8xf32>
    %cst_35 = arith.constant 0.000000e+00 : f32
    %49 = vector.broadcast %cst_35 : f32 to vector<1x256x8xf32>
    %50 = arith.maximumf %48, %49 : vector<1x256x8xf32>
    %c0_36 = arith.constant 0 : index
    %c0_37 = arith.constant 0 : index
    %c24_38 = arith.constant 24 : index
    %51 = vector.load %arg7[%c0_36, %c0_37, %c24_38] : memref<1x256x32xf32, #tpu.memory_space<vmem>>, vector<1x256x8xf32>
    tpu.vector_store %arg7[%c0_36, %c0_37, %c24_38], %50 {strides = array<i32>} : memref<1x256x32xf32, #tpu.memory_space<vmem>>, vector<1x256x8xf32>,
    return
  }
  func.func @transform_0(%arg0: i32) -> (i32, i32, i32) {
    %c0_i32 = arith.constant 0 : i32
    %c0_i32_0 = arith.constant 0 : i32
    %c0_i32_1 = arith.constant 0 : i32
    return %arg0, %c0_i32, %c0_i32_0 : i32, i32, i32
  }
  func.func @transform_1(%arg0: i32) -> (i32, i32, i32) {
    %c0_i32 = arith.constant 0 : i32
    %c0_i32_0 = arith.constant 0 : i32
    %c0_i32_1 = arith.constant 0 : i32
    return %arg0, %c0_i32, %c0_i32_0 : i32, i32, i32
  }
  func.func @transform_2(%arg0: i32) -> (i32, i32, i32) {
    %c0_i32 = arith.constant 0 : i32
    %c0_i32_0 = arith.constant 0 : i32
    %c0_i32_1 = arith.constant 0 : i32
    return %arg0, %c0_i32, %c0_i32_0 : i32, i32, i32
  }
  func.func @transform_3(%arg0: i32) -> (i32, i32, i32) {
    %c0_i32 = arith.constant 0 : i32
    %c0_i32_0 = arith.constant 0 : i32
    %c0_i32_1 = arith.constant 0 : i32
    return %arg0, %c0_i32, %c0_i32_0 : i32, i32, i32
  }
  func.func @transform_4(%arg0: i32) -> (i32, i32) {
    %c0_i32 = arith.constant 0 : i32
    %c0_i32_0 = arith.constant 0 : i32
    %c0_i32_1 = arith.constant 0 : i32
    return %c0_i32, %c0_i32_0 : i32, i32
  }
  func.func @transform_5(%arg0: i32) -> (i32, i32) {
    %c0_i32 = arith.constant 0 : i32
    %c0_i32_0 = arith.constant 0 : i32
    %c0_i32_1 = arith.constant 0 : i32
    return %c0_i32, %c0_i32_0 : i32, i32
  }
  func.func @transform_6(%arg0: i32) -> (i32, i32, i32) {
    %c0_i32 = arith.constant 0 : i32
    %c0_i32_0 = arith.constant 0 : i32
    %c0_i32_1 = arith.constant 0 : i32
    return %arg0, %c0_i32, %c0_i32_0 : i32, i32, i32
  }
}

</mosaic_0001>

<llo_original>
// kernel: inception_forward.9
$region0: #{inception_forward.9}
  #allocation0 [shape = 'u32[]', space=smem, size = 0x4, offset = 0x4, fixed_abs, tag = 'smem constant byte address 0x4 - core index']
  #allocation1 [shape = 'u32[144,128]{1,0:T(1,128)}', space=vmem, size = 0x12000, scoped, tag = 'internal scratch']
  %s0 = inlined_call_operand.vmem [shape: bf16[2,256,8], index: 0, kind: input, shape index: {}]
  %s1 = inlined_call_operand.vmem [shape: bf16[2,256,8], index: 1, kind: input, shape index: {}]
  %s2 = inlined_call_operand.vmem [shape: bf16[2,256,8], index: 2, kind: input, shape index: {}]
  %s3 = inlined_call_operand.vmem [shape: bf16[2,256,8], index: 3, kind: input, shape index: {}]
  %s4 = inlined_call_operand.vmem [shape: f32[1,32], index: 4, kind: input, shape index: {}]
  %s5 = inlined_call_operand.vmem [shape: f32[1,32], index: 5, kind: input, shape index: {}]
  %s6 = inlined_call_operand.hbm [shape: f32[2,256,32], index: 6, kind: output, shape index: {}]
  %s7 = sld [smem:[#allocation0]]
  $region57: #{inception_forward.9} parent=0
    _
  %s9 = ssub.s32 1, %s7
  %s10 = scalar_select 0, %s9, %s7
  $region1: #{inception_forward.9} parent=0
    #allocation2 [shape = 'u8[262144]{0}', space=vmem, size = 0x40000, scoped, tag = 'output window, operand 0']
    #allocation3 [shape = 's32[2]{0}', space=sflag, size = 0x8, scoped, tag = 'scoped memory for inception_forward.9']
    %11 = vsyncpa [#allocation3], 0
    %s12 = scalar_lea.sflag [#allocation3], 1
    %13 = vsyncpa %s12, 0
    loop: start=0, step=1, limit=4
    $region2: #{inception_forward.9} parent=1 // loop_pre_header
      _
    $region3: #{inception_forward.9} parent=1 // loop_header
      %s15 = sphi 0, %s19
      %p16 = scmp.ge.s32.totalorder %s15, 4
      %s25 = sphi 0, %s27
      %s28 = sphi 0, %s25
      %s29 = sphi 0, %s28
      %s45 = sphi 0, %s29
      %s51 = sphi 0, %s53
      %s54 = sphi 0, %s51
      %s55 = sphi 0, %s54
      %s71 = sphi 0, %s55
      %s77 = sphi 0, %s79
      %s80 = sphi 0, %s77
      %s81 = sphi 0, %s80
      %s97 = sphi 0, %s81
      %s103 = sphi 0, %s105
      %s106 = sphi 0, %s103
      %s107 = sphi 0, %s106
      %s123 = sphi 0, %s107
      %s127 = sphi 0, %s127
      %s129 = sphi 0, %s127
      %s130 = sphi 0, %s129
      %s144 = sphi 0, %s130
      %s148 = sphi 0, %s148
      %s150 = sphi 0, %s148
      %s151 = sphi 0, %s150
      %s165 = sphi 0, %s151
      %s171 = sphi 0, %s173
      %s174 = sphi 0, %s171
      %s175 = sphi 0, %s174
      %s191 = sphi 0, %s175
    $region4: #{inception_forward.9} parent=1 // loop_header_branch
      %18 = sbr.rel (%p16) target = $region8
    $region5: #{inception_forward.9} parent=1 // loop_body
      %s20 = ssub.s32 %s15, 1
      %s21 = ssub.s32 %s15, 2
      %s22 = sadd.s32 %s15, 1
      %s23 = ssub.s32 %s15, %s22
      %p24 = scmp.eq.s32.totalorder %s23, 0
      %s26 = sadd.s32 %s25, 1
      %s27 = scalar_select %p24, %s25, %s26
      %p30 = pneg %p24
      %p31 = scmp.eq.s32.totalorder %s15, 1
      %p32 = por %p30, %p31
      %p33 = scmp.ne.s32.totalorder %s25, %s28
      %p34 = scmp.eq.s32.totalorder %s15, 0
      %p35 = por %p33, %p34
      %p36 = scmp.ne.s32.totalorder %s25, %s28
      %p37 = scmp.eq.s32.totalorder %s20, 1
      %p38 = por %p36, %p37
      %p39 = scmp.ne.s32.totalorder %s28, %s29
      %p40 = scmp.eq.s32.totalorder %s20, 0
      %p41 = por %p39, %p40
      %p42 = scmp.ne.s32.totalorder %s28, %s29
      %p43 = scmp.eq.s32.totalorder %s21, 1
      %p44 = por %p42, %p43
      %p46 = scmp.ne.s32.totalorder %s29, %s45
      %p47 = scmp.eq.s32.totalorder %s21, 0
      %p48 = por %p46, %p47
      %s49 = ssub.s32 %s15, %s22
      %p50 = scmp.eq.s32.totalorder %s49, 0
      %s52 = sadd.s32 %s51, 1
      %s53 = scalar_select %p50, %s51, %s52
      %p56 = pneg %p50
      %p57 = scmp.eq.s32.totalorder %s15, 1
      %p58 = por %p56, %p57
      %p59 = scmp.ne.s32.totalorder %s51, %s54
      %p60 = scmp.eq.s32.totalorder %s15, 0
      %p61 = por %p59, %p60
      %p62 = scmp.ne.s32.totalorder %s51, %s54
      %p63 = scmp.eq.s32.totalorder %s20, 1
      %p64 = por %p62, %p63
      %p65 = scmp.ne.s32.totalorder %s54, %s55
      %p66 = scmp.eq.s32.totalorder %s20, 0
      %p67 = por %p65, %p66
      %p68 = scmp.ne.s32.totalorder %s54, %s55
      %p69 = scmp.eq.s32.totalorder %s21, 1
      %p70 = por %p68, %p69
      %p72 = scmp.ne.s32.totalorder %s55, %s71
      %p73 = scmp.eq.s32.totalorder %s21, 0
      %p74 = por %p72, %p73
      %s75 = ssub.s32 %s15, %s22
      %p76 = scmp.eq.s32.totalorder %s75, 0
      %s78 = sadd.s32 %s77, 1
      %s79 = scalar_select %p76, %s77, %s78
      %p82 = pneg %p76
      %p83 = scmp.eq.s32.totalorder %s15, 1
      %p84 = por %p82, %p83
      %p85 = scmp.ne.s32.totalorder %s77, %s80
      %p86 = scmp.eq.s32.totalorder %s15, 0
      %p87 = por %p85, %p86
      %p88 = scmp.ne.s32.totalorder %s77, %s80
      %p89 = scmp.eq.s32.totalorder %s20, 1
      %p90 = por %p88, %p89
      %p91 = scmp.ne.s32.totalorder %s80, %s81
      %p92 = scmp.eq.s32.totalorder %s20, 0
      %p93 = por %p91, %p92
      %p94 = scmp.ne.s32.totalorder %s80, %s81
      %p95 = scmp.eq.s32.totalorder %s21, 1
      %p96 = por %p94, %p95
      %p98 = scmp.ne.s32.totalorder %s81, %s97
      %p99 = scmp.eq.s32.totalorder %s21, 0
      %p100 = por %p98, %p99
      %s101 = ssub.s32 %s15, %s22
      %p102 = scmp.eq.s32.totalorder %s101, 0
      %s104 = sadd.s32 %s103, 1
      %s105 = scalar_select %p102, %s103, %s104
      %p108 = pneg %p102
      %p109 = scmp.eq.s32.totalorder %s15, 1
      %p110 = por %p108, %p109
      %p111 = scmp.ne.s32.totalorder %s103, %s106
      %p112 = scmp.eq.s32.totalorder %s15, 0
      %p113 = por %p111, %p112
      %p114 = scmp.ne.s32.totalorder %s103, %s106
      %p115 = scmp.eq.s32.totalorder %s20, 1
      %p116 = por %p114, %p115
      %p117 = scmp.ne.s32.totalorder %s106, %s107
      %p118 = scmp.eq.s32.totalorder %s20, 0
      %p119 = por %p117, %p118
      %p120 = scmp.ne.s32.totalorder %s106, %s107
      %p121 = scmp.eq.s32.totalorder %s21, 1
      %p122 = por %p120, %p121
      %p124 = scmp.ne.s32.totalorder %s107, %s123
      %p125 = scmp.eq.s32.totalorder %s21, 0
      %p126 = por %p124, %p125
      %s128 = sadd.s32 %s127, 1
      %p131 = scmp.eq.s32.totalorder %s15, 1
      %p132 = scmp.ne.s32.totalorder %s127, %s129
      %p133 = scmp.eq.s32.totalorder %s15, 0
      %p134 = por %p132, %p133
      %p135 = scmp.ne.s32.totalorder %s127, %s129
      %p136 = scmp.eq.s32.totalorder %s20, 1
      %p137 = por %p135, %p136
      %p138 = scmp.ne.s32.totalorder %s129, %s130
      %p139 = scmp.eq.s32.totalorder %s20, 0
      %p140 = por %p138, %p139
      %p141 = scmp.ne.s32.totalorder %s129, %s130
      %p142 = scmp.eq.s32.totalorder %s21, 1
      %p143 = por %p141, %p142
      %p145 = scmp.ne.s32.totalorder %s130, %s144
      %p146 = scmp.eq.s32.totalorder %s21, 0
      %p147 = por %p145, %p146
      %s149 = sadd.s32 %s148, 1
      %p152 = scmp.eq.s32.totalorder %s15, 1
      %p153 = scmp.ne.s32.totalorder %s148, %s150
      %p154 = scmp.eq.s32.totalorder %s15, 0
      %p155 = por %p153, %p154
      %p156 = scmp.ne.s32.totalorder %s148, %s150
      %p157 = scmp.eq.s32.totalorder %s20, 1
      %p158 = por %p156, %p157
      %p159 = scmp.ne.s32.totalorder %s150, %s151
      %p160 = scmp.eq.s32.totalorder %s20, 0
      %p161 = por %p159, %p160
      %p162 = scmp.ne.s32.totalorder %s150, %s151
      %p163 = scmp.eq.s32.totalorder %s21, 1
      %p164 = por %p162, %p163
      %p166 = scmp.ne.s32.totalorder %s151, %s165
      %p167 = scmp.eq.s32.totalorder %s21, 0
      %p168 = por %p166, %p167
      %s169 = ssub.s32 %s15, %s22
      %p170 = scmp.eq.s32.totalorder %s169, 0
      %s172 = sadd.s32 %s171, 1
      %s173 = scalar_select %p170, %s171, %s172
      %p176 = pneg %p170
      %p177 = scmp.eq.s32.totalorder %s15, 1
      %p178 = por %p176, %p177
      %p179 = scmp.ne.s32.totalorder %s171, %s174
      %p180 = scmp.eq.s32.totalorder %s15, 0
      %p181 = por %p179, %p180
      %p182 = scmp.ne.s32.totalorder %s171, %s174
      %p183 = scmp.eq.s32.totalorder %s20, 1
      %p184 = por %p182, %p183
      %p185 = scmp.ne.s32.totalorder %s174, %s175
      %p186 = scmp.eq.s32.totalorder %s20, 0
      %p187 = por %p185, %p186
      %p188 = scmp.ne.s32.totalorder %s174, %s175
      %p189 = scmp.eq.s32.totalorder %s21, 1
      %p190 = por %p188, %p189
      %p192 = scmp.ne.s32.totalorder %s175, %s191
      %p193 = scmp.eq.s32.totalorder %s21, 0
      %p194 = por %p192, %p193
      %p195 = scmp.le.s32.totalorder 1, %s15
      %p196 = scmp.lt.s32.totalorder %s15, 3
      %p197 = pnand %p195, %p196
      %p198 = pneg %p197
      // Predicated region
      $region9: #{inception_forward.9} parent=5 // pred_check
        _
      $region10: #{inception_forward.9} parent=5 // pred_check_branch
        %200 = sbr.rel (%p197) target = $region12
      $region11: #{inception_forward.9} parent=5 // pred_region
        %s201 = ssub.s32 %s15, 1
        // Predicated region
        $region13: #{inception_forward.9} parent=11 // pred_check
          %p202 = pneg %p140
        $region14: #{inception_forward.9} parent=11 // pred_check_branch
          %204 = sbr.rel (%p202) target = $region16
        $region15: #{inception_forward.9} parent=11 // pred_region
          _
        $region16: #{inception_forward.9} parent=11 // pred_fallthru
          _
        // Predicated region
        $region17: #{inception_forward.9} parent=11 // pred_check
          %p205 = pneg %p161
        $region18: #{inception_forward.9} parent=11 // pred_check_branch
          %207 = sbr.rel (%p205) target = $region20
        $region19: #{inception_forward.9} parent=11 // pred_region
          _
        $region20: #{inception_forward.9} parent=11 // pred_fallthru
          _
      $region12: #{inception_forward.9} parent=5 // pred_fallthru
        _
      %p208 = scmp.lt.s32.totalorder %s15, 2
      // Predicated region
      $region21: #{inception_forward.9} parent=5 // pred_check
        %p209 = pneg %p208
      $region22: #{inception_forward.9} parent=5 // pred_check_branch
        %211 = sbr.rel (%p209) target = $region24
      $region23: #{inception_forward.9} parent=5 // pred_region
        // Predicated region
        $region25: #{inception_forward.9} parent=23 // pred_check
          %p212 = pneg %p35
        $region26: #{inception_forward.9} parent=23 // pred_check_branch
          %214 = sbr.rel (%p212) target = $region28
        $region27: #{inception_forward.9} parent=23 // pred_region
          %p215 = scmp.lt.s32.totalorder %s15, 1
          %s216 = scalar_select %p215, %s15, 1
          %s217 = smul.addr %s216, 32
          %s218 = smul.addr %s217, 4
          %s219 = scalar_lea.vmem %s0, %s218
        $region28: #{inception_forward.9} parent=23 // pred_fallthru
          _
        // Predicated region
        $region29: #{inception_forward.9} parent=23 // pred_check
          %p220 = pneg %p61
        $region30: #{inception_forward.9} parent=23 // pred_check_branch
          %222 = sbr.rel (%p220) target = $region32
        $region31: #{inception_forward.9} parent=23 // pred_region
          %p223 = scmp.lt.s32.totalorder %s15, 1
          %s224 = scalar_select %p223, %s15, 1
          %s225 = smul.addr %s224, 32
          %s226 = smul.addr %s225, 4
          %s227 = scalar_lea.vmem %s1, %s226
        $region32: #{inception_forward.9} parent=23 // pred_fallthru
          _
        // Predicated region
        $region33: #{inception_forward.9} parent=23 // pred_check
          %p228 = pneg %p87
        $region34: #{inception_forward.9} parent=23 // pred_check_branch
          %230 = sbr.rel (%p228) target = $region36
        $region35: #{inception_forward.9} parent=23 // pred_region
          %p231 = scmp.lt.s32.totalorder %s15, 1
          %s232 = scalar_select %p231, %s15, 1
          %s233 = smul.addr %s232, 32
          %s234 = smul.addr %s233, 4
          %s235 = scalar_lea.vmem %s2, %s234
        $region36: #{inception_forward.9} parent=23 // pred_fallthru
          _
        // Predicated region
        $region37: #{inception_forward.9} parent=23 // pred_check
          %p236 = pneg %p113
        $region38: #{inception_forward.9} parent=23 // pred_check_branch
          %238 = sbr.rel (%p236) target = $region40
        $region39: #{inception_forward.9} parent=23 // pred_region
          %p239 = scmp.lt.s32.totalorder %s15, 1
          %s240 = scalar_select %p239, %s15, 1
          %s241 = smul.addr %s240, 32
          %s242 = smul.addr %s241, 4
          %s243 = scalar_lea.vmem %s3, %s242
        $region40: #{inception_forward.9} parent=23 // pred_fallthru
          _
      $region24: #{inception_forward.9} parent=5 // pred_fallthru
        _
      %p244 = scmp.le.s32.totalorder 1, %s15
      %p245 = scmp.lt.s32.totalorder %s15, 3
      %p246 = pnand %p244, %p245
      %p247 = pneg %p246
      // Predicated region
      $region41: #{inception_forward.9} parent=5 // pred_check
        _
      $region42: #{inception_forward.9} parent=5 // pred_check_branch
        %249 = sbr.rel (%p246) target = $region44
      $region43: #{inception_forward.9} parent=5 // pred_region
        %s250 = ssub.s32 %s15, 1
        %p251 = scmp.lt.s32.totalorder %s20, 1
        %s252 = scalar_select %p251, %s20, 1
        %s253 = smul.addr %s252, 32
        %s254 = smul.addr %s253, 4
        %s255 = scalar_lea.vmem %s0, %s254
        %p256 = pneg %p41
        %p257 = pneg %p38
        %p258 = scmp.lt.s32.totalorder %s20, 1
        %s259 = scalar_select %p258, %s20, 1
        %s260 = smul.addr %s259, 32
        %s261 = smul.addr %s260, 4
        %s262 = scalar_lea.vmem %s1, %s261
        %p263 = pneg %p67
        %p264 = pneg %p64
        %p265 = scmp.lt.s32.totalorder %s20, 1
        %s266 = scalar_select %p265, %s20, 1
        %s267 = smul.addr %s266, 32
        %s268 = smul.addr %s267, 4
        %s269 = scalar_lea.vmem %s2, %s268
        %p270 = pneg %p93
        %p271 = pneg %p90
        %p272 = scmp.lt.s32.totalorder %s20, 1
        %s273 = scalar_select %p272, %s20, 1
        %s274 = smul.addr %s273, 32
        %s275 = smul.addr %s274, 4
        %s276 = scalar_lea.vmem %s3, %s275
        %p277 = pneg %p119
        %p278 = pneg %p116
        %p279 = pneg %p140
        %p280 = pneg %p137
        %p281 = pneg %p161
        %p282 = pneg %p158
        %p283 = pneg %p187
        %p284 = pneg %p184
        %s285 = sand.u32 %s174, 1
        %s286 = scalar_lea.sflag [#allocation3], %s285
        %s287 = sand.u32 %s174, 1
        %s288 = smul.addr %s287, 256
        %s289 = scalar_lea.vmem [#allocation2], %s288
        %p290 = scmp.lt.s32.totalorder %s20, 1
        %s291 = scalar_select %p290, %s20, 1
        %s292 = smul.addr %s291, 32
        %s293 = smul.addr %s292, 4
        %s294 = scalar_lea.vmem %s0, %s293
        %p295 = scmp.lt.s32.totalorder %s20, 1
        %s296 = scalar_select %p295, %s20, 1
        %s297 = smul.addr %s296, 32
        %s298 = smul.addr %s297, 4
        %s299 = scalar_lea.vmem %s1, %s298
        %p300 = scmp.lt.s32.totalorder %s20, 1
        %s301 = scalar_select %p300, %s20, 1
        %s302 = smul.addr %s301, 32
        %s303 = smul.addr %s302, 4
        %s304 = scalar_lea.vmem %s2, %s303
        %p305 = scmp.lt.s32.totalorder %s20, 1
        %s306 = scalar_select %p305, %s20, 1
        %s307 = smul.addr %s306, 32
        %s308 = smul.addr %s307, 4
        %s309 = scalar_lea.vmem %s3, %s308
        %v310 = vld [vmem:[%s294] sm:$0xf]
        %v311 = vld [vmem:[%s294 + $0x4] sm:$0xf]
        %v312 = vld [vmem:[%s294 + $0x8] sm:$0xf]
        %v313 = vld [vmem:[%s294 + $0xc] sm:$0xf]
        %v314 = vld [vmem:[%s294 + $0x10] sm:$0xf]
        %v315 = vld [vmem:[%s294 + $0x14] sm:$0xf]
        %v316 = vld [vmem:[%s294 + $0x18] sm:$0xf]
        %v317 = vld [vmem:[%s294 + $0x1c] sm:$0xf]
        %v318 = vld [vmem:[%s294 + $0x20] sm:$0xf]
        %v319 = vld [vmem:[%s294 + $0x24] sm:$0xf]
        %v320 = vld [vmem:[%s294 + $0x28] sm:$0xf]
        %v321 = vld [vmem:[%s294 + $0x2c] sm:$0xf]
        %v322 = vld [vmem:[%s294 + $0x30] sm:$0xf]
        %v323 = vld [vmem:[%s294 + $0x34] sm:$0xf]
        %v324 = vld [vmem:[%s294 + $0x38] sm:$0xf]
        %v325 = vld [vmem:[%s294 + $0x3c] sm:$0xf]
        %v326 = vld [vmem:[%s294 + $0x40] sm:$0xf]
        %v327 = vld [vmem:[%s294 + $0x44] sm:$0xf]
        %v328 = vld [vmem:[%s294 + $0x48] sm:$0xf]
        %v329 = vld [vmem:[%s294 + $0x4c] sm:$0xf]
        %v330 = vld [vmem:[%s294 + $0x50] sm:$0xf]
        %v331 = vld [vmem:[%s294 + $0x54] sm:$0xf]
        %v332 = vld [vmem:[%s294 + $0x58] sm:$0xf]
        %v333 = vld [vmem:[%s294 + $0x5c] sm:$0xf]
        %v334 = vld [vmem:[%s294 + $0x60] sm:$0xf]
        %v335 = vld [vmem:[%s294 + $0x64] sm:$0xf]
        %v336 = vld [vmem:[%s294 + $0x68] sm:$0xf]
        %v337 = vld [vmem:[%s294 + $0x6c] sm:$0xf]
        %v338 = vld [vmem:[%s294 + $0x70] sm:$0xf]
        %v339 = vld [vmem:[%s294 + $0x74] sm:$0xf]
        %v340 = vld [vmem:[%s294 + $0x78] sm:$0xf]
        %v341 = vld [vmem:[%s294 + $0x7c] sm:$0xf]
        %v342 = vunpack.c.l.bf16 %v310
        %v343 = vunpack.c.l.bf16 %v311
        %v344 = vunpack.c.l.bf16 %v312
        %v345 = vunpack.c.l.bf16 %v313
        %v346 = vunpack.c.l.bf16 %v314
        %v347 = vunpack.c.l.bf16 %v315
        %v348 = vunpack.c.l.bf16 %v316
        %v349 = vunpack.c.l.bf16 %v317
        %v350 = vunpack.c.l.bf16 %v318
        %v351 = vunpack.c.l.bf16 %v319
        %v352 = vunpack.c.l.bf16 %v320
        %v353 = vunpack.c.l.bf16 %v321
        %v354 = vunpack.c.l.bf16 %v322
        %v355 = vunpack.c.l.bf16 %v323
        %v356 = vunpack.c.l.bf16 %v324
        %v357 = vunpack.c.l.bf16 %v325
        %v358 = vunpack.c.l.bf16 %v326
        %v359 = vunpack.c.l.bf16 %v327
        %v360 = vunpack.c.l.bf16 %v328
        %v361 = vunpack.c.l.bf16 %v329
        %v362 = vunpack.c.l.bf16 %v330
        %v363 = vunpack.c.l.bf16 %v331
        %v364 = vunpack.c.l.bf16 %v332
        %v365 = vunpack.c.l.bf16 %v333
        %v366 = vunpack.c.l.bf16 %v334
        %v367 = vunpack.c.l.bf16 %v335
        %v368 = vunpack.c.l.bf16 %v336
        %v369 = vunpack.c.l.bf16 %v337
        %v370 = vunpack.c.l.bf16 %v338
        %v371 = vunpack.c.l.bf16 %v339
        %v372 = vunpack.c.l.bf16 %v340
        %v373 = vunpack.c.l.bf16 %v341
        %v374 = vld [vmem:[%s4] sm:$0x1]
        %v376 = vlaneseq
        %v377 = vshrl.u32 %v376, 7
        %v378 = vsub.s32 0, %v377
        %v379 = vrot.slane %v374, %v378
        %v381 = vmul.f32 %v342, %v379
        %v382 = vmul.f32 %v343, %v379
        %v383 = vmul.f32 %v344, %v379
        %v384 = vmul.f32 %v345, %v379
        %v385 = vmul.f32 %v346, %v379
        %v386 = vmul.f32 %v347, %v379
        %v387 = vmul.f32 %v348, %v379
        %v388 = vmul.f32 %v349, %v379
        %v389 = vmul.f32 %v350, %v379
        %v390 = vmul.f32 %v351, %v379
        %v391 = vmul.f32 %v352, %v379
        %v392 = vmul.f32 %v353, %v379
        %v393 = vmul.f32 %v354, %v379
        %v394 = vmul.f32 %v355, %v379
        %v395 = vmul.f32 %v356, %v379
        %v396 = vmul.f32 %v357, %v379
        %v397 = vmul.f32 %v358, %v379
        %v398 = vmul.f32 %v359, %v379
        %v399 = vmul.f32 %v360, %v379
        %v400 = vmul.f32 %v361, %v379
        %v401 = vmul.f32 %v362, %v379
        %v402 = vmul.f32 %v363, %v379
        %v403 = vmul.f32 %v364, %v379
        %v404 = vmul.f32 %v365, %v379
        %v405 = vmul.f32 %v366, %v379
        %v406 = vmul.f32 %v367, %v379
        %v407 = vmul.f32 %v368, %v379
        %v408 = vmul.f32 %v369, %v379
        %v409 = vmul.f32 %v370, %v379
        %v410 = vmul.f32 %v371, %v379
        %v411 = vmul.f32 %v372, %v379
        %v412 = vmul.f32 %v373, %v379
        %v413 = vld [vmem:[%s5] sm:$0x1]
        %v415 = vlaneseq
        %v416 = vshrl.u32 %v415, 7
        %v417 = vsub.s32 0, %v416
        %v418 = vrot.slane %v413, %v417
        %v420 = vadd.f32 %v381, %v418
        %v421 = vadd.f32 %v382, %v418
        %v422 = vadd.f32 %v383, %v418
        %v423 = vadd.f32 %v384, %v418
        %v424 = vadd.f32 %v385, %v418
        %v425 = vadd.f32 %v386, %v418
        %v426 = vadd.f32 %v387, %v418
        %v427 = vadd.f32 %v388, %v418
        %v428 = vadd.f32 %v389, %v418
        %v429 = vadd.f32 %v390, %v418
        %v430 = vadd.f32 %v391, %v418
        %v431 = vadd.f32 %v392, %v418
        %v432 = vadd.f32 %v393, %v418
        %v433 = vadd.f32 %v394, %v418
        %v434 = vadd.f32 %v395, %v418
        %v435 = vadd.f32 %v396, %v418
        %v436 = vadd.f32 %v397, %v418
        %v437 = vadd.f32 %v398, %v418
        %v438 = vadd.f32 %v399, %v418
        %v439 = vadd.f32 %v400, %v418
        %v440 = vadd.f32 %v401, %v418
        %v441 = vadd.f32 %v402, %v418
        %v442 = vadd.f32 %v403, %v418
        %v443 = vadd.f32 %v404, %v418
        %v444 = vadd.f32 %v405, %v418
        %v445 = vadd.f32 %v406, %v418
        %v446 = vadd.f32 %v407, %v418
        %v447 = vadd.f32 %v408, %v418
        %v448 = vadd.f32 %v409, %v418
        %v449 = vadd.f32 %v410, %v418
        %v450 = vadd.f32 %v411, %v418
        %v451 = vadd.f32 %v412, %v418
        %v452 = vmax.f32 %v420, 0.0
        %v453 = vmax.f32 %v421, 0.0
        %v454 = vmax.f32 %v422, 0.0
        %v455 = vmax.f32 %v423, 0.0
        %v456 = vmax.f32 %v424, 0.0
        %v457 = vmax.f32 %v425, 0.0
        %v458 = vmax.f32 %v426, 0.0
        %v459 = vmax.f32 %v427, 0.0
        %v460 = vmax.f32 %v428, 0.0
        %v461 = vmax.f32 %v429, 0.0
        %v462 = vmax.f32 %v430, 0.0
        %v463 = vmax.f32 %v431, 0.0
        %v464 = vmax.f32 %v432, 0.0
        %v465 = vmax.f32 %v433, 0.0
        %v466 = vmax.f32 %v434, 0.0
        %v467 = vmax.f32 %v435, 0.0
        %v468 = vmax.f32 %v436, 0.0
        %v469 = vmax.f32 %v437, 0.0
        %v470 = vmax.f32 %v438, 0.0
        %v471 = vmax.f32 %v439, 0.0
        %v472 = vmax.f32 %v440, 0.0
        %v473 = vmax.f32 %v441, 0.0
        %v474 = vmax.f32 %v442, 0.0
        %v475 = vmax.f32 %v443, 0.0
        %v476 = vmax.f32 %v444, 0.0
        %v477 = vmax.f32 %v445, 0.0
        %v478 = vmax.f32 %v446, 0.0
        %v479 = vmax.f32 %v447, 0.0
        %v480 = vmax.f32 %v448, 0.0
        %v481 = vmax.f32 %v449, 0.0
        %v482 = vmax.f32 %v450, 0.0
        %v483 = vmax.f32 %v451, 0.0
        %vm484 = vcmask 64512
        %485 = vst.msk [vmem:[%s289] sm:$0xff] %vm484, %v452
        %486 = vst.msk [vmem:[%s289 + $0x8] sm:$0xff] %vm484, %v453
        %487 = vst.msk [vmem:[%s289 + $0x10] sm:$0xff] %vm484, %v454
        %488 = vst.msk [vmem:[%s289 + $0x18] sm:$0xff] %vm484, %v455
        %489 = vst.msk [vmem:[%s289 + $0x20] sm:$0xff] %vm484, %v456
        %490 = vst.msk [vmem:[%s289 + $0x28] sm:$0xff] %vm484, %v457
        %491 = vst.msk [vmem:[%s289 + $0x30] sm:$0xff] %vm484, %v458
        %492 = vst.msk [vmem:[%s289 + $0x38] sm:$0xff] %vm484, %v459
        %493 = vst.msk [vmem:[%s289 + $0x40] sm:$0xff] %vm484, %v460
        %494 = vst.msk [vmem:[%s289 + $0x48] sm:$0xff] %vm484, %v461
        %495 = vst.msk [vmem:[%s289 + $0x50] sm:$0xff] %vm484, %v462
        %496 = vst.msk [vmem:[%s289 + $0x58] sm:$0xff] %vm484, %v463
        %497 = vst.msk [vmem:[%s289 + $0x60] sm:$0xff] %vm484, %v464
        %498 = vst.msk [vmem:[%s289 + $0x68] sm:$0xff] %vm484, %v465
        %499 = vst.msk [vmem:[%s289 + $0x70] sm:$0xff] %vm484, %v466
        %500 = vst.msk [vmem:[%s289 + $0x78] sm:$0xff] %vm484, %v467
        %501 = vst.msk [vmem:[%s289 + $0x80] sm:$0xff] %vm484, %v468
        %502 = vst.msk [vmem:[%s289 + $0x88] sm:$0xff] %vm484, %v469
        %503 = vst.msk [vmem:[%s289 + $0x90] sm:$0xff] %vm484, %v470
        %504 = vst.msk [vmem:[%s289 + $0x98] sm:$0xff] %vm484, %v471
        %505 = vst.msk [vmem:[%s289 + $0xa0] sm:$0xff] %vm484, %v472
        %506 = vst.msk [vmem:[%s289 + $0xa8] sm:$0xff] %vm484, %v473
        %507 = vst.msk [vmem:[%s289 + $0xb0] sm:$0xff] %vm484, %v474
        %508 = vst.msk [vmem:[%s289 + $0xb8] sm:$0xff] %vm484, %v475
        %509 = vst.msk [vmem:[%s289 + $0xc0] sm:$0xff] %vm484, %v476
        %510 = vst.msk [vmem:[%s289 + $0xc8] sm:$0xff] %vm484, %v477
        %511 = vst.msk [vmem:[%s289 + $0xd0] sm:$0xff] %vm484, %v478
        %512 = vst.msk [vmem:[%s289 + $0xd8] sm:$0xff] %vm484, %v479
        %513 = vst.msk [vmem:[%s289 + $0xe0] sm:$0xff] %vm484, %v480
        %514 = vst.msk [vmem:[%s289 + $0xe8] sm:$0xff] %vm484, %v481
        %515 = vst.msk [vmem:[%s289 + $0xf0] sm:$0xff] %vm484, %v482
        %516 = vst.msk [vmem:[%s289 + $0xf8] sm:$0xff] %vm484, %v483
        %v517 = vld [vmem:[%s299] sm:$0xf]
        %v518 = vld [vmem:[%s299 + $0x4] sm:$0xf]
        %v519 = vld [vmem:[%s299 + $0x8] sm:$0xf]
        %v520 = vld [vmem:[%s299 + $0xc] sm:$0xf]
        %v521 = vld [vmem:[%s299 + $0x10] sm:$0xf]
        %v522 = vld [vmem:[%s299 + $0x14] sm:$0xf]
        %v523 = vld [vmem:[%s299 + $0x18] sm:$0xf]
        %v524 = vld [vmem:[%s299 + $0x1c] sm:$0xf]
        %v525 = vld [vmem:[%s299 + $0x20] sm:$0xf]
        %v526 = vld [vmem:[%s299 + $0x24] sm:$0xf]
        %v527 = vld [vmem:[%s299 + $0x28] sm:$0xf]
        %v528 = vld [vmem:[%s299 + $0x2c] sm:$0xf]
        %v529 = vld [vmem:[%s299 + $0x30] sm:$0xf]
        %v530 = vld [vmem:[%s299 + $0x34] sm:$0xf]
        %v531 = vld [vmem:[%s299 + $0x38] sm:$0xf]
        %v532 = vld [vmem:[%s299 + $0x3c] sm:$0xf]
        %v533 = vld [vmem:[%s299 + $0x40] sm:$0xf]
        %v534 = vld [vmem:[%s299 + $0x44] sm:$0xf]
        %v535 = vld [vmem:[%s299 + $0x48] sm:$0xf]
        %v536 = vld [vmem:[%s299 + $0x4c] sm:$0xf]
        %v537 = vld [vmem:[%s299 + $0x50] sm:$0xf]
        %v538 = vld [vmem:[%s299 + $0x54] sm:$0xf]
        %v539 = vld [vmem:[%s299 + $0x58] sm:$0xf]
        %v540 = vld [vmem:[%s299 + $0x5c] sm:$0xf]
        %v541 = vld [vmem:[%s299 + $0x60] sm:$0xf]
        %v542 = vld [vmem:[%s299 + $0x64] sm:$0xf]
        %v543 = vld [vmem:[%s299 + $0x68] sm:$0xf]
        %v544 = vld [vmem:[%s299 + $0x6c] sm:$0xf]
        %v545 = vld [vmem:[%s299 + $0x70] sm:$0xf]
        %v546 = vld [vmem:[%s299 + $0x74] sm:$0xf]
        %v547 = vld [vmem:[%s299 + $0x78] sm:$0xf]
        %v548 = vld [vmem:[%s299 + $0x7c] sm:$0xf]
        %v549 = vunpack.c.l.bf16 %v517
        %v550 = vunpack.c.l.bf16 %v518
        %v551 = vunpack.c.l.bf16 %v519
        %v552 = vunpack.c.l.bf16 %v520
        %v553 = vunpack.c.l.bf16 %v521
        %v554 = vunpack.c.l.bf16 %v522
        %v555 = vunpack.c.l.bf16 %v523
        %v556 = vunpack.c.l.bf16 %v524
        %v557 = vunpack.c.l.bf16 %v525
        %v558 = vunpack.c.l.bf16 %v526
        %v559 = vunpack.c.l.bf16 %v527
        %v560 = vunpack.c.l.bf16 %v528
        %v561 = vunpack.c.l.bf16 %v529
        %v562 = vunpack.c.l.bf16 %v530
        %v563 = vunpack.c.l.bf16 %v531
        %v564 = vunpack.c.l.bf16 %v532
        %v565 = vunpack.c.l.bf16 %v533
        %v566 = vunpack.c.l.bf16 %v534
        %v567 = vunpack.c.l.bf16 %v535
        %v568 = vunpack.c.l.bf16 %v536
        %v569 = vunpack.c.l.bf16 %v537
        %v570 = vunpack.c.l.bf16 %v538
        %v571 = vunpack.c.l.bf16 %v539
        %v572 = vunpack.c.l.bf16 %v540
        %v573 = vunpack.c.l.bf16 %v541
        %v574 = vunpack.c.l.bf16 %v542
        %v575 = vunpack.c.l.bf16 %v543
        %v576 = vunpack.c.l.bf16 %v544
        %v577 = vunpack.c.l.bf16 %v545
        %v578 = vunpack.c.l.bf16 %v546
        %v579 = vunpack.c.l.bf16 %v547
        %v580 = vunpack.c.l.bf16 %v548
        %v581 = vld [vmem:[%s4] sm:$0x1]
        %v583 = vlaneseq
        %v584 = vshrl.u32 %v583, 7
        %v585 = vsub.s32 0, %v584
        %v586 = vrot.slane %v581, %v585
        %587 = vrot.lane.b32.xlu0 %v586, 120
        %v588 = vpop.permute.xlu0 %587
        %v590 = vmul.f32 %v549, %v588
        %v591 = vmul.f32 %v550, %v588
        %v592 = vmul.f32 %v551, %v588
        %v593 = vmul.f32 %v552, %v588
        %v594 = vmul.f32 %v553, %v588
        %v595 = vmul.f32 %v554, %v588
        %v596 = vmul.f32 %v555, %v588
        %v597 = vmul.f32 %v556, %v588
        %v598 = vmul.f32 %v557, %v588
        %v599 = vmul.f32 %v558, %v588
        %v600 = vmul.f32 %v559, %v588
        %v601 = vmul.f32 %v560, %v588
        %v602 = vmul.f32 %v561, %v588
        %v603 = vmul.f32 %v562, %v588
        %v604 = vmul.f32 %v563, %v588
        %v605 = vmul.f32 %v564, %v588
        %v606 = vmul.f32 %v565, %v588
        %v607 = vmul.f32 %v566, %v588
        %v608 = vmul.f32 %v567, %v588
        %v609 = vmul.f32 %v568, %v588
        %v610 = vmul.f32 %v569, %v588
        %v611 = vmul.f32 %v570, %v588
        %v612 = vmul.f32 %v571, %v588
        %v613 = vmul.f32 %v572, %v588
        %v614 = vmul.f32 %v573, %v588
        %v615 = vmul.f32 %v574, %v588
        %v616 = vmul.f32 %v575, %v588
        %v617 = vmul.f32 %v576, %v588
        %v618 = vmul.f32 %v577, %v588
        %v619 = vmul.f32 %v578, %v588
        %v620 = vmul.f32 %v579, %v588
        %v621 = vmul.f32 %v580, %v588
        %v622 = vld [vmem:[%s5] sm:$0x1]
        %v624 = vlaneseq
        %v625 = vshrl.u32 %v624, 7
        %v626 = vsub.s32 0, %v625
        %v627 = vrot.slane %v622, %v626
        %628 = vrot.lane.b32.xlu0 %v627, 120
        %v629 = vpop.permute.xlu0 %628
        %v631 = vadd.f32 %v590, %v629
        %v632 = vadd.f32 %v591, %v629
        %v633 = vadd.f32 %v592, %v629
        %v634 = vadd.f32 %v593, %v629
        %v635 = vadd.f32 %v594, %v629
        %v636 = vadd.f32 %v595, %v629
        %v637 = vadd.f32 %v596, %v629
        %v638 = vadd.f32 %v597, %v629
        %v639 = vadd.f32 %v598, %v629
        %v640 = vadd.f32 %v599, %v629
        %v641 = vadd.f32 %v600, %v629
        %v642 = vadd.f32 %v601, %v629
        %v643 = vadd.f32 %v602, %v629
        %v644 = vadd.f32 %v603, %v629
        %v645 = vadd.f32 %v604, %v629
        %v646 = vadd.f32 %v605, %v629
        %v647 = vadd.f32 %v606, %v629
        %v648 = vadd.f32 %v607, %v629
        %v649 = vadd.f32 %v608, %v629
        %v650 = vadd.f32 %v609, %v629
        %v651 = vadd.f32 %v610, %v629
        %v652 = vadd.f32 %v611, %v629
        %v653 = vadd.f32 %v612, %v629
        %v654 = vadd.f32 %v613, %v629
        %v655 = vadd.f32 %v614, %v629
        %v656 = vadd.f32 %v615, %v629
        %v657 = vadd.f32 %v616, %v629
        %v658 = vadd.f32 %v617, %v629
        %v659 = vadd.f32 %v618, %v629
        %v660 = vadd.f32 %v619, %v629
        %v661 = vadd.f32 %v620, %v629
        %v662 = vadd.f32 %v621, %v629
        %v663 = vmax.f32 %v631, 0.0
        %v664 = vmax.f32 %v632, 0.0
        %v665 = vmax.f32 %v633, 0.0
        %v666 = vmax.f32 %v634, 0.0
        %v667 = vmax.f32 %v635, 0.0
        %v668 = vmax.f32 %v636, 0.0
        %v669 = vmax.f32 %v637, 0.0
        %v670 = vmax.f32 %v638, 0.0
        %v671 = vmax.f32 %v639, 0.0
        %v672 = vmax.f32 %v640, 0.0
        %v673 = vmax.f32 %v641, 0.0
        %v674 = vmax.f32 %v642, 0.0
        %v675 = vmax.f32 %v643, 0.0
        %v676 = vmax.f32 %v644, 0.0
        %v677 = vmax.f32 %v645, 0.0
        %v678 = vmax.f32 %v646, 0.0
        %v679 = vmax.f32 %v647, 0.0
        %v680 = vmax.f32 %v648, 0.0
        %v681 = vmax.f32 %v649, 0.0
        %v682 = vmax.f32 %v650, 0.0
        %v683 = vmax.f32 %v651, 0.0
        %v684 = vmax.f32 %v652, 0.0
        %v685 = vmax.f32 %v653, 0.0
        %v686 = vmax.f32 %v654, 0.0
        %v687 = vmax.f32 %v655, 0.0
        %v688 = vmax.f32 %v656, 0.0
        %v689 = vmax.f32 %v657, 0.0
        %v690 = vmax.f32 %v658, 0.0
        %v691 = vmax.f32 %v659, 0.0
        %v692 = vmax.f32 %v660, 0.0
        %v693 = vmax.f32 %v661, 0.0
        %v694 = vmax.f32 %v662, 0.0
        %727 = vrot.lane.b32.xlu0 %v663, 8
        %v728 = vpop.permute.xlu0 %727
        %729 = vrot.lane.b32.xlu0 %v664, 8
        %v730 = vpop.permute.xlu0 %729
        %731 = vrot.lane.b32.xlu0 %v665, 8
        %v732 = vpop.permute.xlu0 %731
        %733 = vrot.lane.b32.xlu0 %v666, 8
        %v734 = vpop.permute.xlu0 %733
        %735 = vrot.lane.b32.xlu0 %v667, 8
        %v736 = vpop.permute.xlu0 %735
        %737 = vrot.lane.b32.xlu0 %v668, 8
        %v738 = vpop.permute.xlu0 %737
        %739 = vrot.lane.b32.xlu0 %v669, 8
        %v740 = vpop.permute.xlu0 %739
        %741 = vrot.lane.b32.xlu0 %v670, 8
        %v742 = vpop.permute.xlu0 %741
        %743 = vrot.lane.b32.xlu0 %v671, 8
        %v744 = vpop.permute.xlu0 %743
        %745 = vrot.lane.b32.xlu0 %v672, 8
        %v746 = vpop.permute.xlu0 %745
        %747 = vrot.lane.b32.xlu0 %v673, 8
        %v748 = vpop.permute.xlu0 %747
        %749 = vrot.lane.b32.xlu0 %v674, 8
        %v750 = vpop.permute.xlu0 %749
        %751 = vrot.lane.b32.xlu0 %v675, 8
        %v752 = vpop.permute.xlu0 %751
        %753 = vrot.lane.b32.xlu0 %v676, 8
        %v754 = vpop.permute.xlu0 %753
        %755 = vrot.lane.b32.xlu0 %v677, 8
        %v756 = vpop.permute.xlu0 %755
        %757 = vrot.lane.b32.xlu0 %v678, 8
        %v758 = vpop.permute.xlu0 %757
        %759 = vrot.lane.b32.xlu0 %v679, 8
        %v760 = vpop.permute.xlu0 %759
        %761 = vrot.lane.b32.xlu0 %v680, 8
        %v762 = vpop.permute.xlu0 %761
        %763 = vrot.lane.b32.xlu0 %v681, 8
        %v764 = vpop.permute.xlu0 %763
        %765 = vrot.lane.b32.xlu0 %v682, 8
        %v766 = vpop.permute.xlu0 %765
        %767 = vrot.lane.b32.xlu0 %v683, 8
        %v768 = vpop.permute.xlu0 %767
        %769 = vrot.lane.b32.xlu0 %v684, 8
        %v770 = vpop.permute.xlu0 %769
        %771 = vrot.lane.b32.xlu0 %v685, 8
        %v772 = vpop.permute.xlu0 %771
        %773 = vrot.lane.b32.xlu0 %v686, 8
        %v774 = vpop.permute.xlu0 %773
        %775 = vrot.lane.b32.xlu0 %v687, 8
        %v776 = vpop.permute.xlu0 %775
        %777 = vrot.lane.b32.xlu0 %v688, 8
        %v778 = vpop.permute.xlu0 %777
        %779 = vrot.lane.b32.xlu0 %v689, 8
        %v780 = vpop.permute.xlu0 %779
        %781 = vrot.lane.b32.xlu0 %v690, 8
        %v782 = vpop.permute.xlu0 %781
        %783 = vrot.lane.b32.xlu0 %v691, 8
        %v784 = vpop.permute.xlu0 %783
        %785 = vrot.lane.b32.xlu0 %v692, 8
        %v786 = vpop.permute.xlu0 %785
        %787 = vrot.lane.b32.xlu0 %v693, 8
        %v788 = vpop.permute.xlu0 %787
        %789 = vrot.lane.b32.xlu0 %v694, 8
        %v790 = vpop.permute.xlu0 %789
        %vm823 = vcmask 130112
        %824 = vst.msk [vmem:[%s289] sm:$0xff] %vm823, %v728
        %825 = vst.msk [vmem:[%s289 + $0x8] sm:$0xff] %vm823, %v730
        %826 = vst.msk [vmem:[%s289 + $0x10] sm:$0xff] %vm823, %v732
        %827 = vst.msk [vmem:[%s289 + $0x18] sm:$0xff] %vm823, %v734
        %828 = vst.msk [vmem:[%s289 + $0x20] sm:$0xff] %vm823, %v736
        %829 = vst.msk [vmem:[%s289 + $0x28] sm:$0xff] %vm823, %v738
        %830 = vst.msk [vmem:[%s289 + $0x30] sm:$0xff] %vm823, %v740
        %831 = vst.msk [vmem:[%s289 + $0x38] sm:$0xff] %vm823, %v742
        %832 = vst.msk [vmem:[%s289 + $0x40] sm:$0xff] %vm823, %v744
        %833 = vst.msk [vmem:[%s289 + $0x48] sm:$0xff] %vm823, %v746
        %834 = vst.msk [vmem:[%s289 + $0x50] sm:$0xff] %vm823, %v748
        %835 = vst.msk [vmem:[%s289 + $0x58] sm:$0xff] %vm823, %v750
        %836 = vst.msk [vmem:[%s289 + $0x60] sm:$0xff] %vm823, %v752
        %837 = vst.msk [vmem:[%s289 + $0x68] sm:$0xff] %vm823, %v754
        %838 = vst.msk [vmem:[%s289 + $0x70] sm:$0xff] %vm823, %v756
        %839 = vst.msk [vmem:[%s289 + $0x78] sm:$0xff] %vm823, %v758
        %840 = vst.msk [vmem:[%s289 + $0x80] sm:$0xff] %vm823, %v760
        %841 = vst.msk [vmem:[%s289 + $0x88] sm:$0xff] %vm823, %v762
        %842 = vst.msk [vmem:[%s289 + $0x90] sm:$0xff] %vm823, %v764
        %843 = vst.msk [vmem:[%s289 + $0x98] sm:$0xff] %vm823, %v766
        %844 = vst.msk [vmem:[%s289 + $0xa0] sm:$0xff] %vm823, %v768
        %845 = vst.msk [vmem:[%s289 + $0xa8] sm:$0xff] %vm823, %v770
        %846 = vst.msk [vmem:[%s289 + $0xb0] sm:$0xff] %vm823, %v772
        %847 = vst.msk [vmem:[%s289 + $0xb8] sm:$0xff] %vm823, %v774
        %848 = vst.msk [vmem:[%s289 + $0xc0] sm:$0xff] %vm823, %v776
        %849 = vst.msk [vmem:[%s289 + $0xc8] sm:$0xff] %vm823, %v778
        %850 = vst.msk [vmem:[%s289 + $0xd0] sm:$0xff] %vm823, %v780
        %851 = vst.msk [vmem:[%s289 + $0xd8] sm:$0xff] %vm823, %v782
        %852 = vst.msk [vmem:[%s289 + $0xe0] sm:$0xff] %vm823, %v784
        %853 = vst.msk [vmem:[%s289 + $0xe8] sm:$0xff] %vm823, %v786
        %854 = vst.msk [vmem:[%s289 + $0xf0] sm:$0xff] %vm823, %v788
        %855 = vst.msk [vmem:[%s289 + $0xf8] sm:$0xff] %vm823, %v790
        %v856 = vld [vmem:[%s304] sm:$0xf]
        %v857 = vld [vmem:[%s304 + $0x4] sm:$0xf]
        %v858 = vld [vmem:[%s304 + $0x8] sm:$0xf]
        %v859 = vld [vmem:[%s304 + $0xc] sm:$0xf]
        %v860 = vld [vmem:[%s304 + $0x10] sm:$0xf]
        %v861 = vld [vmem:[%s304 + $0x14] sm:$0xf]
        %v862 = vld [vmem:[%s304 + $0x18] sm:$0xf]
        %v863 = vld [vmem:[%s304 + $0x1c] sm:$0xf]
        %v864 = vld [vmem:[%s304 + $0x20] sm:$0xf]
        %v865 = vld [vmem:[%s304 + $0x24] sm:$0xf]
        %v866 = vld [vmem:[%s304 + $0x28] sm:$0xf]
        %v867 = vld [vmem:[%s304 + $0x2c] sm:$0xf]
        %v868 = vld [vmem:[%s304 + $0x30] sm:$0xf]
        %v869 = vld [vmem:[%s304 + $0x34] sm:$0xf]
        %v870 = vld [vmem:[%s304 + $0x38] sm:$0xf]
        %v871 = vld [vmem:[%s304 + $0x3c] sm:$0xf]
        %v872 = vld [vmem:[%s304 + $0x40] sm:$0xf]
        %v873 = vld [vmem:[%s304 + $0x44] sm:$0xf]
        %v874 = vld [vmem:[%s304 + $0x48] sm:$0xf]
        %v875 = vld [vmem:[%s304 + $0x4c] sm:$0xf]
        %v876 = vld [vmem:[%s304 + $0x50] sm:$0xf]
        %v877 = vld [vmem:[%s304 + $0x54] sm:$0xf]
        %v878 = vld [vmem:[%s304 + $0x58] sm:$0xf]
        %v879 = vld [vmem:[%s304 + $0x5c] sm:$0xf]
        %v880 = vld [vmem:[%s304 + $0x60] sm:$0xf]
        %v881 = vld [vmem:[%s304 + $0x64] sm:$0xf]
        %v882 = vld [vmem:[%s304 + $0x68] sm:$0xf]
        %v883 = vld [vmem:[%s304 + $0x6c] sm:$0xf]
        %v884 = vld [vmem:[%s304 + $0x70] sm:$0xf]
        %v885 = vld [vmem:[%s304 + $0x74] sm:$0xf]
        %v886 = vld [vmem:[%s304 + $0x78] sm:$0xf]
        %v887 = vld [vmem:[%s304 + $0x7c] sm:$0xf]
        %v888 = vunpack.c.l.bf16 %v856
        %v889 = vunpack.c.l.bf16 %v857
        %v890 = vunpack.c.l.bf16 %v858
        %v891 = vunpack.c.l.bf16 %v859
        %v892 = vunpack.c.l.bf16 %v860
        %v893 = vunpack.c.l.bf16 %v861
        %v894 = vunpack.c.l.bf16 %v862
        %v895 = vunpack.c.l.bf16 %v863
        %v896 = vunpack.c.l.bf16 %v864
        %v897 = vunpack.c.l.bf16 %v865
        %v898 = vunpack.c.l.bf16 %v866
        %v899 = vunpack.c.l.bf16 %v867
        %v900 = vunpack.c.l.bf16 %v868
        %v901 = vunpack.c.l.bf16 %v869
        %v902 = vunpack.c.l.bf16 %v870
        %v903 = vunpack.c.l.bf16 %v871
        %v904 = vunpack.c.l.bf16 %v872
        %v905 = vunpack.c.l.bf16 %v873
        %v906 = vunpack.c.l.bf16 %v874
        %v907 = vunpack.c.l.bf16 %v875
        %v908 = vunpack.c.l.bf16 %v876
        %v909 = vunpack.c.l.bf16 %v877
        %v910 = vunpack.c.l.bf16 %v878
        %v911 = vunpack.c.l.bf16 %v879
        %v912 = vunpack.c.l.bf16 %v880
        %v913 = vunpack.c.l.bf16 %v881
        %v914 = vunpack.c.l.bf16 %v882
        %v915 = vunpack.c.l.bf16 %v883
        %v916 = vunpack.c.l.bf16 %v884
        %v917 = vunpack.c.l.bf16 %v885
        %v918 = vunpack.c.l.bf16 %v886
        %v919 = vunpack.c.l.bf16 %v887
        %v920 = vld [vmem:[%s4] sm:$0x1]
        %v922 = vlaneseq
        %v923 = vshrl.u32 %v922, 7
        %v924 = vsub.s32 0, %v923
        %v925 = vrot.slane %v920, %v924
        %926 = vrot.lane.b32.xlu0 %v925, 112
        %v927 = vpop.permute.xlu0 %926
        %v929 = vmul.f32 %v888, %v927
        %v930 = vmul.f32 %v889, %v927
        %v931 = vmul.f32 %v890, %v927
        %v932 = vmul.f32 %v891, %v927
        %v933 = vmul.f32 %v892, %v927
        %v934 = vmul.f32 %v893, %v927
        %v935 = vmul.f32 %v894, %v927
        %v936 = vmul.f32 %v895, %v927
        %v937 = vmul.f32 %v896, %v927
        %v938 = vmul.f32 %v897, %v927
        %v939 = vmul.f32 %v898, %v927
        %v940 = vmul.f32 %v899, %v927
        %v941 = vmul.f32 %v900, %v927
        %v942 = vmul.f32 %v901, %v927
        %v943 = vmul.f32 %v902, %v927
        %v944 = vmul.f32 %v903, %v927
        %v945 = vmul.f32 %v904, %v927
        %v946 = vmul.f32 %v905, %v927
        %v947 = vmul.f32 %v906, %v927
        %v948 = vmul.f32 %v907, %v927
        %v949 = vmul.f32 %v908, %v927
        %v950 = vmul.f32 %v909, %v927
        %v951 = vmul.f32 %v910, %v927
        %v952 = vmul.f32 %v911, %v927
        %v953 = vmul.f32 %v912, %v927
        %v954 = vmul.f32 %v913, %v927
        %v955 = vmul.f32 %v914, %v927
        %v956 = vmul.f32 %v915, %v927
        %v957 = vmul.f32 %v916, %v927
        %v958 = vmul.f32 %v917, %v927
        %v959 = vmul.f32 %v918, %v927
        %v960 = vmul.f32 %v919, %v927
        %v961 = vld [vmem:[%s5] sm:$0x1]
        %v963 = vlaneseq
        %v964 = vshrl.u32 %v963, 7
        %v965 = vsub.s32 0, %v964
        %v966 = vrot.slane %v961, %v965
        %967 = vrot.lane.b32.xlu0 %v966, 112
        %v968 = vpop.permute.xlu0 %967
        %v970 = vadd.f32 %v929, %v968
        %v971 = vadd.f32 %v930, %v968
        %v972 = vadd.f32 %v931, %v968
        %v973 = vadd.f32 %v932, %v968
        %v974 = vadd.f32 %v933, %v968
        %v975 = vadd.f32 %v934, %v968
        %v976 = vadd.f32 %v935, %v968
        %v977 = vadd.f32 %v936, %v968
        %v978 = vadd.f32 %v937, %v968
        %v979 = vadd.f32 %v938, %v968
        %v980 = vadd.f32 %v939, %v968
        %v981 = vadd.f32 %v940, %v968
        %v982 = vadd.f32 %v941, %v968
        %v983 = vadd.f32 %v942, %v968
        %v984 = vadd.f32 %v943, %v968
        %v985 = vadd.f32 %v944, %v968
        %v986 = vadd.f32 %v945, %v968
        %v987 = vadd.f32 %v946, %v968
        %v988 = vadd.f32 %v947, %v968
        %v989 = vadd.f32 %v948, %v968
        %v990 = vadd.f32 %v949, %v968
        %v991 = vadd.f32 %v950, %v968
        %v992 = vadd.f32 %v951, %v968
        %v993 = vadd.f32 %v952, %v968
        %v994 = vadd.f32 %v953, %v968
        %v995 = vadd.f32 %v954, %v968
        %v996 = vadd.f32 %v955, %v968
        %v997 = vadd.f32 %v956, %v968
        %v998 = vadd.f32 %v957, %v968
        %v999 = vadd.f32 %v958, %v968
        %v1000 = vadd.f32 %v959, %v968
        %v1001 = vadd.f32 %v960, %v968
        %v1002 = vmax.f32 %v970, 0.0
        %v1003 = vmax.f32 %v971, 0.0
        %v1004 = vmax.f32 %v972, 0.0
        %v1005 = vmax.f32 %v973, 0.0
        %v1006 = vmax.f32 %v974, 0.0
        %v1007 = vmax.f32 %v975, 0.0
        %v1008 = vmax.f32 %v976, 0.0
        %v1009 = vmax.f32 %v977, 0.0
        %v1010 = vmax.f32 %v978, 0.0
        %v1011 = vmax.f32 %v979, 0.0
        %v1012 = vmax.f32 %v980, 0.0
        %v1013 = vmax.f32 %v981, 0.0
        %v1014 = vmax.f32 %v982, 0.0
        %v1015 = vmax.f32 %v983, 0.0
        %v1016 = vmax.f32 %v984, 0.0
        %v1017 = vmax.f32 %v985, 0.0
        %v1018 = vmax.f32 %v986, 0.0
        %v1019 = vmax.f32 %v987, 0.0
        %v1020 = vmax.f32 %v988, 0.0
        %v1021 = vmax.f32 %v989, 0.0
        %v1022 = vmax.f32 %v990, 0.0
        %v1023 = vmax.f32 %v991, 0.0
        %v1024 = vmax.f32 %v992, 0.0
        %v1025 = vmax.f32 %v993, 0.0
        %v1026 = vmax.f32 %v994, 0.0
        %v1027 = vmax.f32 %v995, 0.0
        %v1028 = vmax.f32 %v996, 0.0
        %v1029 = vmax.f32 %v997, 0.0
        %v1030 = vmax.f32 %v998, 0.0
        %v1031 = vmax.f32 %v999, 0.0
        %v1032 = vmax.f32 %v1000, 0.0
        %v1033 = vmax.f32 %v1001, 0.0
        %1066 = vrot.lane.b32.xlu0 %v1002, 16
        %v1067 = vpop.permute.xlu0 %1066
        %1068 = vrot.lane.b32.xlu0 %v1003, 16
        %v1069 = vpop.permute.xlu0 %1068
        %1070 = vrot.lane.b32.xlu0 %v1004, 16
        %v1071 = vpop.permute.xlu0 %1070
        %1072 = vrot.lane.b32.xlu0 %v1005, 16
        %v1073 = vpop.permute.xlu0 %1072
        %1074 = vrot.lane.b32.xlu0 %v1006, 16
        %v1075 = vpop.permute.xlu0 %1074
        %1076 = vrot.lane.b32.xlu0 %v1007, 16
        %v1077 = vpop.permute.xlu0 %1076
        %1078 = vrot.lane.b32.xlu0 %v1008, 16
        %v1079 = vpop.permute.xlu0 %1078
        %1080 = vrot.lane.b32.xlu0 %v1009, 16
        %v1081 = vpop.permute.xlu0 %1080
        %1082 = vrot.lane.b32.xlu0 %v1010, 16
        %v1083 = vpop.permute.xlu0 %1082
        %1084 = vrot.lane.b32.xlu0 %v1011, 16
        %v1085 = vpop.permute.xlu0 %1084
        %1086 = vrot.lane.b32.xlu0 %v1012, 16
        %v1087 = vpop.permute.xlu0 %1086
        %1088 = vrot.lane.b32.xlu0 %v1013, 16
        %v1089 = vpop.permute.xlu0 %1088
        %1090 = vrot.lane.b32.xlu0 %v1014, 16
        %v1091 = vpop.permute.xlu0 %1090
        %1092 = vrot.lane.b32.xlu0 %v1015, 16
        %v1093 = vpop.permute.xlu0 %1092
        %1094 = vrot.lane.b32.xlu0 %v1016, 16
        %v1095 = vpop.permute.xlu0 %1094
        %1096 = vrot.lane.b32.xlu0 %v1017, 16
        %v1097 = vpop.permute.xlu0 %1096
        %1098 = vrot.lane.b32.xlu0 %v1018, 16
        %v1099 = vpop.permute.xlu0 %1098
        %1100 = vrot.lane.b32.xlu0 %v1019, 16
        %v1101 = vpop.permute.xlu0 %1100
        %1102 = vrot.lane.b32.xlu0 %v1020, 16
        %v1103 = vpop.permute.xlu0 %1102
        %1104 = vrot.lane.b32.xlu0 %v1021, 16
        %v1105 = vpop.permute.xlu0 %1104
        %1106 = vrot.lane.b32.xlu0 %v1022, 16
        %v1107 = vpop.permute.xlu0 %1106
        %1108 = vrot.lane.b32.xlu0 %v1023, 16
        %v1109 = vpop.permute.xlu0 %1108
        %1110 = vrot.lane.b32.xlu0 %v1024, 16
        %v1111 = vpop.permute.xlu0 %1110
        %1112 = vrot.lane.b32.xlu0 %v1025, 16
        %v1113 = vpop.permute.xlu0 %1112
        %1114 = vrot.lane.b32.xlu0 %v1026, 16
        %v1115 = vpop.permute.xlu0 %1114
        %1116 = vrot.lane.b32.xlu0 %v1027, 16
        %v1117 = vpop.permute.xlu0 %1116
        %1118 = vrot.lane.b32.xlu0 %v1028, 16
        %v1119 = vpop.permute.xlu0 %1118
        %1120 = vrot.lane.b32.xlu0 %v1029, 16
        %v1121 = vpop.permute.xlu0 %1120
        %1122 = vrot.lane.b32.xlu0 %v1030, 16
        %v1123 = vpop.permute.xlu0 %1122
        %1124 = vrot.lane.b32.xlu0 %v1031, 16
        %v1125 = vpop.permute.xlu0 %1124
        %1126 = vrot.lane.b32.xlu0 %v1032, 16
        %v1127 = vpop.permute.xlu0 %1126
        %1128 = vrot.lane.b32.xlu0 %v1033, 16
        %v1129 = vpop.permute.xlu0 %1128
        %vm1162 = vcmask 195712
        %1163 = vst.msk [vmem:[%s289] sm:$0xff] %vm1162, %v1067
        %1164 = vst.msk [vmem:[%s289 + $0x8] sm:$0xff] %vm1162, %v1069
        %1165 = vst.msk [vmem:[%s289 + $0x10] sm:$0xff] %vm1162, %v1071
        %1166 = vst.msk [vmem:[%s289 + $0x18] sm:$0xff] %vm1162, %v1073
        %1167 = vst.msk [vmem:[%s289 + $0x20] sm:$0xff] %vm1162, %v1075
        %1168 = vst.msk [vmem:[%s289 + $0x28] sm:$0xff] %vm1162, %v1077
        %1169 = vst.msk [vmem:[%s289 + $0x30] sm:$0xff] %vm1162, %v1079
        %1170 = vst.msk [vmem:[%s289 + $0x38] sm:$0xff] %vm1162, %v1081
        %1171 = vst.msk [vmem:[%s289 + $0x40] sm:$0xff] %vm1162, %v1083
        %1172 = vst.msk [vmem:[%s289 + $0x48] sm:$0xff] %vm1162, %v1085
        %1173 = vst.msk [vmem:[%s289 + $0x50] sm:$0xff] %vm1162, %v1087
        %1174 = vst.msk [vmem:[%s289 + $0x58] sm:$0xff] %vm1162, %v1089
        %1175 = vst.msk [vmem:[%s289 + $0x60] sm:$0xff] %vm1162, %v1091
        %1176 = vst.msk [vmem:[%s289 + $0x68] sm:$0xff] %vm1162, %v1093
        %1177 = vst.msk [vmem:[%s289 + $0x70] sm:$0xff] %vm1162, %v1095
        %1178 = vst.msk [vmem:[%s289 + $0x78] sm:$0xff] %vm1162, %v1097
        %1179 = vst.msk [vmem:[%s289 + $0x80] sm:$0xff] %vm1162, %v1099
        %1180 = vst.msk [vmem:[%s289 + $0x88] sm:$0xff] %vm1162, %v1101
        %1181 = vst.msk [vmem:[%s289 + $0x90] sm:$0xff] %vm1162, %v1103
        %1182 = vst.msk [vmem:[%s289 + $0x98] sm:$0xff] %vm1162, %v1105
        %1183 = vst.msk [vmem:[%s289 + $0xa0] sm:$0xff] %vm1162, %v1107
        %1184 = vst.msk [vmem:[%s289 + $0xa8] sm:$0xff] %vm1162, %v1109
        %1185 = vst.msk [vmem:[%s289 + $0xb0] sm:$0xff] %vm1162, %v1111
        %1186 = vst.msk [vmem:[%s289 + $0xb8] sm:$0xff] %vm1162, %v1113
        %1187 = vst.msk [vmem:[%s289 + $0xc0] sm:$0xff] %vm1162, %v1115
        %1188 = vst.msk [vmem:[%s289 + $0xc8] sm:$0xff] %vm1162, %v1117
        %1189 = vst.msk [vmem:[%s289 + $0xd0] sm:$0xff] %vm1162, %v1119
        %1190 = vst.msk [vmem:[%s289 + $0xd8] sm:$0xff] %vm1162, %v1121
        %1191 = vst.msk [vmem:[%s289 + $0xe0] sm:$0xff] %vm1162, %v1123
        %1192 = vst.msk [vmem:[%s289 + $0xe8] sm:$0xff] %vm1162, %v1125
        %1193 = vst.msk [vmem:[%s289 + $0xf0] sm:$0xff] %vm1162, %v1127
        %1194 = vst.msk [vmem:[%s289 + $0xf8] sm:$0xff] %vm1162, %v1129
        %v1195 = vld [vmem:[%s309] sm:$0xf]
        %v1196 = vld [vmem:[%s309 + $0x4] sm:$0xf]
        %v1197 = vld [vmem:[%s309 + $0x8] sm:$0xf]
        %v1198 = vld [vmem:[%s309 + $0xc] sm:$0xf]
        %v1199 = vld [vmem:[%s309 + $0x10] sm:$0xf]
        %v1200 = vld [vmem:[%s309 + $0x14] sm:$0xf]
        %v1201 = vld [vmem:[%s309 + $0x18] sm:$0xf]
        %v1202 = vld [vmem:[%s309 + $0x1c] sm:$0xf]
        %v1203 = vld [vmem:[%s309 + $0x20] sm:$0xf]
        %v1204 = vld [vmem:[%s309 + $0x24] sm:$0xf]
        %v1205 = vld [vmem:[%s309 + $0x28] sm:$0xf]
        %v1206 = vld [vmem:[%s309 + $0x2c] sm:$0xf]
        %v1207 = vld [vmem:[%s309 + $0x30] sm:$0xf]
        %v1208 = vld [vmem:[%s309 + $0x34] sm:$0xf]
        %v1209 = vld [vmem:[%s309 + $0x38] sm:$0xf]
        %v1210 = vld [vmem:[%s309 + $0x3c] sm:$0xf]
        %v1211 = vld [vmem:[%s309 + $0x40] sm:$0xf]
        %v1212 = vld [vmem:[%s309 + $0x44] sm:$0xf]
        %v1213 = vld [vmem:[%s309 + $0x48] sm:$0xf]
        %v1214 = vld [vmem:[%s309 + $0x4c] sm:$0xf]
        %v1215 = vld [vmem:[%s309 + $0x50] sm:$0xf]
        %v1216 = vld [vmem:[%s309 + $0x54] sm:$0xf]
        %v1217 = vld [vmem:[%s309 + $0x58] sm:$0xf]
        %v1218 = vld [vmem:[%s309 + $0x5c] sm:$0xf]
        %v1219 = vld [vmem:[%s309 + $0x60] sm:$0xf]
        %v1220 = vld [vmem:[%s309 + $0x64] sm:$0xf]
        %v1221 = vld [vmem:[%s309 + $0x68] sm:$0xf]
        %v1222 = vld [vmem:[%s309 + $0x6c] sm:$0xf]
        %v1223 = vld [vmem:[%s309 + $0x70] sm:$0xf]
        %v1224 = vld [vmem:[%s309 + $0x74] sm:$0xf]
        %v1225 = vld [vmem:[%s309 + $0x78] sm:$0xf]
        %v1226 = vld [vmem:[%s309 + $0x7c] sm:$0xf]
        %v1227 = vunpack.c.l.bf16 %v1195
        %v1228 = vunpack.c.l.bf16 %v1196
        %v1229 = vunpack.c.l.bf16 %v1197
        %v1230 = vunpack.c.l.bf16 %v1198
        %v1231 = vunpack.c.l.bf16 %v1199
        %v1232 = vunpack.c.l.bf16 %v1200
        %v1233 = vunpack.c.l.bf16 %v1201
        %v1234 = vunpack.c.l.bf16 %v1202
        %v1235 = vunpack.c.l.bf16 %v1203
        %v1236 = vunpack.c.l.bf16 %v1204
        %v1237 = vunpack.c.l.bf16 %v1205
        %v1238 = vunpack.c.l.bf16 %v1206
        %v1239 = vunpack.c.l.bf16 %v1207
        %v1240 = vunpack.c.l.bf16 %v1208
        %v1241 = vunpack.c.l.bf16 %v1209
        %v1242 = vunpack.c.l.bf16 %v1210
        %v1243 = vunpack.c.l.bf16 %v1211
        %v1244 = vunpack.c.l.bf16 %v1212
        %v1245 = vunpack.c.l.bf16 %v1213
        %v1246 = vunpack.c.l.bf16 %v1214
        %v1247 = vunpack.c.l.bf16 %v1215
        %v1248 = vunpack.c.l.bf16 %v1216
        %v1249 = vunpack.c.l.bf16 %v1217
        %v1250 = vunpack.c.l.bf16 %v1218
        %v1251 = vunpack.c.l.bf16 %v1219
        %v1252 = vunpack.c.l.bf16 %v1220
        %v1253 = vunpack.c.l.bf16 %v1221
        %v1254 = vunpack.c.l.bf16 %v1222
        %v1255 = vunpack.c.l.bf16 %v1223
        %v1256 = vunpack.c.l.bf16 %v1224
        %v1257 = vunpack.c.l.bf16 %v1225
        %v1258 = vunpack.c.l.bf16 %v1226
        %v1259 = vld [vmem:[%s4] sm:$0x1]
        %v1261 = vlaneseq
        %v1262 = vshrl.u32 %v1261, 7
        %v1263 = vsub.s32 0, %v1262
        %v1264 = vrot.slane %v1259, %v1263
        %1265 = vrot.lane.b32.xlu0 %v1264, 104
        %v1266 = vpop.permute.xlu0 %1265
        %v1268 = vmul.f32 %v1227, %v1266
        %v1269 = vmul.f32 %v1228, %v1266
        %v1270 = vmul.f32 %v1229, %v1266
        %v1271 = vmul.f32 %v1230, %v1266
        %v1272 = vmul.f32 %v1231, %v1266
        %v1273 = vmul.f32 %v1232, %v1266
        %v1274 = vmul.f32 %v1233, %v1266
        %v1275 = vmul.f32 %v1234, %v1266
        %v1276 = vmul.f32 %v1235, %v1266
        %v1277 = vmul.f32 %v1236, %v1266
        %v1278 = vmul.f32 %v1237, %v1266
        %v1279 = vmul.f32 %v1238, %v1266
        %v1280 = vmul.f32 %v1239, %v1266
        %v1281 = vmul.f32 %v1240, %v1266
        %v1282 = vmul.f32 %v1241, %v1266
        %v1283 = vmul.f32 %v1242, %v1266
        %v1284 = vmul.f32 %v1243, %v1266
        %v1285 = vmul.f32 %v1244, %v1266
        %v1286 = vmul.f32 %v1245, %v1266
        %v1287 = vmul.f32 %v1246, %v1266
        %v1288 = vmul.f32 %v1247, %v1266
        %v1289 = vmul.f32 %v1248, %v1266
        %v1290 = vmul.f32 %v1249, %v1266
        %v1291 = vmul.f32 %v1250, %v1266
        %v1292 = vmul.f32 %v1251, %v1266
        %v1293 = vmul.f32 %v1252, %v1266
        %v1294 = vmul.f32 %v1253, %v1266
        %v1295 = vmul.f32 %v1254, %v1266
        %v1296 = vmul.f32 %v1255, %v1266
        %v1297 = vmul.f32 %v1256, %v1266
        %v1298 = vmul.f32 %v1257, %v1266
        %v1299 = vmul.f32 %v1258, %v1266
        %v1300 = vld [vmem:[%s5] sm:$0x1]
        %v1302 = vlaneseq
        %v1303 = vshrl.u32 %v1302, 7
        %v1304 = vsub.s32 0, %v1303
        %v1305 = vrot.slane %v1300, %v1304
        %1306 = vrot.lane.b32.xlu0 %v1305, 104
        %v1307 = vpop.permute.xlu0 %1306
        %v1309 = vadd.f32 %v1268, %v1307
        %v1310 = vadd.f32 %v1269, %v1307
        %v1311 = vadd.f32 %v1270, %v1307
        %v1312 = vadd.f32 %v1271, %v1307
        %v1313 = vadd.f32 %v1272, %v1307
        %v1314 = vadd.f32 %v1273, %v1307
        %v1315 = vadd.f32 %v1274, %v1307
        %v1316 = vadd.f32 %v1275, %v1307
        %v1317 = vadd.f32 %v1276, %v1307
        %v1318 = vadd.f32 %v1277, %v1307
        %v1319 = vadd.f32 %v1278, %v1307
        %v1320 = vadd.f32 %v1279, %v1307
        %v1321 = vadd.f32 %v1280, %v1307
        %v1322 = vadd.f32 %v1281, %v1307
        %v1323 = vadd.f32 %v1282, %v1307
        %v1324 = vadd.f32 %v1283, %v1307
        %v1325 = vadd.f32 %v1284, %v1307
        %v1326 = vadd.f32 %v1285, %v1307
        %v1327 = vadd.f32 %v1286, %v1307
        %v1328 = vadd.f32 %v1287, %v1307
        %v1329 = vadd.f32 %v1288, %v1307
        %v1330 = vadd.f32 %v1289, %v1307
        %v1331 = vadd.f32 %v1290, %v1307
        %v1332 = vadd.f32 %v1291, %v1307
        %v1333 = vadd.f32 %v1292, %v1307
        %v1334 = vadd.f32 %v1293, %v1307
        %v1335 = vadd.f32 %v1294, %v1307
        %v1336 = vadd.f32 %v1295, %v1307
        %v1337 = vadd.f32 %v1296, %v1307
        %v1338 = vadd.f32 %v1297, %v1307
        %v1339 = vadd.f32 %v1298, %v1307
        %v1340 = vadd.f32 %v1299, %v1307
        %v1341 = vmax.f32 %v1309, 0.0
        %v1342 = vmax.f32 %v1310, 0.0
        %v1343 = vmax.f32 %v1311, 0.0
        %v1344 = vmax.f32 %v1312, 0.0
        %v1345 = vmax.f32 %v1313, 0.0
        %v1346 = vmax.f32 %v1314, 0.0
        %v1347 = vmax.f32 %v1315, 0.0
        %v1348 = vmax.f32 %v1316, 0.0
        %v1349 = vmax.f32 %v1317, 0.0
        %v1350 = vmax.f32 %v1318, 0.0
        %v1351 = vmax.f32 %v1319, 0.0
        %v1352 = vmax.f32 %v1320, 0.0
        %v1353 = vmax.f32 %v1321, 0.0
        %v1354 = vmax.f32 %v1322, 0.0
        %v1355 = vmax.f32 %v1323, 0.0
        %v1356 = vmax.f32 %v1324, 0.0
        %v1357 = vmax.f32 %v1325, 0.0
        %v1358 = vmax.f32 %v1326, 0.0
        %v1359 = vmax.f32 %v1327, 0.0
        %v1360 = vmax.f32 %v1328, 0.0
        %v1361 = vmax.f32 %v1329, 0.0
        %v1362 = vmax.f32 %v1330, 0.0
        %v1363 = vmax.f32 %v1331, 0.0
        %v1364 = vmax.f32 %v1332, 0.0
        %v1365 = vmax.f32 %v1333, 0.0
        %v1366 = vmax.f32 %v1334, 0.0
        %v1367 = vmax.f32 %v1335, 0.0
        %v1368 = vmax.f32 %v1336, 0.0
        %v1369 = vmax.f32 %v1337, 0.0
        %v1370 = vmax.f32 %v1338, 0.0
        %v1371 = vmax.f32 %v1339, 0.0
        %v1372 = vmax.f32 %v1340, 0.0
        %1405 = vrot.lane.b32.xlu0 %v1341, 24
        %v1406 = vpop.permute.xlu0 %1405
        %1407 = vrot.lane.b32.xlu0 %v1342, 24
        %v1408 = vpop.permute.xlu0 %1407
        %1409 = vrot.lane.b32.xlu0 %v1343, 24
        %v1410 = vpop.permute.xlu0 %1409
        %1411 = vrot.lane.b32.xlu0 %v1344, 24
        %v1412 = vpop.permute.xlu0 %1411
        %1413 = vrot.lane.b32.xlu0 %v1345, 24
        %v1414 = vpop.permute.xlu0 %1413
        %1415 = vrot.lane.b32.xlu0 %v1346, 24
        %v1416 = vpop.permute.xlu0 %1415
        %1417 = vrot.lane.b32.xlu0 %v1347, 24
        %v1418 = vpop.permute.xlu0 %1417
        %1419 = vrot.lane.b32.xlu0 %v1348, 24
        %v1420 = vpop.permute.xlu0 %1419
        %1421 = vrot.lane.b32.xlu0 %v1349, 24
        %v1422 = vpop.permute.xlu0 %1421
        %1423 = vrot.lane.b32.xlu0 %v1350, 24
        %v1424 = vpop.permute.xlu0 %1423
        %1425 = vrot.lane.b32.xlu0 %v1351, 24
        %v1426 = vpop.permute.xlu0 %1425
        %1427 = vrot.lane.b32.xlu0 %v1352, 24
        %v1428 = vpop.permute.xlu0 %1427
        %1429 = vrot.lane.b32.xlu0 %v1353, 24
        %v1430 = vpop.permute.xlu0 %1429
        %1431 = vrot.lane.b32.xlu0 %v1354, 24
        %v1432 = vpop.permute.xlu0 %1431
        %1433 = vrot.lane.b32.xlu0 %v1355, 24
        %v1434 = vpop.permute.xlu0 %1433
        %1435 = vrot.lane.b32.xlu0 %v1356, 24
        %v1436 = vpop.permute.xlu0 %1435
        %1437 = vrot.lane.b32.xlu0 %v1357, 24
        %v1438 = vpop.permute.xlu0 %1437
        %1439 = vrot.lane.b32.xlu0 %v1358, 24
        %v1440 = vpop.permute.xlu0 %1439
        %1441 = vrot.lane.b32.xlu0 %v1359, 24
        %v1442 = vpop.permute.xlu0 %1441
        %1443 = vrot.lane.b32.xlu0 %v1360, 24
        %v1444 = vpop.permute.xlu0 %1443
        %1445 = vrot.lane.b32.xlu0 %v1361, 24
        %v1446 = vpop.permute.xlu0 %1445
        %1447 = vrot.lane.b32.xlu0 %v1362, 24
        %v1448 = vpop.permute.xlu0 %1447
        %1449 = vrot.lane.b32.xlu0 %v1363, 24
        %v1450 = vpop.permute.xlu0 %1449
        %1451 = vrot.lane.b32.xlu0 %v1364, 24
        %v1452 = vpop.permute.xlu0 %1451
        %1453 = vrot.lane.b32.xlu0 %v1365, 24
        %v1454 = vpop.permute.xlu0 %1453
        %1455 = vrot.lane.b32.xlu0 %v1366, 24
        %v1456 = vpop.permute.xlu0 %1455
        %1457 = vrot.lane.b32.xlu0 %v1367, 24
        %v1458 = vpop.permute.xlu0 %1457
        %1459 = vrot.lane.b32.xlu0 %v1368, 24
        %v1460 = vpop.permute.xlu0 %1459
        %1461 = vrot.lane.b32.xlu0 %v1369, 24
        %v1462 = vpop.permute.xlu0 %1461
        %1463 = vrot.lane.b32.xlu0 %v1370, 24
        %v1464 = vpop.permute.xlu0 %1463
        %1465 = vrot.lane.b32.xlu0 %v1371, 24
        %v1466 = vpop.permute.xlu0 %1465
        %1467 = vrot.lane.b32.xlu0 %v1372, 24
        %v1468 = vpop.permute.xlu0 %1467
        %vm1501 = vcmask 261312
        %1502 = vst.msk [vmem:[%s289] sm:$0xff] %vm1501, %v1406
        %1503 = vst.msk [vmem:[%s289 + $0x8] sm:$0xff] %vm1501, %v1408
        %1504 = vst.msk [vmem:[%s289 + $0x10] sm:$0xff] %vm1501, %v1410
        %1505 = vst.msk [vmem:[%s289 + $0x18] sm:$0xff] %vm1501, %v1412
        %1506 = vst.msk [vmem:[%s289 + $0x20] sm:$0xff] %vm1501, %v1414
        %1507 = vst.msk [vmem:[%s289 + $0x28] sm:$0xff] %vm1501, %v1416
        %1508 = vst.msk [vmem:[%s289 + $0x30] sm:$0xff] %vm1501, %v1418
        %1509 = vst.msk [vmem:[%s289 + $0x38] sm:$0xff] %vm1501, %v1420
        %1510 = vst.msk [vmem:[%s289 + $0x40] sm:$0xff] %vm1501, %v1422
        %1511 = vst.msk [vmem:[%s289 + $0x48] sm:$0xff] %vm1501, %v1424
        %1512 = vst.msk [vmem:[%s289 + $0x50] sm:$0xff] %vm1501, %v1426
        %1513 = vst.msk [vmem:[%s289 + $0x58] sm:$0xff] %vm1501, %v1428
        %1514 = vst.msk [vmem:[%s289 + $0x60] sm:$0xff] %vm1501, %v1430
        %1515 = vst.msk [vmem:[%s289 + $0x68] sm:$0xff] %vm1501, %v1432
        %1516 = vst.msk [vmem:[%s289 + $0x70] sm:$0xff] %vm1501, %v1434
        %1517 = vst.msk [vmem:[%s289 + $0x78] sm:$0xff] %vm1501, %v1436
        %1518 = vst.msk [vmem:[%s289 + $0x80] sm:$0xff] %vm1501, %v1438
        %1519 = vst.msk [vmem:[%s289 + $0x88] sm:$0xff] %vm1501, %v1440
        %1520 = vst.msk [vmem:[%s289 + $0x90] sm:$0xff] %vm1501, %v1442
        %1521 = vst.msk [vmem:[%s289 + $0x98] sm:$0xff] %vm1501, %v1444
        %1522 = vst.msk [vmem:[%s289 + $0xa0] sm:$0xff] %vm1501, %v1446
        %1523 = vst.msk [vmem:[%s289 + $0xa8] sm:$0xff] %vm1501, %v1448
        %1524 = vst.msk [vmem:[%s289 + $0xb0] sm:$0xff] %vm1501, %v1450
        %1525 = vst.msk [vmem:[%s289 + $0xb8] sm:$0xff] %vm1501, %v1452
        %1526 = vst.msk [vmem:[%s289 + $0xc0] sm:$0xff] %vm1501, %v1454
        %1527 = vst.msk [vmem:[%s289 + $0xc8] sm:$0xff] %vm1501, %v1456
        %1528 = vst.msk [vmem:[%s289 + $0xd0] sm:$0xff] %vm1501, %v1458
        %1529 = vst.msk [vmem:[%s289 + $0xd8] sm:$0xff] %vm1501, %v1460
        %1530 = vst.msk [vmem:[%s289 + $0xe0] sm:$0xff] %vm1501, %v1462
        %1531 = vst.msk [vmem:[%s289 + $0xe8] sm:$0xff] %vm1501, %v1464
        %1532 = vst.msk [vmem:[%s289 + $0xf0] sm:$0xff] %vm1501, %v1466
        %1533 = vst.msk [vmem:[%s289 + $0xf8] sm:$0xff] %vm1501, %v1468
        %s1534 = sand.u32 %s174, 1
        %s1535 = scalar_lea.sflag [#allocation3], %s1534
        %s1536 = sand.u32 %s174, 1
        %s1537 = smul.addr %s1536, 256
        %s1538 = scalar_lea.vmem [#allocation2], %s1537
        // Predicated region
        $region45: #{inception_forward.9} parent=43 // pred_check
          %p1539 = pneg %p184
        $region46: #{inception_forward.9} parent=43 // pred_check_branch
          %1541 = sbr.rel (%p1539) target = $region48
        $region47: #{inception_forward.9} parent=43 // pred_region
          %s1543 = ssub.s32 4096, 4096
          %1544 = vsyncadd %s1535, %s1543
          %s1545 = smul.addr %s20, 32
          %s1546 = smul.addr %s1545, 128
          %s1547 = scalar_lea.hbm %s6, %s1546
          %s1548 = sshll.u32 %s1538, 4
          %s1549 = int_to_ptr.vmem [resolvable:$true] %s1548
          %1554 = dma.vmem_to_hbm [thread:$0]  %s1549, 4096, %s1547, %s1535, 128, 128, 8
        $region48: #{inception_forward.9} parent=43 // pred_fallthru
          _
      $region44: #{inception_forward.9} parent=5 // pred_fallthru
        _
      %p1555 = scmp.le.s32.totalorder 2, %s15
      // Predicated region
      $region49: #{inception_forward.9} parent=5 // pred_check
        %p1556 = pneg %p1555
      $region50: #{inception_forward.9} parent=5 // pred_check_branch
        %1558 = sbr.rel (%p1556) target = $region52
      $region51: #{inception_forward.9} parent=5 // pred_region
        %s1559 = ssub.s32 %s15, 2
        // Predicated region
        $region53: #{inception_forward.9} parent=51 // pred_check
          %p1560 = pneg %p190
        $region54: #{inception_forward.9} parent=51 // pred_check_branch
          %1562 = sbr.rel (%p1560) target = $region56
        $region55: #{inception_forward.9} parent=51 // pred_region
          %s1563 = sand.u32 %s175, 1
          %s1564 = scalar_lea.sflag [#allocation3], %s1563
          %s1565 = sand.u32 %s175, 1
          %s1566 = smul.addr %s1565, 256
          %s1567 = scalar_lea.vmem [#allocation2], %s1566
          %1568 = dma.done %s1564, 4096
        $region56: #{inception_forward.9} parent=51 // pred_fallthru
          _
      $region52: #{inception_forward.9} parent=5 // pred_fallthru
        _
    $region6: #{inception_forward.9} parent=1 // loop_footer
      %s19 = sadd.s32 1, %s15
    $region7: #{inception_forward.9} parent=1 // loop_footer_branch
      %14 = sbr.rel target = $region3
    $region8: #{inception_forward.9} parent=1 // loop_exit
      _
    %1569 = vsyncpa [#allocation3], 1
    %s1570 = scalar_lea.sflag [#allocation3], 1
    %1571 = vsyncpa %s1570, 1

// kernel: inception_forward.5
$region0: #{inception_forward.5}
  #allocation0 [shape = 'u32[]', space=smem, size = 0x4, offset = 0x4, fixed_abs, tag = 'smem constant byte address 0x4 - core index']
  #allocation1 [shape = 'u32[144,128]{1,0:T(1,128)}', space=vmem, size = 0x12000, scoped, tag = 'internal scratch']
  #allocation2 [shape = 'f32[1,18,18,4]{3,2,1,0:T(8,128)}', space=vmem, size = 0x36000, scoped, tag = 'scratch operand']
  %s0 = inlined_call_operand.vmem [shape: f32[2,16,16,4], index: 0, kind: input, shape index: {}]
  %s1 = inlined_call_operand.vmem [shape: bf16[4,16], index: 1, kind: input, shape index: {}]
  %s2 = inlined_call_operand.vmem [shape: bf16[4,8], index: 2, kind: input, shape index: {}]
  %s3 = inlined_call_operand.vmem [shape: bf16[2,256,8], index: 3, kind: output, shape index: {0}]
  %s4 = inlined_call_operand.vmem [shape: bf16[2,256,4], index: 4, kind: output, shape index: {1}]
  %s5 = inlined_call_operand.vmem [shape: bf16[2,256,4], index: 5, kind: output, shape index: {2}]
  %s6 = inlined_call_operand.vmem [shape: bf16[2,256,8], index: 6, kind: output, shape index: {3}]
  %s7 = inlined_call_operand.vmem [shape: f32[2,2,24], index: 7, kind: output, shape index: {4}]
  %8 = xla_tuple %s3, %s4, %s5, %s6, %s7
  %s9 = sld [smem:[#allocation0]]
  $region77: #{inception_forward.5} parent=0
    _
  %s11 = ssub.s32 1, %s9
  %s12 = scalar_select 0, %s11, %s9
  loop: start=0, step=1, limit=4
  $region2: #{inception_forward.5} parent=0 // loop_pre_header
    _
  $region3: #{inception_forward.5} parent=0 // loop_header
    %s14 = sphi 0, %s18
    %p15 = scmp.ge.s32.totalorder %s14, 4
    %s24 = sphi 0, %s26
    %s27 = sphi 0, %s24
    %s28 = sphi 0, %s27
    %s44 = sphi 0, %s28
    %s48 = sphi 0, %s48
    %s50 = sphi 0, %s48
    %s51 = sphi 0, %s50
    %s65 = sphi 0, %s51
    %s69 = sphi 0, %s69
    %s71 = sphi 0, %s69
    %s72 = sphi 0, %s71
    %s86 = sphi 0, %s72
    %s92 = sphi 0, %s94
    %s95 = sphi 0, %s92
    %s96 = sphi 0, %s95
    %s112 = sphi 0, %s96
    %s118 = sphi 0, %s120
    %s121 = sphi 0, %s118
    %s122 = sphi 0, %s121
    %s138 = sphi 0, %s122
    %s144 = sphi 0, %s146
    %s147 = sphi 0, %s144
    %s148 = sphi 0, %s147
    %s164 = sphi 0, %s148
    %s170 = sphi 0, %s172
    %s173 = sphi 0, %s170
    %s174 = sphi 0, %s173
    %s190 = sphi 0, %s174
    %s196 = sphi 0, %s198
    %s199 = sphi 0, %s196
    %s200 = sphi 0, %s199
    %s216 = sphi 0, %s200
  $region4: #{inception_forward.5} parent=0 // loop_header_branch
    %17 = sbr.rel (%p15) target = $region8
  $region5: #{inception_forward.5} parent=0 // loop_body
    %s19 = ssub.s32 %s14, 1
    %s20 = ssub.s32 %s14, 2
    %s21 = sadd.s32 %s14, 1
    %s22 = ssub.s32 %s14, %s21
    %p23 = scmp.eq.s32.totalorder %s22, 0
    %s25 = sadd.s32 %s24, 1
    %s26 = scalar_select %p23, %s24, %s25
    %p29 = pneg %p23
    %p30 = scmp.eq.s32.totalorder %s14, 1
    %p31 = por %p29, %p30
    %p32 = scmp.ne.s32.totalorder %s24, %s27
    %p33 = scmp.eq.s32.totalorder %s14, 0
    %p34 = por %p32, %p33
    %p35 = scmp.ne.s32.totalorder %s24, %s27
    %p36 = scmp.eq.s32.totalorder %s19, 1
    %p37 = por %p35, %p36
    %p38 = scmp.ne.s32.totalorder %s27, %s28
    %p39 = scmp.eq.s32.totalorder %s19, 0
    %p40 = por %p38, %p39
    %p41 = scmp.ne.s32.totalorder %s27, %s28
    %p42 = scmp.eq.s32.totalorder %s20, 1
    %p43 = por %p41, %p42
    %p45 = scmp.ne.s32.totalorder %s28, %s44
    %p46 = scmp.eq.s32.totalorder %s20, 0
    %p47 = por %p45, %p46
    %s49 = sadd.s32 %s48, 1
    %p52 = scmp.eq.s32.totalorder %s14, 1
    %p53 = scmp.ne.s32.totalorder %s48, %s50
    %p54 = scmp.eq.s32.totalorder %s14, 0
    %p55 = por %p53, %p54
    %p56 = scmp.ne.s32.totalorder %s48, %s50
    %p57 = scmp.eq.s32.totalorder %s19, 1
    %p58 = por %p56, %p57
    %p59 = scmp.ne.s32.totalorder %s50, %s51
    %p60 = scmp.eq.s32.totalorder %s19, 0
    %p61 = por %p59, %p60
    %p62 = scmp.ne.s32.totalorder %s50, %s51
    %p63 = scmp.eq.s32.totalorder %s20, 1
    %p64 = por %p62, %p63
    %p66 = scmp.ne.s32.totalorder %s51, %s65
    %p67 = scmp.eq.s32.totalorder %s20, 0
    %p68 = por %p66, %p67
    %s70 = sadd.s32 %s69, 1
    %p73 = scmp.eq.s32.totalorder %s14, 1
    %p74 = scmp.ne.s32.totalorder %s69, %s71
    %p75 = scmp.eq.s32.totalorder %s14, 0
    %p76 = por %p74, %p75
    %p77 = scmp.ne.s32.totalorder %s69, %s71
    %p78 = scmp.eq.s32.totalorder %s19, 1
    %p79 = por %p77, %p78
    %p80 = scmp.ne.s32.totalorder %s71, %s72
    %p81 = scmp.eq.s32.totalorder %s19, 0
    %p82 = por %p80, %p81
    %p83 = scmp.ne.s32.totalorder %s71, %s72
    %p84 = scmp.eq.s32.totalorder %s20, 1
    %p85 = por %p83, %p84
    %p87 = scmp.ne.s32.totalorder %s72, %s86
    %p88 = scmp.eq.s32.totalorder %s20, 0
    %p89 = por %p87, %p88
    %s90 = ssub.s32 %s14, %s21
    %p91 = scmp.eq.s32.totalorder %s90, 0
    %s93 = sadd.s32 %s92, 1
    %s94 = scalar_select %p91, %s92, %s93
    %p97 = pneg %p91
    %p98 = scmp.eq.s32.totalorder %s14, 1
    %p99 = por %p97, %p98
    %p100 = scmp.ne.s32.totalorder %s92, %s95
    %p101 = scmp.eq.s32.totalorder %s14, 0
    %p102 = por %p100, %p101
    %p103 = scmp.ne.s32.totalorder %s92, %s95
    %p104 = scmp.eq.s32.totalorder %s19, 1
    %p105 = por %p103, %p104
    %p106 = scmp.ne.s32.totalorder %s95, %s96
    %p107 = scmp.eq.s32.totalorder %s19, 0
    %p108 = por %p106, %p107
    %p109 = scmp.ne.s32.totalorder %s95, %s96
    %p110 = scmp.eq.s32.totalorder %s20, 1
    %p111 = por %p109, %p110
    %p113 = scmp.ne.s32.totalorder %s96, %s112
    %p114 = scmp.eq.s32.totalorder %s20, 0
    %p115 = por %p113, %p114
    %s116 = ssub.s32 %s14, %s21
    %p117 = scmp.eq.s32.totalorder %s116, 0
    %s119 = sadd.s32 %s118, 1
    %s120 = scalar_select %p117, %s118, %s119
    %p123 = pneg %p117
    %p124 = scmp.eq.s32.totalorder %s14, 1
    %p125 = por %p123, %p124
    %p126 = scmp.ne.s32.totalorder %s118, %s121
    %p127 = scmp.eq.s32.totalorder %s14, 0
    %p128 = por %p126, %p127
    %p129 = scmp.ne.s32.totalorder %s118, %s121
    %p130 = scmp.eq.s32.totalorder %s19, 1
    %p131 = por %p129, %p130
    %p132 = scmp.ne.s32.totalorder %s121, %s122
    %p133 = scmp.eq.s32.totalorder %s19, 0
    %p134 = por %p132, %p133
    %p135 = scmp.ne.s32.totalorder %s121, %s122
    %p136 = scmp.eq.s32.totalorder %s20, 1
    %p137 = por %p135, %p136
    %p139 = scmp.ne.s32.totalorder %s122, %s138
    %p140 = scmp.eq.s32.totalorder %s20, 0
    %p141 = por %p139, %p140
    %s142 = ssub.s32 %s14, %s21
    %p143 = scmp.eq.s32.totalorder %s142, 0
    %s145 = sadd.s32 %s144, 1
    %s146 = scalar_select %p143, %s144, %s145
    %p149 = pneg %p143
    %p150 = scmp.eq.s32.totalorder %s14, 1
    %p151 = por %p149, %p150
    %p152 = scmp.ne.s32.totalorder %s144, %s147
    %p153 = scmp.eq.s32.totalorder %s14, 0
    %p154 = por %p152, %p153
    %p155 = scmp.ne.s32.totalorder %s144, %s147
    %p156 = scmp.eq.s32.totalorder %s19, 1
    %p157 = por %p155, %p156
    %p158 = scmp.ne.s32.totalorder %s147, %s148
    %p159 = scmp.eq.s32.totalorder %s19, 0
    %p160 = por %p158, %p159
    %p161 = scmp.ne.s32.totalorder %s147, %s148
    %p162 = scmp.eq.s32.totalorder %s20, 1
    %p163 = por %p161, %p162
    %p165 = scmp.ne.s32.totalorder %s148, %s164
    %p166 = scmp.eq.s32.totalorder %s20, 0
    %p167 = por %p165, %p166
    %s168 = ssub.s32 %s14, %s21
    %p169 = scmp.eq.s32.totalorder %s168, 0
    %s171 = sadd.s32 %s170, 1
    %s172 = scalar_select %p169, %s170, %s171
    %p175 = pneg %p169
    %p176 = scmp.eq.s32.totalorder %s14, 1
    %p177 = por %p175, %p176
    %p178 = scmp.ne.s32.totalorder %s170, %s173
    %p179 = scmp.eq.s32.totalorder %s14, 0
    %p180 = por %p178, %p179
    %p181 = scmp.ne.s32.totalorder %s170, %s173
    %p182 = scmp.eq.s32.totalorder %s19, 1
    %p183 = por %p181, %p182
    %p184 = scmp.ne.s32.totalorder %s173, %s174
    %p185 = scmp.eq.s32.totalorder %s19, 0
    %p186 = por %p184, %p185
    %p187 = scmp.ne.s32.totalorder %s173, %s174
    %p188 = scmp.eq.s32.totalorder %s20, 1
    %p189 = por %p187, %p188
    %p191 = scmp.ne.s32.totalorder %s174, %s190
    %p192 = scmp.eq.s32.totalorder %s20, 0
    %p193 = por %p191, %p192
    %s194 = ssub.s32 %s14, %s21
    %p195 = scmp.eq.s32.totalorder %s194, 0
    %s197 = sadd.s32 %s196, 1
    %s198 = scalar_select %p195, %s196, %s197
    %p201 = pneg %p195
    %p202 = scmp.eq.s32.totalorder %s14, 1
    %p203 = por %p201, %p202
    %p204 = scmp.ne.s32.totalorder %s196, %s199
    %p205 = scmp.eq.s32.totalorder %s14, 0
    %p206 = por %p204, %p205
    %p207 = scmp.ne.s32.totalorder %s196, %s199
    %p208 = scmp.eq.s32.totalorder %s19, 1
    %p209 = por %p207, %p208
    %p210 = scmp.ne.s32.totalorder %s199, %s200
    %p211 = scmp.eq.s32.totalorder %s19, 0
    %p212 = por %p210, %p211
    %p213 = scmp.ne.s32.totalorder %s199, %s200
    %p214 = scmp.eq.s32.totalorder %s20, 1
    %p215 = por %p213, %p214
    %p217 = scmp.ne.s32.totalorder %s200, %s216
    %p218 = scmp.eq.s32.totalorder %s20, 0
    %p219 = por %p217, %p218
    %p220 = scmp.le.s32.totalorder 1, %s14
    %p221 = scmp.lt.s32.totalorder %s14, 3
    %p222 = pnand %p220, %p221
    %p223 = pneg %p222
    // Predicated region
    $region9: #{inception_forward.5} parent=5 // pred_check
      _
    $region10: #{inception_forward.5} parent=5 // pred_check_branch
      %225 = sbr.rel (%p222) target = $region12
    $region11: #{inception_forward.5} parent=5 // pred_region
      %s226 = ssub.s32 %s14, 1
      // Predicated region
      $region13: #{inception_forward.5} parent=11 // pred_check
        %p227 = pneg %p61
      $region14: #{inception_forward.5} parent=11 // pred_check_branch
        %229 = sbr.rel (%p227) target = $region16
      $region15: #{inception_forward.5} parent=11 // pred_region
        _
      $region16: #{inception_forward.5} parent=11 // pred_fallthru
        _
      // Predicated region
      $region17: #{inception_forward.5} parent=11 // pred_check
        %p230 = pneg %p82
      $region18: #{inception_forward.5} parent=11 // pred_check_branch
        %232 = sbr.rel (%p230) target = $region20
      $region19: #{inception_forward.5} parent=11 // pred_region
        _
      $region20: #{inception_forward.5} parent=11 // pred_fallthru
        _
    $region12: #{inception_forward.5} parent=5 // pred_fallthru
      _
    %p233 = scmp.lt.s32.totalorder %s14, 2
    // Predicated region
    $region21: #{inception_forward.5} parent=5 // pred_check
      %p234 = pneg %p233
    $region22: #{inception_forward.5} parent=5 // pred_check_branch
      %236 = sbr.rel (%p234) target = $region24
    $region23: #{inception_forward.5} parent=5 // pred_region
      // Predicated region
      $region25: #{inception_forward.5} parent=23 // pred_check
        %p237 = pneg %p34
      $region26: #{inception_forward.5} parent=23 // pred_check_branch
        %239 = sbr.rel (%p237) target = $region28
      $region27: #{inception_forward.5} parent=23 // pred_region
        %p240 = scmp.lt.s32.totalorder %s14, 1
        %s241 = scalar_select %p240, %s14, 1
        %s242 = smul.addr %s241, 32
        %s243 = smul.addr %s242, 8
        %s244 = scalar_lea.vmem %s0, %s243
      $region28: #{inception_forward.5} parent=23 // pred_fallthru
        _
    $region24: #{inception_forward.5} parent=5 // pred_fallthru
      _
    %p245 = scmp.le.s32.totalorder 1, %s14
    %p246 = scmp.lt.s32.totalorder %s14, 3
    %p247 = pnand %p245, %p246
    %p248 = pneg %p247
    // Predicated region
    $region29: #{inception_forward.5} parent=5 // pred_check
      _
    $region30: #{inception_forward.5} parent=5 // pred_check_branch
      %250 = sbr.rel (%p247) target = $region32
    $region31: #{inception_forward.5} parent=5 // pred_region
      %s251 = ssub.s32 %s14, 1
      %p252 = scmp.lt.s32.totalorder %s19, 1
      %s253 = scalar_select %p252, %s19, 1
      %s254 = smul.addr %s253, 32
      %s255 = smul.addr %s254, 8
      %s256 = scalar_lea.vmem %s0, %s255
      %p257 = pneg %p40
      %p258 = pneg %p37
      %p259 = pneg %p61
      %p260 = pneg %p58
      %p261 = pneg %p82
      %p262 = pneg %p79
      %p263 = pneg %p108
      %p264 = pneg %p105
      %p265 = scmp.lt.s32.totalorder %s19, 1
      %s266 = scalar_select %p265, %s19, 1
      %s267 = smul.addr %s266, 32
      %s268 = smul.addr %s267, 4
      %s269 = scalar_lea.vmem %s3, %s268
      %p270 = pneg %p134
      %p271 = pneg %p131
      %p272 = scmp.lt.s32.totalorder %s19, 1
      %s273 = scalar_select %p272, %s19, 1
      %s274 = smul.addr %s273, 32
      %s275 = smul.addr %s274, 4
      %s276 = scalar_lea.vmem %s4, %s275
      %p277 = pneg %p160
      %p278 = pneg %p157
      %p279 = scmp.lt.s32.totalorder %s19, 1
      %s280 = scalar_select %p279, %s19, 1
      %s281 = smul.addr %s280, 32
      %s282 = smul.addr %s281, 4
      %s283 = scalar_lea.vmem %s5, %s282
      %p284 = pneg %p186
      %p285 = pneg %p183
      %p286 = scmp.lt.s32.totalorder %s19, 1
      %s287 = scalar_select %p286, %s19, 1
      %s288 = smul.addr %s287, 32
      %s289 = smul.addr %s288, 4
      %s290 = scalar_lea.vmem %s6, %s289
      %p291 = pneg %p212
      %p292 = pneg %p209
      %p293 = scmp.lt.s32.totalorder %s19, 1
      %s294 = scalar_select %p293, %s19, 1
      %s295 = smul.addr %s294, 2
      %s296 = scalar_lea.vmem %s7, %s295
      %p297 = scmp.lt.s32.totalorder %s19, 1
      %s298 = scalar_select %p297, %s19, 1
      %s299 = smul.addr %s298, 32
      %s300 = smul.addr %s299, 8
      %s301 = scalar_lea.vmem %s0, %s300
      %p302 = scmp.lt.s32.totalorder %s19, 1
      %s303 = scalar_select %p302, %s19, 1
      %s304 = smul.addr %s303, 32
      %s305 = smul.addr %s304, 4
      %s306 = scalar_lea.vmem %s3, %s305
      %p307 = scmp.lt.s32.totalorder %s19, 1
      %s308 = scalar_select %p307, %s19, 1
      %s309 = smul.addr %s308, 32
      %s310 = smul.addr %s309, 4
      %s311 = scalar_lea.vmem %s4, %s310
      %p312 = scmp.lt.s32.totalorder %s19, 1
      %s313 = scalar_select %p312, %s19, 1
      %s314 = smul.addr %s313, 32
      %s315 = smul.addr %s314, 4
      %s316 = scalar_lea.vmem %s5, %s315
      %p317 = scmp.lt.s32.totalorder %s19, 1
      %s318 = scalar_select %p317, %s19, 1
      %s319 = smul.addr %s318, 32
      %s320 = smul.addr %s319, 4
      %s321 = scalar_lea.vmem %s6, %s320
      %p322 = scmp.lt.s32.totalorder %s19, 1
      %s323 = scalar_select %p322, %s19, 1
      %s324 = smul.addr %s323, 2
      %s325 = scalar_lea.vmem %s7, %s324
      %vm327 = vcmask 31744
      %328 = vst.msk [vmem:[#allocation2] sm:$0xff] %vm327, -1e+30
      %329 = vst.msk [vmem:[#allocation2 + $0x8] sm:$0xff] %vm327, -1e+30
      %vm330 = vcmask 25600
      %331 = vst.msk [vmem:[#allocation2 + $0x10] sm:$0x3] %vm330, -1e+30
      %s332 = scalar_lea.vmem [#allocation2], 408
      %333 = vst.msk [vmem:[%s332] sm:$0xff] %vm327, -1e+30
      %334 = vst.msk [vmem:[%s332 + $0x8] sm:$0xff] %vm327, -1e+30
      %335 = vst.msk [vmem:[%s332 + $0x10] sm:$0x3] %vm330, -1e+30
      %vm336 = vcmask 24576
      %337 = vst.msk [vmem:[#allocation2] sm:$0x1] %vm336, -1e+30
      %338 = vst.msk [vmem:[#allocation2 + $0x18] sm:$0x1] %vm336, -1e+30
      %339 = vst.msk [vmem:[#allocation2 + $0x30] sm:$0x1] %vm336, -1e+30
      %340 = vst.msk [vmem:[#allocation2 + $0x48] sm:$0x1] %vm336, -1e+30
      %341 = vst.msk [vmem:[#allocation2 + $0x60] sm:$0x1] %vm336, -1e+30
      %342 = vst.msk [vmem:[#allocation2 + $0x78] sm:$0x1] %vm336, -1e+30
      %343 = vst.msk [vmem:[#allocation2 + $0x90] sm:$0x1] %vm336, -1e+30
      %344 = vst.msk [vmem:[#allocation2 + $0xa8] sm:$0x1] %vm336, -1e+30
      %345 = vst.msk [vmem:[#allocation2 + $0xc0] sm:$0x1] %vm336, -1e+30
      %346 = vst.msk [vmem:[#allocation2 + $0xd8] sm:$0x1] %vm336, -1e+30
      %347 = vst.msk [vmem:[#allocation2 + $0xf0] sm:$0x1] %vm336, -1e+30
      %348 = vst.msk [vmem:[#allocation2 + $0x108] sm:$0x1] %vm336, -1e+30
      %349 = vst.msk [vmem:[#allocation2 + $0x120] sm:$0x1] %vm336, -1e+30
      %350 = vst.msk [vmem:[#allocation2 + $0x138] sm:$0x1] %vm336, -1e+30
      %351 = vst.msk [vmem:[#allocation2 + $0x150] sm:$0x1] %vm336, -1e+30
      %352 = vst.msk [vmem:[#allocation2 + $0x168] sm:$0x1] %vm336, -1e+30
      %353 = vst.msk [vmem:[#allocation2 + $0x180] sm:$0x1] %vm336, -1e+30
      %354 = vst.msk [vmem:[#allocation2 + $0x198] sm:$0x1] %vm336, -1e+30
      %355 = vst.msk [vmem:[#allocation2 + $0x11] sm:$0x1] %vm336, -1e+30
      %356 = vst.msk [vmem:[#allocation2 + $0x29] sm:$0x1] %vm336, -1e+30
      %357 = vst.msk [vmem:[#allocation2 + $0x41] sm:$0x1] %vm336, -1e+30
      %358 = vst.msk [vmem:[#allocation2 + $0x59] sm:$0x1] %vm336, -1e+30
      %359 = vst.msk [vmem:[#allocation2 + $0x71] sm:$0x1] %vm336, -1e+30
      %360 = vst.msk [vmem:[#allocation2 + $0x89] sm:$0x1] %vm336, -1e+30
      %361 = vst.msk [vmem:[#allocation2 + $0xa1] sm:$0x1] %vm336, -1e+30
      %362 = vst.msk [vmem:[#allocation2 + $0xb9] sm:$0x1] %vm336, -1e+30
      %363 = vst.msk [vmem:[#allocation2 + $0xd1] sm:$0x1] %vm336, -1e+30
      %364 = vst.msk [vmem:[#allocation2 + $0xe9] sm:$0x1] %vm336, -1e+30
      %365 = vst.msk [vmem:[#allocation2 + $0x101] sm:$0x1] %vm336, -1e+30
      %366 = vst.msk [vmem:[#allocation2 + $0x119] sm:$0x1] %vm336, -1e+30
      %367 = vst.msk [vmem:[#allocation2 + $0x131] sm:$0x1] %vm336, -1e+30
      %368 = vst.msk [vmem:[#allocation2 + $0x149] sm:$0x1] %vm336, -1e+30
      %369 = vst.msk [vmem:[#allocation2 + $0x161] sm:$0x1] %vm336, -1e+30
      %370 = vst.msk [vmem:[#allocation2 + $0x179] sm:$0x1] %vm336, -1e+30
      %371 = vst.msk [vmem:[#allocation2 + $0x191] sm:$0x1] %vm336, -1e+30
      %372 = vst.msk [vmem:[#allocation2 + $0x1a9] sm:$0x1] %vm336, -1e+30
      %v373 = vld [vmem:[%s301] sm:$0xff]
      %v374 = vld [vmem:[%s301 + $0x8] sm:$0xff]
      %v375 = vld [vmem:[%s301 + $0x10] sm:$0xff]
      %v376 = vld [vmem:[%s301 + $0x18] sm:$0xff]
      %v377 = vld [vmem:[%s301 + $0x20] sm:$0xff]
      %v378 = vld [vmem:[%s301 + $0x28] sm:$0xff]
      %v379 = vld [vmem:[%s301 + $0x30] sm:$0xff]
      %v380 = vld [vmem:[%s301 + $0x38] sm:$0xff]
      %v381 = vld [vmem:[%s301 + $0x40] sm:$0xff]
      %v382 = vld [vmem:[%s301 + $0x48] sm:$0xff]
      %v383 = vld [vmem:[%s301 + $0x50] sm:$0xff]
      %v384 = vld [vmem:[%s301 + $0x58] sm:$0xff]
      %v385 = vld [vmem:[%s301 + $0x60] sm:$0xff]
      %v386 = vld [vmem:[%s301 + $0x68] sm:$0xff]
      %v387 = vld [vmem:[%s301 + $0x70] sm:$0xff]
      %v388 = vld [vmem:[%s301 + $0x78] sm:$0xff]
      %v389 = vld [vmem:[%s301 + $0x80] sm:$0xff]
      %v390 = vld [vmem:[%s301 + $0x88] sm:$0xff]
      %v391 = vld [vmem:[%s301 + $0x90] sm:$0xff]
      %v392 = vld [vmem:[%s301 + $0x98] sm:$0xff]
      %v393 = vld [vmem:[%s301 + $0xa0] sm:$0xff]
      %v394 = vld [vmem:[%s301 + $0xa8] sm:$0xff]
      %v395 = vld [vmem:[%s301 + $0xb0] sm:$0xff]
      %v396 = vld [vmem:[%s301 + $0xb8] sm:$0xff]
      %v397 = vld [vmem:[%s301 + $0xc0] sm:$0xff]
      %v398 = vld [vmem:[%s301 + $0xc8] sm:$0xff]
      %v399 = vld [vmem:[%s301 + $0xd0] sm:$0xff]
      %v400 = vld [vmem:[%s301 + $0xd8] sm:$0xff]
      %v401 = vld [vmem:[%s301 + $0xe0] sm:$0xff]
      %v402 = vld [vmem:[%s301 + $0xe8] sm:$0xff]
      %v403 = vld [vmem:[%s301 + $0xf0] sm:$0xff]
      %v404 = vld [vmem:[%s301 + $0xf8] sm:$0xff]
      %s405 = scalar_lea.vmem [#allocation2], 24
      %406 = vst.msk [vmem:[%s405 + $0x1] sm:$0xff] %vm327, %v373
      %407 = vst.msk [vmem:[%s405 + $0x9] sm:$0xff] %vm327, %v374
      %408 = vst.msk [vmem:[%s405 + $0x19] sm:$0xff] %vm327, %v375
      %409 = vst.msk [vmem:[%s405 + $0x21] sm:$0xff] %vm327, %v376
      %410 = vst.msk [vmem:[%s405 + $0x31] sm:$0xff] %vm327, %v377
      %411 = vst.msk [vmem:[%s405 + $0x39] sm:$0xff] %vm327, %v378
      %412 = vst.msk [vmem:[%s405 + $0x49] sm:$0xff] %vm327, %v379
      %413 = vst.msk [vmem:[%s405 + $0x51] sm:$0xff] %vm327, %v380
      %414 = vst.msk [vmem:[%s405 + $0x61] sm:$0xff] %vm327, %v381
      %415 = vst.msk [vmem:[%s405 + $0x69] sm:$0xff] %vm327, %v382
      %416 = vst.msk [vmem:[%s405 + $0x79] sm:$0xff] %vm327, %v383
      %417 = vst.msk [vmem:[%s405 + $0x81] sm:$0xff] %vm327, %v384
      %418 = vst.msk [vmem:[%s405 + $0x91] sm:$0xff] %vm327, %v385
      %419 = vst.msk [vmem:[%s405 + $0x99] sm:$0xff] %vm327, %v386
      %420 = vst.msk [vmem:[%s405 + $0xa9] sm:$0xff] %vm327, %v387
      %421 = vst.msk [vmem:[%s405 + $0xb1] sm:$0xff] %vm327, %v388
      %422 = vst.msk [vmem:[%s405 + $0xc1] sm:$0xff] %vm327, %v389
      %423 = vst.msk [vmem:[%s405 + $0xc9] sm:$0xff] %vm327, %v390
      %424 = vst.msk [vmem:[%s405 + $0xd9] sm:$0xff] %vm327, %v391
      %425 = vst.msk [vmem:[%s405 + $0xe1] sm:$0xff] %vm327, %v392
      %426 = vst.msk [vmem:[%s405 + $0xf1] sm:$0xff] %vm327, %v393
      %427 = vst.msk [vmem:[%s405 + $0xf9] sm:$0xff] %vm327, %v394
      %428 = vst.msk [vmem:[%s405 + $0x109] sm:$0xff] %vm327, %v395
      %429 = vst.msk [vmem:[%s405 + $0x111] sm:$0xff] %vm327, %v396
      %430 = vst.msk [vmem:[%s405 + $0x121] sm:$0xff] %vm327, %v397
      %431 = vst.msk [vmem:[%s405 + $0x129] sm:$0xff] %vm327, %v398
      %432 = vst.msk [vmem:[%s405 + $0x139] sm:$0xff] %vm327, %v399
      %433 = vst.msk [vmem:[%s405 + $0x141] sm:$0xff] %vm327, %v400
      %434 = vst.msk [vmem:[%s405 + $0x151] sm:$0xff] %vm327, %v401
      %435 = vst.msk [vmem:[%s405 + $0x159] sm:$0xff] %vm327, %v402
      %436 = vst.msk [vmem:[%s405 + $0x169] sm:$0xff] %vm327, %v403
      %437 = vst.msk [vmem:[%s405 + $0x171] sm:$0xff] %vm327, %v404
      %v438 = vld [vmem:[#allocation2] sm:$0xff]
      %v439 = vld [vmem:[#allocation2 + $0x8] sm:$0xff]
      %v440 = vld [vmem:[#allocation2 + $0x18] sm:$0xff]
      %v441 = vld [vmem:[#allocation2 + $0x20] sm:$0xff]
      %v442 = vld [vmem:[#allocation2 + $0x30] sm:$0xff]
      %v443 = vld [vmem:[#allocation2 + $0x38] sm:$0xff]
      %v444 = vld [vmem:[#allocation2 + $0x48] sm:$0xff]
      %v445 = vld [vmem:[#allocation2 + $0x50] sm:$0xff]
      %v446 = vld [vmem:[#allocation2 + $0x60] sm:$0xff]
      %v447 = vld [vmem:[#allocation2 + $0x68] sm:$0xff]
      %v448 = vld [vmem:[#allocation2 + $0x78] sm:$0xff]
      %v449 = vld [vmem:[#allocation2 + $0x80] sm:$0xff]
      %v450 = vld [vmem:[#allocation2 + $0x90] sm:$0xff]
      %v451 = vld [vmem:[#allocation2 + $0x98] sm:$0xff]
      %v452 = vld [vmem:[#allocation2 + $0xa8] sm:$0xff]
      %v453 = vld [vmem:[#allocation2 + $0xb0] sm:$0xff]
      %v454 = vld [vmem:[#allocation2 + $0xc0] sm:$0xff]
      %v455 = vld [vmem:[#allocation2 + $0xc8] sm:$0xff]
      %v456 = vld [vmem:[#allocation2 + $0xd8] sm:$0xff]
      %v457 = vld [vmem:[#allocation2 + $0xe0] sm:$0xff]
      %v458 = vld [vmem:[#allocation2 + $0xf0] sm:$0xff]
      %v459 = vld [vmem:[#allocation2 + $0xf8] sm:$0xff]
      %v460 = vld [vmem:[#allocation2 + $0x108] sm:$0xff]
      %v461 = vld [vmem:[#allocation2 + $0x110] sm:$0xff]
      %v462 = vld [vmem:[#allocation2 + $0x120] sm:$0xff]
      %v463 = vld [vmem:[#allocation2 + $0x128] sm:$0xff]
      %v464 = vld [vmem:[#allocation2 + $0x138] sm:$0xff]
      %v465 = vld [vmem:[#allocation2 + $0x140] sm:$0xff]
      %v466 = vld [vmem:[#allocation2 + $0x150] sm:$0xff]
      %v467 = vld [vmem:[#allocation2 + $0x158] sm:$0xff]
      %v468 = vld [vmem:[#allocation2 + $0x168] sm:$0xff]
      %v469 = vld [vmem:[#allocation2 + $0x170] sm:$0xff]
      %v470 = vld [vmem:[#allocation2 + $0x180] sm:$0xff]
      %v471 = vld [vmem:[#allocation2 + $0x188] sm:$0xff]
      %v472 = vld [vmem:[#allocation2 + $0x198] sm:$0xff]
      %v473 = vld [vmem:[#allocation2 + $0x1a0] sm:$0xff]
      %v474 = vld [vmem:[#allocation2 + $0x1] sm:$0xff]
      %v475 = vld [vmem:[#allocation2 + $0x9] sm:$0xff]
      %v476 = vld [vmem:[#allocation2 + $0x19] sm:$0xff]
      %v477 = vld [vmem:[#allocation2 + $0x21] sm:$0xff]
      %v478 = vld [vmem:[#allocation2 + $0x31] sm:$0xff]
      %v479 = vld [vmem:[#allocation2 + $0x39] sm:$0xff]
      %v480 = vld [vmem:[#allocation2 + $0x49] sm:$0xff]
      %v481 = vld [vmem:[#allocation2 + $0x51] sm:$0xff]
      %v482 = vld [vmem:[#allocation2 + $0x61] sm:$0xff]
      %v483 = vld [vmem:[#allocation2 + $0x69] sm:$0xff]
      %v484 = vld [vmem:[#allocation2 + $0x79] sm:$0xff]
      %v485 = vld [vmem:[#allocation2 + $0x81] sm:$0xff]
      %v486 = vld [vmem:[#allocation2 + $0x91] sm:$0xff]
      %v487 = vld [vmem:[#allocation2 + $0x99] sm:$0xff]
      %v488 = vld [vmem:[#allocation2 + $0xa9] sm:$0xff]
      %v489 = vld [vmem:[#allocation2 + $0xb1] sm:$0xff]
      %v490 = vld [vmem:[#allocation2 + $0xc1] sm:$0xff]
      %v491 = vld [vmem:[#allocation2 + $0xc9] sm:$0xff]
      %v492 = vld [vmem:[#allocation2 + $0xd9] sm:$0xff]
      %v493 = vld [vmem:[#allocation2 + $0xe1] sm:$0xff]
      %v494 = vld [vmem:[#allocation2 + $0xf1] sm:$0xff]
      %v495 = vld [vmem:[#allocation2 + $0xf9] sm:$0xff]
      %v496 = vld [vmem:[#allocation2 + $0x109] sm:$0xff]
      %v497 = vld [vmem:[#allocation2 + $0x111] sm:$0xff]
      %v498 = vld [vmem:[#allocation2 + $0x121] sm:$0xff]
      %v499 = vld [vmem:[#allocation2 + $0x129] sm:$0xff]
      %v500 = vld [vmem:[#allocation2 + $0x139] sm:$0xff]
      %v501 = vld [vmem:[#allocation2 + $0x141] sm:$0xff]
      %v502 = vld [vmem:[#allocation2 + $0x151] sm:$0xff]
      %v503 = vld [vmem:[#allocation2 + $0x159] sm:$0xff]
      %v504 = vld [vmem:[#allocation2 + $0x169] sm:$0xff]
      %v505 = vld [vmem:[#allocation2 + $0x171] sm:$0xff]
      %v506 = vld [vmem:[#allocation2 + $0x181] sm:$0xff]
      %v507 = vld [vmem:[#allocation2 + $0x189] sm:$0xff]
      %v508 = vld [vmem:[#allocation2 + $0x199] sm:$0xff]
      %v509 = vld [vmem:[#allocation2 + $0x1a1] sm:$0xff]
      %v510 = vmax.f32 %v438, %v474
      %v511 = vmax.f32 %v439, %v475
      %v512 = vmax.f32 %v440, %v476
      %v513 = vmax.f32 %v441, %v477
      %v514 = vmax.f32 %v442, %v478
      %v515 = vmax.f32 %v443, %v479
      %v516 = vmax.f32 %v444, %v480
      %v517 = vmax.f32 %v445, %v481
      %v518 = vmax.f32 %v446, %v482
      %v519 = vmax.f32 %v447, %v483
      %v520 = vmax.f32 %v448, %v484
      %v521 = vmax.f32 %v449, %v485
      %v522 = vmax.f32 %v450, %v486
      %v523 = vmax.f32 %v451, %v487
      %v524 = vmax.f32 %v452, %v488
      %v525 = vmax.f32 %v453, %v489
      %v526 = vmax.f32 %v454, %v490
      %v527 = vmax.f32 %v455, %v491
      %v528 = vmax.f32 %v456, %v492
      %v529 = vmax.f32 %v457, %v493
      %v530 = vmax.f32 %v458, %v494
      %v531 = vmax.f32 %v459, %v495
      %v532 = vmax.f32 %v460, %v496
      %v533 = vmax.f32 %v461, %v497
      %v534 = vmax.f32 %v462, %v498
      %v535 = vmax.f32 %v463, %v499
      %v536 = vmax.f32 %v464, %v500
      %v537 = vmax.f32 %v465, %v501
      %v538 = vmax.f32 %v466, %v502
      %v539 = vmax.f32 %v467, %v503
      %v540 = vmax.f32 %v468, %v504
      %v541 = vmax.f32 %v469, %v505
      %v542 = vmax.f32 %v470, %v506
      %v543 = vmax.f32 %v471, %v507
      %v544 = vmax.f32 %v472, %v508
      %v545 = vmax.f32 %v473, %v509
      %v546 = vld [vmem:[#allocation2 + $0x2] sm:$0xff]
      %v547 = vld [vmem:[#allocation2 + $0xa] sm:$0xff]
      %v548 = vld [vmem:[#allocation2 + $0x1a] sm:$0xff]
      %v549 = vld [vmem:[#allocation2 + $0x22] sm:$0xff]
      %v550 = vld [vmem:[#allocation2 + $0x32] sm:$0xff]
      %v551 = vld [vmem:[#allocation2 + $0x3a] sm:$0xff]
      %v552 = vld [vmem:[#allocation2 + $0x4a] sm:$0xff]
      %v553 = vld [vmem:[#allocation2 + $0x52] sm:$0xff]
      %v554 = vld [vmem:[#allocation2 + $0x62] sm:$0xff]
      %v555 = vld [vmem:[#allocation2 + $0x6a] sm:$0xff]
      %v556 = vld [vmem:[#allocation2 + $0x7a] sm:$0xff]
      %v557 = vld [vmem:[#allocation2 + $0x82] sm:$0xff]
      %v558 = vld [vmem:[#allocation2 + $0x92] sm:$0xff]
      %v559 = vld [vmem:[#allocation2 + $0x9a] sm:$0xff]
      %v560 = vld [vmem:[#allocation2 + $0xaa] sm:$0xff]
      %v561 = vld [vmem:[#allocation2 + $0xb2] sm:$0xff]
      %v562 = vld [vmem:[#allocation2 + $0xc2] sm:$0xff]
      %v563 = vld [vmem:[#allocation2 + $0xca] sm:$0xff]
      %v564 = vld [vmem:[#allocation2 + $0xda] sm:$0xff]
      %v565 = vld [vmem:[#allocation2 + $0xe2] sm:$0xff]
      %v566 = vld [vmem:[#allocation2 + $0xf2] sm:$0xff]
      %v567 = vld [vmem:[#allocation2 + $0xfa] sm:$0xff]
      %v568 = vld [vmem:[#allocation2 + $0x10a] sm:$0xff]
      %v569 = vld [vmem:[#allocation2 + $0x112] sm:$0xff]
      %v570 = vld [vmem:[#allocation2 + $0x122] sm:$0xff]
      %v571 = vld [vmem:[#allocation2 + $0x12a] sm:$0xff]
      %v572 = vld [vmem:[#allocation2 + $0x13a] sm:$0xff]
      %v573 = vld [vmem:[#allocation2 + $0x142] sm:$0xff]
      %v574 = vld [vmem:[#allocation2 + $0x152] sm:$0xff]
      %v575 = vld [vmem:[#allocation2 + $0x15a] sm:$0xff]
      %v576 = vld [vmem:[#allocation2 + $0x16a] sm:$0xff]
      %v577 = vld [vmem:[#allocation2 + $0x172] sm:$0xff]
      %v578 = vld [vmem:[#allocation2 + $0x182] sm:$0xff]
      %v579 = vld [vmem:[#allocation2 + $0x18a] sm:$0xff]
      %v580 = vld [vmem:[#allocation2 + $0x19a] sm:$0xff]
      %v581 = vld [vmem:[#allocation2 + $0x1a2] sm:$0xff]
      %v582 = vmax.f32 %v510, %v546
      %v583 = vmax.f32 %v511, %v547
      %v584 = vmax.f32 %v512, %v548
      %v585 = vmax.f32 %v513, %v549
      %v586 = vmax.f32 %v514, %v550
      %v587 = vmax.f32 %v515, %v551
      %v588 = vmax.f32 %v516, %v552
      %v589 = vmax.f32 %v517, %v553
      %v590 = vmax.f32 %v518, %v554
      %v591 = vmax.f32 %v519, %v555
      %v592 = vmax.f32 %v520, %v556
      %v593 = vmax.f32 %v521, %v557
      %v594 = vmax.f32 %v522, %v558
      %v595 = vmax.f32 %v523, %v559
      %v596 = vmax.f32 %v524, %v560
      %v597 = vmax.f32 %v525, %v561
      %v598 = vmax.f32 %v526, %v562
      %v599 = vmax.f32 %v527, %v563
      %v600 = vmax.f32 %v528, %v564
      %v601 = vmax.f32 %v529, %v565
      %v602 = vmax.f32 %v530, %v566
      %v603 = vmax.f32 %v531, %v567
      %v604 = vmax.f32 %v532, %v568
      %v605 = vmax.f32 %v533, %v569
      %v606 = vmax.f32 %v534, %v570
      %v607 = vmax.f32 %v535, %v571
      %v608 = vmax.f32 %v536, %v572
      %v609 = vmax.f32 %v537, %v573
      %v610 = vmax.f32 %v538, %v574
      %v611 = vmax.f32 %v539, %v575
      %v612 = vmax.f32 %v540, %v576
      %v613 = vmax.f32 %v541, %v577
      %v614 = vmax.f32 %v542, %v578
      %v615 = vmax.f32 %v543, %v579
      %v616 = vmax.f32 %v544, %v580
      %v617 = vmax.f32 %v545, %v581
      %v618 = vmax.f32 %v582, %v584
      %v619 = vmax.f32 %v583, %v585
      %v620 = vmax.f32 %v584, %v586
      %v621 = vmax.f32 %v585, %v587
      %v622 = vmax.f32 %v586, %v588
      %v623 = vmax.f32 %v587, %v589
      %v624 = vmax.f32 %v588, %v590
      %v625 = vmax.f32 %v589, %v591
      %v626 = vmax.f32 %v590, %v592
      %v627 = vmax.f32 %v591, %v593
      %v628 = vmax.f32 %v592, %v594
      %v629 = vmax.f32 %v593, %v595
      %v630 = vmax.f32 %v594, %v596
      %v631 = vmax.f32 %v595, %v597
      %v632 = vmax.f32 %v596, %v598
      %v633 = vmax.f32 %v597, %v599
      %v634 = vmax.f32 %v598, %v600
      %v635 = vmax.f32 %v599, %v601
      %v636 = vmax.f32 %v600, %v602
      %v637 = vmax.f32 %v601, %v603
      %v638 = vmax.f32 %v602, %v604
      %v639 = vmax.f32 %v603, %v605
      %v640 = vmax.f32 %v604, %v606
      %v641 = vmax.f32 %v605, %v607
      %v642 = vmax.f32 %v606, %v608
      %v643 = vmax.f32 %v607, %v609
      %v644 = vmax.f32 %v608, %v610
      %v645 = vmax.f32 %v609, %v611
      %v646 = vmax.f32 %v610, %v612
      %v647 = vmax.f32 %v611, %v613
      %v648 = vmax.f32 %v612, %v614
      %v649 = vmax.f32 %v613, %v615
      %v650 = vmax.f32 %v618, %v586
      %v651 = vmax.f32 %v619, %v587
      %v652 = vmax.f32 %v620, %v588
      %v653 = vmax.f32 %v621, %v589
      %v654 = vmax.f32 %v622, %v590
      %v655 = vmax.f32 %v623, %v591
      %v656 = vmax.f32 %v624, %v592
      %v657 = vmax.f32 %v625, %v593
      %v658 = vmax.f32 %v626, %v594
      %v659 = vmax.f32 %v627, %v595
      %v660 = vmax.f32 %v628, %v596
      %v661 = vmax.f32 %v629, %v597
      %v662 = vmax.f32 %v630, %v598
      %v663 = vmax.f32 %v631, %v599
      %v664 = vmax.f32 %v632, %v600
      %v665 = vmax.f32 %v633, %v601
      %v666 = vmax.f32 %v634, %v602
      %v667 = vmax.f32 %v635, %v603
      %v668 = vmax.f32 %v636, %v604
      %v669 = vmax.f32 %v637, %v605
      %v670 = vmax.f32 %v638, %v606
      %v671 = vmax.f32 %v639, %v607
      %v672 = vmax.f32 %v640, %v608
      %v673 = vmax.f32 %v641, %v609
      %v674 = vmax.f32 %v642, %v610
      %v675 = vmax.f32 %v643, %v611
      %v676 = vmax.f32 %v644, %v612
      %v677 = vmax.f32 %v645, %v613
      %v678 = vmax.f32 %v646, %v614
      %v679 = vmax.f32 %v647, %v615
      %v680 = vmax.f32 %v648, %v616
      %v681 = vmax.f32 %v649, %v617
      %v682 = vpack.c.bf16 %v374, %v373
      %v683 = vpack.c.bf16 %v376, %v375
      %v684 = vpack.c.bf16 %v378, %v377
      %v685 = vpack.c.bf16 %v380, %v379
      %v686 = vpack.c.bf16 %v382, %v381
      %v687 = vpack.c.bf16 %v384, %v383
      %v688 = vpack.c.bf16 %v386, %v385
      %v689 = vpack.c.bf16 %v388, %v387
      %v690 = vpack.c.bf16 %v390, %v389
      %v691 = vpack.c.bf16 %v392, %v391
      %v692 = vpack.c.bf16 %v394, %v393
      %v693 = vpack.c.bf16 %v396, %v395
      %v694 = vpack.c.bf16 %v398, %v397
      %v695 = vpack.c.bf16 %v400, %v399
      %v696 = vpack.c.bf16 %v402, %v401
      %v697 = vpack.c.bf16 %v404, %v403
      %v698 = vpack.c.bf16 %v651, %v650
      %v699 = vpack.c.bf16 %v653, %v652
      %v700 = vpack.c.bf16 %v655, %v654
      %v701 = vpack.c.bf16 %v657, %v656
      %v702 = vpack.c.bf16 %v659, %v658
      %v703 = vpack.c.bf16 %v661, %v660
      %v704 = vpack.c.bf16 %v663, %v662
      %v705 = vpack.c.bf16 %v665, %v664
      %v706 = vpack.c.bf16 %v667, %v666
      %v707 = vpack.c.bf16 %v669, %v668
      %v708 = vpack.c.bf16 %v671, %v670
      %v709 = vpack.c.bf16 %v673, %v672
      %v710 = vpack.c.bf16 %v675, %v674
      %v711 = vpack.c.bf16 %v677, %v676
      %v712 = vpack.c.bf16 %v679, %v678
      %v713 = vpack.c.bf16 %v681, %v680
      %v714 = vld [vmem:[%s1] sm:$0x3]
      %v716 = vsel %vm327, %v682, 0
      %v719 = vsel %vm327, %v683, 0
      %v722 = vsel %vm327, %v684, 0
      %v725 = vsel %vm327, %v685, 0
      %v728 = vsel %vm327, %v686, 0
      %v731 = vsel %vm327, %v687, 0
      %v734 = vsel %vm327, %v688, 0
      %v737 = vsel %vm327, %v689, 0
      %v740 = vsel %vm327, %v690, 0
      %v743 = vsel %vm327, %v691, 0
      %v746 = vsel %vm327, %v692, 0
      %v749 = vsel %vm327, %v693, 0
      %v752 = vsel %vm327, %v694, 0
      %v755 = vsel %vm327, %v695, 0
      %v758 = vsel %vm327, %v696, 0
      %v761 = vsel %vm327, %v697, 0
      %vm763 = vcmask 1041408
      %v765 = vsel %vm763, %v714, 0
      %767 = vmatprep.subr.bf16.mxu0 0
      %768 = vmatpush1.bf16.msra.mxu0 %v765
      %769 = vmatprep.subr.bf16.mxu0 0
      %770 = vmatpush1.bf16.msra.mxu0 0
      %771 = vmatprep.subr.bf16.mxu0 0
      %772 = vmatpush1.bf16.msra.mxu0 0
      %773 = vmatprep.subr.bf16.mxu0 0
      %774 = vmatpush1.bf16.msra.mxu0 0
      %775 = vmatprep.subr.bf16.mxu0 0
      %776 = vmatpush1.bf16.msra.mxu0 0
      %777 = vmatprep.subr.bf16.mxu0 0
      %778 = vmatpush1.bf16.msra.mxu0 0
      %779 = vmatprep.subr.bf16.mxu0 0
      %780 = vmatpush1.bf16.msra.mxu0 0
      %781 = vmatprep.subr.bf16.mxu0 0
      %782 = vmatpush1.bf16.msra.mxu0 0
      %783 = vmatprep.subr.bf16.mxu0 0
      %784 = vmatpush1.bf16.msra.mxu0 0
      %785 = vmatprep.subr.bf16.mxu0 0
      %786 = vmatpush1.bf16.msra.mxu0 0
      %787 = vmatprep.subr.bf16.mxu0 0
      %788 = vmatpush1.bf16.msra.mxu0 0
      %789 = vmatprep.subr.bf16.mxu0 0
      %790 = vmatpush1.bf16.msra.mxu0 0
      %791 = vmatprep.subr.bf16.mxu0 0
      %792 = vmatpush1.bf16.msra.mxu0 0
      %793 = vmatprep.subr.bf16.mxu0 0
      %794 = vmatpush1.bf16.msra.mxu0 0
      %795 = vmatprep.subr.bf16.mxu0 0
      %796 = vmatpush1.bf16.msra.mxu0 0
      %797 = vmatprep.subr.bf16.mxu0 0
      %798 = vmatpush1.bf16.msra.mxu0 0
      %799 = vmatprep.mubr.bf16.mxu0 0
      %800 = vmatmul.mubr.bf16.gmra.mrb[0].mxu0 %v716
      %v801 = vpop.f32.mrb[0].mxu0
      %v802 = vadd.f32 0.0, %v801
      %v803 = vpop.f32.mrb[0].mxu0
      %v804 = vpop.f32.mrb[0].mxu0
      %v805 = vadd.f32 0.0, %v804
      %v806 = vpop.f32.mrb[0].mxu0
      %807 = vmatprep.mubr.bf16.mxu0 0
      %808 = vmatmul.mubr.bf16.gmra.mrb[0].mxu0 %v719
      %v809 = vpop.f32.mrb[0].mxu0
      %v810 = vadd.f32 0.0, %v809
      %v811 = vpop.f32.mrb[0].mxu0
      %v812 = vpop.f32.mrb[0].mxu0
      %v813 = vadd.f32 0.0, %v812
      %v814 = vpop.f32.mrb[0].mxu0
      %815 = vmatprep.mubr.bf16.mxu0 0
      %816 = vmatmul.mubr.bf16.gmra.mrb[0].mxu0 %v722
      %v817 = vpop.f32.mrb[0].mxu0
      %v818 = vadd.f32 0.0, %v817
      %v819 = vpop.f32.mrb[0].mxu0
      %v820 = vpop.f32.mrb[0].mxu0
      %v821 = vadd.f32 0.0, %v820
      %v822 = vpop.f32.mrb[0].mxu0
      %823 = vmatprep.mubr.bf16.mxu0 0
      %824 = vmatmul.mubr.bf16.gmra.mrb[0].mxu0 %v725
      %v825 = vpop.f32.mrb[0].mxu0
      %v826 = vadd.f32 0.0, %v825
      %v827 = vpop.f32.mrb[0].mxu0
      %v828 = vpop.f32.mrb[0].mxu0
      %v829 = vadd.f32 0.0, %v828
      %v830 = vpop.f32.mrb[0].mxu0
      %831 = vmatprep.mubr.bf16.mxu0 0
      %832 = vmatmul.mubr.bf16.gmra.mrb[0].mxu0 %v728
      %v833 = vpop.f32.mrb[0].mxu0
      %v834 = vadd.f32 0.0, %v833
      %v835 = vpop.f32.mrb[0].mxu0
      %v836 = vpop.f32.mrb[0].mxu0
      %v837 = vadd.f32 0.0, %v836
      %v838 = vpop.f32.mrb[0].mxu0
      %839 = vmatprep.mubr.bf16.mxu0 0
      %840 = vmatmul.mubr.bf16.gmra.mrb[0].mxu0 %v731
      %v841 = vpop.f32.mrb[0].mxu0
      %v842 = vadd.f32 0.0, %v841
      %v843 = vpop.f32.mrb[0].mxu0
      %v844 = vpop.f32.mrb[0].mxu0
      %v845 = vadd.f32 0.0, %v844
      %v846 = vpop.f32.mrb[0].mxu0
      %847 = vmatprep.mubr.bf16.mxu0 0
      %848 = vmatmul.mubr.bf16.gmra.mrb[0].mxu0 %v734
      %v849 = vpop.f32.mrb[0].mxu0
      %v850 = vadd.f32 0.0, %v849
      %v851 = vpop.f32.mrb[0].mxu0
      %v852 = vpop.f32.mrb[0].mxu0
      %v853 = vadd.f32 0.0, %v852
      %v854 = vpop.f32.mrb[0].mxu0
      %855 = vmatprep.mubr.bf16.mxu0 0
      %856 = vmatmul.mubr.bf16.gmra.mrb[0].mxu0 %v737
      %v857 = vpop.f32.mrb[0].mxu0
      %v858 = vadd.f32 0.0, %v857
      %v859 = vpop.f32.mrb[0].mxu0
      %v860 = vpop.f32.mrb[0].mxu0
      %v861 = vadd.f32 0.0, %v860
      %v862 = vpop.f32.mrb[0].mxu0
      %863 = vmatprep.mubr.bf16.mxu0 0
      %864 = vmatmul.mubr.bf16.gmra.mrb[0].mxu0 %v740
      %v865 = vpop.f32.mrb[0].mxu0
      %v866 = vadd.f32 0.0, %v865
      %v867 = vpop.f32.mrb[0].mxu0
      %v868 = vpop.f32.mrb[0].mxu0
      %v869 = vadd.f32 0.0, %v868
      %v870 = vpop.f32.mrb[0].mxu0
      %871 = vmatprep.mubr.bf16.mxu0 0
      %872 = vmatmul.mubr.bf16.gmra.mrb[0].mxu0 %v743
      %v873 = vpop.f32.mrb[0].mxu0
      %v874 = vadd.f32 0.0, %v873
      %v875 = vpop.f32.mrb[0].mxu0
      %v876 = vpop.f32.mrb[0].mxu0
      %v877 = vadd.f32 0.0, %v876
      %v878 = vpop.f32.mrb[0].mxu0
      %879 = vmatprep.mubr.bf16.mxu0 0
      %880 = vmatmul.mubr.bf16.gmra.mrb[0].mxu0 %v746
      %v881 = vpop.f32.mrb[0].mxu0
      %v882 = vadd.f32 0.0, %v881
      %v883 = vpop.f32.mrb[0].mxu0
      %v884 = vpop.f32.mrb[0].mxu0
      %v885 = vadd.f32 0.0, %v884
      %v886 = vpop.f32.mrb[0].mxu0
      %887 = vmatprep.mubr.bf16.mxu0 0
      %888 = vmatmul.mubr.bf16.gmra.mrb[0].mxu0 %v749
      %v889 = vpop.f32.mrb[0].mxu0
      %v890 = vadd.f32 0.0, %v889
      %v891 = vpop.f32.mrb[0].mxu0
      %v892 = vpop.f32.mrb[0].mxu0
      %v893 = vadd.f32 0.0, %v892
      %v894 = vpop.f32.mrb[0].mxu0
      %895 = vmatprep.mubr.bf16.mxu0 0
      %896 = vmatmul.mubr.bf16.gmra.mrb[0].mxu0 %v752
      %v897 = vpop.f32.mrb[0].mxu0
      %v898 = vadd.f32 0.0, %v897
      %v899 = vpop.f32.mrb[0].mxu0
      %v900 = vpop.f32.mrb[0].mxu0
      %v901 = vadd.f32 0.0, %v900
      %v902 = vpop.f32.mrb[0].mxu0
      %903 = vmatprep.mubr.bf16.mxu0 0
      %904 = vmatmul.mubr.bf16.gmra.mrb[0].mxu0 %v755
      %v905 = vpop.f32.mrb[0].mxu0
      %v906 = vadd.f32 0.0, %v905
      %v907 = vpop.f32.mrb[0].mxu0
      %v908 = vpop.f32.mrb[0].mxu0
      %v909 = vadd.f32 0.0, %v908
      %v910 = vpop.f32.mrb[0].mxu0
      %911 = vmatprep.mubr.bf16.mxu0 0
      %912 = vmatmul.mubr.bf16.gmra.mrb[0].mxu0 %v758
      %v913 = vpop.f32.mrb[0].mxu0
      %v914 = vadd.f32 0.0, %v913
      %v915 = vpop.f32.mrb[0].mxu0
      %v916 = vpop.f32.mrb[0].mxu0
      %v917 = vadd.f32 0.0, %v916
      %v918 = vpop.f32.mrb[0].mxu0
      %919 = vmatprep.mubr.bf16.mxu0 0
      %920 = vmatmul.mubr.bf16.gmra.mrb[0].mxu0 %v761
      %v921 = vpop.f32.mrb[0].mxu0
      %v922 = vadd.f32 0.0, %v921
      %v923 = vpop.f32.mrb[0].mxu0
      %v924 = vpop.f32.mrb[0].mxu0
      %v925 = vadd.f32 0.0, %v924
      %v926 = vpop.f32.mrb[0].mxu0
      %927 = vdwg.mxu0
      %v928 = vld [vmem:[%s2] sm:$0x3]
      %v930 = vsel %vm327, %v698, 0
      %v933 = vsel %vm327, %v699, 0
      %v936 = vsel %vm327, %v700, 0
      %v939 = vsel %vm327, %v701, 0
      %v942 = vsel %vm327, %v702, 0
      %v945 = vsel %vm327, %v703, 0
      %v948 = vsel %vm327, %v704, 0
      %v951 = vsel %vm327, %v705, 0
      %v954 = vsel %vm327, %v706, 0
      %v957 = vsel %vm327, %v707, 0
      %v960 = vsel %vm327, %v708, 0
      %v963 = vsel %vm327, %v709, 0
      %v966 = vsel %vm327, %v710, 0
      %v969 = vsel %vm327, %v711, 0
      %v972 = vsel %vm327, %v712, 0
      %v975 = vsel %vm327, %v713, 0
      %v978 = vsel %vm763, %v928, 0
      %980 = vmatprep.subr.bf16.mxu0 0
      %981 = vmatpush1.bf16.msra.mxu0 %v978
      %982 = vmatprep.subr.bf16.mxu0 0
      %983 = vmatpush1.bf16.msra.mxu0 0
      %984 = vmatprep.subr.bf16.mxu0 0
      %985 = vmatpush1.bf16.msra.mxu0 0
      %986 = vmatprep.subr.bf16.mxu0 0
      %987 = vmatpush1.bf16.msra.mxu0 0
      %988 = vmatprep.subr.bf16.mxu0 0
      %989 = vmatpush1.bf16.msra.mxu0 0
      %990 = vmatprep.subr.bf16.mxu0 0
      %991 = vmatpush1.bf16.msra.mxu0 0
      %992 = vmatprep.subr.bf16.mxu0 0
      %993 = vmatpush1.bf16.msra.mxu0 0
      %994 = vmatprep.subr.bf16.mxu0 0
      %995 = vmatpush1.bf16.msra.mxu0 0
      %996 = vmatprep.subr.bf16.mxu0 0
      %997 = vmatpush1.bf16.msra.mxu0 0
      %998 = vmatprep.subr.bf16.mxu0 0
      %999 = vmatpush1.bf16.msra.mxu0 0
      %1000 = vmatprep.subr.bf16.mxu0 0
      %1001 = vmatpush1.bf16.msra.mxu0 0
      %1002 = vmatprep.subr.bf16.mxu0 0
      %1003 = vmatpush1.bf16.msra.mxu0 0
      %1004 = vmatprep.subr.bf16.mxu0 0
      %1005 = vmatpush1.bf16.msra.mxu0 0
      %1006 = vmatprep.subr.bf16.mxu0 0
      %1007 = vmatpush1.bf16.msra.mxu0 0
      %1008 = vmatprep.subr.bf16.mxu0 0
      %1009 = vmatpush1.bf16.msra.mxu0 0
      %1010 = vmatprep.subr.bf16.mxu0 0
      %1011 = vmatpush1.bf16.msra.mxu0 0
      %1012 = vmatprep.mubr.bf16.mxu0 0
      %1013 = vmatmul.mubr.bf16.gmra.mrb[0].mxu0 %v930
      %v1014 = vpop.f32.mrb[0].mxu0
      %v1015 = vadd.f32 0.0, %v1014
      %v1016 = vpop.f32.mrb[0].mxu0
      %v1017 = vpop.f32.mrb[0].mxu0
      %v1018 = vadd.f32 0.0, %v1017
      %v1019 = vpop.f32.mrb[0].mxu0
      %1020 = vmatprep.mubr.bf16.mxu0 0
      %1021 = vmatmul.mubr.bf16.gmra.mrb[0].mxu0 %v933
      %v1022 = vpop.f32.mrb[0].mxu0
      %v1023 = vadd.f32 0.0, %v1022
      %v1024 = vpop.f32.mrb[0].mxu0
      %v1025 = vpop.f32.mrb[0].mxu0
      %v1026 = vadd.f32 0.0, %v1025
      %v1027 = vpop.f32.mrb[0].mxu0
      %1028 = vmatprep.mubr.bf16.mxu0 0
      %1029 = vmatmul.mubr.bf16.gmra.mrb[0].mxu0 %v936
      %v1030 = vpop.f32.mrb[0].mxu0
      %v1031 = vadd.f32 0.0, %v1030
      %v1032 = vpop.f32.mrb[0].mxu0
      %v1033 = vpop.f32.mrb[0].mxu0
      %v1034 = vadd.f32 0.0, %v1033
      %v1035 = vpop.f32.mrb[0].mxu0
      %1036 = vmatprep.mubr.bf16.mxu0 0
      %1037 = vmatmul.mubr.bf16.gmra.mrb[0].mxu0 %v939
      %v1038 = vpop.f32.mrb[0].mxu0
      %v1039 = vadd.f32 0.0, %v1038
      %v1040 = vpop.f32.mrb[0].mxu0
      %v1041 = vpop.f32.mrb[0].mxu0
      %v1042 = vadd.f32 0.0, %v1041
      %v1043 = vpop.f32.mrb[0].mxu0
      %1044 = vmatprep.mubr.bf16.mxu0 0
      %1045 = vmatmul.mubr.bf16.gmra.mrb[0].mxu0 %v942
      %v1046 = vpop.f32.mrb[0].mxu0
      %v1047 = vadd.f32 0.0, %v1046
      %v1048 = vpop.f32.mrb[0].mxu0
      %v1049 = vpop.f32.mrb[0].mxu0
      %v1050 = vadd.f32 0.0, %v1049
      %v1051 = vpop.f32.mrb[0].mxu0
      %1052 = vmatprep.mubr.bf16.mxu0 0
      %1053 = vmatmul.mubr.bf16.gmra.mrb[0].mxu0 %v945
      %v1054 = vpop.f32.mrb[0].mxu0
      %v1055 = vadd.f32 0.0, %v1054
      %v1056 = vpop.f32.mrb[0].mxu0
      %v1057 = vpop.f32.mrb[0].mxu0
      %v1058 = vadd.f32 0.0, %v1057
      %v1059 = vpop.f32.mrb[0].mxu0
      %1060 = vmatprep.mubr.bf16.mxu0 0
      %1061 = vmatmul.mubr.bf16.gmra.mrb[0].mxu0 %v948
      %v1062 = vpop.f32.mrb[0].mxu0
      %v1063 = vadd.f32 0.0, %v1062
      %v1064 = vpop.f32.mrb[0].mxu0
      %v1065 = vpop.f32.mrb[0].mxu0
      %v1066 = vadd.f32 0.0, %v1065
      %v1067 = vpop.f32.mrb[0].mxu0
      %1068 = vmatprep.mubr.bf16.mxu0 0
      %1069 = vmatmul.mubr.bf16.gmra.mrb[0].mxu0 %v951
      %v1070 = vpop.f32.mrb[0].mxu0
      %v1071 = vadd.f32 0.0, %v1070
      %v1072 = vpop.f32.mrb[0].mxu0
      %v1073 = vpop.f32.mrb[0].mxu0
      %v1074 = vadd.f32 0.0, %v1073
      %v1075 = vpop.f32.mrb[0].mxu0
      %1076 = vmatprep.mubr.bf16.mxu0 0
      %1077 = vmatmul.mubr.bf16.gmra.mrb[0].mxu0 %v954
      %v1078 = vpop.f32.mrb[0].mxu0
      %v1079 = vadd.f32 0.0, %v1078
      %v1080 = vpop.f32.mrb[0].mxu0
      %v1081 = vpop.f32.mrb[0].mxu0
      %v1082 = vadd.f32 0.0, %v1081
      %v1083 = vpop.f32.mrb[0].mxu0
      %1084 = vmatprep.mubr.bf16.mxu0 0
      %1085 = vmatmul.mubr.bf16.gmra.mrb[0].mxu0 %v957
      %v1086 = vpop.f32.mrb[0].mxu0
      %v1087 = vadd.f32 0.0, %v1086
      %v1088 = vpop.f32.mrb[0].mxu0
      %v1089 = vpop.f32.mrb[0].mxu0
      %v1090 = vadd.f32 0.0, %v1089
      %v1091 = vpop.f32.mrb[0].mxu0
      %1092 = vmatprep.mubr.bf16.mxu0 0
      %1093 = vmatmul.mubr.bf16.gmra.mrb[0].mxu0 %v960
      %v1094 = vpop.f32.mrb[0].mxu0
      %v1095 = vadd.f32 0.0, %v1094
      %v1096 = vpop.f32.mrb[0].mxu0
      %v1097 = vpop.f32.mrb[0].mxu0
      %v1098 = vadd.f32 0.0, %v1097
      %v1099 = vpop.f32.mrb[0].mxu0
      %1100 = vmatprep.mubr.bf16.mxu0 0
      %1101 = vmatmul.mubr.bf16.gmra.mrb[0].mxu0 %v963
      %v1102 = vpop.f32.mrb[0].mxu0
      %v1103 = vadd.f32 0.0, %v1102
      %v1104 = vpop.f32.mrb[0].mxu0
      %v1105 = vpop.f32.mrb[0].mxu0
      %v1106 = vadd.f32 0.0, %v1105
      %v1107 = vpop.f32.mrb[0].mxu0
      %1108 = vmatprep.mubr.bf16.mxu0 0
      %1109 = vmatmul.mubr.bf16.gmra.mrb[0].mxu0 %v966
      %v1110 = vpop.f32.mrb[0].mxu0
      %v1111 = vadd.f32 0.0, %v1110
      %v1112 = vpop.f32.mrb[0].mxu0
      %v1113 = vpop.f32.mrb[0].mxu0
      %v1114 = vadd.f32 0.0, %v1113
      %v1115 = vpop.f32.mrb[0].mxu0
      %1116 = vmatprep.mubr.bf16.mxu0 0
      %1117 = vmatmul.mubr.bf16.gmra.mrb[0].mxu0 %v969
      %v1118 = vpop.f32.mrb[0].mxu0
      %v1119 = vadd.f32 0.0, %v1118
      %v1120 = vpop.f32.mrb[0].mxu0
      %v1121 = vpop.f32.mrb[0].mxu0
      %v1122 = vadd.f32 0.0, %v1121
      %v1123 = vpop.f32.mrb[0].mxu0
      %1124 = vmatprep.mubr.bf16.mxu0 0
      %1125 = vmatmul.mubr.bf16.gmra.mrb[0].mxu0 %v972
      %v1126 = vpop.f32.mrb[0].mxu0
      %v1127 = vadd.f32 0.0, %v1126
      %v1128 = vpop.f32.mrb[0].mxu0
      %v1129 = vpop.f32.mrb[0].mxu0
      %v1130 = vadd.f32 0.0, %v1129
      %v1131 = vpop.f32.mrb[0].mxu0
      %1132 = vmatprep.mubr.bf16.mxu0 0
      %1133 = vmatmul.mubr.bf16.gmra.mrb[0].mxu0 %v975
      %v1134 = vpop.f32.mrb[0].mxu0
      %v1135 = vadd.f32 0.0, %v1134
      %v1136 = vpop.f32.mrb[0].mxu0
      %v1137 = vpop.f32.mrb[0].mxu0
      %v1138 = vadd.f32 0.0, %v1137
      %v1139 = vpop.f32.mrb[0].mxu0
      %1140 = vdwg.mxu0
      %vm1141 = vcmask 130048
      %v1142 = vsel %vm1141, %v802, 0.0
      %v1143 = vsel %vm1141, %v805, 0.0
      %v1144 = vadd.f32 %v1142, %v1143
      %v1145 = vsel %vm1141, %v810, 0.0
      %v1146 = vadd.f32 %v1144, %v1145
      %v1147 = vsel %vm1141, %v813, 0.0
      %v1148 = vadd.f32 %v1146, %v1147
      %v1149 = vsel %vm1141, %v818, 0.0
      %v1150 = vadd.f32 %v1148, %v1149
      %v1151 = vsel %vm1141, %v821, 0.0
      %v1152 = vadd.f32 %v1150, %v1151
      %v1153 = vsel %vm1141, %v826, 0.0
      %v1154 = vadd.f32 %v1152, %v1153
      %v1155 = vsel %vm1141, %v829, 0.0
      %v1156 = vadd.f32 %v1154, %v1155
      %v1157 = vsel %vm1141, %v834, 0.0
      %v1158 = vadd.f32 %v1156, %v1157
      %v1159 = vsel %vm1141, %v837, 0.0
      %v1160 = vadd.f32 %v1158, %v1159
      %v1161 = vsel %vm1141, %v842, 0.0
      %v1162 = vadd.f32 %v1160, %v1161
      %v1163 = vsel %vm1141, %v845, 0.0
      %v1164 = vadd.f32 %v1162, %v1163
      %v1165 = vsel %vm1141, %v850, 0.0
      %v1166 = vadd.f32 %v1164, %v1165
      %v1167 = vsel %vm1141, %v853, 0.0
      %v1168 = vadd.f32 %v1166, %v1167
      %v1169 = vsel %vm1141, %v858, 0.0
      %v1170 = vadd.f32 %v1168, %v1169
      %v1171 = vsel %vm1141, %v861, 0.0
      %v1172 = vadd.f32 %v1170, %v1171
      %v1173 = vsel %vm1141, %v866, 0.0
      %v1174 = vadd.f32 %v1172, %v1173
      %v1175 = vsel %vm1141, %v869, 0.0
      %v1176 = vadd.f32 %v1174, %v1175
      %v1177 = vsel %vm1141, %v874, 0.0
      %v1178 = vadd.f32 %v1176, %v1177
      %v1179 = vsel %vm1141, %v877, 0.0
      %v1180 = vadd.f32 %v1178, %v1179
      %v1181 = vsel %vm1141, %v882, 0.0
      %v1182 = vadd.f32 %v1180, %v1181
      %v1183 = vsel %vm1141, %v885, 0.0
      %v1184 = vadd.f32 %v1182, %v1183
      %v1185 = vsel %vm1141, %v890, 0.0
      %v1186 = vadd.f32 %v1184, %v1185
      %v1187 = vsel %vm1141, %v893, 0.0
      %v1188 = vadd.f32 %v1186, %v1187
      %v1189 = vsel %vm1141, %v898, 0.0
      %v1190 = vadd.f32 %v1188, %v1189
      %v1191 = vsel %vm1141, %v901, 0.0
      %v1192 = vadd.f32 %v1190, %v1191
      %v1193 = vsel %vm1141, %v906, 0.0
      %v1194 = vadd.f32 %v1192, %v1193
      %v1195 = vsel %vm1141, %v909, 0.0
      %v1196 = vadd.f32 %v1194, %v1195
      %v1197 = vsel %vm1141, %v914, 0.0
      %v1198 = vadd.f32 %v1196, %v1197
      %v1199 = vsel %vm1141, %v917, 0.0
      %v1200 = vadd.f32 %v1198, %v1199
      %v1201 = vsel %vm1141, %v922, 0.0
      %v1202 = vadd.f32 %v1200, %v1201
      %v1203 = vsel %vm1141, %v925, 0.0
      %v1204 = vadd.f32 %v1202, %v1203
      %v1205 = vrot.slane %v1204, 4
      %v1206 = vadd.f32 %v1204, %v1205
      %v1207 = vrot.slane %v1206, 2
      %v1208 = vadd.f32 %v1206, %v1207
      %v1209 = vrot.slane %v1208, 1
      %v1210 = vadd.f32 %v1208, %v1209
      %vm1211 = vcmask 122880
      %1212 = vst.msk [vmem:[%s325] sm:$0x1] %vm1211, %v1210
      %v1213 = vmul.f32 %v802, %v802
      %v1214 = vmul.f32 %v805, %v805
      %v1215 = vmul.f32 %v810, %v810
      %v1216 = vmul.f32 %v813, %v813
      %v1217 = vmul.f32 %v818, %v818
      %v1218 = vmul.f32 %v821, %v821
      %v1219 = vmul.f32 %v826, %v826
      %v1220 = vmul.f32 %v829, %v829
      %v1221 = vmul.f32 %v834, %v834
      %v1222 = vmul.f32 %v837, %v837
      %v1223 = vmul.f32 %v842, %v842
      %v1224 = vmul.f32 %v845, %v845
      %v1225 = vmul.f32 %v850, %v850
      %v1226 = vmul.f32 %v853, %v853
      %v1227 = vmul.f32 %v858, %v858
      %v1228 = vmul.f32 %v861, %v861
      %v1229 = vmul.f32 %v866, %v866
      %v1230 = vmul.f32 %v869, %v869
      %v1231 = vmul.f32 %v874, %v874
      %v1232 = vmul.f32 %v877, %v877
      %v1233 = vmul.f32 %v882, %v882
      %v1234 = vmul.f32 %v885, %v885
      %v1235 = vmul.f32 %v890, %v890
      %v1236 = vmul.f32 %v893, %v893
      %v1237 = vmul.f32 %v898, %v898
      %v1238 = vmul.f32 %v901, %v901
      %v1239 = vmul.f32 %v906, %v906
      %v1240 = vmul.f32 %v909, %v909
      %v1241 = vmul.f32 %v914, %v914
      %v1242 = vmul.f32 %v917, %v917
      %v1243 = vmul.f32 %v922, %v922
      %v1244 = vmul.f32 %v925, %v925
      %v1245 = vsel %vm1141, %v1213, 0.0
      %v1246 = vsel %vm1141, %v1214, 0.0
      %v1247 = vadd.f32 %v1245, %v1246
      %v1248 = vsel %vm1141, %v1215, 0.0
      %v1249 = vadd.f32 %v1247, %v1248
      %v1250 = vsel %vm1141, %v1216, 0.0
      %v1251 = vadd.f32 %v1249, %v1250
      %v1252 = vsel %vm1141, %v1217, 0.0
      %v1253 = vadd.f32 %v1251, %v1252
      %v1254 = vsel %vm1141, %v1218, 0.0
      %v1255 = vadd.f32 %v1253, %v1254
      %v1256 = vsel %vm1141, %v1219, 0.0
      %v1257 = vadd.f32 %v1255, %v1256
      %v1258 = vsel %vm1141, %v1220, 0.0
      %v1259 = vadd.f32 %v1257, %v1258
      %v1260 = vsel %vm1141, %v1221, 0.0
      %v1261 = vadd.f32 %v1259, %v1260
      %v1262 = vsel %vm1141, %v1222, 0.0
      %v1263 = vadd.f32 %v1261, %v1262
      %v1264 = vsel %vm1141, %v1223, 0.0
      %v1265 = vadd.f32 %v1263, %v1264
      %v1266 = vsel %vm1141, %v1224, 0.0
      %v1267 = vadd.f32 %v1265, %v1266
      %v1268 = vsel %vm1141, %v1225, 0.0
      %v1269 = vadd.f32 %v1267, %v1268
      %v1270 = vsel %vm1141, %v1226, 0.0
      %v1271 = vadd.f32 %v1269, %v1270
      %v1272 = vsel %vm1141, %v1227, 0.0
      %v1273 = vadd.f32 %v1271, %v1272
      %v1274 = vsel %vm1141, %v1228, 0.0
      %v1275 = vadd.f32 %v1273, %v1274
      %v1276 = vsel %vm1141, %v1229, 0.0
      %v1277 = vadd.f32 %v1275, %v1276
      %v1278 = vsel %vm1141, %v1230, 0.0
      %v1279 = vadd.f32 %v1277, %v1278
      %v1280 = vsel %vm1141, %v1231, 0.0
      %v1281 = vadd.f32 %v1279, %v1280
      %v1282 = vsel %vm1141, %v1232, 0.0
      %v1283 = vadd.f32 %v1281, %v1282
      %v1284 = vsel %vm1141, %v1233, 0.0
      %v1285 = vadd.f32 %v1283, %v1284
      %v1286 = vsel %vm1141, %v1234, 0.0
      %v1287 = vadd.f32 %v1285, %v1286
      %v1288 = vsel %vm1141, %v1235, 0.0
      %v1289 = vadd.f32 %v1287, %v1288
      %v1290 = vsel %vm1141, %v1236, 0.0
      %v1291 = vadd.f32 %v1289, %v1290
      %v1292 = vsel %vm1141, %v1237, 0.0
      %v1293 = vadd.f32 %v1291, %v1292
      %v1294 = vsel %vm1141, %v1238, 0.0
      %v1295 = vadd.f32 %v1293, %v1294
      %v1296 = vsel %vm1141, %v1239, 0.0
      %v1297 = vadd.f32 %v1295, %v1296
      %v1298 = vsel %vm1141, %v1240, 0.0
      %v1299 = vadd.f32 %v1297, %v1298
      %v1300 = vsel %vm1141, %v1241, 0.0
      %v1301 = vadd.f32 %v1299, %v1300
      %v1302 = vsel %vm1141, %v1242, 0.0
      %v1303 = vadd.f32 %v1301, %v1302
      %v1304 = vsel %vm1141, %v1243, 0.0
      %v1305 = vadd.f32 %v1303, %v1304
      %v1306 = vsel %vm1141, %v1244, 0.0
      %v1307 = vadd.f32 %v1305, %v1306
      %v1308 = vrot.slane %v1307, 4
      %v1309 = vadd.f32 %v1307, %v1308
      %v1310 = vrot.slane %v1309, 2
      %v1311 = vadd.f32 %v1309, %v1310
      %v1312 = vrot.slane %v1311, 1
      %v1313 = vadd.f32 %v1311, %v1312
      %1314 = vst.msk [vmem:[%s325 + $0x1] sm:$0x1] %vm1211, %v1313
      %vm1315 = vcmask 64512
      %v1316 = vsel %vm1315, %v1015, 0.0
      %v1317 = vsel %vm1315, %v1018, 0.0
      %v1318 = vadd.f32 %v1316, %v1317
      %v1319 = vsel %vm1315, %v1023, 0.0
      %v1320 = vadd.f32 %v1318, %v1319
      %v1321 = vsel %vm1315, %v1026, 0.0
      %v1322 = vadd.f32 %v1320, %v1321
      %v1323 = vsel %vm1315, %v1031, 0.0
      %v1324 = vadd.f32 %v1322, %v1323
      %v1325 = vsel %vm1315, %v1034, 0.0
      %v1326 = vadd.f32 %v1324, %v1325
      %v1327 = vsel %vm1315, %v1039, 0.0
      %v1328 = vadd.f32 %v1326, %v1327
      %v1329 = vsel %vm1315, %v1042, 0.0
      %v1330 = vadd.f32 %v1328, %v1329
      %v1331 = vsel %vm1315, %v1047, 0.0
      %v1332 = vadd.f32 %v1330, %v1331
      %v1333 = vsel %vm1315, %v1050, 0.0
      %v1334 = vadd.f32 %v1332, %v1333
      %v1335 = vsel %vm1315, %v1055, 0.0
      %v1336 = vadd.f32 %v1334, %v1335
      %v1337 = vsel %vm1315, %v1058, 0.0
      %v1338 = vadd.f32 %v1336, %v1337
      %v1339 = vsel %vm1315, %v1063, 0.0
      %v1340 = vadd.f32 %v1338, %v1339
      %v1341 = vsel %vm1315, %v1066, 0.0
      %v1342 = vadd.f32 %v1340, %v1341
      %v1343 = vsel %vm1315, %v1071, 0.0
      %v1344 = vadd.f32 %v1342, %v1343
      %v1345 = vsel %vm1315, %v1074, 0.0
      %v1346 = vadd.f32 %v1344, %v1345
      %v1347 = vsel %vm1315, %v1079, 0.0
      %v1348 = vadd.f32 %v1346, %v1347
      %v1349 = vsel %vm1315, %v1082, 0.0
      %v1350 = vadd.f32 %v1348, %v1349
      %v1351 = vsel %vm1315, %v1087, 0.0
      %v1352 = vadd.f32 %v1350, %v1351
      %v1353 = vsel %vm1315, %v1090, 0.0
      %v1354 = vadd.f32 %v1352, %v1353
      %v1355 = vsel %vm1315, %v1095, 0.0
      %v1356 = vadd.f32 %v1354, %v1355
      %v1357 = vsel %vm1315, %v1098, 0.0
      %v1358 = vadd.f32 %v1356, %v1357
      %v1359 = vsel %vm1315, %v1103, 0.0
      %v1360 = vadd.f32 %v1358, %v1359
      %v1361 = vsel %vm1315, %v1106, 0.0
      %v1362 = vadd.f32 %v1360, %v1361
      %v1363 = vsel %vm1315, %v1111, 0.0
      %v1364 = vadd.f32 %v1362, %v1363
      %v1365 = vsel %vm1315, %v1114, 0.0
      %v1366 = vadd.f32 %v1364, %v1365
      %v1367 = vsel %vm1315, %v1119, 0.0
      %v1368 = vadd.f32 %v1366, %v1367
      %v1369 = vsel %vm1315, %v1122, 0.0
      %v1370 = vadd.f32 %v1368, %v1369
      %v1371 = vsel %vm1315, %v1127, 0.0
      %v1372 = vadd.f32 %v1370, %v1371
      %v1373 = vsel %vm1315, %v1130, 0.0
      %v1374 = vadd.f32 %v1372, %v1373
      %v1375 = vsel %vm1315, %v1135, 0.0
      %v1376 = vadd.f32 %v1374, %v1375
      %v1377 = vsel %vm1315, %v1138, 0.0
      %v1378 = vadd.f32 %v1376, %v1377
      %v1379 = vrot.slane %v1378, 4
      %v1380 = vadd.f32 %v1378, %v1379
      %v1381 = vrot.slane %v1380, 2
      %v1382 = vadd.f32 %v1380, %v1381
      %v1383 = vrot.slane %v1382, 1
      %v1384 = vadd.f32 %v1382, %v1383
      %1386 = vrot.lane.b32.xlu0 %v1384, 16
      %v1387 = vpop.permute.xlu0 %1386
      %vm1389 = vcmask 188544
      %1390 = vst.msk [vmem:[%s325] sm:$0x1] %vm1389, %v1387
      %v1391 = vmul.f32 %v1015, %v1015
      %v1392 = vmul.f32 %v1018, %v1018
      %v1393 = vmul.f32 %v1023, %v1023
      %v1394 = vmul.f32 %v1026, %v1026
      %v1395 = vmul.f32 %v1031, %v1031
      %v1396 = vmul.f32 %v1034, %v1034
      %v1397 = vmul.f32 %v1039, %v1039
      %v1398 = vmul.f32 %v1042, %v1042
      %v1399 = vmul.f32 %v1047, %v1047
      %v1400 = vmul.f32 %v1050, %v1050
      %v1401 = vmul.f32 %v1055, %v1055
      %v1402 = vmul.f32 %v1058, %v1058
      %v1403 = vmul.f32 %v1063, %v1063
      %v1404 = vmul.f32 %v1066, %v1066
      %v1405 = vmul.f32 %v1071, %v1071
      %v1406 = vmul.f32 %v1074, %v1074
      %v1407 = vmul.f32 %v1079, %v1079
      %v1408 = vmul.f32 %v1082, %v1082
      %v1409 = vmul.f32 %v1087, %v1087
      %v1410 = vmul.f32 %v1090, %v1090
      %v1411 = vmul.f32 %v1095, %v1095
      %v1412 = vmul.f32 %v1098, %v1098
      %v1413 = vmul.f32 %v1103, %v1103
      %v1414 = vmul.f32 %v1106, %v1106
      %v1415 = vmul.f32 %v1111, %v1111
      %v1416 = vmul.f32 %v1114, %v1114
      %v1417 = vmul.f32 %v1119, %v1119
      %v1418 = vmul.f32 %v1122, %v1122
      %v1419 = vmul.f32 %v1127, %v1127
      %v1420 = vmul.f32 %v1130, %v1130
      %v1421 = vmul.f32 %v1135, %v1135
      %v1422 = vmul.f32 %v1138, %v1138
      %v1423 = vsel %vm1315, %v1391, 0.0
      %v1424 = vsel %vm1315, %v1392, 0.0
      %v1425 = vadd.f32 %v1423, %v1424
      %v1426 = vsel %vm1315, %v1393, 0.0
      %v1427 = vadd.f32 %v1425, %v1426
      %v1428 = vsel %vm1315, %v1394, 0.0
      %v1429 = vadd.f32 %v1427, %v1428
      %v1430 = vsel %vm1315, %v1395, 0.0
      %v1431 = vadd.f32 %v1429, %v1430
      %v1432 = vsel %vm1315, %v1396, 0.0
      %v1433 = vadd.f32 %v1431, %v1432
      %v1434 = vsel %vm1315, %v1397, 0.0
      %v1435 = vadd.f32 %v1433, %v1434
      %v1436 = vsel %vm1315, %v1398, 0.0
      %v1437 = vadd.f32 %v1435, %v1436
      %v1438 = vsel %vm1315, %v1399, 0.0
      %v1439 = vadd.f32 %v1437, %v1438
      %v1440 = vsel %vm1315, %v1400, 0.0
      %v1441 = vadd.f32 %v1439, %v1440
      %v1442 = vsel %vm1315, %v1401, 0.0
      %v1443 = vadd.f32 %v1441, %v1442
      %v1444 = vsel %vm1315, %v1402, 0.0
      %v1445 = vadd.f32 %v1443, %v1444
      %v1446 = vsel %vm1315, %v1403, 0.0
      %v1447 = vadd.f32 %v1445, %v1446
      %v1448 = vsel %vm1315, %v1404, 0.0
      %v1449 = vadd.f32 %v1447, %v1448
      %v1450 = vsel %vm1315, %v1405, 0.0
      %v1451 = vadd.f32 %v1449, %v1450
      %v1452 = vsel %vm1315, %v1406, 0.0
      %v1453 = vadd.f32 %v1451, %v1452
      %v1454 = vsel %vm1315, %v1407, 0.0
      %v1455 = vadd.f32 %v1453, %v1454
      %v1456 = vsel %vm1315, %v1408, 0.0
      %v1457 = vadd.f32 %v1455, %v1456
      %v1458 = vsel %vm1315, %v1409, 0.0
      %v1459 = vadd.f32 %v1457, %v1458
      %v1460 = vsel %vm1315, %v1410, 0.0
      %v1461 = vadd.f32 %v1459, %v1460
      %v1462 = vsel %vm1315, %v1411, 0.0
      %v1463 = vadd.f32 %v1461, %v1462
      %v1464 = vsel %vm1315, %v1412, 0.0
      %v1465 = vadd.f32 %v1463, %v1464
      %v1466 = vsel %vm1315, %v1413, 0.0
      %v1467 = vadd.f32 %v1465, %v1466
      %v1468 = vsel %vm1315, %v1414, 0.0
      %v1469 = vadd.f32 %v1467, %v1468
      %v1470 = vsel %vm1315, %v1415, 0.0
      %v1471 = vadd.f32 %v1469, %v1470
      %v1472 = vsel %vm1315, %v1416, 0.0
      %v1473 = vadd.f32 %v1471, %v1472
      %v1474 = vsel %vm1315, %v1417, 0.0
      %v1475 = vadd.f32 %v1473, %v1474
      %v1476 = vsel %vm1315, %v1418, 0.0
      %v1477 = vadd.f32 %v1475, %v1476
      %v1478 = vsel %vm1315, %v1419, 0.0
      %v1479 = vadd.f32 %v1477, %v1478
      %v1480 = vsel %vm1315, %v1420, 0.0
      %v1481 = vadd.f32 %v1479, %v1480
      %v1482 = vsel %vm1315, %v1421, 0.0
      %v1483 = vadd.f32 %v1481, %v1482
      %v1484 = vsel %vm1315, %v1422, 0.0
      %v1485 = vadd.f32 %v1483, %v1484
      %v1486 = vrot.slane %v1485, 4
      %v1487 = vadd.f32 %v1485, %v1486
      %v1488 = vrot.slane %v1487, 2
      %v1489 = vadd.f32 %v1487, %v1488
      %v1490 = vrot.slane %v1489, 1
      %v1491 = vadd.f32 %v1489, %v1490
      %1493 = vrot.lane.b32.xlu0 %v1491, 16
      %v1494 = vpop.permute.xlu0 %1493
      %1496 = vst.msk [vmem:[%s325 + $0x1] sm:$0x1] %vm1389, %v1494
      %v1497 = vpack.c.bf16 %v805, %v802
      %v1498 = vpack.c.bf16 %v813, %v810
      %v1499 = vpack.c.bf16 %v821, %v818
      %v1500 = vpack.c.bf16 %v829, %v826
      %v1501 = vpack.c.bf16 %v837, %v834
      %v1502 = vpack.c.bf16 %v845, %v842
      %v1503 = vpack.c.bf16 %v853, %v850
      %v1504 = vpack.c.bf16 %v861, %v858
      %v1505 = vpack.c.bf16 %v869, %v866
      %v1506 = vpack.c.bf16 %v877, %v874
      %v1507 = vpack.c.bf16 %v885, %v882
      %v1508 = vpack.c.bf16 %v893, %v890
      %v1509 = vpack.c.bf16 %v901, %v898
      %v1510 = vpack.c.bf16 %v909, %v906
      %v1511 = vpack.c.bf16 %v917, %v914
      %v1512 = vpack.c.bf16 %v925, %v922
      %v1529 = vunpack.c.l.b16 %v1497
      %v1530 = vunpack.c.h.b16 %v1497
      %v1531 = vunpack.c.l.b16 %v1498
      %v1532 = vunpack.c.h.b16 %v1498
      %v1533 = vunpack.c.l.b16 %v1499
      %v1534 = vunpack.c.h.b16 %v1499
      %v1535 = vunpack.c.l.b16 %v1500
      %v1536 = vunpack.c.h.b16 %v1500
      %v1537 = vunpack.c.l.b16 %v1501
      %v1538 = vunpack.c.h.b16 %v1501
      %v1539 = vunpack.c.l.b16 %v1502
      %v1540 = vunpack.c.h.b16 %v1502
      %v1541 = vunpack.c.l.b16 %v1503
      %v1542 = vunpack.c.h.b16 %v1503
      %v1543 = vunpack.c.l.b16 %v1504
      %v1544 = vunpack.c.h.b16 %v1504
      %v1545 = vunpack.c.l.b16 %v1505
      %v1546 = vunpack.c.h.b16 %v1505
      %v1547 = vunpack.c.l.b16 %v1506
      %v1548 = vunpack.c.h.b16 %v1506
      %v1549 = vunpack.c.l.b16 %v1507
      %v1550 = vunpack.c.h.b16 %v1507
      %v1551 = vunpack.c.l.b16 %v1508
      %v1552 = vunpack.c.h.b16 %v1508
      %v1553 = vunpack.c.l.b16 %v1509
      %v1554 = vunpack.c.h.b16 %v1509
      %v1555 = vunpack.c.l.b16 %v1510
      %v1556 = vunpack.c.h.b16 %v1510
      %v1557 = vunpack.c.l.b16 %v1511
      %v1558 = vunpack.c.h.b16 %v1511
      %v1559 = vunpack.c.l.b16 %v1512
      %v1560 = vunpack.c.h.b16 %v1512
      %v1561 = vpack.c.b16 %v1529, %v1529
      %v1562 = vpack.c.b16 %v1530, %v1530
      %v1563 = vpack.c.b16 %v1531, %v1531
      %v1564 = vpack.c.b16 %v1532, %v1532
      %v1565 = vpack.c.b16 %v1533, %v1533
      %v1566 = vpack.c.b16 %v1534, %v1534
      %v1567 = vpack.c.b16 %v1535, %v1535
      %v1568 = vpack.c.b16 %v1536, %v1536
      %v1569 = vpack.c.b16 %v1537, %v1537
      %v1570 = vpack.c.b16 %v1538, %v1538
      %v1571 = vpack.c.b16 %v1539, %v1539
      %v1572 = vpack.c.b16 %v1540, %v1540
      %v1573 = vpack.c.b16 %v1541, %v1541
      %v1574 = vpack.c.b16 %v1542, %v1542
      %v1575 = vpack.c.b16 %v1543, %v1543
      %v1576 = vpack.c.b16 %v1544, %v1544
      %v1577 = vpack.c.b16 %v1545, %v1545
      %v1578 = vpack.c.b16 %v1546, %v1546
      %v1579 = vpack.c.b16 %v1547, %v1547
      %v1580 = vpack.c.b16 %v1548, %v1548
      %v1581 = vpack.c.b16 %v1549, %v1549
      %v1582 = vpack.c.b16 %v1550, %v1550
      %v1583 = vpack.c.b16 %v1551, %v1551
      %v1584 = vpack.c.b16 %v1552, %v1552
      %v1585 = vpack.c.b16 %v1553, %v1553
      %v1586 = vpack.c.b16 %v1554, %v1554
      %v1587 = vpack.c.b16 %v1555, %v1555
      %v1588 = vpack.c.b16 %v1556, %v1556
      %v1589 = vpack.c.b16 %v1557, %v1557
      %v1590 = vpack.c.b16 %v1558, %v1558
      %v1591 = vpack.c.b16 %v1559, %v1559
      %v1592 = vpack.c.b16 %v1560, %v1560
      %vm1625 = vcmask 60416
      %1626 = vst.msk [vmem:[%s306] sm:$0xf] %vm1625, %v1561
      %1627 = vst.msk [vmem:[%s306 + $0x4] sm:$0xf] %vm1625, %v1562
      %1628 = vst.msk [vmem:[%s306 + $0x8] sm:$0xf] %vm1625, %v1563
      %1629 = vst.msk [vmem:[%s306 + $0xc] sm:$0xf] %vm1625, %v1564
      %1630 = vst.msk [vmem:[%s306 + $0x10] sm:$0xf] %vm1625, %v1565
      %1631 = vst.msk [vmem:[%s306 + $0x14] sm:$0xf] %vm1625, %v1566
      %1632 = vst.msk [vmem:[%s306 + $0x18] sm:$0xf] %vm1625, %v1567
      %1633 = vst.msk [vmem:[%s306 + $0x1c] sm:$0xf] %vm1625, %v1568
      %1634 = vst.msk [vmem:[%s306 + $0x20] sm:$0xf] %vm1625, %v1569
      %1635 = vst.msk [vmem:[%s306 + $0x24] sm:$0xf] %vm1625, %v1570
      %1636 = vst.msk [vmem:[%s306 + $0x28] sm:$0xf] %vm1625, %v1571
      %1637 = vst.msk [vmem:[%s306 + $0x2c] sm:$0xf] %vm1625, %v1572
      %1638 = vst.msk [vmem:[%s306 + $0x30] sm:$0xf] %vm1625, %v1573
      %1639 = vst.msk [vmem:[%s306 + $0x34] sm:$0xf] %vm1625, %v1574
      %1640 = vst.msk [vmem:[%s306 + $0x38] sm:$0xf] %vm1625, %v1575
      %1641 = vst.msk [vmem:[%s306 + $0x3c] sm:$0xf] %vm1625, %v1576
      %1642 = vst.msk [vmem:[%s306 + $0x40] sm:$0xf] %vm1625, %v1577
      %1643 = vst.msk [vmem:[%s306 + $0x44] sm:$0xf] %vm1625, %v1578
      %1644 = vst.msk [vmem:[%s306 + $0x48] sm:$0xf] %vm1625, %v1579
      %1645 = vst.msk [vmem:[%s306 + $0x4c] sm:$0xf] %vm1625, %v1580
      %1646 = vst.msk [vmem:[%s306 + $0x50] sm:$0xf] %vm1625, %v1581
      %1647 = vst.msk [vmem:[%s306 + $0x54] sm:$0xf] %vm1625, %v1582
      %1648 = vst.msk [vmem:[%s306 + $0x58] sm:$0xf] %vm1625, %v1583
      %1649 = vst.msk [vmem:[%s306 + $0x5c] sm:$0xf] %vm1625, %v1584
      %1650 = vst.msk [vmem:[%s306 + $0x60] sm:$0xf] %vm1625, %v1585
      %1651 = vst.msk [vmem:[%s306 + $0x64] sm:$0xf] %vm1625, %v1586
      %1652 = vst.msk [vmem:[%s306 + $0x68] sm:$0xf] %vm1625, %v1587
      %1653 = vst.msk [vmem:[%s306 + $0x6c] sm:$0xf] %vm1625, %v1588
      %1654 = vst.msk [vmem:[%s306 + $0x70] sm:$0xf] %vm1625, %v1589
      %1655 = vst.msk [vmem:[%s306 + $0x74] sm:$0xf] %vm1625, %v1590
      %1656 = vst.msk [vmem:[%s306 + $0x78] sm:$0xf] %vm1625, %v1591
      %1657 = vst.msk [vmem:[%s306 + $0x7c] sm:$0xf] %vm1625, %v1592
      %1658 = vrot.lane.b32.xlu0 %v1561, 120
      %v1659 = vpop.permute.xlu0 %1658
      %1660 = vrot.lane.b32.xlu0 %v1562, 120
      %v1661 = vpop.permute.xlu0 %1660
      %1662 = vrot.lane.b32.xlu0 %v1563, 120
      %v1663 = vpop.permute.xlu0 %1662
      %1664 = vrot.lane.b32.xlu0 %v1564, 120
      %v1665 = vpop.permute.xlu0 %1664
      %1666 = vrot.lane.b32.xlu0 %v1565, 120
      %v1667 = vpop.permute.xlu0 %1666
      %1668 = vrot.lane.b32.xlu0 %v1566, 120
      %v1669 = vpop.permute.xlu0 %1668
      %1670 = vrot.lane.b32.xlu0 %v1567, 120
      %v1671 = vpop.permute.xlu0 %1670
      %1672 = vrot.lane.b32.xlu0 %v1568, 120
      %v1673 = vpop.permute.xlu0 %1672
      %1674 = vrot.lane.b32.xlu0 %v1569, 120
      %v1675 = vpop.permute.xlu0 %1674
      %1676 = vrot.lane.b32.xlu0 %v1570, 120
      %v1677 = vpop.permute.xlu0 %1676
      %1678 = vrot.lane.b32.xlu0 %v1571, 120
      %v1679 = vpop.permute.xlu0 %1678
      %1680 = vrot.lane.b32.xlu0 %v1572, 120
      %v1681 = vpop.permute.xlu0 %1680
      %1682 = vrot.lane.b32.xlu0 %v1573, 120
      %v1683 = vpop.permute.xlu0 %1682
      %1684 = vrot.lane.b32.xlu0 %v1574, 120
      %v1685 = vpop.permute.xlu0 %1684
      %1686 = vrot.lane.b32.xlu0 %v1575, 120
      %v1687 = vpop.permute.xlu0 %1686
      %1688 = vrot.lane.b32.xlu0 %v1576, 120
      %v1689 = vpop.permute.xlu0 %1688
      %1690 = vrot.lane.b32.xlu0 %v1577, 120
      %v1691 = vpop.permute.xlu0 %1690
      %1692 = vrot.lane.b32.xlu0 %v1578, 120
      %v1693 = vpop.permute.xlu0 %1692
      %1694 = vrot.lane.b32.xlu0 %v1579, 120
      %v1695 = vpop.permute.xlu0 %1694
      %1696 = vrot.lane.b32.xlu0 %v1580, 120
      %v1697 = vpop.permute.xlu0 %1696
      %1698 = vrot.lane.b32.xlu0 %v1581, 120
      %v1699 = vpop.permute.xlu0 %1698
      %1700 = vrot.lane.b32.xlu0 %v1582, 120
      %v1701 = vpop.permute.xlu0 %1700
      %1702 = vrot.lane.b32.xlu0 %v1583, 120
      %v1703 = vpop.permute.xlu0 %1702
      %1704 = vrot.lane.b32.xlu0 %v1584, 120
      %v1705 = vpop.permute.xlu0 %1704
      %1706 = vrot.lane.b32.xlu0 %v1585, 120
      %v1707 = vpop.permute.xlu0 %1706
      %1708 = vrot.lane.b32.xlu0 %v1586, 120
      %v1709 = vpop.permute.xlu0 %1708
      %1710 = vrot.lane.b32.xlu0 %v1587, 120
      %v1711 = vpop.permute.xlu0 %1710
      %1712 = vrot.lane.b32.xlu0 %v1588, 120
      %v1713 = vpop.permute.xlu0 %1712
      %1714 = vrot.lane.b32.xlu0 %v1589, 120
      %v1715 = vpop.permute.xlu0 %1714
      %1716 = vrot.lane.b32.xlu0 %v1590, 120
      %v1717 = vpop.permute.xlu0 %1716
      %1718 = vrot.lane.b32.xlu0 %v1591, 120
      %v1719 = vpop.permute.xlu0 %1718
      %1720 = vrot.lane.b32.xlu0 %v1592, 120
      %v1721 = vpop.permute.xlu0 %1720
      %vm1754 = vcmask 27648
      %1755 = vst.msk [vmem:[%s311] sm:$0xf] %vm1754, %v1659
      %1756 = vst.msk [vmem:[%s311 + $0x4] sm:$0xf] %vm1754, %v1661
      %1757 = vst.msk [vmem:[%s311 + $0x8] sm:$0xf] %vm1754, %v1663
      %1758 = vst.msk [vmem:[%s311 + $0xc] sm:$0xf] %vm1754, %v1665
      %1759 = vst.msk [vmem:[%s311 + $0x10] sm:$0xf] %vm1754, %v1667
      %1760 = vst.msk [vmem:[%s311 + $0x14] sm:$0xf] %vm1754, %v1669
      %1761 = vst.msk [vmem:[%s311 + $0x18] sm:$0xf] %vm1754, %v1671
      %1762 = vst.msk [vmem:[%s311 + $0x1c] sm:$0xf] %vm1754, %v1673
      %1763 = vst.msk [vmem:[%s311 + $0x20] sm:$0xf] %vm1754, %v1675
      %1764 = vst.msk [vmem:[%s311 + $0x24] sm:$0xf] %vm1754, %v1677
      %1765 = vst.msk [vmem:[%s311 + $0x28] sm:$0xf] %vm1754, %v1679
      %1766 = vst.msk [vmem:[%s311 + $0x2c] sm:$0xf] %vm1754, %v1681
      %1767 = vst.msk [vmem:[%s311 + $0x30] sm:$0xf] %vm1754, %v1683
      %1768 = vst.msk [vmem:[%s311 + $0x34] sm:$0xf] %vm1754, %v1685
      %1769 = vst.msk [vmem:[%s311 + $0x38] sm:$0xf] %vm1754, %v1687
      %1770 = vst.msk [vmem:[%s311 + $0x3c] sm:$0xf] %vm1754, %v1689
      %1771 = vst.msk [vmem:[%s311 + $0x40] sm:$0xf] %vm1754, %v1691
      %1772 = vst.msk [vmem:[%s311 + $0x44] sm:$0xf] %vm1754, %v1693
      %1773 = vst.msk [vmem:[%s311 + $0x48] sm:$0xf] %vm1754, %v1695
      %1774 = vst.msk [vmem:[%s311 + $0x4c] sm:$0xf] %vm1754, %v1697
      %1775 = vst.msk [vmem:[%s311 + $0x50] sm:$0xf] %vm1754, %v1699
      %1776 = vst.msk [vmem:[%s311 + $0x54] sm:$0xf] %vm1754, %v1701
      %1777 = vst.msk [vmem:[%s311 + $0x58] sm:$0xf] %vm1754, %v1703
      %1778 = vst.msk [vmem:[%s311 + $0x5c] sm:$0xf] %vm1754, %v1705
      %1779 = vst.msk [vmem:[%s311 + $0x60] sm:$0xf] %vm1754, %v1707
      %1780 = vst.msk [vmem:[%s311 + $0x64] sm:$0xf] %vm1754, %v1709
      %1781 = vst.msk [vmem:[%s311 + $0x68] sm:$0xf] %vm1754, %v1711
      %1782 = vst.msk [vmem:[%s311 + $0x6c] sm:$0xf] %vm1754, %v1713
      %1783 = vst.msk [vmem:[%s311 + $0x70] sm:$0xf] %vm1754, %v1715
      %1784 = vst.msk [vmem:[%s311 + $0x74] sm:$0xf] %vm1754, %v1717
      %1785 = vst.msk [vmem:[%s311 + $0x78] sm:$0xf] %vm1754, %v1719
      %1786 = vst.msk [vmem:[%s311 + $0x7c] sm:$0xf] %vm1754, %v1721
      %1787 = vrot.lane.b32.xlu0 %v1561, 116
      %v1788 = vpop.permute.xlu0 %1787
      %1789 = vrot.lane.b32.xlu0 %v1562, 116
      %v1790 = vpop.permute.xlu0 %1789
      %1791 = vrot.lane.b32.xlu0 %v1563, 116
      %v1792 = vpop.permute.xlu0 %1791
      %1793 = vrot.lane.b32.xlu0 %v1564, 116
      %v1794 = vpop.permute.xlu0 %1793
      %1795 = vrot.lane.b32.xlu0 %v1565, 116
      %v1796 = vpop.permute.xlu0 %1795
      %1797 = vrot.lane.b32.xlu0 %v1566, 116
      %v1798 = vpop.permute.xlu0 %1797
      %1799 = vrot.lane.b32.xlu0 %v1567, 116
      %v1800 = vpop.permute.xlu0 %1799
      %1801 = vrot.lane.b32.xlu0 %v1568, 116
      %v1802 = vpop.permute.xlu0 %1801
      %1803 = vrot.lane.b32.xlu0 %v1569, 116
      %v1804 = vpop.permute.xlu0 %1803
      %1805 = vrot.lane.b32.xlu0 %v1570, 116
      %v1806 = vpop.permute.xlu0 %1805
      %1807 = vrot.lane.b32.xlu0 %v1571, 116
      %v1808 = vpop.permute.xlu0 %1807
      %1809 = vrot.lane.b32.xlu0 %v1572, 116
      %v1810 = vpop.permute.xlu0 %1809
      %1811 = vrot.lane.b32.xlu0 %v1573, 116
      %v1812 = vpop.permute.xlu0 %1811
      %1813 = vrot.lane.b32.xlu0 %v1574, 116
      %v1814 = vpop.permute.xlu0 %1813
      %1815 = vrot.lane.b32.xlu0 %v1575, 116
      %v1816 = vpop.permute.xlu0 %1815
      %1817 = vrot.lane.b32.xlu0 %v1576, 116
      %v1818 = vpop.permute.xlu0 %1817
      %1819 = vrot.lane.b32.xlu0 %v1577, 116
      %v1820 = vpop.permute.xlu0 %1819
      %1821 = vrot.lane.b32.xlu0 %v1578, 116
      %v1822 = vpop.permute.xlu0 %1821
      %1823 = vrot.lane.b32.xlu0 %v1579, 116
      %v1824 = vpop.permute.xlu0 %1823
      %1825 = vrot.lane.b32.xlu0 %v1580, 116
      %v1826 = vpop.permute.xlu0 %1825
      %1827 = vrot.lane.b32.xlu0 %v1581, 116
      %v1828 = vpop.permute.xlu0 %1827
      %1829 = vrot.lane.b32.xlu0 %v1582, 116
      %v1830 = vpop.permute.xlu0 %1829
      %1831 = vrot.lane.b32.xlu0 %v1583, 116
      %v1832 = vpop.permute.xlu0 %1831
      %1833 = vrot.lane.b32.xlu0 %v1584, 116
      %v1834 = vpop.permute.xlu0 %1833
      %1835 = vrot.lane.b32.xlu0 %v1585, 116
      %v1836 = vpop.permute.xlu0 %1835
      %1837 = vrot.lane.b32.xlu0 %v1586, 116
      %v1838 = vpop.permute.xlu0 %1837
      %1839 = vrot.lane.b32.xlu0 %v1587, 116
      %v1840 = vpop.permute.xlu0 %1839
      %1841 = vrot.lane.b32.xlu0 %v1588, 116
      %v1842 = vpop.permute.xlu0 %1841
      %1843 = vrot.lane.b32.xlu0 %v1589, 116
      %v1844 = vpop.permute.xlu0 %1843
      %1845 = vrot.lane.b32.xlu0 %v1590, 116
      %v1846 = vpop.permute.xlu0 %1845
      %1847 = vrot.lane.b32.xlu0 %v1591, 116
      %v1848 = vpop.permute.xlu0 %1847
      %1849 = vrot.lane.b32.xlu0 %v1592, 116
      %v1850 = vpop.permute.xlu0 %1849
      %1883 = vst.msk [vmem:[%s316] sm:$0xf] %vm1754, %v1788
      %1884 = vst.msk [vmem:[%s316 + $0x4] sm:$0xf] %vm1754, %v1790
      %1885 = vst.msk [vmem:[%s316 + $0x8] sm:$0xf] %vm1754, %v1792
      %1886 = vst.msk [vmem:[%s316 + $0xc] sm:$0xf] %vm1754, %v1794
      %1887 = vst.msk [vmem:[%s316 + $0x10] sm:$0xf] %vm1754, %v1796
      %1888 = vst.msk [vmem:[%s316 + $0x14] sm:$0xf] %vm1754, %v1798
      %1889 = vst.msk [vmem:[%s316 + $0x18] sm:$0xf] %vm1754, %v1800
      %1890 = vst.msk [vmem:[%s316 + $0x1c] sm:$0xf] %vm1754, %v1802
      %1891 = vst.msk [vmem:[%s316 + $0x20] sm:$0xf] %vm1754, %v1804
      %1892 = vst.msk [vmem:[%s316 + $0x24] sm:$0xf] %vm1754, %v1806
      %1893 = vst.msk [vmem:[%s316 + $0x28] sm:$0xf] %vm1754, %v1808
      %1894 = vst.msk [vmem:[%s316 + $0x2c] sm:$0xf] %vm1754, %v1810
      %1895 = vst.msk [vmem:[%s316 + $0x30] sm:$0xf] %vm1754, %v1812
      %1896 = vst.msk [vmem:[%s316 + $0x34] sm:$0xf] %vm1754, %v1814
      %1897 = vst.msk [vmem:[%s316 + $0x38] sm:$0xf] %vm1754, %v1816
      %1898 = vst.msk [vmem:[%s316 + $0x3c] sm:$0xf] %vm1754, %v1818
      %1899 = vst.msk [vmem:[%s316 + $0x40] sm:$0xf] %vm1754, %v1820
      %1900 = vst.msk [vmem:[%s316 + $0x44] sm:$0xf] %vm1754, %v1822
      %1901 = vst.msk [vmem:[%s316 + $0x48] sm:$0xf] %vm1754, %v1824
      %1902 = vst.msk [vmem:[%s316 + $0x4c] sm:$0xf] %vm1754, %v1826
      %1903 = vst.msk [vmem:[%s316 + $0x50] sm:$0xf] %vm1754, %v1828
      %1904 = vst.msk [vmem:[%s316 + $0x54] sm:$0xf] %vm1754, %v1830
      %1905 = vst.msk [vmem:[%s316 + $0x58] sm:$0xf] %vm1754, %v1832
      %1906 = vst.msk [vmem:[%s316 + $0x5c] sm:$0xf] %vm1754, %v1834
      %1907 = vst.msk [vmem:[%s316 + $0x60] sm:$0xf] %vm1754, %v1836
      %1908 = vst.msk [vmem:[%s316 + $0x64] sm:$0xf] %vm1754, %v1838
      %1909 = vst.msk [vmem:[%s316 + $0x68] sm:$0xf] %vm1754, %v1840
      %1910 = vst.msk [vmem:[%s316 + $0x6c] sm:$0xf] %vm1754, %v1842
      %1911 = vst.msk [vmem:[%s316 + $0x70] sm:$0xf] %vm1754, %v1844
      %1912 = vst.msk [vmem:[%s316 + $0x74] sm:$0xf] %vm1754, %v1846
      %1913 = vst.msk [vmem:[%s316 + $0x78] sm:$0xf] %vm1754, %v1848
      %1914 = vst.msk [vmem:[%s316 + $0x7c] sm:$0xf] %vm1754, %v1850
      %v1915 = vpack.c.bf16 %v1018, %v1015
      %v1916 = vpack.c.bf16 %v1026, %v1023
      %v1917 = vpack.c.bf16 %v1034, %v1031
      %v1918 = vpack.c.bf16 %v1042, %v1039
      %v1919 = vpack.c.bf16 %v1050, %v1047
      %v1920 = vpack.c.bf16 %v1058, %v1055
      %v1921 = vpack.c.bf16 %v1066, %v1063
      %v1922 = vpack.c.bf16 %v1074, %v1071
      %v1923 = vpack.c.bf16 %v1082, %v1079
      %v1924 = vpack.c.bf16 %v1090, %v1087
      %v1925 = vpack.c.bf16 %v1098, %v1095
      %v1926 = vpack.c.bf16 %v1106, %v1103
      %v1927 = vpack.c.bf16 %v1114, %v1111
      %v1928 = vpack.c.bf16 %v1122, %v1119
      %v1929 = vpack.c.bf16 %v1130, %v1127
      %v1930 = vpack.c.bf16 %v1138, %v1135
      %v1947 = vunpack.c.l.b16 %v1915
      %v1948 = vunpack.c.h.b16 %v1915
      %v1949 = vunpack.c.l.b16 %v1916
      %v1950 = vunpack.c.h.b16 %v1916
      %v1951 = vunpack.c.l.b16 %v1917
      %v1952 = vunpack.c.h.b16 %v1917
      %v1953 = vunpack.c.l.b16 %v1918
      %v1954 = vunpack.c.h.b16 %v1918
      %v1955 = vunpack.c.l.b16 %v1919
      %v1956 = vunpack.c.h.b16 %v1919
      %v1957 = vunpack.c.l.b16 %v1920
      %v1958 = vunpack.c.h.b16 %v1920
      %v1959 = vunpack.c.l.b16 %v1921
      %v1960 = vunpack.c.h.b16 %v1921
      %v1961 = vunpack.c.l.b16 %v1922
      %v1962 = vunpack.c.h.b16 %v1922
      %v1963 = vunpack.c.l.b16 %v1923
      %v1964 = vunpack.c.h.b16 %v1923
      %v1965 = vunpack.c.l.b16 %v1924
      %v1966 = vunpack.c.h.b16 %v1924
      %v1967 = vunpack.c.l.b16 %v1925
      %v1968 = vunpack.c.h.b16 %v1925
      %v1969 = vunpack.c.l.b16 %v1926
      %v1970 = vunpack.c.h.b16 %v1926
      %v1971 = vunpack.c.l.b16 %v1927
      %v1972 = vunpack.c.h.b16 %v1927
      %v1973 = vunpack.c.l.b16 %v1928
      %v1974 = vunpack.c.h.b16 %v1928
      %v1975 = vunpack.c.l.b16 %v1929
      %v1976 = vunpack.c.h.b16 %v1929
      %v1977 = vunpack.c.l.b16 %v1930
      %v1978 = vunpack.c.h.b16 %v1930
      %v1979 = vpack.c.b16 %v1947, %v1947
      %v1980 = vpack.c.b16 %v1948, %v1948
      %v1981 = vpack.c.b16 %v1949, %v1949
      %v1982 = vpack.c.b16 %v1950, %v1950
      %v1983 = vpack.c.b16 %v1951, %v1951
      %v1984 = vpack.c.b16 %v1952, %v1952
      %v1985 = vpack.c.b16 %v1953, %v1953
      %v1986 = vpack.c.b16 %v1954, %v1954
      %v1987 = vpack.c.b16 %v1955, %v1955
      %v1988 = vpack.c.b16 %v1956, %v1956
      %v1989 = vpack.c.b16 %v1957, %v1957
      %v1990 = vpack.c.b16 %v1958, %v1958
      %v1991 = vpack.c.b16 %v1959, %v1959
      %v1992 = vpack.c.b16 %v1960, %v1960
      %v1993 = vpack.c.b16 %v1961, %v1961
      %v1994 = vpack.c.b16 %v1962, %v1962
      %v1995 = vpack.c.b16 %v1963, %v1963
      %v1996 = vpack.c.b16 %v1964, %v1964
      %v1997 = vpack.c.b16 %v1965, %v1965
      %v1998 = vpack.c.b16 %v1966, %v1966
      %v1999 = vpack.c.b16 %v1967, %v1967
      %v2000 = vpack.c.b16 %v1968, %v1968
      %v2001 = vpack.c.b16 %v1969, %v1969
      %v2002 = vpack.c.b16 %v1970, %v1970
      %v2003 = vpack.c.b16 %v1971, %v1971
      %v2004 = vpack.c.b16 %v1972, %v1972
      %v2005 = vpack.c.b16 %v1973, %v1973
      %v2006 = vpack.c.b16 %v1974, %v1974
      %v2007 = vpack.c.b16 %v1975, %v1975
      %v2008 = vpack.c.b16 %v1976, %v1976
      %v2009 = vpack.c.b16 %v1977, %v1977
      %v2010 = vpack.c.b16 %v1978, %v1978
      %2043 = vst.msk [vmem:[%s321] sm:$0xf] %vm1625, %v1979
      %2044 = vst.msk [vmem:[%s321 + $0x4] sm:$0xf] %vm1625, %v1980
      %2045 = vst.msk [vmem:[%s321 + $0x8] sm:$0xf] %vm1625, %v1981
      %2046 = vst.msk [vmem:[%s321 + $0xc] sm:$0xf] %vm1625, %v1982
      %2047 = vst.msk [vmem:[%s321 + $0x10] sm:$0xf] %vm1625, %v1983
      %2048 = vst.msk [vmem:[%s321 + $0x14] sm:$0xf] %vm1625, %v1984
      %2049 = vst.msk [vmem:[%s321 + $0x18] sm:$0xf] %vm1625, %v1985
      %2050 = vst.msk [vmem:[%s321 + $0x1c] sm:$0xf] %vm1625, %v1986
      %2051 = vst.msk [vmem:[%s321 + $0x20] sm:$0xf] %vm1625, %v1987
      %2052 = vst.msk [vmem:[%s321 + $0x24] sm:$0xf] %vm1625, %v1988
      %2053 = vst.msk [vmem:[%s321 + $0x28] sm:$0xf] %vm1625, %v1989
      %2054 = vst.msk [vmem:[%s321 + $0x2c] sm:$0xf] %vm1625, %v1990
      %2055 = vst.msk [vmem:[%s321 + $0x30] sm:$0xf] %vm1625, %v1991
      %2056 = vst.msk [vmem:[%s321 + $0x34] sm:$0xf] %vm1625, %v1992
      %2057 = vst.msk [vmem:[%s321 + $0x38] sm:$0xf] %vm1625, %v1993
      %2058 = vst.msk [vmem:[%s321 + $0x3c] sm:$0xf] %vm1625, %v1994
      %2059 = vst.msk [vmem:[%s321 + $0x40] sm:$0xf] %vm1625, %v1995
      %2060 = vst.msk [vmem:[%s321 + $0x44] sm:$0xf] %vm1625, %v1996
      %2061 = vst.msk [vmem:[%s321 + $0x48] sm:$0xf] %vm1625, %v1997
      %2062 = vst.msk [vmem:[%s321 + $0x4c] sm:$0xf] %vm1625, %v1998
      %2063 = vst.msk [vmem:[%s321 + $0x50] sm:$0xf] %vm1625, %v1999
      %2064 = vst.msk [vmem:[%s321 + $0x54] sm:$0xf] %vm1625, %v2000
      %2065 = vst.msk [vmem:[%s321 + $0x58] sm:$0xf] %vm1625, %v2001
      %2066 = vst.msk [vmem:[%s321 + $0x5c] sm:$0xf] %vm1625, %v2002
      %2067 = vst.msk [vmem:[%s321 + $0x60] sm:$0xf] %vm1625, %v2003
      %2068 = vst.msk [vmem:[%s321 + $0x64] sm:$0xf] %vm1625, %v2004
      %2069 = vst.msk [vmem:[%s321 + $0x68] sm:$0xf] %vm1625, %v2005
      %2070 = vst.msk [vmem:[%s321 + $0x6c] sm:$0xf] %vm1625, %v2006
      %2071 = vst.msk [vmem:[%s321 + $0x70] sm:$0xf] %vm1625, %v2007
      %2072 = vst.msk [vmem:[%s321 + $0x74] sm:$0xf] %vm1625, %v2008
      %2073 = vst.msk [vmem:[%s321 + $0x78] sm:$0xf] %vm1625, %v2009
      %2074 = vst.msk [vmem:[%s321 + $0x7c] sm:$0xf] %vm1625, %v2010
      %p2075 = scmp.lt.s32.totalorder %s19, 1
      %s2076 = scalar_select %p2075, %s19, 1
      %s2077 = smul.addr %s2076, 32
      %s2078 = smul.addr %s2077, 4
      %s2079 = scalar_lea.vmem %s3, %s2078
      %p2080 = scmp.lt.s32.totalorder %s19, 1
      %s2081 = scalar_select %p2080, %s19, 1
      %s2082 = smul.addr %s2081, 32
      %s2083 = smul.addr %s2082, 4
      %s2084 = scalar_lea.vmem %s4, %s2083
      %p2085 = scmp.lt.s32.totalorder %s19, 1
      %s2086 = scalar_select %p2085, %s19, 1
      %s2087 = smul.addr %s2086, 32
      %s2088 = smul.addr %s2087, 4
      %s2089 = scalar_lea.vmem %s5, %s2088
      %p2090 = scmp.lt.s32.totalorder %s19, 1
      %s2091 = scalar_select %p2090, %s19, 1
      %s2092 = smul.addr %s2091, 32
      %s2093 = smul.addr %s2092, 4
      %s2094 = scalar_lea.vmem %s6, %s2093
      %p2095 = scmp.lt.s32.totalorder %s19, 1
      %s2096 = scalar_select %p2095, %s19, 1
      %s2097 = smul.addr %s2096, 2
      %s2098 = scalar_lea.vmem %s7, %s2097
      // Predicated region
      $region33: #{inception_forward.5} parent=31 // pred_check
        %p2099 = pneg %p105
      $region34: #{inception_forward.5} parent=31 // pred_check_branch
        %2101 = sbr.rel (%p2099) target = $region36
      $region35: #{inception_forward.5} parent=31 // pred_region
        _
      $region36: #{inception_forward.5} parent=31 // pred_fallthru
        _
      // Predicated region
      $region37: #{inception_forward.5} parent=31 // pred_check
        %p2102 = pneg %p131
      $region38: #{inception_forward.5} parent=31 // pred_check_branch
        %2104 = sbr.rel (%p2102) target = $region40
      $region39: #{inception_forward.5} parent=31 // pred_region
        _
      $region40: #{inception_forward.5} parent=31 // pred_fallthru
        _
      // Predicated region
      $region41: #{inception_forward.5} parent=31 // pred_check
        %p2105 = pneg %p157
      $region42: #{inception_forward.5} parent=31 // pred_check_branch
        %2107 = sbr.rel (%p2105) target = $region44
      $region43: #{inception_forward.5} parent=31 // pred_region
        _
      $region44: #{inception_forward.5} parent=31 // pred_fallthru
        _
      // Predicated region
      $region45: #{inception_forward.5} parent=31 // pred_check
        %p2108 = pneg %p183
      $region46: #{inception_forward.5} parent=31 // pred_check_branch
        %2110 = sbr.rel (%p2108) target = $region48
      $region47: #{inception_forward.5} parent=31 // pred_region
        _
      $region48: #{inception_forward.5} parent=31 // pred_fallthru
        _
      // Predicated region
      $region49: #{inception_forward.5} parent=31 // pred_check
        %p2111 = pneg %p209
      $region50: #{inception_forward.5} parent=31 // pred_check_branch
        %2113 = sbr.rel (%p2111) target = $region52
      $region51: #{inception_forward.5} parent=31 // pred_region
        _
      $region52: #{inception_forward.5} parent=31 // pred_fallthru
        _
    $region32: #{inception_forward.5} parent=5 // pred_fallthru
      _
    %p2114 = scmp.le.s32.totalorder 2, %s14
    // Predicated region
    $region53: #{inception_forward.5} parent=5 // pred_check
      %p2115 = pneg %p2114
    $region54: #{inception_forward.5} parent=5 // pred_check_branch
      %2117 = sbr.rel (%p2115) target = $region56
    $region55: #{inception_forward.5} parent=5 // pred_region
      %s2118 = ssub.s32 %s14, 2
      // Predicated region
      $region57: #{inception_forward.5} parent=55 // pred_check
        %p2119 = pneg %p111
      $region58: #{inception_forward.5} parent=55 // pred_check_branch
        %2121 = sbr.rel (%p2119) target = $region60
      $region59: #{inception_forward.5} parent=55 // pred_region
        %p2122 = scmp.lt.s32.totalorder %s20, 1
        %s2123 = scalar_select %p2122, %s20, 1
        %s2124 = smul.addr %s2123, 32
        %s2125 = smul.addr %s2124, 4
        %s2126 = scalar_lea.vmem %s3, %s2125
      $region60: #{inception_forward.5} parent=55 // pred_fallthru
        _
      // Predicated region
      $region61: #{inception_forward.5} parent=55 // pred_check
        %p2127 = pneg %p137
      $region62: #{inception_forward.5} parent=55 // pred_check_branch
        %2129 = sbr.rel (%p2127) target = $region64
      $region63: #{inception_forward.5} parent=55 // pred_region
        %p2130 = scmp.lt.s32.totalorder %s20, 1
        %s2131 = scalar_select %p2130, %s20, 1
        %s2132 = smul.addr %s2131, 32
        %s2133 = smul.addr %s2132, 4
        %s2134 = scalar_lea.vmem %s4, %s2133
      $region64: #{inception_forward.5} parent=55 // pred_fallthru
        _
      // Predicated region
      $region65: #{inception_forward.5} parent=55 // pred_check
        %p2135 = pneg %p163
      $region66: #{inception_forward.5} parent=55 // pred_check_branch
        %2137 = sbr.rel (%p2135) target = $region68
      $region67: #{inception_forward.5} parent=55 // pred_region
        %p2138 = scmp.lt.s32.totalorder %s20, 1
        %s2139 = scalar_select %p2138, %s20, 1
        %s2140 = smul.addr %s2139, 32
        %s2141 = smul.addr %s2140, 4
        %s2142 = scalar_lea.vmem %s5, %s2141
      $region68: #{inception_forward.5} parent=55 // pred_fallthru
        _
      // Predicated region
      $region69: #{inception_forward.5} parent=55 // pred_check
        %p2143 = pneg %p189
      $region70: #{inception_forward.5} parent=55 // pred_check_branch
        %2145 = sbr.rel (%p2143) target = $region72
      $region71: #{inception_forward.5} parent=55 // pred_region
        %p2146 = scmp.lt.s32.totalorder %s20, 1
        %s2147 = scalar_select %p2146, %s20, 1
        %s2148 = smul.addr %s2147, 32
        %s2149 = smul.addr %s2148, 4
        %s2150 = scalar_lea.vmem %s6, %s2149
      $region72: #{inception_forward.5} parent=55 // pred_fallthru
        _
      // Predicated region
      $region73: #{inception_forward.5} parent=55 // pred_check
        %p2151 = pneg %p215
      $region74: #{inception_forward.5} parent=55 // pred_check_branch
        %2153 = sbr.rel (%p2151) target = $region76
      $region75: #{inception_forward.5} parent=55 // pred_region
        %p2154 = scmp.lt.s32.totalorder %s20, 1
        %s2155 = scalar_select %p2154, %s20, 1
        %s2156 = smul.addr %s2155, 2
        %s2157 = scalar_lea.vmem %s7, %s2156
      $region76: #{inception_forward.5} parent=55 // pred_fallthru
        _
    $region56: #{inception_forward.5} parent=5 // pred_fallthru
      _
  $region6: #{inception_forward.5} parent=0 // loop_footer
    %s18 = sadd.s32 1, %s14
  $region7: #{inception_forward.5} parent=0 // loop_footer_branch
    %13 = sbr.rel target = $region3
  $region8: #{inception_forward.5} parent=0 // loop_exit
    _

// kernel: inception_forward.6
$region0: #{inception_forward.6}
  #allocation0 [shape = 'u32[]', space=smem, size = 0x4, offset = 0x4, fixed_abs, tag = 'smem constant byte address 0x4 - core index']
  #allocation1 [shape = 'u32[144,128]{1,0:T(1,128)}', space=vmem, size = 0x12000, scoped, tag = 'internal scratch']
  #allocation2 [shape = 'f32[1,18,18,4]{3,2,1,0:T(8,128)}', space=vmem, size = 0x36000, scoped, tag = 'scratch operand']
  %s0 = inlined_call_operand.vmem [shape: bf16[2,256,4], index: 0, kind: input, shape index: {}]
  %s1 = inlined_call_operand.vmem [shape: f32[1,4], index: 1, kind: input, shape index: {}]
  %s2 = inlined_call_operand.vmem [shape: f32[1,4], index: 2, kind: input, shape index: {}]
  %s3 = inlined_call_operand.vmem [shape: bf16[9,4,8], index: 3, kind: input, shape index: {}]
  %s4 = inlined_call_operand.vmem [shape: bf16[2,256,8], index: 4, kind: output, shape index: {0}]
  %s5 = inlined_call_operand.vmem [shape: f32[2,2,8], index: 5, kind: output, shape index: {1}]
  %6 = xla_tuple %s4, %s5
  %s7 = sld [smem:[#allocation0]]
  $region57: #{inception_forward.6} parent=0
    _
  %s9 = ssub.s32 1, %s7
  %s10 = scalar_select 0, %s9, %s7
  loop: start=0, step=1, limit=4
  $region2: #{inception_forward.6} parent=0 // loop_pre_header
    _
  $region3: #{inception_forward.6} parent=0 // loop_header
    %s12 = sphi 0, %s16
    %p13 = scmp.ge.s32.totalorder %s12, 4
    %s22 = sphi 0, %s24
    %s25 = sphi 0, %s22
    %s26 = sphi 0, %s25
    %s42 = sphi 0, %s26
    %s46 = sphi 0, %s46
    %s48 = sphi 0, %s46
    %s49 = sphi 0, %s48
    %s63 = sphi 0, %s49
    %s67 = sphi 0, %s67
    %s69 = sphi 0, %s67
    %s70 = sphi 0, %s69
    %s84 = sphi 0, %s70
    %s88 = sphi 0, %s88
    %s90 = sphi 0, %s88
    %s91 = sphi 0, %s90
    %s105 = sphi 0, %s91
    %s111 = sphi 0, %s113
    %s114 = sphi 0, %s111
    %s115 = sphi 0, %s114
    %s131 = sphi 0, %s115
    %s137 = sphi 0, %s139
    %s140 = sphi 0, %s137
    %s141 = sphi 0, %s140
    %s157 = sphi 0, %s141
  $region4: #{inception_forward.6} parent=0 // loop_header_branch
    %15 = sbr.rel (%p13) target = $region8
  $region5: #{inception_forward.6} parent=0 // loop_body
    %s17 = ssub.s32 %s12, 1
    %s18 = ssub.s32 %s12, 2
    %s19 = sadd.s32 %s12, 1
    %s20 = ssub.s32 %s12, %s19
    %p21 = scmp.eq.s32.totalorder %s20, 0
    %s23 = sadd.s32 %s22, 1
    %s24 = scalar_select %p21, %s22, %s23
    %p27 = pneg %p21
    %p28 = scmp.eq.s32.totalorder %s12, 1
    %p29 = por %p27, %p28
    %p30 = scmp.ne.s32.totalorder %s22, %s25
    %p31 = scmp.eq.s32.totalorder %s12, 0
    %p32 = por %p30, %p31
    %p33 = scmp.ne.s32.totalorder %s22, %s25
    %p34 = scmp.eq.s32.totalorder %s17, 1
    %p35 = por %p33, %p34
    %p36 = scmp.ne.s32.totalorder %s25, %s26
    %p37 = scmp.eq.s32.totalorder %s17, 0
    %p38 = por %p36, %p37
    %p39 = scmp.ne.s32.totalorder %s25, %s26
    %p40 = scmp.eq.s32.totalorder %s18, 1
    %p41 = por %p39, %p40
    %p43 = scmp.ne.s32.totalorder %s26, %s42
    %p44 = scmp.eq.s32.totalorder %s18, 0
    %p45 = por %p43, %p44
    %s47 = sadd.s32 %s46, 1
    %p50 = scmp.eq.s32.totalorder %s12, 1
    %p51 = scmp.ne.s32.totalorder %s46, %s48
    %p52 = scmp.eq.s32.totalorder %s12, 0
    %p53 = por %p51, %p52
    %p54 = scmp.ne.s32.totalorder %s46, %s48
    %p55 = scmp.eq.s32.totalorder %s17, 1
    %p56 = por %p54, %p55
    %p57 = scmp.ne.s32.totalorder %s48, %s49
    %p58 = scmp.eq.s32.totalorder %s17, 0
    %p59 = por %p57, %p58
    %p60 = scmp.ne.s32.totalorder %s48, %s49
    %p61 = scmp.eq.s32.totalorder %s18, 1
    %p62 = por %p60, %p61
    %p64 = scmp.ne.s32.totalorder %s49, %s63
    %p65 = scmp.eq.s32.totalorder %s18, 0
    %p66 = por %p64, %p65
    %s68 = sadd.s32 %s67, 1
    %p71 = scmp.eq.s32.totalorder %s12, 1
    %p72 = scmp.ne.s32.totalorder %s67, %s69
    %p73 = scmp.eq.s32.totalorder %s12, 0
    %p74 = por %p72, %p73
    %p75 = scmp.ne.s32.totalorder %s67, %s69
    %p76 = scmp.eq.s32.totalorder %s17, 1
    %p77 = por %p75, %p76
    %p78 = scmp.ne.s32.totalorder %s69, %s70
    %p79 = scmp.eq.s32.totalorder %s17, 0
    %p80 = por %p78, %p79
    %p81 = scmp.ne.s32.totalorder %s69, %s70
    %p82 = scmp.eq.s32.totalorder %s18, 1
    %p83 = por %p81, %p82
    %p85 = scmp.ne.s32.totalorder %s70, %s84
    %p86 = scmp.eq.s32.totalorder %s18, 0
    %p87 = por %p85, %p86
    %s89 = sadd.s32 %s88, 1
    %p92 = scmp.eq.s32.totalorder %s12, 1
    %p93 = scmp.ne.s32.totalorder %s88, %s90
    %p94 = scmp.eq.s32.totalorder %s12, 0
    %p95 = por %p93, %p94
    %p96 = scmp.ne.s32.totalorder %s88, %s90
    %p97 = scmp.eq.s32.totalorder %s17, 1
    %p98 = por %p96, %p97
    %p99 = scmp.ne.s32.totalorder %s90, %s91
    %p100 = scmp.eq.s32.totalorder %s17, 0
    %p101 = por %p99, %p100
    %p102 = scmp.ne.s32.totalorder %s90, %s91
    %p103 = scmp.eq.s32.totalorder %s18, 1
    %p104 = por %p102, %p103
    %p106 = scmp.ne.s32.totalorder %s91, %s105
    %p107 = scmp.eq.s32.totalorder %s18, 0
    %p108 = por %p106, %p107
    %s109 = ssub.s32 %s12, %s19
    %p110 = scmp.eq.s32.totalorder %s109, 0
    %s112 = sadd.s32 %s111, 1
    %s113 = scalar_select %p110, %s111, %s112
    %p116 = pneg %p110
    %p117 = scmp.eq.s32.totalorder %s12, 1
    %p118 = por %p116, %p117
    %p119 = scmp.ne.s32.totalorder %s111, %s114
    %p120 = scmp.eq.s32.totalorder %s12, 0
    %p121 = por %p119, %p120
    %p122 = scmp.ne.s32.totalorder %s111, %s114
    %p123 = scmp.eq.s32.totalorder %s17, 1
    %p124 = por %p122, %p123
    %p125 = scmp.ne.s32.totalorder %s114, %s115
    %p126 = scmp.eq.s32.totalorder %s17, 0
    %p127 = por %p125, %p126
    %p128 = scmp.ne.s32.totalorder %s114, %s115
    %p129 = scmp.eq.s32.totalorder %s18, 1
    %p130 = por %p128, %p129
    %p132 = scmp.ne.s32.totalorder %s115, %s131
    %p133 = scmp.eq.s32.totalorder %s18, 0
    %p134 = por %p132, %p133
    %s135 = ssub.s32 %s12, %s19
    %p136 = scmp.eq.s32.totalorder %s135, 0
    %s138 = sadd.s32 %s137, 1
    %s139 = scalar_select %p136, %s137, %s138
    %p142 = pneg %p136
    %p143 = scmp.eq.s32.totalorder %s12, 1
    %p144 = por %p142, %p143
    %p145 = scmp.ne.s32.totalorder %s137, %s140
    %p146 = scmp.eq.s32.totalorder %s12, 0
    %p147 = por %p145, %p146
    %p148 = scmp.ne.s32.totalorder %s137, %s140
    %p149 = scmp.eq.s32.totalorder %s17, 1
    %p150 = por %p148, %p149
    %p151 = scmp.ne.s32.totalorder %s140, %s141
    %p152 = scmp.eq.s32.totalorder %s17, 0
    %p153 = por %p151, %p152
    %p154 = scmp.ne.s32.totalorder %s140, %s141
    %p155 = scmp.eq.s32.totalorder %s18, 1
    %p156 = por %p154, %p155
    %p158 = scmp.ne.s32.totalorder %s141, %s157
    %p159 = scmp.eq.s32.totalorder %s18, 0
    %p160 = por %p158, %p159
    %p161 = scmp.le.s32.totalorder 1, %s12
    %p162 = scmp.lt.s32.totalorder %s12, 3
    %p163 = pnand %p161, %p162
    %p164 = pneg %p163
    // Predicated region
    $region9: #{inception_forward.6} parent=5 // pred_check
      _
    $region10: #{inception_forward.6} parent=5 // pred_check_branch
      %166 = sbr.rel (%p163) target = $region12
    $region11: #{inception_forward.6} parent=5 // pred_region
      %s167 = ssub.s32 %s12, 1
      // Predicated region
      $region13: #{inception_forward.6} parent=11 // pred_check
        %p168 = pneg %p59
      $region14: #{inception_forward.6} parent=11 // pred_check_branch
        %170 = sbr.rel (%p168) target = $region16
      $region15: #{inception_forward.6} parent=11 // pred_region
        _
      $region16: #{inception_forward.6} parent=11 // pred_fallthru
        _
      // Predicated region
      $region17: #{inception_forward.6} parent=11 // pred_check
        %p171 = pneg %p80
      $region18: #{inception_forward.6} parent=11 // pred_check_branch
        %173 = sbr.rel (%p171) target = $region20
      $region19: #{inception_forward.6} parent=11 // pred_region
        _
      $region20: #{inception_forward.6} parent=11 // pred_fallthru
        _
      // Predicated region
      $region21: #{inception_forward.6} parent=11 // pred_check
        %p174 = pneg %p101
      $region22: #{inception_forward.6} parent=11 // pred_check_branch
        %176 = sbr.rel (%p174) target = $region24
      $region23: #{inception_forward.6} parent=11 // pred_region
        _
      $region24: #{inception_forward.6} parent=11 // pred_fallthru
        _
    $region12: #{inception_forward.6} parent=5 // pred_fallthru
      _
    %p177 = scmp.lt.s32.totalorder %s12, 2
    // Predicated region
    $region25: #{inception_forward.6} parent=5 // pred_check
      %p178 = pneg %p177
    $region26: #{inception_forward.6} parent=5 // pred_check_branch
      %180 = sbr.rel (%p178) target = $region28
    $region27: #{inception_forward.6} parent=5 // pred_region
      // Predicated region
      $region29: #{inception_forward.6} parent=27 // pred_check
        %p181 = pneg %p32
      $region30: #{inception_forward.6} parent=27 // pred_check_branch
        %183 = sbr.rel (%p181) target = $region32
      $region31: #{inception_forward.6} parent=27 // pred_region
        %p184 = scmp.lt.s32.totalorder %s12, 1
        %s185 = scalar_select %p184, %s12, 1
        %s186 = smul.addr %s185, 32
        %s187 = smul.addr %s186, 4
        %s188 = scalar_lea.vmem %s0, %s187
      $region32: #{inception_forward.6} parent=27 // pred_fallthru
        _
    $region28: #{inception_forward.6} parent=5 // pred_fallthru
      _
    %p189 = scmp.le.s32.totalorder 1, %s12
    %p190 = scmp.lt.s32.totalorder %s12, 3
    %p191 = pnand %p189, %p190
    %p192 = pneg %p191
    // Predicated region
    $region33: #{inception_forward.6} parent=5 // pred_check
      _
    $region34: #{inception_forward.6} parent=5 // pred_check_branch
      %194 = sbr.rel (%p191) target = $region36
    $region35: #{inception_forward.6} parent=5 // pred_region
      %s195 = ssub.s32 %s12, 1
      %p196 = scmp.lt.s32.totalorder %s17, 1
      %s197 = scalar_select %p196, %s17, 1
      %s198 = smul.addr %s197, 32
      %s199 = smul.addr %s198, 4
      %s200 = scalar_lea.vmem %s0, %s199
      %p201 = pneg %p38
      %p202 = pneg %p35
      %p203 = pneg %p59
      %p204 = pneg %p56
      %p205 = pneg %p80
      %p206 = pneg %p77
      %p207 = pneg %p101
      %p208 = pneg %p98
      %p209 = pneg %p127
      %p210 = pneg %p124
      %p211 = scmp.lt.s32.totalorder %s17, 1
      %s212 = scalar_select %p211, %s17, 1
      %s213 = smul.addr %s212, 32
      %s214 = smul.addr %s213, 4
      %s215 = scalar_lea.vmem %s4, %s214
      %p216 = pneg %p153
      %p217 = pneg %p150
      %p218 = scmp.lt.s32.totalorder %s17, 1
      %s219 = scalar_select %p218, %s17, 1
      %s220 = smul.addr %s219, 2
      %s221 = scalar_lea.vmem %s5, %s220
      %p222 = scmp.lt.s32.totalorder %s17, 1
      %s223 = scalar_select %p222, %s17, 1
      %s224 = smul.addr %s223, 32
      %s225 = smul.addr %s224, 4
      %s226 = scalar_lea.vmem %s0, %s225
      %p227 = scmp.lt.s32.totalorder %s17, 1
      %s228 = scalar_select %p227, %s17, 1
      %s229 = smul.addr %s228, 32
      %s230 = smul.addr %s229, 4
      %s231 = scalar_lea.vmem %s4, %s230
      %p232 = scmp.lt.s32.totalorder %s17, 1
      %s233 = scalar_select %p232, %s17, 1
      %s234 = smul.addr %s233, 2
      %s235 = scalar_lea.vmem %s5, %s234
      %vm237 = vcmask 31744
      %238 = vst.msk [vmem:[#allocation2] sm:$0xff] %vm237, 0.0
      %239 = vst.msk [vmem:[#allocation2 + $0x8] sm:$0xff] %vm237, 0.0
      %vm240 = vcmask 25600
      %241 = vst.msk [vmem:[#allocation2 + $0x10] sm:$0x3] %vm240, 0.0
      %s242 = scalar_lea.vmem [#allocation2], 408
      %243 = vst.msk [vmem:[%s242] sm:$0xff] %vm237, 0.0
      %244 = vst.msk [vmem:[%s242 + $0x8] sm:$0xff] %vm237, 0.0
      %245 = vst.msk [vmem:[%s242 + $0x10] sm:$0x3] %vm240, 0.0
      %vm246 = vcmask 24576
      %247 = vst.msk [vmem:[#allocation2] sm:$0x1] %vm246, 0.0
      %248 = vst.msk [vmem:[#allocation2 + $0x18] sm:$0x1] %vm246, 0.0
      %249 = vst.msk [vmem:[#allocation2 + $0x30] sm:$0x1] %vm246, 0.0
      %250 = vst.msk [vmem:[#allocation2 + $0x48] sm:$0x1] %vm246, 0.0
      %251 = vst.msk [vmem:[#allocation2 + $0x60] sm:$0x1] %vm246, 0.0
      %252 = vst.msk [vmem:[#allocation2 + $0x78] sm:$0x1] %vm246, 0.0
      %253 = vst.msk [vmem:[#allocation2 + $0x90] sm:$0x1] %vm246, 0.0
      %254 = vst.msk [vmem:[#allocation2 + $0xa8] sm:$0x1] %vm246, 0.0
      %255 = vst.msk [vmem:[#allocation2 + $0xc0] sm:$0x1] %vm246, 0.0
      %256 = vst.msk [vmem:[#allocation2 + $0xd8] sm:$0x1] %vm246, 0.0
      %257 = vst.msk [vmem:[#allocation2 + $0xf0] sm:$0x1] %vm246, 0.0
      %258 = vst.msk [vmem:[#allocation2 + $0x108] sm:$0x1] %vm246, 0.0
      %259 = vst.msk [vmem:[#allocation2 + $0x120] sm:$0x1] %vm246, 0.0
      %260 = vst.msk [vmem:[#allocation2 + $0x138] sm:$0x1] %vm246, 0.0
      %261 = vst.msk [vmem:[#allocation2 + $0x150] sm:$0x1] %vm246, 0.0
      %262 = vst.msk [vmem:[#allocation2 + $0x168] sm:$0x1] %vm246, 0.0
      %263 = vst.msk [vmem:[#allocation2 + $0x180] sm:$0x1] %vm246, 0.0
      %264 = vst.msk [vmem:[#allocation2 + $0x198] sm:$0x1] %vm246, 0.0
      %265 = vst.msk [vmem:[#allocation2 + $0x11] sm:$0x1] %vm246, 0.0
      %266 = vst.msk [vmem:[#allocation2 + $0x29] sm:$0x1] %vm246, 0.0
      %267 = vst.msk [vmem:[#allocation2 + $0x41] sm:$0x1] %vm246, 0.0
      %268 = vst.msk [vmem:[#allocation2 + $0x59] sm:$0x1] %vm246, 0.0
      %269 = vst.msk [vmem:[#allocation2 + $0x71] sm:$0x1] %vm246, 0.0
      %270 = vst.msk [vmem:[#allocation2 + $0x89] sm:$0x1] %vm246, 0.0
      %271 = vst.msk [vmem:[#allocation2 + $0xa1] sm:$0x1] %vm246, 0.0
      %272 = vst.msk [vmem:[#allocation2 + $0xb9] sm:$0x1] %vm246, 0.0
      %273 = vst.msk [vmem:[#allocation2 + $0xd1] sm:$0x1] %vm246, 0.0
      %274 = vst.msk [vmem:[#allocation2 + $0xe9] sm:$0x1] %vm246, 0.0
      %275 = vst.msk [vmem:[#allocation2 + $0x101] sm:$0x1] %vm246, 0.0
      %276 = vst.msk [vmem:[#allocation2 + $0x119] sm:$0x1] %vm246, 0.0
      %277 = vst.msk [vmem:[#allocation2 + $0x131] sm:$0x1] %vm246, 0.0
      %278 = vst.msk [vmem:[#allocation2 + $0x149] sm:$0x1] %vm246, 0.0
      %279 = vst.msk [vmem:[#allocation2 + $0x161] sm:$0x1] %vm246, 0.0
      %280 = vst.msk [vmem:[#allocation2 + $0x179] sm:$0x1] %vm246, 0.0
      %281 = vst.msk [vmem:[#allocation2 + $0x191] sm:$0x1] %vm246, 0.0
      %282 = vst.msk [vmem:[#allocation2 + $0x1a9] sm:$0x1] %vm246, 0.0
      %v283 = vld [vmem:[%s226] sm:$0xf]
      %v284 = vld [vmem:[%s226 + $0x4] sm:$0xf]
      %v285 = vld [vmem:[%s226 + $0x8] sm:$0xf]
      %v286 = vld [vmem:[%s226 + $0xc] sm:$0xf]
      %v287 = vld [vmem:[%s226 + $0x10] sm:$0xf]
      %v288 = vld [vmem:[%s226 + $0x14] sm:$0xf]
      %v289 = vld [vmem:[%s226 + $0x18] sm:$0xf]
      %v290 = vld [vmem:[%s226 + $0x1c] sm:$0xf]
      %v291 = vld [vmem:[%s226 + $0x20] sm:$0xf]
      %v292 = vld [vmem:[%s226 + $0x24] sm:$0xf]
      %v293 = vld [vmem:[%s226 + $0x28] sm:$0xf]
      %v294 = vld [vmem:[%s226 + $0x2c] sm:$0xf]
      %v295 = vld [vmem:[%s226 + $0x30] sm:$0xf]
      %v296 = vld [vmem:[%s226 + $0x34] sm:$0xf]
      %v297 = vld [vmem:[%s226 + $0x38] sm:$0xf]
      %v298 = vld [vmem:[%s226 + $0x3c] sm:$0xf]
      %v299 = vld [vmem:[%s226 + $0x40] sm:$0xf]
      %v300 = vld [vmem:[%s226 + $0x44] sm:$0xf]
      %v301 = vld [vmem:[%s226 + $0x48] sm:$0xf]
      %v302 = vld [vmem:[%s226 + $0x4c] sm:$0xf]
      %v303 = vld [vmem:[%s226 + $0x50] sm:$0xf]
      %v304 = vld [vmem:[%s226 + $0x54] sm:$0xf]
      %v305 = vld [vmem:[%s226 + $0x58] sm:$0xf]
      %v306 = vld [vmem:[%s226 + $0x5c] sm:$0xf]
      %v307 = vld [vmem:[%s226 + $0x60] sm:$0xf]
      %v308 = vld [vmem:[%s226 + $0x64] sm:$0xf]
      %v309 = vld [vmem:[%s226 + $0x68] sm:$0xf]
      %v310 = vld [vmem:[%s226 + $0x6c] sm:$0xf]
      %v311 = vld [vmem:[%s226 + $0x70] sm:$0xf]
      %v312 = vld [vmem:[%s226 + $0x74] sm:$0xf]
      %v313 = vld [vmem:[%s226 + $0x78] sm:$0xf]
      %v314 = vld [vmem:[%s226 + $0x7c] sm:$0xf]
      %v315 = vunpack.c.l.bf16 %v283
      %v316 = vunpack.c.l.bf16 %v284
      %v317 = vunpack.c.l.bf16 %v285
      %v318 = vunpack.c.l.bf16 %v286
      %v319 = vunpack.c.l.bf16 %v287
      %v320 = vunpack.c.l.bf16 %v288
      %v321 = vunpack.c.l.bf16 %v289
      %v322 = vunpack.c.l.bf16 %v290
      %v323 = vunpack.c.l.bf16 %v291
      %v324 = vunpack.c.l.bf16 %v292
      %v325 = vunpack.c.l.bf16 %v293
      %v326 = vunpack.c.l.bf16 %v294
      %v327 = vunpack.c.l.bf16 %v295
      %v328 = vunpack.c.l.bf16 %v296
      %v329 = vunpack.c.l.bf16 %v297
      %v330 = vunpack.c.l.bf16 %v298
      %v331 = vunpack.c.l.bf16 %v299
      %v332 = vunpack.c.l.bf16 %v300
      %v333 = vunpack.c.l.bf16 %v301
      %v334 = vunpack.c.l.bf16 %v302
      %v335 = vunpack.c.l.bf16 %v303
      %v336 = vunpack.c.l.bf16 %v304
      %v337 = vunpack.c.l.bf16 %v305
      %v338 = vunpack.c.l.bf16 %v306
      %v339 = vunpack.c.l.bf16 %v307
      %v340 = vunpack.c.l.bf16 %v308
      %v341 = vunpack.c.l.bf16 %v309
      %v342 = vunpack.c.l.bf16 %v310
      %v343 = vunpack.c.l.bf16 %v311
      %v344 = vunpack.c.l.bf16 %v312
      %v345 = vunpack.c.l.bf16 %v313
      %v346 = vunpack.c.l.bf16 %v314
      %v347 = vld [vmem:[%s1] sm:$0x1]
      %v349 = vlaneseq
      %v350 = vshrl.u32 %v349, 7
      %v351 = vsub.s32 0, %v350
      %v352 = vrot.slane %v347, %v351
      %v354 = vmul.f32 %v315, %v352
      %v355 = vmul.f32 %v316, %v352
      %v356 = vmul.f32 %v317, %v352
      %v357 = vmul.f32 %v318, %v352
      %v358 = vmul.f32 %v319, %v352
      %v359 = vmul.f32 %v320, %v352
      %v360 = vmul.f32 %v321, %v352
      %v361 = vmul.f32 %v322, %v352
      %v362 = vmul.f32 %v323, %v352
      %v363 = vmul.f32 %v324, %v352
      %v364 = vmul.f32 %v325, %v352
      %v365 = vmul.f32 %v326, %v352
      %v366 = vmul.f32 %v327, %v352
      %v367 = vmul.f32 %v328, %v352
      %v368 = vmul.f32 %v329, %v352
      %v369 = vmul.f32 %v330, %v352
      %v370 = vmul.f32 %v331, %v352
      %v371 = vmul.f32 %v332, %v352
      %v372 = vmul.f32 %v333, %v352
      %v373 = vmul.f32 %v334, %v352
      %v374 = vmul.f32 %v335, %v352
      %v375 = vmul.f32 %v336, %v352
      %v376 = vmul.f32 %v337, %v352
      %v377 = vmul.f32 %v338, %v352
      %v378 = vmul.f32 %v339, %v352
      %v379 = vmul.f32 %v340, %v352
      %v380 = vmul.f32 %v341, %v352
      %v381 = vmul.f32 %v342, %v352
      %v382 = vmul.f32 %v343, %v352
      %v383 = vmul.f32 %v344, %v352
      %v384 = vmul.f32 %v345, %v352
      %v385 = vmul.f32 %v346, %v352
      %v386 = vld [vmem:[%s2] sm:$0x1]
      %v388 = vlaneseq
      %v389 = vshrl.u32 %v388, 7
      %v390 = vsub.s32 0, %v389
      %v391 = vrot.slane %v386, %v390
      %v393 = vadd.f32 %v354, %v391
      %v394 = vadd.f32 %v355, %v391
      %v395 = vadd.f32 %v356, %v391
      %v396 = vadd.f32 %v357, %v391
      %v397 = vadd.f32 %v358, %v391
      %v398 = vadd.f32 %v359, %v391
      %v399 = vadd.f32 %v360, %v391
      %v400 = vadd.f32 %v361, %v391
      %v401 = vadd.f32 %v362, %v391
      %v402 = vadd.f32 %v363, %v391
      %v403 = vadd.f32 %v364, %v391
      %v404 = vadd.f32 %v365, %v391
      %v405 = vadd.f32 %v366, %v391
      %v406 = vadd.f32 %v367, %v391
      %v407 = vadd.f32 %v368, %v391
      %v408 = vadd.f32 %v369, %v391
      %v409 = vadd.f32 %v370, %v391
      %v410 = vadd.f32 %v371, %v391
      %v411 = vadd.f32 %v372, %v391
      %v412 = vadd.f32 %v373, %v391
      %v413 = vadd.f32 %v374, %v391
      %v414 = vadd.f32 %v375, %v391
      %v415 = vadd.f32 %v376, %v391
      %v416 = vadd.f32 %v377, %v391
      %v417 = vadd.f32 %v378, %v391
      %v418 = vadd.f32 %v379, %v391
      %v419 = vadd.f32 %v380, %v391
      %v420 = vadd.f32 %v381, %v391
      %v421 = vadd.f32 %v382, %v391
      %v422 = vadd.f32 %v383, %v391
      %v423 = vadd.f32 %v384, %v391
      %v424 = vadd.f32 %v385, %v391
      %v425 = vmax.f32 %v393, 0.0
      %v426 = vmax.f32 %v394, 0.0
      %v427 = vmax.f32 %v395, 0.0
      %v428 = vmax.f32 %v396, 0.0
      %v429 = vmax.f32 %v397, 0.0
      %v430 = vmax.f32 %v398, 0.0
      %v431 = vmax.f32 %v399, 0.0
      %v432 = vmax.f32 %v400, 0.0
      %v433 = vmax.f32 %v401, 0.0
      %v434 = vmax.f32 %v402, 0.0
      %v435 = vmax.f32 %v403, 0.0
      %v436 = vmax.f32 %v404, 0.0
      %v437 = vmax.f32 %v405, 0.0
      %v438 = vmax.f32 %v406, 0.0
      %v439 = vmax.f32 %v407, 0.0
      %v440 = vmax.f32 %v408, 0.0
      %v441 = vmax.f32 %v409, 0.0
      %v442 = vmax.f32 %v410, 0.0
      %v443 = vmax.f32 %v411, 0.0
      %v444 = vmax.f32 %v412, 0.0
      %v445 = vmax.f32 %v413, 0.0
      %v446 = vmax.f32 %v414, 0.0
      %v447 = vmax.f32 %v415, 0.0
      %v448 = vmax.f32 %v416, 0.0
      %v449 = vmax.f32 %v417, 0.0
      %v450 = vmax.f32 %v418, 0.0
      %v451 = vmax.f32 %v419, 0.0
      %v452 = vmax.f32 %v420, 0.0
      %v453 = vmax.f32 %v421, 0.0
      %v454 = vmax.f32 %v422, 0.0
      %v455 = vmax.f32 %v423, 0.0
      %v456 = vmax.f32 %v424, 0.0
      %s457 = scalar_lea.vmem [#allocation2], 24
      %458 = vst.msk [vmem:[%s457 + $0x1] sm:$0xff] %vm237, %v425
      %459 = vst.msk [vmem:[%s457 + $0x9] sm:$0xff] %vm237, %v426
      %460 = vst.msk [vmem:[%s457 + $0x19] sm:$0xff] %vm237, %v427
      %461 = vst.msk [vmem:[%s457 + $0x21] sm:$0xff] %vm237, %v428
      %462 = vst.msk [vmem:[%s457 + $0x31] sm:$0xff] %vm237, %v429
      %463 = vst.msk [vmem:[%s457 + $0x39] sm:$0xff] %vm237, %v430
      %464 = vst.msk [vmem:[%s457 + $0x49] sm:$0xff] %vm237, %v431
      %465 = vst.msk [vmem:[%s457 + $0x51] sm:$0xff] %vm237, %v432
      %466 = vst.msk [vmem:[%s457 + $0x61] sm:$0xff] %vm237, %v433
      %467 = vst.msk [vmem:[%s457 + $0x69] sm:$0xff] %vm237, %v434
      %468 = vst.msk [vmem:[%s457 + $0x79] sm:$0xff] %vm237, %v435
      %469 = vst.msk [vmem:[%s457 + $0x81] sm:$0xff] %vm237, %v436
      %470 = vst.msk [vmem:[%s457 + $0x91] sm:$0xff] %vm237, %v437
      %471 = vst.msk [vmem:[%s457 + $0x99] sm:$0xff] %vm237, %v438
      %472 = vst.msk [vmem:[%s457 + $0xa9] sm:$0xff] %vm237, %v439
      %473 = vst.msk [vmem:[%s457 + $0xb1] sm:$0xff] %vm237, %v440
      %474 = vst.msk [vmem:[%s457 + $0xc1] sm:$0xff] %vm237, %v441
      %475 = vst.msk [vmem:[%s457 + $0xc9] sm:$0xff] %vm237, %v442
      %476 = vst.msk [vmem:[%s457 + $0xd9] sm:$0xff] %vm237, %v443
      %477 = vst.msk [vmem:[%s457 + $0xe1] sm:$0xff] %vm237, %v444
      %478 = vst.msk [vmem:[%s457 + $0xf1] sm:$0xff] %vm237, %v445
      %479 = vst.msk [vmem:[%s457 + $0xf9] sm:$0xff] %vm237, %v446
      %480 = vst.msk [vmem:[%s457 + $0x109] sm:$0xff] %vm237, %v447
      %481 = vst.msk [vmem:[%s457 + $0x111] sm:$0xff] %vm237, %v448
      %482 = vst.msk [vmem:[%s457 + $0x121] sm:$0xff] %vm237, %v449
      %483 = vst.msk [vmem:[%s457 + $0x129] sm:$0xff] %vm237, %v450
      %484 = vst.msk [vmem:[%s457 + $0x139] sm:$0xff] %vm237, %v451
      %485 = vst.msk [vmem:[%s457 + $0x141] sm:$0xff] %vm237, %v452
      %486 = vst.msk [vmem:[%s457 + $0x151] sm:$0xff] %vm237, %v453
      %487 = vst.msk [vmem:[%s457 + $0x159] sm:$0xff] %vm237, %v454
      %488 = vst.msk [vmem:[%s457 + $0x169] sm:$0xff] %vm237, %v455
      %489 = vst.msk [vmem:[%s457 + $0x171] sm:$0xff] %vm237, %v456
      %v490 = vld [vmem:[#allocation2] sm:$0xff]
      %v491 = vld [vmem:[#allocation2 + $0x8] sm:$0xff]
      %v492 = vld [vmem:[#allocation2 + $0x18] sm:$0xff]
      %v493 = vld [vmem:[#allocation2 + $0x20] sm:$0xff]
      %v494 = vld [vmem:[#allocation2 + $0x30] sm:$0xff]
      %v495 = vld [vmem:[#allocation2 + $0x38] sm:$0xff]
      %v496 = vld [vmem:[#allocation2 + $0x48] sm:$0xff]
      %v497 = vld [vmem:[#allocation2 + $0x50] sm:$0xff]
      %v498 = vld [vmem:[#allocation2 + $0x60] sm:$0xff]
      %v499 = vld [vmem:[#allocation2 + $0x68] sm:$0xff]
      %v500 = vld [vmem:[#allocation2 + $0x78] sm:$0xff]
      %v501 = vld [vmem:[#allocation2 + $0x80] sm:$0xff]
      %v502 = vld [vmem:[#allocation2 + $0x90] sm:$0xff]
      %v503 = vld [vmem:[#allocation2 + $0x98] sm:$0xff]
      %v504 = vld [vmem:[#allocation2 + $0xa8] sm:$0xff]
      %v505 = vld [vmem:[#allocation2 + $0xb0] sm:$0xff]
      %v506 = vld [vmem:[#allocation2 + $0xc0] sm:$0xff]
      %v507 = vld [vmem:[#allocation2 + $0xc8] sm:$0xff]
      %v508 = vld [vmem:[#allocation2 + $0xd8] sm:$0xff]
      %v509 = vld [vmem:[#allocation2 + $0xe0] sm:$0xff]
      %v510 = vld [vmem:[#allocation2 + $0xf0] sm:$0xff]
      %v511 = vld [vmem:[#allocation2 + $0xf8] sm:$0xff]
      %v512 = vld [vmem:[#allocation2 + $0x108] sm:$0xff]
      %v513 = vld [vmem:[#allocation2 + $0x110] sm:$0xff]
      %v514 = vld [vmem:[#allocation2 + $0x120] sm:$0xff]
      %v515 = vld [vmem:[#allocation2 + $0x128] sm:$0xff]
      %v516 = vld [vmem:[#allocation2 + $0x138] sm:$0xff]
      %v517 = vld [vmem:[#allocation2 + $0x140] sm:$0xff]
      %v518 = vld [vmem:[#allocation2 + $0x150] sm:$0xff]
      %v519 = vld [vmem:[#allocation2 + $0x158] sm:$0xff]
      %v520 = vld [vmem:[#allocation2 + $0x168] sm:$0xff]
      %v521 = vld [vmem:[#allocation2 + $0x170] sm:$0xff]
      %v522 = vpack.c.bf16 %v491, %v490
      %v523 = vpack.c.bf16 %v493, %v492
      %v524 = vpack.c.bf16 %v495, %v494
      %v525 = vpack.c.bf16 %v497, %v496
      %v526 = vpack.c.bf16 %v499, %v498
      %v527 = vpack.c.bf16 %v501, %v500
      %v528 = vpack.c.bf16 %v503, %v502
      %v529 = vpack.c.bf16 %v505, %v504
      %v530 = vpack.c.bf16 %v507, %v506
      %v531 = vpack.c.bf16 %v509, %v508
      %v532 = vpack.c.bf16 %v511, %v510
      %v533 = vpack.c.bf16 %v513, %v512
      %v534 = vpack.c.bf16 %v515, %v514
      %v535 = vpack.c.bf16 %v517, %v516
      %v536 = vpack.c.bf16 %v519, %v518
      %v537 = vpack.c.bf16 %v521, %v520
      %v538 = vld [vmem:[%s3] sm:$0x3]
      %v539 = vld [vmem:[#allocation2 + $0x1] sm:$0xff]
      %v540 = vld [vmem:[#allocation2 + $0x9] sm:$0xff]
      %v541 = vld [vmem:[#allocation2 + $0x19] sm:$0xff]
      %v542 = vld [vmem:[#allocation2 + $0x21] sm:$0xff]
      %v543 = vld [vmem:[#allocation2 + $0x31] sm:$0xff]
      %v544 = vld [vmem:[#allocation2 + $0x39] sm:$0xff]
      %v545 = vld [vmem:[#allocation2 + $0x49] sm:$0xff]
      %v546 = vld [vmem:[#allocation2 + $0x51] sm:$0xff]
      %v547 = vld [vmem:[#allocation2 + $0x61] sm:$0xff]
      %v548 = vld [vmem:[#allocation2 + $0x69] sm:$0xff]
      %v549 = vld [vmem:[#allocation2 + $0x79] sm:$0xff]
      %v550 = vld [vmem:[#allocation2 + $0x81] sm:$0xff]
      %v551 = vld [vmem:[#allocation2 + $0x91] sm:$0xff]
      %v552 = vld [vmem:[#allocation2 + $0x99] sm:$0xff]
      %v553 = vld [vmem:[#allocation2 + $0xa9] sm:$0xff]
      %v554 = vld [vmem:[#allocation2 + $0xb1] sm:$0xff]
      %v555 = vld [vmem:[#allocation2 + $0xc1] sm:$0xff]
      %v556 = vld [vmem:[#allocation2 + $0xc9] sm:$0xff]
      %v557 = vld [vmem:[#allocation2 + $0xd9] sm:$0xff]
      %v558 = vld [vmem:[#allocation2 + $0xe1] sm:$0xff]
      %v559 = vld [vmem:[#allocation2 + $0xf1] sm:$0xff]
      %v560 = vld [vmem:[#allocation2 + $0xf9] sm:$0xff]
      %v561 = vld [vmem:[#allocation2 + $0x109] sm:$0xff]
      %v562 = vld [vmem:[#allocation2 + $0x111] sm:$0xff]
      %v563 = vld [vmem:[#allocation2 + $0x121] sm:$0xff]
      %v564 = vld [vmem:[#allocation2 + $0x129] sm:$0xff]
      %v565 = vld [vmem:[#allocation2 + $0x139] sm:$0xff]
      %v566 = vld [vmem:[#allocation2 + $0x141] sm:$0xff]
      %v567 = vld [vmem:[#allocation2 + $0x151] sm:$0xff]
      %v568 = vld [vmem:[#allocation2 + $0x159] sm:$0xff]
      %v569 = vld [vmem:[#allocation2 + $0x169] sm:$0xff]
      %v570 = vld [vmem:[#allocation2 + $0x171] sm:$0xff]
      %v571 = vpack.c.bf16 %v540, %v539
      %v572 = vpack.c.bf16 %v542, %v541
      %v573 = vpack.c.bf16 %v544, %v543
      %v574 = vpack.c.bf16 %v546, %v545
      %v575 = vpack.c.bf16 %v548, %v547
      %v576 = vpack.c.bf16 %v550, %v549
      %v577 = vpack.c.bf16 %v552, %v551
      %v578 = vpack.c.bf16 %v554, %v553
      %v579 = vpack.c.bf16 %v556, %v555
      %v580 = vpack.c.bf16 %v558, %v557
      %v581 = vpack.c.bf16 %v560, %v559
      %v582 = vpack.c.bf16 %v562, %v561
      %v583 = vpack.c.bf16 %v564, %v563
      %v584 = vpack.c.bf16 %v566, %v565
      %v585 = vpack.c.bf16 %v568, %v567
      %v586 = vpack.c.bf16 %v570, %v569
      %s587 = scalar_lea.vmem %s3, 2
      %v588 = vld [vmem:[%s587] sm:$0x3]
      %v590 = vsel %vm237, %v571, 0
      %v593 = vsel %vm237, %v572, 0
      %v596 = vsel %vm237, %v573, 0
      %v599 = vsel %vm237, %v574, 0
      %v602 = vsel %vm237, %v575, 0
      %v605 = vsel %vm237, %v576, 0
      %v608 = vsel %vm237, %v577, 0
      %v611 = vsel %vm237, %v578, 0
      %v614 = vsel %vm237, %v579, 0
      %v617 = vsel %vm237, %v580, 0
      %v620 = vsel %vm237, %v581, 0
      %v623 = vsel %vm237, %v582, 0
      %v626 = vsel %vm237, %v583, 0
      %v629 = vsel %vm237, %v584, 0
      %v632 = vsel %vm237, %v585, 0
      %v635 = vsel %vm237, %v586, 0
      %vm637 = vcmask 1041408
      %v639 = vsel %vm637, %v588, 0
      %641 = vmatprep.subr.bf16.mxu0 0
      %642 = vmatpush1.bf16.msra.mxu0 %v639
      %643 = vmatprep.subr.bf16.mxu0 0
      %644 = vmatpush1.bf16.msra.mxu0 0
      %645 = vmatprep.subr.bf16.mxu0 0
      %646 = vmatpush1.bf16.msra.mxu0 0
      %647 = vmatprep.subr.bf16.mxu0 0
      %648 = vmatpush1.bf16.msra.mxu0 0
      %649 = vmatprep.subr.bf16.mxu0 0
      %650 = vmatpush1.bf16.msra.mxu0 0
      %651 = vmatprep.subr.bf16.mxu0 0
      %652 = vmatpush1.bf16.msra.mxu0 0
      %653 = vmatprep.subr.bf16.mxu0 0
      %654 = vmatpush1.bf16.msra.mxu0 0
      %655 = vmatprep.subr.bf16.mxu0 0
      %656 = vmatpush1.bf16.msra.mxu0 0
      %657 = vmatprep.subr.bf16.mxu0 0
      %658 = vmatpush1.bf16.msra.mxu0 0
      %659 = vmatprep.subr.bf16.mxu0 0
      %660 = vmatpush1.bf16.msra.mxu0 0
      %661 = vmatprep.subr.bf16.mxu0 0
      %662 = vmatpush1.bf16.msra.mxu0 0
      %663 = vmatprep.subr.bf16.mxu0 0
      %664 = vmatpush1.bf16.msra.mxu0 0
      %665 = vmatprep.subr.bf16.mxu0 0
      %666 = vmatpush1.bf16.msra.mxu0 0
      %667 = vmatprep.subr.bf16.mxu0 0
      %668 = vmatpush1.bf16.msra.mxu0 0
      %669 = vmatprep.subr.bf16.mxu0 0
      %670 = vmatpush1.bf16.msra.mxu0 0
      %671 = vmatprep.subr.bf16.mxu0 0
      %672 = vmatpush1.bf16.msra.mxu0 0
      %673 = vmatprep.mubr.bf16.mxu0 0
      %674 = vmatmul.mubr.bf16.gmra.mrb[0].mxu0 %v590
      %v675 = vpop.f32.mrb[0].mxu0
      %v676 = vadd.f32 0.0, %v675
      %v677 = vpop.f32.mrb[0].mxu0
      %v678 = vpop.f32.mrb[0].mxu0
      %v679 = vadd.f32 0.0, %v678
      %v680 = vpop.f32.mrb[0].mxu0
      %681 = vmatprep.mubr.bf16.mxu0 0
      %682 = vmatmul.mubr.bf16.gmra.mrb[0].mxu0 %v593
      %v683 = vpop.f32.mrb[0].mxu0
      %v684 = vadd.f32 0.0, %v683
      %v685 = vpop.f32.mrb[0].mxu0
      %v686 = vpop.f32.mrb[0].mxu0
      %v687 = vadd.f32 0.0, %v686
      %v688 = vpop.f32.mrb[0].mxu0
      %689 = vmatprep.mubr.bf16.mxu0 0
      %690 = vmatmul.mubr.bf16.gmra.mrb[0].mxu0 %v596
      %v691 = vpop.f32.mrb[0].mxu0
      %v692 = vadd.f32 0.0, %v691
      %v693 = vpop.f32.mrb[0].mxu0
      %v694 = vpop.f32.mrb[0].mxu0
      %v695 = vadd.f32 0.0, %v694
      %v696 = vpop.f32.mrb[0].mxu0
      %697 = vmatprep.mubr.bf16.mxu0 0
      %698 = vmatmul.mubr.bf16.gmra.mrb[0].mxu0 %v599
      %v699 = vpop.f32.mrb[0].mxu0
      %v700 = vadd.f32 0.0, %v699
      %v701 = vpop.f32.mrb[0].mxu0
      %v702 = vpop.f32.mrb[0].mxu0
      %v703 = vadd.f32 0.0, %v702
      %v704 = vpop.f32.mrb[0].mxu0
      %705 = vmatprep.mubr.bf16.mxu0 0
      %706 = vmatmul.mubr.bf16.gmra.mrb[0].mxu0 %v602
      %v707 = vpop.f32.mrb[0].mxu0
      %v708 = vadd.f32 0.0, %v707
      %v709 = vpop.f32.mrb[0].mxu0
      %v710 = vpop.f32.mrb[0].mxu0
      %v711 = vadd.f32 0.0, %v710
      %v712 = vpop.f32.mrb[0].mxu0
      %713 = vmatprep.mubr.bf16.mxu0 0
      %714 = vmatmul.mubr.bf16.gmra.mrb[0].mxu0 %v605
      %v715 = vpop.f32.mrb[0].mxu0
      %v716 = vadd.f32 0.0, %v715
      %v717 = vpop.f32.mrb[0].mxu0
      %v718 = vpop.f32.mrb[0].mxu0
      %v719 = vadd.f32 0.0, %v718
      %v720 = vpop.f32.mrb[0].mxu0
      %721 = vmatprep.mubr.bf16.mxu0 0
      %722 = vmatmul.mubr.bf16.gmra.mrb[0].mxu0 %v608
      %v723 = vpop.f32.mrb[0].mxu0
      %v724 = vadd.f32 0.0, %v723
      %v725 = vpop.f32.mrb[0].mxu0
      %v726 = vpop.f32.mrb[0].mxu0
      %v727 = vadd.f32 0.0, %v726
      %v728 = vpop.f32.mrb[0].mxu0
      %729 = vmatprep.mubr.bf16.mxu0 0
      %730 = vmatmul.mubr.bf16.gmra.mrb[0].mxu0 %v611
      %v731 = vpop.f32.mrb[0].mxu0
      %v732 = vadd.f32 0.0, %v731
      %v733 = vpop.f32.mrb[0].mxu0
      %v734 = vpop.f32.mrb[0].mxu0
      %v735 = vadd.f32 0.0, %v734
      %v736 = vpop.f32.mrb[0].mxu0
      %737 = vmatprep.mubr.bf16.mxu0 0
      %738 = vmatmul.mubr.bf16.gmra.mrb[0].mxu0 %v614
      %v739 = vpop.f32.mrb[0].mxu0
      %v740 = vadd.f32 0.0, %v739
      %v741 = vpop.f32.mrb[0].mxu0
      %v742 = vpop.f32.mrb[0].mxu0
      %v743 = vadd.f32 0.0, %v742
      %v744 = vpop.f32.mrb[0].mxu0
      %745 = vmatprep.mubr.bf16.mxu0 0
      %746 = vmatmul.mubr.bf16.gmra.mrb[0].mxu0 %v617
      %v747 = vpop.f32.mrb[0].mxu0
      %v748 = vadd.f32 0.0, %v747
      %v749 = vpop.f32.mrb[0].mxu0
      %v750 = vpop.f32.mrb[0].mxu0
      %v751 = vadd.f32 0.0, %v750
      %v752 = vpop.f32.mrb[0].mxu0
      %753 = vmatprep.mubr.bf16.mxu0 0
      %754 = vmatmul.mubr.bf16.gmra.mrb[0].mxu0 %v620
      %v755 = vpop.f32.mrb[0].mxu0
      %v756 = vadd.f32 0.0, %v755
      %v757 = vpop.f32.mrb[0].mxu0
      %v758 = vpop.f32.mrb[0].mxu0
      %v759 = vadd.f32 0.0, %v758
      %v760 = vpop.f32.mrb[0].mxu0
      %761 = vmatprep.mubr.bf16.mxu0 0
      %762 = vmatmul.mubr.bf16.gmra.mrb[0].mxu0 %v623
      %v763 = vpop.f32.mrb[0].mxu0
      %v764 = vadd.f32 0.0, %v763
      %v765 = vpop.f32.mrb[0].mxu0
      %v766 = vpop.f32.mrb[0].mxu0
      %v767 = vadd.f32 0.0, %v766
      %v768 = vpop.f32.mrb[0].mxu0
      %769 = vmatprep.mubr.bf16.mxu0 0
      %770 = vmatmul.mubr.bf16.gmra.mrb[0].mxu0 %v626
      %v771 = vpop.f32.mrb[0].mxu0
      %v772 = vadd.f32 0.0, %v771
      %v773 = vpop.f32.mrb[0].mxu0
      %v774 = vpop.f32.mrb[0].mxu0
      %v775 = vadd.f32 0.0, %v774
      %v776 = vpop.f32.mrb[0].mxu0
      %777 = vmatprep.mubr.bf16.mxu0 0
      %778 = vmatmul.mubr.bf16.gmra.mrb[0].mxu0 %v629
      %v779 = vpop.f32.mrb[0].mxu0
      %v780 = vadd.f32 0.0, %v779
      %v781 = vpop.f32.mrb[0].mxu0
      %v782 = vpop.f32.mrb[0].mxu0
      %v783 = vadd.f32 0.0, %v782
      %v784 = vpop.f32.mrb[0].mxu0
      %785 = vmatprep.mubr.bf16.mxu0 0
      %786 = vmatmul.mubr.bf16.gmra.mrb[0].mxu0 %v632
      %v787 = vpop.f32.mrb[0].mxu0
      %v788 = vadd.f32 0.0, %v787
      %v789 = vpop.f32.mrb[0].mxu0
      %v790 = vpop.f32.mrb[0].mxu0
      %v791 = vadd.f32 0.0, %v790
      %v792 = vpop.f32.mrb[0].mxu0
      %793 = vmatprep.mubr.bf16.mxu0 0
      %794 = vmatmul.mubr.bf16.gmra.mrb[0].mxu0 %v635
      %v795 = vpop.f32.mrb[0].mxu0
      %v796 = vadd.f32 0.0, %v795
      %v797 = vpop.f32.mrb[0].mxu0
      %v798 = vpop.f32.mrb[0].mxu0
      %v799 = vadd.f32 0.0, %v798
      %v800 = vpop.f32.mrb[0].mxu0
      %801 = vdwg.mxu0
      %v803 = vsel %vm237, %v522, 0
      %v806 = vsel %vm237, %v523, 0
      %v809 = vsel %vm237, %v524, 0
      %v812 = vsel %vm237, %v525, 0
      %v815 = vsel %vm237, %v526, 0
      %v818 = vsel %vm237, %v527, 0
      %v821 = vsel %vm237, %v528, 0
      %v824 = vsel %vm237, %v529, 0
      %v827 = vsel %vm237, %v530, 0
      %v830 = vsel %vm237, %v531, 0
      %v833 = vsel %vm237, %v532, 0
      %v836 = vsel %vm237, %v533, 0
      %v839 = vsel %vm237, %v534, 0
      %v842 = vsel %vm237, %v535, 0
      %v845 = vsel %vm237, %v536, 0
      %v848 = vsel %vm237, %v537, 0
      %v851 = vsel %vm637, %v538, 0
      %853 = vmatprep.subr.bf16.mxu0 0
      %854 = vmatpush1.bf16.msra.mxu0 %v851
      %855 = vmatprep.subr.bf16.mxu0 0
      %856 = vmatpush1.bf16.msra.mxu0 0
      %857 = vmatprep.subr.bf16.mxu0 0
      %858 = vmatpush1.bf16.msra.mxu0 0
      %859 = vmatprep.subr.bf16.mxu0 0
      %860 = vmatpush1.bf16.msra.mxu0 0
      %861 = vmatprep.subr.bf16.mxu0 0
      %862 = vmatpush1.bf16.msra.mxu0 0
      %863 = vmatprep.subr.bf16.mxu0 0
      %864 = vmatpush1.bf16.msra.mxu0 0
      %865 = vmatprep.subr.bf16.mxu0 0
      %866 = vmatpush1.bf16.msra.mxu0 0
      %867 = vmatprep.subr.bf16.mxu0 0
      %868 = vmatpush1.bf16.msra.mxu0 0
      %869 = vmatprep.subr.bf16.mxu0 0
      %870 = vmatpush1.bf16.msra.mxu0 0
      %871 = vmatprep.subr.bf16.mxu0 0
      %872 = vmatpush1.bf16.msra.mxu0 0
      %873 = vmatprep.subr.bf16.mxu0 0
      %874 = vmatpush1.bf16.msra.mxu0 0
      %875 = vmatprep.subr.bf16.mxu0 0
      %876 = vmatpush1.bf16.msra.mxu0 0
      %877 = vmatprep.subr.bf16.mxu0 0
      %878 = vmatpush1.bf16.msra.mxu0 0
      %879 = vmatprep.subr.bf16.mxu0 0
      %880 = vmatpush1.bf16.msra.mxu0 0
      %881 = vmatprep.subr.bf16.mxu0 0
      %882 = vmatpush1.bf16.msra.mxu0 0
      %883 = vmatprep.subr.bf16.mxu0 0
      %884 = vmatpush1.bf16.msra.mxu0 0
      %885 = vmatprep.mubr.bf16.mxu0 0
      %886 = vmatmul.mubr.bf16.gmra.mrb[0].mxu0 %v803
      %v887 = vpop.f32.mrb[0].mxu0
      %v888 = vadd.f32 %v676, %v887
      %v889 = vpop.f32.mrb[0].mxu0
      %v890 = vpop.f32.mrb[0].mxu0
      %v891 = vadd.f32 %v679, %v890
      %v892 = vpop.f32.mrb[0].mxu0
      %893 = vmatprep.mubr.bf16.mxu0 0
      %894 = vmatmul.mubr.bf16.gmra.mrb[0].mxu0 %v806
      %v895 = vpop.f32.mrb[0].mxu0
      %v896 = vadd.f32 %v684, %v895
      %v897 = vpop.f32.mrb[0].mxu0
      %v898 = vpop.f32.mrb[0].mxu0
      %v899 = vadd.f32 %v687, %v898
      %v900 = vpop.f32.mrb[0].mxu0
      %901 = vmatprep.mubr.bf16.mxu0 0
      %902 = vmatmul.mubr.bf16.gmra.mrb[0].mxu0 %v809
      %v903 = vpop.f32.mrb[0].mxu0
      %v904 = vadd.f32 %v692, %v903
      %v905 = vpop.f32.mrb[0].mxu0
      %v906 = vpop.f32.mrb[0].mxu0
      %v907 = vadd.f32 %v695, %v906
      %v908 = vpop.f32.mrb[0].mxu0
      %909 = vmatprep.mubr.bf16.mxu0 0
      %910 = vmatmul.mubr.bf16.gmra.mrb[0].mxu0 %v812
      %v911 = vpop.f32.mrb[0].mxu0
      %v912 = vadd.f32 %v700, %v911
      %v913 = vpop.f32.mrb[0].mxu0
      %v914 = vpop.f32.mrb[0].mxu0
      %v915 = vadd.f32 %v703, %v914
      %v916 = vpop.f32.mrb[0].mxu0
      %917 = vmatprep.mubr.bf16.mxu0 0
      %918 = vmatmul.mubr.bf16.gmra.mrb[0].mxu0 %v815
      %v919 = vpop.f32.mrb[0].mxu0
      %v920 = vadd.f32 %v708, %v919
      %v921 = vpop.f32.mrb[0].mxu0
      %v922 = vpop.f32.mrb[0].mxu0
      %v923 = vadd.f32 %v711, %v922
      %v924 = vpop.f32.mrb[0].mxu0
      %925 = vmatprep.mubr.bf16.mxu0 0
      %926 = vmatmul.mubr.bf16.gmra.mrb[0].mxu0 %v818
      %v927 = vpop.f32.mrb[0].mxu0
      %v928 = vadd.f32 %v716, %v927
      %v929 = vpop.f32.mrb[0].mxu0
      %v930 = vpop.f32.mrb[0].mxu0
      %v931 = vadd.f32 %v719, %v930
      %v932 = vpop.f32.mrb[0].mxu0
      %933 = vmatprep.mubr.bf16.mxu0 0
      %934 = vmatmul.mubr.bf16.gmra.mrb[0].mxu0 %v821
      %v935 = vpop.f32.mrb[0].mxu0
      %v936 = vadd.f32 %v724, %v935
      %v937 = vpop.f32.mrb[0].mxu0
      %v938 = vpop.f32.mrb[0].mxu0
      %v939 = vadd.f32 %v727, %v938
      %v940 = vpop.f32.mrb[0].mxu0
      %941 = vmatprep.mubr.bf16.mxu0 0
      %942 = vmatmul.mubr.bf16.gmra.mrb[0].mxu0 %v824
      %v943 = vpop.f32.mrb[0].mxu0
      %v944 = vadd.f32 %v732, %v943
      %v945 = vpop.f32.mrb[0].mxu0
      %v946 = vpop.f32.mrb[0].mxu0
      %v947 = vadd.f32 %v735, %v946
      %v948 = vpop.f32.mrb[0].mxu0
      %949 = vmatprep.mubr.bf16.mxu0 0
      %950 = vmatmul.mubr.bf16.gmra.mrb[0].mxu0 %v827
      %v951 = vpop.f32.mrb[0].mxu0
      %v952 = vadd.f32 %v740, %v951
      %v953 = vpop.f32.mrb[0].mxu0
      %v954 = vpop.f32.mrb[0].mxu0
      %v955 = vadd.f32 %v743, %v954
      %v956 = vpop.f32.mrb[0].mxu0
      %957 = vmatprep.mubr.bf16.mxu0 0
      %958 = vmatmul.mubr.bf16.gmra.mrb[0].mxu0 %v830
      %v959 = vpop.f32.mrb[0].mxu0
      %v960 = vadd.f32 %v748, %v959
      %v961 = vpop.f32.mrb[0].mxu0
      %v962 = vpop.f32.mrb[0].mxu0
      %v963 = vadd.f32 %v751, %v962
      %v964 = vpop.f32.mrb[0].mxu0
      %965 = vmatprep.mubr.bf16.mxu0 0
      %966 = vmatmul.mubr.bf16.gmra.mrb[0].mxu0 %v833
      %v967 = vpop.f32.mrb[0].mxu0
      %v968 = vadd.f32 %v756, %v967
      %v969 = vpop.f32.mrb[0].mxu0
      %v970 = vpop.f32.mrb[0].mxu0
      %v971 = vadd.f32 %v759, %v970
      %v972 = vpop.f32.mrb[0].mxu0
      %973 = vmatprep.mubr.bf16.mxu0 0
      %974 = vmatmul.mubr.bf16.gmra.mrb[0].mxu0 %v836
      %v975 = vpop.f32.mrb[0].mxu0
      %v976 = vadd.f32 %v764, %v975
      %v977 = vpop.f32.mrb[0].mxu0
      %v978 = vpop.f32.mrb[0].mxu0
      %v979 = vadd.f32 %v767, %v978
      %v980 = vpop.f32.mrb[0].mxu0
      %981 = vmatprep.mubr.bf16.mxu0 0
      %982 = vmatmul.mubr.bf16.gmra.mrb[0].mxu0 %v839
      %v983 = vpop.f32.mrb[0].mxu0
      %v984 = vadd.f32 %v772, %v983
      %v985 = vpop.f32.mrb[0].mxu0
      %v986 = vpop.f32.mrb[0].mxu0
      %v987 = vadd.f32 %v775, %v986
      %v988 = vpop.f32.mrb[0].mxu0
      %989 = vmatprep.mubr.bf16.mxu0 0
      %990 = vmatmul.mubr.bf16.gmra.mrb[0].mxu0 %v842
      %v991 = vpop.f32.mrb[0].mxu0
      %v992 = vadd.f32 %v780, %v991
      %v993 = vpop.f32.mrb[0].mxu0
      %v994 = vpop.f32.mrb[0].mxu0
      %v995 = vadd.f32 %v783, %v994
      %v996 = vpop.f32.mrb[0].mxu0
      %997 = vmatprep.mubr.bf16.mxu0 0
      %998 = vmatmul.mubr.bf16.gmra.mrb[0].mxu0 %v845
      %v999 = vpop.f32.mrb[0].mxu0
      %v1000 = vadd.f32 %v788, %v999
      %v1001 = vpop.f32.mrb[0].mxu0
      %v1002 = vpop.f32.mrb[0].mxu0
      %v1003 = vadd.f32 %v791, %v1002
      %v1004 = vpop.f32.mrb[0].mxu0
      %1005 = vmatprep.mubr.bf16.mxu0 0
      %1006 = vmatmul.mubr.bf16.gmra.mrb[0].mxu0 %v848
      %v1007 = vpop.f32.mrb[0].mxu0
      %v1008 = vadd.f32 %v796, %v1007
      %v1009 = vpop.f32.mrb[0].mxu0
      %v1010 = vpop.f32.mrb[0].mxu0
      %v1011 = vadd.f32 %v799, %v1010
      %v1012 = vpop.f32.mrb[0].mxu0
      %1013 = vdwg.mxu0
      %v1014 = vld [vmem:[#allocation2 + $0x2] sm:$0xff]
      %v1015 = vld [vmem:[#allocation2 + $0xa] sm:$0xff]
      %v1016 = vld [vmem:[#allocation2 + $0x1a] sm:$0xff]
      %v1017 = vld [vmem:[#allocation2 + $0x22] sm:$0xff]
      %v1018 = vld [vmem:[#allocation2 + $0x32] sm:$0xff]
      %v1019 = vld [vmem:[#allocation2 + $0x3a] sm:$0xff]
      %v1020 = vld [vmem:[#allocation2 + $0x4a] sm:$0xff]
      %v1021 = vld [vmem:[#allocation2 + $0x52] sm:$0xff]
      %v1022 = vld [vmem:[#allocation2 + $0x62] sm:$0xff]
      %v1023 = vld [vmem:[#allocation2 + $0x6a] sm:$0xff]
      %v1024 = vld [vmem:[#allocation2 + $0x7a] sm:$0xff]
      %v1025 = vld [vmem:[#allocation2 + $0x82] sm:$0xff]
      %v1026 = vld [vmem:[#allocation2 + $0x92] sm:$0xff]
      %v1027 = vld [vmem:[#allocation2 + $0x9a] sm:$0xff]
      %v1028 = vld [vmem:[#allocation2 + $0xaa] sm:$0xff]
      %v1029 = vld [vmem:[#allocation2 + $0xb2] sm:$0xff]
      %v1030 = vld [vmem:[#allocation2 + $0xc2] sm:$0xff]
      %v1031 = vld [vmem:[#allocation2 + $0xca] sm:$0xff]
      %v1032 = vld [vmem:[#allocation2 + $0xda] sm:$0xff]
      %v1033 = vld [vmem:[#allocation2 + $0xe2] sm:$0xff]
      %v1034 = vld [vmem:[#allocation2 + $0xf2] sm:$0xff]
      %v1035 = vld [vmem:[#allocation2 + $0xfa] sm:$0xff]
      %v1036 = vld [vmem:[#allocation2 + $0x10a] sm:$0xff]
      %v1037 = vld [vmem:[#allocation2 + $0x112] sm:$0xff]
      %v1038 = vld [vmem:[#allocation2 + $0x122] sm:$0xff]
      %v1039 = vld [vmem:[#allocation2 + $0x12a] sm:$0xff]
      %v1040 = vld [vmem:[#allocation2 + $0x13a] sm:$0xff]
      %v1041 = vld [vmem:[#allocation2 + $0x142] sm:$0xff]
      %v1042 = vld [vmem:[#allocation2 + $0x152] sm:$0xff]
      %v1043 = vld [vmem:[#allocation2 + $0x15a] sm:$0xff]
      %v1044 = vld [vmem:[#allocation2 + $0x16a] sm:$0xff]
      %v1045 = vld [vmem:[#allocation2 + $0x172] sm:$0xff]
      %v1046 = vpack.c.bf16 %v1015, %v1014
      %v1047 = vpack.c.bf16 %v1017, %v1016
      %v1048 = vpack.c.bf16 %v1019, %v1018
      %v1049 = vpack.c.bf16 %v1021, %v1020
      %v1050 = vpack.c.bf16 %v1023, %v1022
      %v1051 = vpack.c.bf16 %v1025, %v1024
      %v1052 = vpack.c.bf16 %v1027, %v1026
      %v1053 = vpack.c.bf16 %v1029, %v1028
      %v1054 = vpack.c.bf16 %v1031, %v1030
      %v1055 = vpack.c.bf16 %v1033, %v1032
      %v1056 = vpack.c.bf16 %v1035, %v1034
      %v1057 = vpack.c.bf16 %v1037, %v1036
      %v1058 = vpack.c.bf16 %v1039, %v1038
      %v1059 = vpack.c.bf16 %v1041, %v1040
      %v1060 = vpack.c.bf16 %v1043, %v1042
      %v1061 = vpack.c.bf16 %v1045, %v1044
      %s1062 = scalar_lea.vmem %s3, 4
      %v1063 = vld [vmem:[%s1062] sm:$0x3]
      %v1065 = vsel %vm237, %v1046, 0
      %v1068 = vsel %vm237, %v1047, 0
      %v1071 = vsel %vm237, %v1048, 0
      %v1074 = vsel %vm237, %v1049, 0
      %v1077 = vsel %vm237, %v1050, 0
      %v1080 = vsel %vm237, %v1051, 0
      %v1083 = vsel %vm237, %v1052, 0
      %v1086 = vsel %vm237, %v1053, 0
      %v1089 = vsel %vm237, %v1054, 0
      %v1092 = vsel %vm237, %v1055, 0
      %v1095 = vsel %vm237, %v1056, 0
      %v1098 = vsel %vm237, %v1057, 0
      %v1101 = vsel %vm237, %v1058, 0
      %v1104 = vsel %vm237, %v1059, 0
      %v1107 = vsel %vm237, %v1060, 0
      %v1110 = vsel %vm237, %v1061, 0
      %v1113 = vsel %vm637, %v1063, 0
      %1115 = vmatprep.subr.bf16.mxu0 0
      %1116 = vmatpush1.bf16.msra.mxu0 %v1113
      %1117 = vmatprep.subr.bf16.mxu0 0
      %1118 = vmatpush1.bf16.msra.mxu0 0
      %1119 = vmatprep.subr.bf16.mxu0 0
      %1120 = vmatpush1.bf16.msra.mxu0 0
      %1121 = vmatprep.subr.bf16.mxu0 0
      %1122 = vmatpush1.bf16.msra.mxu0 0
      %1123 = vmatprep.subr.bf16.mxu0 0
      %1124 = vmatpush1.bf16.msra.mxu0 0
      %1125 = vmatprep.subr.bf16.mxu0 0
      %1126 = vmatpush1.bf16.msra.mxu0 0
      %1127 = vmatprep.subr.bf16.mxu0 0
      %1128 = vmatpush1.bf16.msra.mxu0 0
      %1129 = vmatprep.subr.bf16.mxu0 0
      %1130 = vmatpush1.bf16.msra.mxu0 0
      %1131 = vmatprep.subr.bf16.mxu0 0
      %1132 = vmatpush1.bf16.msra.mxu0 0
      %1133 = vmatprep.subr.bf16.mxu0 0
      %1134 = vmatpush1.bf16.msra.mxu0 0
      %1135 = vmatprep.subr.bf16.mxu0 0
      %1136 = vmatpush1.bf16.msra.mxu0 0
      %1137 = vmatprep.subr.bf16.mxu0 0
      %1138 = vmatpush1.bf16.msra.mxu0 0
      %1139 = vmatprep.subr.bf16.mxu0 0
      %1140 = vmatpush1.bf16.msra.mxu0 0
      %1141 = vmatprep.subr.bf16.mxu0 0
      %1142 = vmatpush1.bf16.msra.mxu0 0
      %1143 = vmatprep.subr.bf16.mxu0 0
      %1144 = vmatpush1.bf16.msra.mxu0 0
      %1145 = vmatprep.subr.bf16.mxu0 0
      %1146 = vmatpush1.bf16.msra.mxu0 0
      %1147 = vmatprep.mubr.bf16.mxu0 0
      %1148 = vmatmul.mubr.bf16.gmra.mrb[0].mxu0 %v1065
      %v1149 = vpop.f32.mrb[0].mxu0
      %v1150 = vadd.f32 0.0, %v1149
      %v1151 = vpop.f32.mrb[0].mxu0
      %v1152 = vpop.f32.mrb[0].mxu0
      %v1153 = vadd.f32 0.0, %v1152
      %v1154 = vpop.f32.mrb[0].mxu0
      %1155 = vmatprep.mubr.bf16.mxu0 0
      %1156 = vmatmul.mubr.bf16.gmra.mrb[0].mxu0 %v1068
      %v1157 = vpop.f32.mrb[0].mxu0
      %v1158 = vadd.f32 0.0, %v1157
      %v1159 = vpop.f32.mrb[0].mxu0
      %v1160 = vpop.f32.mrb[0].mxu0
      %v1161 = vadd.f32 0.0, %v1160
      %v1162 = vpop.f32.mrb[0].mxu0
      %1163 = vmatprep.mubr.bf16.mxu0 0
      %1164 = vmatmul.mubr.bf16.gmra.mrb[0].mxu0 %v1071
      %v1165 = vpop.f32.mrb[0].mxu0
      %v1166 = vadd.f32 0.0, %v1165
      %v1167 = vpop.f32.mrb[0].mxu0
      %v1168 = vpop.f32.mrb[0].mxu0
      %v1169 = vadd.f32 0.0, %v1168
      %v1170 = vpop.f32.mrb[0].mxu0
      %1171 = vmatprep.mubr.bf16.mxu0 0
      %1172 = vmatmul.mubr.bf16.gmra.mrb[0].mxu0 %v1074
      %v1173 = vpop.f32.mrb[0].mxu0
      %v1174 = vadd.f32 0.0, %v1173
      %v1175 = vpop.f32.mrb[0].mxu0
      %v1176 = vpop.f32.mrb[0].mxu0
      %v1177 = vadd.f32 0.0, %v1176
      %v1178 = vpop.f32.mrb[0].mxu0
      %1179 = vmatprep.mubr.bf16.mxu0 0
      %1180 = vmatmul.mubr.bf16.gmra.mrb[0].mxu0 %v1077
      %v1181 = vpop.f32.mrb[0].mxu0
      %v1182 = vadd.f32 0.0, %v1181
      %v1183 = vpop.f32.mrb[0].mxu0
      %v1184 = vpop.f32.mrb[0].mxu0
      %v1185 = vadd.f32 0.0, %v1184
      %v1186 = vpop.f32.mrb[0].mxu0
      %1187 = vmatprep.mubr.bf16.mxu0 0
      %1188 = vmatmul.mubr.bf16.gmra.mrb[0].mxu0 %v1080
      %v1189 = vpop.f32.mrb[0].mxu0
      %v1190 = vadd.f32 0.0, %v1189
      %v1191 = vpop.f32.mrb[0].mxu0
      %v1192 = vpop.f32.mrb[0].mxu0
      %v1193 = vadd.f32 0.0, %v1192
      %v1194 = vpop.f32.mrb[0].mxu0
      %1195 = vmatprep.mubr.bf16.mxu0 0
      %1196 = vmatmul.mubr.bf16.gmra.mrb[0].mxu0 %v1083
      %v1197 = vpop.f32.mrb[0].mxu0
      %v1198 = vadd.f32 0.0, %v1197
      %v1199 = vpop.f32.mrb[0].mxu0
      %v1200 = vpop.f32.mrb[0].mxu0
      %v1201 = vadd.f32 0.0, %v1200
      %v1202 = vpop.f32.mrb[0].mxu0
      %1203 = vmatprep.mubr.bf16.mxu0 0
      %1204 = vmatmul.mubr.bf16.gmra.mrb[0].mxu0 %v1086
      %v1205 = vpop.f32.mrb[0].mxu0
      %v1206 = vadd.f32 0.0, %v1205
      %v1207 = vpop.f32.mrb[0].mxu0
      %v1208 = vpop.f32.mrb[0].mxu0
      %v1209 = vadd.f32 0.0, %v1208
      %v1210 = vpop.f32.mrb[0].mxu0
      %1211 = vmatprep.mubr.bf16.mxu0 0
      %1212 = vmatmul.mubr.bf16.gmra.mrb[0].mxu0 %v1089
      %v1213 = vpop.f32.mrb[0].mxu0
      %v1214 = vadd.f32 0.0, %v1213
      %v1215 = vpop.f32.mrb[0].mxu0
      %v1216 = vpop.f32.mrb[0].mxu0
      %v1217 = vadd.f32 0.0, %v1216
      %v1218 = vpop.f32.mrb[0].mxu0
      %1219 = vmatprep.mubr.bf16.mxu0 0
      %1220 = vmatmul.mubr.bf16.gmra.mrb[0].mxu0 %v1092
      %v1221 = vpop.f32.mrb[0].mxu0
      %v1222 = vadd.f32 0.0, %v1221
      %v1223 = vpop.f32.mrb[0].mxu0
      %v1224 = vpop.f32.mrb[0].mxu0
      %v1225 = vadd.f32 0.0, %v1224
      %v1226 = vpop.f32.mrb[0].mxu0
      %1227 = vmatprep.mubr.bf16.mxu0 0
      %1228 = vmatmul.mubr.bf16.gmra.mrb[0].mxu0 %v1095
      %v1229 = vpop.f32.mrb[0].mxu0
      %v1230 = vadd.f32 0.0, %v1229
      %v1231 = vpop.f32.mrb[0].mxu0
      %v1232 = vpop.f32.mrb[0].mxu0
      %v1233 = vadd.f32 0.0, %v1232
      %v1234 = vpop.f32.mrb[0].mxu0
      %1235 = vmatprep.mubr.bf16.mxu0 0
      %1236 = vmatmul.mubr.bf16.gmra.mrb[0].mxu0 %v1098
      %v1237 = vpop.f32.mrb[0].mxu0
      %v1238 = vadd.f32 0.0, %v1237
      %v1239 = vpop.f32.mrb[0].mxu0
      %v1240 = vpop.f32.mrb[0].mxu0
      %v1241 = vadd.f32 0.0, %v1240
      %v1242 = vpop.f32.mrb[0].mxu0
      %1243 = vmatprep.mubr.bf16.mxu0 0
      %1244 = vmatmul.mubr.bf16.gmra.mrb[0].mxu0 %v1101
      %v1245 = vpop.f32.mrb[0].mxu0
      %v1246 = vadd.f32 0.0, %v1245
      %v1247 = vpop.f32.mrb[0].mxu0
      %v1248 = vpop.f32.mrb[0].mxu0
      %v1249 = vadd.f32 0.0, %v1248
      %v1250 = vpop.f32.mrb[0].mxu0
      %1251 = vmatprep.mubr.bf16.mxu0 0
      %1252 = vmatmul.mubr.bf16.gmra.mrb[0].mxu0 %v1104
      %v1253 = vpop.f32.mrb[0].mxu0
      %v1254 = vadd.f32 0.0, %v1253
      %v1255 = vpop.f32.mrb[0].mxu0
      %v1256 = vpop.f32.mrb[0].mxu0
      %v1257 = vadd.f32 0.0, %v1256
      %v1258 = vpop.f32.mrb[0].mxu0
      %1259 = vmatprep.mubr.bf16.mxu0 0
      %1260 = vmatmul.mubr.bf16.gmra.mrb[0].mxu0 %v1107
      %v1261 = vpop.f32.mrb[0].mxu0
      %v1262 = vadd.f32 0.0, %v1261
      %v1263 = vpop.f32.mrb[0].mxu0
      %v1264 = vpop.f32.mrb[0].mxu0
      %v1265 = vadd.f32 0.0, %v1264
      %v1266 = vpop.f32.mrb[0].mxu0
      %1267 = vmatprep.mubr.bf16.mxu0 0
      %1268 = vmatmul.mubr.bf16.gmra.mrb[0].mxu0 %v1110
      %v1269 = vpop.f32.mrb[0].mxu0
      %v1270 = vadd.f32 0.0, %v1269
      %v1271 = vpop.f32.mrb[0].mxu0
      %v1272 = vpop.f32.mrb[0].mxu0
      %v1273 = vadd.f32 0.0, %v1272
      %v1274 = vpop.f32.mrb[0].mxu0
      %1275 = vdwg.mxu0
      %v1276 = vadd.f32 %v888, %v1150
      %v1277 = vadd.f32 %v891, %v1153
      %v1278 = vadd.f32 %v896, %v1158
      %v1279 = vadd.f32 %v899, %v1161
      %v1280 = vadd.f32 %v904, %v1166
      %v1281 = vadd.f32 %v907, %v1169
      %v1282 = vadd.f32 %v912, %v1174
      %v1283 = vadd.f32 %v915, %v1177
      %v1284 = vadd.f32 %v920, %v1182
      %v1285 = vadd.f32 %v923, %v1185
      %v1286 = vadd.f32 %v928, %v1190
      %v1287 = vadd.f32 %v931, %v1193
      %v1288 = vadd.f32 %v936, %v1198
      %v1289 = vadd.f32 %v939, %v1201
      %v1290 = vadd.f32 %v944, %v1206
      %v1291 = vadd.f32 %v947, %v1209
      %v1292 = vadd.f32 %v952, %v1214
      %v1293 = vadd.f32 %v955, %v1217
      %v1294 = vadd.f32 %v960, %v1222
      %v1295 = vadd.f32 %v963, %v1225
      %v1296 = vadd.f32 %v968, %v1230
      %v1297 = vadd.f32 %v971, %v1233
      %v1298 = vadd.f32 %v976, %v1238
      %v1299 = vadd.f32 %v979, %v1241
      %v1300 = vadd.f32 %v984, %v1246
      %v1301 = vadd.f32 %v987, %v1249
      %v1302 = vadd.f32 %v992, %v1254
      %v1303 = vadd.f32 %v995, %v1257
      %v1304 = vadd.f32 %v1000, %v1262
      %v1305 = vadd.f32 %v1003, %v1265
      %v1306 = vadd.f32 %v1008, %v1270
      %v1307 = vadd.f32 %v1011, %v1273
      %v1308 = vld [vmem:[%s457] sm:$0xff]
      %v1309 = vld [vmem:[%s457 + $0x8] sm:$0xff]
      %v1310 = vld [vmem:[%s457 + $0x18] sm:$0xff]
      %v1311 = vld [vmem:[%s457 + $0x20] sm:$0xff]
      %v1312 = vld [vmem:[%s457 + $0x30] sm:$0xff]
      %v1313 = vld [vmem:[%s457 + $0x38] sm:$0xff]
      %v1314 = vld [vmem:[%s457 + $0x48] sm:$0xff]
      %v1315 = vld [vmem:[%s457 + $0x50] sm:$0xff]
      %v1316 = vld [vmem:[%s457 + $0x60] sm:$0xff]
      %v1317 = vld [vmem:[%s457 + $0x68] sm:$0xff]
      %v1318 = vld [vmem:[%s457 + $0x78] sm:$0xff]
      %v1319 = vld [vmem:[%s457 + $0x80] sm:$0xff]
      %v1320 = vld [vmem:[%s457 + $0x90] sm:$0xff]
      %v1321 = vld [vmem:[%s457 + $0x98] sm:$0xff]
      %v1322 = vld [vmem:[%s457 + $0xa8] sm:$0xff]
      %v1323 = vld [vmem:[%s457 + $0xb0] sm:$0xff]
      %v1324 = vld [vmem:[%s457 + $0xc0] sm:$0xff]
      %v1325 = vld [vmem:[%s457 + $0xc8] sm:$0xff]
      %v1326 = vld [vmem:[%s457 + $0xd8] sm:$0xff]
      %v1327 = vld [vmem:[%s457 + $0xe0] sm:$0xff]
      %v1328 = vld [vmem:[%s457 + $0xf0] sm:$0xff]
      %v1329 = vld [vmem:[%s457 + $0xf8] sm:$0xff]
      %v1330 = vld [vmem:[%s457 + $0x108] sm:$0xff]
      %v1331 = vld [vmem:[%s457 + $0x110] sm:$0xff]
      %v1332 = vld [vmem:[%s457 + $0x120] sm:$0xff]
      %v1333 = vld [vmem:[%s457 + $0x128] sm:$0xff]
      %v1334 = vld [vmem:[%s457 + $0x138] sm:$0xff]
      %v1335 = vld [vmem:[%s457 + $0x140] sm:$0xff]
      %v1336 = vld [vmem:[%s457 + $0x150] sm:$0xff]
      %v1337 = vld [vmem:[%s457 + $0x158] sm:$0xff]
      %v1338 = vld [vmem:[%s457 + $0x168] sm:$0xff]
      %v1339 = vld [vmem:[%s457 + $0x170] sm:$0xff]
      %v1340 = vpack.c.bf16 %v1309, %v1308
      %v1341 = vpack.c.bf16 %v1311, %v1310
      %v1342 = vpack.c.bf16 %v1313, %v1312
      %v1343 = vpack.c.bf16 %v1315, %v1314
      %v1344 = vpack.c.bf16 %v1317, %v1316
      %v1345 = vpack.c.bf16 %v1319, %v1318
      %v1346 = vpack.c.bf16 %v1321, %v1320
      %v1347 = vpack.c.bf16 %v1323, %v1322
      %v1348 = vpack.c.bf16 %v1325, %v1324
      %v1349 = vpack.c.bf16 %v1327, %v1326
      %v1350 = vpack.c.bf16 %v1329, %v1328
      %v1351 = vpack.c.bf16 %v1331, %v1330
      %v1352 = vpack.c.bf16 %v1333, %v1332
      %v1353 = vpack.c.bf16 %v1335, %v1334
      %v1354 = vpack.c.bf16 %v1337, %v1336
      %v1355 = vpack.c.bf16 %v1339, %v1338
      %s1356 = scalar_lea.vmem %s3, 6
      %v1357 = vld [vmem:[%s1356] sm:$0x3]
      %v1359 = vsel %vm237, %v1340, 0
      %v1362 = vsel %vm237, %v1341, 0
      %v1365 = vsel %vm237, %v1342, 0
      %v1368 = vsel %vm237, %v1343, 0
      %v1371 = vsel %vm237, %v1344, 0
      %v1374 = vsel %vm237, %v1345, 0
      %v1377 = vsel %vm237, %v1346, 0
      %v1380 = vsel %vm237, %v1347, 0
      %v1383 = vsel %vm237, %v1348, 0
      %v1386 = vsel %vm237, %v1349, 0
      %v1389 = vsel %vm237, %v1350, 0
      %v1392 = vsel %vm237, %v1351, 0
      %v1395 = vsel %vm237, %v1352, 0
      %v1398 = vsel %vm237, %v1353, 0
      %v1401 = vsel %vm237, %v1354, 0
      %v1404 = vsel %vm237, %v1355, 0
      %v1407 = vsel %vm637, %v1357, 0
      %1409 = vmatprep.subr.bf16.mxu0 0
      %1410 = vmatpush1.bf16.msra.mxu0 %v1407
      %1411 = vmatprep.subr.bf16.mxu0 0
      %1412 = vmatpush1.bf16.msra.mxu0 0
      %1413 = vmatprep.subr.bf16.mxu0 0
      %1414 = vmatpush1.bf16.msra.mxu0 0
      %1415 = vmatprep.subr.bf16.mxu0 0
      %1416 = vmatpush1.bf16.msra.mxu0 0
      %1417 = vmatprep.subr.bf16.mxu0 0
      %1418 = vmatpush1.bf16.msra.mxu0 0
      %1419 = vmatprep.subr.bf16.mxu0 0
      %1420 = vmatpush1.bf16.msra.mxu0 0
      %1421 = vmatprep.subr.bf16.mxu0 0
      %1422 = vmatpush1.bf16.msra.mxu0 0
      %1423 = vmatprep.subr.bf16.mxu0 0
      %1424 = vmatpush1.bf16.msra.mxu0 0
      %1425 = vmatprep.subr.bf16.mxu0 0
      %1426 = vmatpush1.bf16.msra.mxu0 0
      %1427 = vmatprep.subr.bf16.mxu0 0
      %1428 = vmatpush1.bf16.msra.mxu0 0
      %1429 = vmatprep.subr.bf16.mxu0 0
      %1430 = vmatpush1.bf16.msra.mxu0 0
      %1431 = vmatprep.subr.bf16.mxu0 0
      %1432 = vmatpush1.bf16.msra.mxu0 0
      %1433 = vmatprep.subr.bf16.mxu0 0
      %1434 = vmatpush1.bf16.msra.mxu0 0
      %1435 = vmatprep.subr.bf16.mxu0 0
      %1436 = vmatpush1.bf16.msra.mxu0 0
      %1437 = vmatprep.subr.bf16.mxu0 0
      %1438 = vmatpush1.bf16.msra.mxu0 0
      %1439 = vmatprep.subr.bf16.mxu0 0
      %1440 = vmatpush1.bf16.msra.mxu0 0
      %1441 = vmatprep.mubr.bf16.mxu0 0
      %1442 = vmatmul.mubr.bf16.gmra.mrb[0].mxu0 %v1359
      %v1443 = vpop.f32.mrb[0].mxu0
      %v1444 = vadd.f32 0.0, %v1443
      %v1445 = vpop.f32.mrb[0].mxu0
      %v1446 = vpop.f32.mrb[0].mxu0
      %v1447 = vadd.f32 0.0, %v1446
      %v1448 = vpop.f32.mrb[0].mxu0
      %1449 = vmatprep.mubr.bf16.mxu0 0
      %1450 = vmatmul.mubr.bf16.gmra.mrb[0].mxu0 %v1362
      %v1451 = vpop.f32.mrb[0].mxu0
      %v1452 = vadd.f32 0.0, %v1451
      %v1453 = vpop.f32.mrb[0].mxu0
      %v1454 = vpop.f32.mrb[0].mxu0
      %v1455 = vadd.f32 0.0, %v1454
      %v1456 = vpop.f32.mrb[0].mxu0
      %1457 = vmatprep.mubr.bf16.mxu0 0
      %1458 = vmatmul.mubr.bf16.gmra.mrb[0].mxu0 %v1365
      %v1459 = vpop.f32.mrb[0].mxu0
      %v1460 = vadd.f32 0.0, %v1459
      %v1461 = vpop.f32.mrb[0].mxu0
      %v1462 = vpop.f32.mrb[0].mxu0
      %v1463 = vadd.f32 0.0, %v1462
      %v1464 = vpop.f32.mrb[0].mxu0
      %1465 = vmatprep.mubr.bf16.mxu0 0
      %1466 = vmatmul.mubr.bf16.gmra.mrb[0].mxu0 %v1368
      %v1467 = vpop.f32.mrb[0].mxu0
      %v1468 = vadd.f32 0.0, %v1467
      %v1469 = vpop.f32.mrb[0].mxu0
      %v1470 = vpop.f32.mrb[0].mxu0
      %v1471 = vadd.f32 0.0, %v1470
      %v1472 = vpop.f32.mrb[0].mxu0
      %1473 = vmatprep.mubr.bf16.mxu0 0
      %1474 = vmatmul.mubr.bf16.gmra.mrb[0].mxu0 %v1371
      %v1475 = vpop.f32.mrb[0].mxu0
      %v1476 = vadd.f32 0.0, %v1475
      %v1477 = vpop.f32.mrb[0].mxu0
      %v1478 = vpop.f32.mrb[0].mxu0
      %v1479 = vadd.f32 0.0, %v1478
      %v1480 = vpop.f32.mrb[0].mxu0
      %1481 = vmatprep.mubr.bf16.mxu0 0
      %1482 = vmatmul.mubr.bf16.gmra.mrb[0].mxu0 %v1374
      %v1483 = vpop.f32.mrb[0].mxu0
      %v1484 = vadd.f32 0.0, %v1483
      %v1485 = vpop.f32.mrb[0].mxu0
      %v1486 = vpop.f32.mrb[0].mxu0
      %v1487 = vadd.f32 0.0, %v1486
      %v1488 = vpop.f32.mrb[0].mxu0
      %1489 = vmatprep.mubr.bf16.mxu0 0
      %1490 = vmatmul.mubr.bf16.gmra.mrb[0].mxu0 %v1377
      %v1491 = vpop.f32.mrb[0].mxu0
      %v1492 = vadd.f32 0.0, %v1491
      %v1493 = vpop.f32.mrb[0].mxu0
      %v1494 = vpop.f32.mrb[0].mxu0
      %v1495 = vadd.f32 0.0, %v1494
      %v1496 = vpop.f32.mrb[0].mxu0
      %1497 = vmatprep.mubr.bf16.mxu0 0
      %1498 = vmatmul.mubr.bf16.gmra.mrb[0].mxu0 %v1380
      %v1499 = vpop.f32.mrb[0].mxu0
      %v1500 = vadd.f32 0.0, %v1499
      %v1501 = vpop.f32.mrb[0].mxu0
      %v1502 = vpop.f32.mrb[0].mxu0
      %v1503 = vadd.f32 0.0, %v1502
      %v1504 = vpop.f32.mrb[0].mxu0
      %1505 = vmatprep.mubr.bf16.mxu0 0
      %1506 = vmatmul.mubr.bf16.gmra.mrb[0].mxu0 %v1383
      %v1507 = vpop.f32.mrb[0].mxu0
      %v1508 = vadd.f32 0.0, %v1507
      %v1509 = vpop.f32.mrb[0].mxu0
      %v1510 = vpop.f32.mrb[0].mxu0
      %v1511 = vadd.f32 0.0, %v1510
      %v1512 = vpop.f32.mrb[0].mxu0
      %1513 = vmatprep.mubr.bf16.mxu0 0
      %1514 = vmatmul.mubr.bf16.gmra.mrb[0].mxu0 %v1386
      %v1515 = vpop.f32.mrb[0].mxu0
      %v1516 = vadd.f32 0.0, %v1515
      %v1517 = vpop.f32.mrb[0].mxu0
      %v1518 = vpop.f32.mrb[0].mxu0
      %v1519 = vadd.f32 0.0, %v1518
      %v1520 = vpop.f32.mrb[0].mxu0
      %1521 = vmatprep.mubr.bf16.mxu0 0
      %1522 = vmatmul.mubr.bf16.gmra.mrb[0].mxu0 %v1389
      %v1523 = vpop.f32.mrb[0].mxu0
      %v1524 = vadd.f32 0.0, %v1523
      %v1525 = vpop.f32.mrb[0].mxu0
      %v1526 = vpop.f32.mrb[0].mxu0
      %v1527 = vadd.f32 0.0, %v1526
      %v1528 = vpop.f32.mrb[0].mxu0
      %1529 = vmatprep.mubr.bf16.mxu0 0
      %1530 = vmatmul.mubr.bf16.gmra.mrb[0].mxu0 %v1392
      %v1531 = vpop.f32.mrb[0].mxu0
      %v1532 = vadd.f32 0.0, %v1531
      %v1533 = vpop.f32.mrb[0].mxu0
      %v1534 = vpop.f32.mrb[0].mxu0
      %v1535 = vadd.f32 0.0, %v1534
      %v1536 = vpop.f32.mrb[0].mxu0
      %1537 = vmatprep.mubr.bf16.mxu0 0
      %1538 = vmatmul.mubr.bf16.gmra.mrb[0].mxu0 %v1395
      %v1539 = vpop.f32.mrb[0].mxu0
      %v1540 = vadd.f32 0.0, %v1539
      %v1541 = vpop.f32.mrb[0].mxu0
      %v1542 = vpop.f32.mrb[0].mxu0
      %v1543 = vadd.f32 0.0, %v1542
      %v1544 = vpop.f32.mrb[0].mxu0
      %1545 = vmatprep.mubr.bf16.mxu0 0
      %1546 = vmatmul.mubr.bf16.gmra.mrb[0].mxu0 %v1398
      %v1547 = vpop.f32.mrb[0].mxu0
      %v1548 = vadd.f32 0.0, %v1547
      %v1549 = vpop.f32.mrb[0].mxu0
      %v1550 = vpop.f32.mrb[0].mxu0
      %v1551 = vadd.f32 0.0, %v1550
      %v1552 = vpop.f32.mrb[0].mxu0
      %1553 = vmatprep.mubr.bf16.mxu0 0
      %1554 = vmatmul.mubr.bf16.gmra.mrb[0].mxu0 %v1401
      %v1555 = vpop.f32.mrb[0].mxu0
      %v1556 = vadd.f32 0.0, %v1555
      %v1557 = vpop.f32.mrb[0].mxu0
      %v1558 = vpop.f32.mrb[0].mxu0
      %v1559 = vadd.f32 0.0, %v1558
      %v1560 = vpop.f32.mrb[0].mxu0
      %1561 = vmatprep.mubr.bf16.mxu0 0
      %1562 = vmatmul.mubr.bf16.gmra.mrb[0].mxu0 %v1404
      %v1563 = vpop.f32.mrb[0].mxu0
      %v1564 = vadd.f32 0.0, %v1563
      %v1565 = vpop.f32.mrb[0].mxu0
      %v1566 = vpop.f32.mrb[0].mxu0
      %v1567 = vadd.f32 0.0, %v1566
      %v1568 = vpop.f32.mrb[0].mxu0
      %1569 = vdwg.mxu0
      %v1570 = vadd.f32 %v1276, %v1444
      %v1571 = vadd.f32 %v1277, %v1447
      %v1572 = vadd.f32 %v1278, %v1452
      %v1573 = vadd.f32 %v1279, %v1455
      %v1574 = vadd.f32 %v1280, %v1460
      %v1575 = vadd.f32 %v1281, %v1463
      %v1576 = vadd.f32 %v1282, %v1468
      %v1577 = vadd.f32 %v1283, %v1471
      %v1578 = vadd.f32 %v1284, %v1476
      %v1579 = vadd.f32 %v1285, %v1479
      %v1580 = vadd.f32 %v1286, %v1484
      %v1581 = vadd.f32 %v1287, %v1487
      %v1582 = vadd.f32 %v1288, %v1492
      %v1583 = vadd.f32 %v1289, %v1495
      %v1584 = vadd.f32 %v1290, %v1500
      %v1585 = vadd.f32 %v1291, %v1503
      %v1586 = vadd.f32 %v1292, %v1508
      %v1587 = vadd.f32 %v1293, %v1511
      %v1588 = vadd.f32 %v1294, %v1516
      %v1589 = vadd.f32 %v1295, %v1519
      %v1590 = vadd.f32 %v1296, %v1524
      %v1591 = vadd.f32 %v1297, %v1527
      %v1592 = vadd.f32 %v1298, %v1532
      %v1593 = vadd.f32 %v1299, %v1535
      %v1594 = vadd.f32 %v1300, %v1540
      %v1595 = vadd.f32 %v1301, %v1543
      %v1596 = vadd.f32 %v1302, %v1548
      %v1597 = vadd.f32 %v1303, %v1551
      %v1598 = vadd.f32 %v1304, %v1556
      %v1599 = vadd.f32 %v1305, %v1559
      %v1600 = vadd.f32 %v1306, %v1564
      %v1601 = vadd.f32 %v1307, %v1567
      %v1602 = vld [vmem:[%s457 + $0x1] sm:$0xff]
      %v1603 = vld [vmem:[%s457 + $0x9] sm:$0xff]
      %v1604 = vld [vmem:[%s457 + $0x19] sm:$0xff]
      %v1605 = vld [vmem:[%s457 + $0x21] sm:$0xff]
      %v1606 = vld [vmem:[%s457 + $0x31] sm:$0xff]
      %v1607 = vld [vmem:[%s457 + $0x39] sm:$0xff]
      %v1608 = vld [vmem:[%s457 + $0x49] sm:$0xff]
      %v1609 = vld [vmem:[%s457 + $0x51] sm:$0xff]
      %v1610 = vld [vmem:[%s457 + $0x61] sm:$0xff]
      %v1611 = vld [vmem:[%s457 + $0x69] sm:$0xff]
      %v1612 = vld [vmem:[%s457 + $0x79] sm:$0xff]
      %v1613 = vld [vmem:[%s457 + $0x81] sm:$0xff]
      %v1614 = vld [vmem:[%s457 + $0x91] sm:$0xff]
      %v1615 = vld [vmem:[%s457 + $0x99] sm:$0xff]
      %v1616 = vld [vmem:[%s457 + $0xa9] sm:$0xff]
      %v1617 = vld [vmem:[%s457 + $0xb1] sm:$0xff]
      %v1618 = vld [vmem:[%s457 + $0xc1] sm:$0xff]
      %v1619 = vld [vmem:[%s457 + $0xc9] sm:$0xff]
      %v1620 = vld [vmem:[%s457 + $0xd9] sm:$0xff]
      %v1621 = vld [vmem:[%s457 + $0xe1] sm:$0xff]
      %v1622 = vld [vmem:[%s457 + $0xf1] sm:$0xff]
      %v1623 = vld [vmem:[%s457 + $0xf9] sm:$0xff]
      %v1624 = vld [vmem:[%s457 + $0x109] sm:$0xff]
      %v1625 = vld [vmem:[%s457 + $0x111] sm:$0xff]
      %v1626 = vld [vmem:[%s457 + $0x121] sm:$0xff]
      %v1627 = vld [vmem:[%s457 + $0x129] sm:$0xff]
      %v1628 = vld [vmem:[%s457 + $0x139] sm:$0xff]
      %v1629 = vld [vmem:[%s457 + $0x141] sm:$0xff]
      %v1630 = vld [vmem:[%s457 + $0x151] sm:$0xff]
      %v1631 = vld [vmem:[%s457 + $0x159] sm:$0xff]
      %v1632 = vld [vmem:[%s457 + $0x169] sm:$0xff]
      %v1633 = vld [vmem:[%s457 + $0x171] sm:$0xff]
      %v1634 = vpack.c.bf16 %v1603, %v1602
      %v1635 = vpack.c.bf16 %v1605, %v1604
      %v1636 = vpack.c.bf16 %v1607, %v1606
      %v1637 = vpack.c.bf16 %v1609, %v1608
      %v1638 = vpack.c.bf16 %v1611, %v1610
      %v1639 = vpack.c.bf16 %v1613, %v1612
      %v1640 = vpack.c.bf16 %v1615, %v1614
      %v1641 = vpack.c.bf16 %v1617, %v1616
      %v1642 = vpack.c.bf16 %v1619, %v1618
      %v1643 = vpack.c.bf16 %v1621, %v1620
      %v1644 = vpack.c.bf16 %v1623, %v1622
      %v1645 = vpack.c.bf16 %v1625, %v1624
      %v1646 = vpack.c.bf16 %v1627, %v1626
      %v1647 = vpack.c.bf16 %v1629, %v1628
      %v1648 = vpack.c.bf16 %v1631, %v1630
      %v1649 = vpack.c.bf16 %v1633, %v1632
      %s1650 = scalar_lea.vmem %s3, 8
      %v1651 = vld [vmem:[%s1650] sm:$0x3]
      %v1653 = vsel %vm237, %v1634, 0
      %v1656 = vsel %vm237, %v1635, 0
      %v1659 = vsel %vm237, %v1636, 0
      %v1662 = vsel %vm237, %v1637, 0
      %v1665 = vsel %vm237, %v1638, 0
      %v1668 = vsel %vm237, %v1639, 0
      %v1671 = vsel %vm237, %v1640, 0
      %v1674 = vsel %vm237, %v1641, 0
      %v1677 = vsel %vm237, %v1642, 0
      %v1680 = vsel %vm237, %v1643, 0
      %v1683 = vsel %vm237, %v1644, 0
      %v1686 = vsel %vm237, %v1645, 0
      %v1689 = vsel %vm237, %v1646, 0
      %v1692 = vsel %vm237, %v1647, 0
      %v1695 = vsel %vm237, %v1648, 0
      %v1698 = vsel %vm237, %v1649, 0
      %v1701 = vsel %vm637, %v1651, 0
      %1703 = vmatprep.subr.bf16.mxu0 0
      %1704 = vmatpush1.bf16.msra.mxu0 %v1701
      %1705 = vmatprep.subr.bf16.mxu0 0
      %1706 = vmatpush1.bf16.msra.mxu0 0
      %1707 = vmatprep.subr.bf16.mxu0 0
      %1708 = vmatpush1.bf16.msra.mxu0 0
      %1709 = vmatprep.subr.bf16.mxu0 0
      %1710 = vmatpush1.bf16.msra.mxu0 0
      %1711 = vmatprep.subr.bf16.mxu0 0
      %1712 = vmatpush1.bf16.msra.mxu0 0
      %1713 = vmatprep.subr.bf16.mxu0 0
      %1714 = vmatpush1.bf16.msra.mxu0 0
      %1715 = vmatprep.subr.bf16.mxu0 0
      %1716 = vmatpush1.bf16.msra.mxu0 0
      %1717 = vmatprep.subr.bf16.mxu0 0
      %1718 = vmatpush1.bf16.msra.mxu0 0
      %1719 = vmatprep.subr.bf16.mxu0 0
      %1720 = vmatpush1.bf16.msra.mxu0 0
      %1721 = vmatprep.subr.bf16.mxu0 0
      %1722 = vmatpush1.bf16.msra.mxu0 0
      %1723 = vmatprep.subr.bf16.mxu0 0
      %1724 = vmatpush1.bf16.msra.mxu0 0
      %1725 = vmatprep.subr.bf16.mxu0 0
      %1726 = vmatpush1.bf16.msra.mxu0 0
      %1727 = vmatprep.subr.bf16.mxu0 0
      %1728 = vmatpush1.bf16.msra.mxu0 0
      %1729 = vmatprep.subr.bf16.mxu0 0
      %1730 = vmatpush1.bf16.msra.mxu0 0
      %1731 = vmatprep.subr.bf16.mxu0 0
      %1732 = vmatpush1.bf16.msra.mxu0 0
      %1733 = vmatprep.subr.bf16.mxu0 0
      %1734 = vmatpush1.bf16.msra.mxu0 0
      %1735 = vmatprep.mubr.bf16.mxu0 0
      %1736 = vmatmul.mubr.bf16.gmra.mrb[0].mxu0 %v1653
      %v1737 = vpop.f32.mrb[0].mxu0
      %v1738 = vadd.f32 0.0, %v1737
      %v1739 = vpop.f32.mrb[0].mxu0
      %v1740 = vpop.f32.mrb[0].mxu0
      %v1741 = vadd.f32 0.0, %v1740
      %v1742 = vpop.f32.mrb[0].mxu0
      %1743 = vmatprep.mubr.bf16.mxu0 0
      %1744 = vmatmul.mubr.bf16.gmra.mrb[0].mxu0 %v1656
      %v1745 = vpop.f32.mrb[0].mxu0
      %v1746 = vadd.f32 0.0, %v1745
      %v1747 = vpop.f32.mrb[0].mxu0
      %v1748 = vpop.f32.mrb[0].mxu0
      %v1749 = vadd.f32 0.0, %v1748
      %v1750 = vpop.f32.mrb[0].mxu0
      %1751 = vmatprep.mubr.bf16.mxu0 0
      %1752 = vmatmul.mubr.bf16.gmra.mrb[0].mxu0 %v1659
      %v1753 = vpop.f32.mrb[0].mxu0
      %v1754 = vadd.f32 0.0, %v1753
      %v1755 = vpop.f32.mrb[0].mxu0
      %v1756 = vpop.f32.mrb[0].mxu0
      %v1757 = vadd.f32 0.0, %v1756
      %v1758 = vpop.f32.mrb[0].mxu0
      %1759 = vmatprep.mubr.bf16.mxu0 0
      %1760 = vmatmul.mubr.bf16.gmra.mrb[0].mxu0 %v1662
      %v1761 = vpop.f32.mrb[0].mxu0
      %v1762 = vadd.f32 0.0, %v1761
      %v1763 = vpop.f32.mrb[0].mxu0
      %v1764 = vpop.f32.mrb[0].mxu0
      %v1765 = vadd.f32 0.0, %v1764
      %v1766 = vpop.f32.mrb[0].mxu0
      %1767 = vmatprep.mubr.bf16.mxu0 0
      %1768 = vmatmul.mubr.bf16.gmra.mrb[0].mxu0 %v1665
      %v1769 = vpop.f32.mrb[0].mxu0
      %v1770 = vadd.f32 0.0, %v1769
      %v1771 = vpop.f32.mrb[0].mxu0
      %v1772 = vpop.f32.mrb[0].mxu0
      %v1773 = vadd.f32 0.0, %v1772
      %v1774 = vpop.f32.mrb[0].mxu0
      %1775 = vmatprep.mubr.bf16.mxu0 0
      %1776 = vmatmul.mubr.bf16.gmra.mrb[0].mxu0 %v1668
      %v1777 = vpop.f32.mrb[0].mxu0
      %v1778 = vadd.f32 0.0, %v1777
      %v1779 = vpop.f32.mrb[0].mxu0
      %v1780 = vpop.f32.mrb[0].mxu0
      %v1781 = vadd.f32 0.0, %v1780
      %v1782 = vpop.f32.mrb[0].mxu0
      %1783 = vmatprep.mubr.bf16.mxu0 0
      %1784 = vmatmul.mubr.bf16.gmra.mrb[0].mxu0 %v1671
      %v1785 = vpop.f32.mrb[0].mxu0
      %v1786 = vadd.f32 0.0, %v1785
      %v1787 = vpop.f32.mrb[0].mxu0
      %v1788 = vpop.f32.mrb[0].mxu0
      %v1789 = vadd.f32 0.0, %v1788
      %v1790 = vpop.f32.mrb[0].mxu0
      %1791 = vmatprep.mubr.bf16.mxu0 0
      %1792 = vmatmul.mubr.bf16.gmra.mrb[0].mxu0 %v1674
      %v1793 = vpop.f32.mrb[0].mxu0
      %v1794 = vadd.f32 0.0, %v1793
      %v1795 = vpop.f32.mrb[0].mxu0
      %v1796 = vpop.f32.mrb[0].mxu0
      %v1797 = vadd.f32 0.0, %v1796
      %v1798 = vpop.f32.mrb[0].mxu0
      %1799 = vmatprep.mubr.bf16.mxu0 0
      %1800 = vmatmul.mubr.bf16.gmra.mrb[0].mxu0 %v1677
      %v1801 = vpop.f32.mrb[0].mxu0
      %v1802 = vadd.f32 0.0, %v1801
      %v1803 = vpop.f32.mrb[0].mxu0
      %v1804 = vpop.f32.mrb[0].mxu0
      %v1805 = vadd.f32 0.0, %v1804
      %v1806 = vpop.f32.mrb[0].mxu0
      %1807 = vmatprep.mubr.bf16.mxu0 0
      %1808 = vmatmul.mubr.bf16.gmra.mrb[0].mxu0 %v1680
      %v1809 = vpop.f32.mrb[0].mxu0
      %v1810 = vadd.f32 0.0, %v1809
      %v1811 = vpop.f32.mrb[0].mxu0
      %v1812 = vpop.f32.mrb[0].mxu0
      %v1813 = vadd.f32 0.0, %v1812
      %v1814 = vpop.f32.mrb[0].mxu0
      %1815 = vmatprep.mubr.bf16.mxu0 0
      %1816 = vmatmul.mubr.bf16.gmra.mrb[0].mxu0 %v1683
      %v1817 = vpop.f32.mrb[0].mxu0
      %v1818 = vadd.f32 0.0, %v1817
      %v1819 = vpop.f32.mrb[0].mxu0
      %v1820 = vpop.f32.mrb[0].mxu0
      %v1821 = vadd.f32 0.0, %v1820
      %v1822 = vpop.f32.mrb[0].mxu0
      %1823 = vmatprep.mubr.bf16.mxu0 0
      %1824 = vmatmul.mubr.bf16.gmra.mrb[0].mxu0 %v1686
      %v1825 = vpop.f32.mrb[0].mxu0
      %v1826 = vadd.f32 0.0, %v1825
      %v1827 = vpop.f32.mrb[0].mxu0
      %v1828 = vpop.f32.mrb[0].mxu0
      %v1829 = vadd.f32 0.0, %v1828
      %v1830 = vpop.f32.mrb[0].mxu0
      %1831 = vmatprep.mubr.bf16.mxu0 0
      %1832 = vmatmul.mubr.bf16.gmra.mrb[0].mxu0 %v1689
      %v1833 = vpop.f32.mrb[0].mxu0
      %v1834 = vadd.f32 0.0, %v1833
      %v1835 = vpop.f32.mrb[0].mxu0
      %v1836 = vpop.f32.mrb[0].mxu0
      %v1837 = vadd.f32 0.0, %v1836
      %v1838 = vpop.f32.mrb[0].mxu0
      %1839 = vmatprep.mubr.bf16.mxu0 0
      %1840 = vmatmul.mubr.bf16.gmra.mrb[0].mxu0 %v1692
      %v1841 = vpop.f32.mrb[0].mxu0
      %v1842 = vadd.f32 0.0, %v1841
      %v1843 = vpop.f32.mrb[0].mxu0
      %v1844 = vpop.f32.mrb[0].mxu0
      %v1845 = vadd.f32 0.0, %v1844
      %v1846 = vpop.f32.mrb[0].mxu0
      %1847 = vmatprep.mubr.bf16.mxu0 0
      %1848 = vmatmul.mubr.bf16.gmra.mrb[0].mxu0 %v1695
      %v1849 = vpop.f32.mrb[0].mxu0
      %v1850 = vadd.f32 0.0, %v1849
      %v1851 = vpop.f32.mrb[0].mxu0
      %v1852 = vpop.f32.mrb[0].mxu0
      %v1853 = vadd.f32 0.0, %v1852
      %v1854 = vpop.f32.mrb[0].mxu0
      %1855 = vmatprep.mubr.bf16.mxu0 0
      %1856 = vmatmul.mubr.bf16.gmra.mrb[0].mxu0 %v1698
      %v1857 = vpop.f32.mrb[0].mxu0
      %v1858 = vadd.f32 0.0, %v1857
      %v1859 = vpop.f32.mrb[0].mxu0
      %v1860 = vpop.f32.mrb[0].mxu0
      %v1861 = vadd.f32 0.0, %v1860
      %v1862 = vpop.f32.mrb[0].mxu0
      %1863 = vdwg.mxu0
      %v1864 = vadd.f32 %v1570, %v1738
      %v1865 = vadd.f32 %v1571, %v1741
      %v1866 = vadd.f32 %v1572, %v1746
      %v1867 = vadd.f32 %v1573, %v1749
      %v1868 = vadd.f32 %v1574, %v1754
      %v1869 = vadd.f32 %v1575, %v1757
      %v1870 = vadd.f32 %v1576, %v1762
      %v1871 = vadd.f32 %v1577, %v1765
      %v1872 = vadd.f32 %v1578, %v1770
      %v1873 = vadd.f32 %v1579, %v1773
      %v1874 = vadd.f32 %v1580, %v1778
      %v1875 = vadd.f32 %v1581, %v1781
      %v1876 = vadd.f32 %v1582, %v1786
      %v1877 = vadd.f32 %v1583, %v1789
      %v1878 = vadd.f32 %v1584, %v1794
      %v1879 = vadd.f32 %v1585, %v1797
      %v1880 = vadd.f32 %v1586, %v1802
      %v1881 = vadd.f32 %v1587, %v1805
      %v1882 = vadd.f32 %v1588, %v1810
      %v1883 = vadd.f32 %v1589, %v1813
      %v1884 = vadd.f32 %v1590, %v1818
      %v1885 = vadd.f32 %v1591, %v1821
      %v1886 = vadd.f32 %v1592, %v1826
      %v1887 = vadd.f32 %v1593, %v1829
      %v1888 = vadd.f32 %v1594, %v1834
      %v1889 = vadd.f32 %v1595, %v1837
      %v1890 = vadd.f32 %v1596, %v1842
      %v1891 = vadd.f32 %v1597, %v1845
      %v1892 = vadd.f32 %v1598, %v1850
      %v1893 = vadd.f32 %v1599, %v1853
      %v1894 = vadd.f32 %v1600, %v1858
      %v1895 = vadd.f32 %v1601, %v1861
      %v1896 = vld [vmem:[%s457 + $0x2] sm:$0xff]
      %v1897 = vld [vmem:[%s457 + $0xa] sm:$0xff]
      %v1898 = vld [vmem:[%s457 + $0x1a] sm:$0xff]
      %v1899 = vld [vmem:[%s457 + $0x22] sm:$0xff]
      %v1900 = vld [vmem:[%s457 + $0x32] sm:$0xff]
      %v1901 = vld [vmem:[%s457 + $0x3a] sm:$0xff]
      %v1902 = vld [vmem:[%s457 + $0x4a] sm:$0xff]
      %v1903 = vld [vmem:[%s457 + $0x52] sm:$0xff]
      %v1904 = vld [vmem:[%s457 + $0x62] sm:$0xff]
      %v1905 = vld [vmem:[%s457 + $0x6a] sm:$0xff]
      %v1906 = vld [vmem:[%s457 + $0x7a] sm:$0xff]
      %v1907 = vld [vmem:[%s457 + $0x82] sm:$0xff]
      %v1908 = vld [vmem:[%s457 + $0x92] sm:$0xff]
      %v1909 = vld [vmem:[%s457 + $0x9a] sm:$0xff]
      %v1910 = vld [vmem:[%s457 + $0xaa] sm:$0xff]
      %v1911 = vld [vmem:[%s457 + $0xb2] sm:$0xff]
      %v1912 = vld [vmem:[%s457 + $0xc2] sm:$0xff]
      %v1913 = vld [vmem:[%s457 + $0xca] sm:$0xff]
      %v1914 = vld [vmem:[%s457 + $0xda] sm:$0xff]
      %v1915 = vld [vmem:[%s457 + $0xe2] sm:$0xff]
      %v1916 = vld [vmem:[%s457 + $0xf2] sm:$0xff]
      %v1917 = vld [vmem:[%s457 + $0xfa] sm:$0xff]
      %v1918 = vld [vmem:[%s457 + $0x10a] sm:$0xff]
      %v1919 = vld [vmem:[%s457 + $0x112] sm:$0xff]
      %v1920 = vld [vmem:[%s457 + $0x122] sm:$0xff]
      %v1921 = vld [vmem:[%s457 + $0x12a] sm:$0xff]
      %v1922 = vld [vmem:[%s457 + $0x13a] sm:$0xff]
      %v1923 = vld [vmem:[%s457 + $0x142] sm:$0xff]
      %v1924 = vld [vmem:[%s457 + $0x152] sm:$0xff]
      %v1925 = vld [vmem:[%s457 + $0x15a] sm:$0xff]
      %v1926 = vld [vmem:[%s457 + $0x16a] sm:$0xff]
      %v1927 = vld [vmem:[%s457 + $0x172] sm:$0xff]
      %v1928 = vpack.c.bf16 %v1897, %v1896
      %v1929 = vpack.c.bf16 %v1899, %v1898
      %v1930 = vpack.c.bf16 %v1901, %v1900
      %v1931 = vpack.c.bf16 %v1903, %v1902
      %v1932 = vpack.c.bf16 %v1905, %v1904
      %v1933 = vpack.c.bf16 %v1907, %v1906
      %v1934 = vpack.c.bf16 %v1909, %v1908
      %v1935 = vpack.c.bf16 %v1911, %v1910
      %v1936 = vpack.c.bf16 %v1913, %v1912
      %v1937 = vpack.c.bf16 %v1915, %v1914
      %v1938 = vpack.c.bf16 %v1917, %v1916
      %v1939 = vpack.c.bf16 %v1919, %v1918
      %v1940 = vpack.c.bf16 %v1921, %v1920
      %v1941 = vpack.c.bf16 %v1923, %v1922
      %v1942 = vpack.c.bf16 %v1925, %v1924
      %v1943 = vpack.c.bf16 %v1927, %v1926
      %s1944 = scalar_lea.vmem %s3, 10
      %v1945 = vld [vmem:[%s1944] sm:$0x3]
      %v1947 = vsel %vm237, %v1928, 0
      %v1950 = vsel %vm237, %v1929, 0
      %v1953 = vsel %vm237, %v1930, 0
      %v1956 = vsel %vm237, %v1931, 0
      %v1959 = vsel %vm237, %v1932, 0
      %v1962 = vsel %vm237, %v1933, 0
      %v1965 = vsel %vm237, %v1934, 0
      %v1968 = vsel %vm237, %v1935, 0
      %v1971 = vsel %vm237, %v1936, 0
      %v1974 = vsel %vm237, %v1937, 0
      %v1977 = vsel %vm237, %v1938, 0
      %v1980 = vsel %vm237, %v1939, 0
      %v1983 = vsel %vm237, %v1940, 0
      %v1986 = vsel %vm237, %v1941, 0
      %v1989 = vsel %vm237, %v1942, 0
      %v1992 = vsel %vm237, %v1943, 0
      %v1995 = vsel %vm637, %v1945, 0
      %1997 = vmatprep.subr.bf16.mxu0 0
      %1998 = vmatpush1.bf16.msra.mxu0 %v1995
      %1999 = vmatprep.subr.bf16.mxu0 0
      %2000 = vmatpush1.bf16.msra.mxu0 0
      %2001 = vmatprep.subr.bf16.mxu0 0
      %2002 = vmatpush1.bf16.msra.mxu0 0
      %2003 = vmatprep.subr.bf16.mxu0 0
      %2004 = vmatpush1.bf16.msra.mxu0 0
      %2005 = vmatprep.subr.bf16.mxu0 0
      %2006 = vmatpush1.bf16.msra.mxu0 0
      %2007 = vmatprep.subr.bf16.mxu0 0
      %2008 = vmatpush1.bf16.msra.mxu0 0
      %2009 = vmatprep.subr.bf16.mxu0 0
      %2010 = vmatpush1.bf16.msra.mxu0 0
      %2011 = vmatprep.subr.bf16.mxu0 0
      %2012 = vmatpush1.bf16.msra.mxu0 0
      %2013 = vmatprep.subr.bf16.mxu0 0
      %2014 = vmatpush1.bf16.msra.mxu0 0
      %2015 = vmatprep.subr.bf16.mxu0 0
      %2016 = vmatpush1.bf16.msra.mxu0 0
      %2017 = vmatprep.subr.bf16.mxu0 0
      %2018 = vmatpush1.bf16.msra.mxu0 0
      %2019 = vmatprep.subr.bf16.mxu0 0
      %2020 = vmatpush1.bf16.msra.mxu0 0
      %2021 = vmatprep.subr.bf16.mxu0 0
      %2022 = vmatpush1.bf16.msra.mxu0 0
      %2023 = vmatprep.subr.bf16.mxu0 0
      %2024 = vmatpush1.bf16.msra.mxu0 0
      %2025 = vmatprep.subr.bf16.mxu0 0
      %2026 = vmatpush1.bf16.msra.mxu0 0
      %2027 = vmatprep.subr.bf16.mxu0 0
      %2028 = vmatpush1.bf16.msra.mxu0 0
      %2029 = vmatprep.mubr.bf16.mxu0 0
      %2030 = vmatmul.mubr.bf16.gmra.mrb[0].mxu0 %v1947
      %v2031 = vpop.f32.mrb[0].mxu0
      %v2032 = vadd.f32 0.0, %v2031
      %v2033 = vpop.f32.mrb[0].mxu0
      %v2034 = vpop.f32.mrb[0].mxu0
      %v2035 = vadd.f32 0.0, %v2034
      %v2036 = vpop.f32.mrb[0].mxu0
      %2037 = vmatprep.mubr.bf16.mxu0 0
      %2038 = vmatmul.mubr.bf16.gmra.mrb[0].mxu0 %v1950
      %v2039 = vpop.f32.mrb[0].mxu0
      %v2040 = vadd.f32 0.0, %v2039
      %v2041 = vpop.f32.mrb[0].mxu0
      %v2042 = vpop.f32.mrb[0].mxu0
      %v2043 = vadd.f32 0.0, %v2042
      %v2044 = vpop.f32.mrb[0].mxu0
      %2045 = vmatprep.mubr.bf16.mxu0 0
      %2046 = vmatmul.mubr.bf16.gmra.mrb[0].mxu0 %v1953
      %v2047 = vpop.f32.mrb[0].mxu0
      %v2048 = vadd.f32 0.0, %v2047
      %v2049 = vpop.f32.mrb[0].mxu0
      %v2050 = vpop.f32.mrb[0].mxu0
      %v2051 = vadd.f32 0.0, %v2050
      %v2052 = vpop.f32.mrb[0].mxu0
      %2053 = vmatprep.mubr.bf16.mxu0 0
      %2054 = vmatmul.mubr.bf16.gmra.mrb[0].mxu0 %v1956
      %v2055 = vpop.f32.mrb[0].mxu0
      %v2056 = vadd.f32 0.0, %v2055
      %v2057 = vpop.f32.mrb[0].mxu0
      %v2058 = vpop.f32.mrb[0].mxu0
      %v2059 = vadd.f32 0.0, %v2058
      %v2060 = vpop.f32.mrb[0].mxu0
      %2061 = vmatprep.mubr.bf16.mxu0 0
      %2062 = vmatmul.mubr.bf16.gmra.mrb[0].mxu0 %v1959
      %v2063 = vpop.f32.mrb[0].mxu0
      %v2064 = vadd.f32 0.0, %v2063
      %v2065 = vpop.f32.mrb[0].mxu0
      %v2066 = vpop.f32.mrb[0].mxu0
      %v2067 = vadd.f32 0.0, %v2066
      %v2068 = vpop.f32.mrb[0].mxu0
      %2069 = vmatprep.mubr.bf16.mxu0 0
      %2070 = vmatmul.mubr.bf16.gmra.mrb[0].mxu0 %v1962
      %v2071 = vpop.f32.mrb[0].mxu0
      %v2072 = vadd.f32 0.0, %v2071
      %v2073 = vpop.f32.mrb[0].mxu0
      %v2074 = vpop.f32.mrb[0].mxu0
      %v2075 = vadd.f32 0.0, %v2074
      %v2076 = vpop.f32.mrb[0].mxu0
      %2077 = vmatprep.mubr.bf16.mxu0 0
      %2078 = vmatmul.mubr.bf16.gmra.mrb[0].mxu0 %v1965
      %v2079 = vpop.f32.mrb[0].mxu0
      %v2080 = vadd.f32 0.0, %v2079
      %v2081 = vpop.f32.mrb[0].mxu0
      %v2082 = vpop.f32.mrb[0].mxu0
      %v2083 = vadd.f32 0.0, %v2082
      %v2084 = vpop.f32.mrb[0].mxu0
      %2085 = vmatprep.mubr.bf16.mxu0 0
      %2086 = vmatmul.mubr.bf16.gmra.mrb[0].mxu0 %v1968
      %v2087 = vpop.f32.mrb[0].mxu0
      %v2088 = vadd.f32 0.0, %v2087
      %v2089 = vpop.f32.mrb[0].mxu0
      %v2090 = vpop.f32.mrb[0].mxu0
      %v2091 = vadd.f32 0.0, %v2090
      %v2092 = vpop.f32.mrb[0].mxu0
      %2093 = vmatprep.mubr.bf16.mxu0 0
      %2094 = vmatmul.mubr.bf16.gmra.mrb[0].mxu0 %v1971
      %v2095 = vpop.f32.mrb[0].mxu0
      %v2096 = vadd.f32 0.0, %v2095
      %v2097 = vpop.f32.mrb[0].mxu0
      %v2098 = vpop.f32.mrb[0].mxu0
      %v2099 = vadd.f32 0.0, %v2098
      %v2100 = vpop.f32.mrb[0].mxu0
      %2101 = vmatprep.mubr.bf16.mxu0 0
      %2102 = vmatmul.mubr.bf16.gmra.mrb[0].mxu0 %v1974
      %v2103 = vpop.f32.mrb[0].mxu0
      %v2104 = vadd.f32 0.0, %v2103
      %v2105 = vpop.f32.mrb[0].mxu0
      %v2106 = vpop.f32.mrb[0].mxu0
      %v2107 = vadd.f32 0.0, %v2106
      %v2108 = vpop.f32.mrb[0].mxu0
      %2109 = vmatprep.mubr.bf16.mxu0 0
      %2110 = vmatmul.mubr.bf16.gmra.mrb[0].mxu0 %v1977
      %v2111 = vpop.f32.mrb[0].mxu0
      %v2112 = vadd.f32 0.0, %v2111
      %v2113 = vpop.f32.mrb[0].mxu0
      %v2114 = vpop.f32.mrb[0].mxu0
      %v2115 = vadd.f32 0.0, %v2114
      %v2116 = vpop.f32.mrb[0].mxu0
      %2117 = vmatprep.mubr.bf16.mxu0 0
      %2118 = vmatmul.mubr.bf16.gmra.mrb[0].mxu0 %v1980
      %v2119 = vpop.f32.mrb[0].mxu0
      %v2120 = vadd.f32 0.0, %v2119
      %v2121 = vpop.f32.mrb[0].mxu0
      %v2122 = vpop.f32.mrb[0].mxu0
      %v2123 = vadd.f32 0.0, %v2122
      %v2124 = vpop.f32.mrb[0].mxu0
      %2125 = vmatprep.mubr.bf16.mxu0 0
      %2126 = vmatmul.mubr.bf16.gmra.mrb[0].mxu0 %v1983
      %v2127 = vpop.f32.mrb[0].mxu0
      %v2128 = vadd.f32 0.0, %v2127
      %v2129 = vpop.f32.mrb[0].mxu0
      %v2130 = vpop.f32.mrb[0].mxu0
      %v2131 = vadd.f32 0.0, %v2130
      %v2132 = vpop.f32.mrb[0].mxu0
      %2133 = vmatprep.mubr.bf16.mxu0 0
      %2134 = vmatmul.mubr.bf16.gmra.mrb[0].mxu0 %v1986
      %v2135 = vpop.f32.mrb[0].mxu0
      %v2136 = vadd.f32 0.0, %v2135
      %v2137 = vpop.f32.mrb[0].mxu0
      %v2138 = vpop.f32.mrb[0].mxu0
      %v2139 = vadd.f32 0.0, %v2138
      %v2140 = vpop.f32.mrb[0].mxu0
      %2141 = vmatprep.mubr.bf16.mxu0 0
      %2142 = vmatmul.mubr.bf16.gmra.mrb[0].mxu0 %v1989
      %v2143 = vpop.f32.mrb[0].mxu0
      %v2144 = vadd.f32 0.0, %v2143
      %v2145 = vpop.f32.mrb[0].mxu0
      %v2146 = vpop.f32.mrb[0].mxu0
      %v2147 = vadd.f32 0.0, %v2146
      %v2148 = vpop.f32.mrb[0].mxu0
      %2149 = vmatprep.mubr.bf16.mxu0 0
      %2150 = vmatmul.mubr.bf16.gmra.mrb[0].mxu0 %v1992
      %v2151 = vpop.f32.mrb[0].mxu0
      %v2152 = vadd.f32 0.0, %v2151
      %v2153 = vpop.f32.mrb[0].mxu0
      %v2154 = vpop.f32.mrb[0].mxu0
      %v2155 = vadd.f32 0.0, %v2154
      %v2156 = vpop.f32.mrb[0].mxu0
      %2157 = vdwg.mxu0
      %v2158 = vadd.f32 %v1864, %v2032
      %v2159 = vadd.f32 %v1865, %v2035
      %v2160 = vadd.f32 %v1866, %v2040
      %v2161 = vadd.f32 %v1867, %v2043
      %v2162 = vadd.f32 %v1868, %v2048
      %v2163 = vadd.f32 %v1869, %v2051
      %v2164 = vadd.f32 %v1870, %v2056
      %v2165 = vadd.f32 %v1871, %v2059
      %v2166 = vadd.f32 %v1872, %v2064
      %v2167 = vadd.f32 %v1873, %v2067
      %v2168 = vadd.f32 %v1874, %v2072
      %v2169 = vadd.f32 %v1875, %v2075
      %v2170 = vadd.f32 %v1876, %v2080
      %v2171 = vadd.f32 %v1877, %v2083
      %v2172 = vadd.f32 %v1878, %v2088
      %v2173 = vadd.f32 %v1879, %v2091
      %v2174 = vadd.f32 %v1880, %v2096
      %v2175 = vadd.f32 %v1881, %v2099
      %v2176 = vadd.f32 %v1882, %v2104
      %v2177 = vadd.f32 %v1883, %v2107
      %v2178 = vadd.f32 %v1884, %v2112
      %v2179 = vadd.f32 %v1885, %v2115
      %v2180 = vadd.f32 %v1886, %v2120
      %v2181 = vadd.f32 %v1887, %v2123
      %v2182 = vadd.f32 %v1888, %v2128
      %v2183 = vadd.f32 %v1889, %v2131
      %v2184 = vadd.f32 %v1890, %v2136
      %v2185 = vadd.f32 %v1891, %v2139
      %v2186 = vadd.f32 %v1892, %v2144
      %v2187 = vadd.f32 %v1893, %v2147
      %v2188 = vadd.f32 %v1894, %v2152
      %v2189 = vadd.f32 %v1895, %v2155
      %s2190 = scalar_lea.vmem [#allocation2], 48
      %v2191 = vld [vmem:[%s2190] sm:$0xff]
      %v2192 = vld [vmem:[%s2190 + $0x8] sm:$0xff]
      %v2193 = vld [vmem:[%s2190 + $0x18] sm:$0xff]
      %v2194 = vld [vmem:[%s2190 + $0x20] sm:$0xff]
      %v2195 = vld [vmem:[%s2190 + $0x30] sm:$0xff]
      %v2196 = vld [vmem:[%s2190 + $0x38] sm:$0xff]
      %v2197 = vld [vmem:[%s2190 + $0x48] sm:$0xff]
      %v2198 = vld [vmem:[%s2190 + $0x50] sm:$0xff]
      %v2199 = vld [vmem:[%s2190 + $0x60] sm:$0xff]
      %v2200 = vld [vmem:[%s2190 + $0x68] sm:$0xff]
      %v2201 = vld [vmem:[%s2190 + $0x78] sm:$0xff]
      %v2202 = vld [vmem:[%s2190 + $0x80] sm:$0xff]
      %v2203 = vld [vmem:[%s2190 + $0x90] sm:$0xff]
      %v2204 = vld [vmem:[%s2190 + $0x98] sm:$0xff]
      %v2205 = vld [vmem:[%s2190 + $0xa8] sm:$0xff]
      %v2206 = vld [vmem:[%s2190 + $0xb0] sm:$0xff]
      %v2207 = vld [vmem:[%s2190 + $0xc0] sm:$0xff]
      %v2208 = vld [vmem:[%s2190 + $0xc8] sm:$0xff]
      %v2209 = vld [vmem:[%s2190 + $0xd8] sm:$0xff]
      %v2210 = vld [vmem:[%s2190 + $0xe0] sm:$0xff]
      %v2211 = vld [vmem:[%s2190 + $0xf0] sm:$0xff]
      %v2212 = vld [vmem:[%s2190 + $0xf8] sm:$0xff]
      %v2213 = vld [vmem:[%s2190 + $0x108] sm:$0xff]
      %v2214 = vld [vmem:[%s2190 + $0x110] sm:$0xff]
      %v2215 = vld [vmem:[%s2190 + $0x120] sm:$0xff]
      %v2216 = vld [vmem:[%s2190 + $0x128] sm:$0xff]
      %v2217 = vld [vmem:[%s2190 + $0x138] sm:$0xff]
      %v2218 = vld [vmem:[%s2190 + $0x140] sm:$0xff]
      %v2219 = vld [vmem:[%s2190 + $0x150] sm:$0xff]
      %v2220 = vld [vmem:[%s2190 + $0x158] sm:$0xff]
      %v2221 = vld [vmem:[%s2190 + $0x168] sm:$0xff]
      %v2222 = vld [vmem:[%s2190 + $0x170] sm:$0xff]
      %v2223 = vpack.c.bf16 %v2192, %v2191
      %v2224 = vpack.c.bf16 %v2194, %v2193
      %v2225 = vpack.c.bf16 %v2196, %v2195
      %v2226 = vpack.c.bf16 %v2198, %v2197
      %v2227 = vpack.c.bf16 %v2200, %v2199
      %v2228 = vpack.c.bf16 %v2202, %v2201
      %v2229 = vpack.c.bf16 %v2204, %v2203
      %v2230 = vpack.c.bf16 %v2206, %v2205
      %v2231 = vpack.c.bf16 %v2208, %v2207
      %v2232 = vpack.c.bf16 %v2210, %v2209
      %v2233 = vpack.c.bf16 %v2212, %v2211
      %v2234 = vpack.c.bf16 %v2214, %v2213
      %v2235 = vpack.c.bf16 %v2216, %v2215
      %v2236 = vpack.c.bf16 %v2218, %v2217
      %v2237 = vpack.c.bf16 %v2220, %v2219
      %v2238 = vpack.c.bf16 %v2222, %v2221
      %s2239 = scalar_lea.vmem %s3, 12
      %v2240 = vld [vmem:[%s2239] sm:$0x3]
      %v2242 = vsel %vm237, %v2223, 0
      %v2245 = vsel %vm237, %v2224, 0
      %v2248 = vsel %vm237, %v2225, 0
      %v2251 = vsel %vm237, %v2226, 0
      %v2254 = vsel %vm237, %v2227, 0
      %v2257 = vsel %vm237, %v2228, 0
      %v2260 = vsel %vm237, %v2229, 0
      %v2263 = vsel %vm237, %v2230, 0
      %v2266 = vsel %vm237, %v2231, 0
      %v2269 = vsel %vm237, %v2232, 0
      %v2272 = vsel %vm237, %v2233, 0
      %v2275 = vsel %vm237, %v2234, 0
      %v2278 = vsel %vm237, %v2235, 0
      %v2281 = vsel %vm237, %v2236, 0
      %v2284 = vsel %vm237, %v2237, 0
      %v2287 = vsel %vm237, %v2238, 0
      %v2290 = vsel %vm637, %v2240, 0
      %2292 = vmatprep.subr.bf16.mxu0 0
      %2293 = vmatpush1.bf16.msra.mxu0 %v2290
      %2294 = vmatprep.subr.bf16.mxu0 0
      %2295 = vmatpush1.bf16.msra.mxu0 0
      %2296 = vmatprep.subr.bf16.mxu0 0
      %2297 = vmatpush1.bf16.msra.mxu0 0
      %2298 = vmatprep.subr.bf16.mxu0 0
      %2299 = vmatpush1.bf16.msra.mxu0 0
      %2300 = vmatprep.subr.bf16.mxu0 0
      %2301 = vmatpush1.bf16.msra.mxu0 0
      %2302 = vmatprep.subr.bf16.mxu0 0
      %2303 = vmatpush1.bf16.msra.mxu0 0
      %2304 = vmatprep.subr.bf16.mxu0 0
      %2305 = vmatpush1.bf16.msra.mxu0 0
      %2306 = vmatprep.subr.bf16.mxu0 0
      %2307 = vmatpush1.bf16.msra.mxu0 0
      %2308 = vmatprep.subr.bf16.mxu0 0
      %2309 = vmatpush1.bf16.msra.mxu0 0
      %2310 = vmatprep.subr.bf16.mxu0 0
      %2311 = vmatpush1.bf16.msra.mxu0 0
      %2312 = vmatprep.subr.bf16.mxu0 0
      %2313 = vmatpush1.bf16.msra.mxu0 0
      %2314 = vmatprep.subr.bf16.mxu0 0
      %2315 = vmatpush1.bf16.msra.mxu0 0
      %2316 = vmatprep.subr.bf16.mxu0 0
      %2317 = vmatpush1.bf16.msra.mxu0 0
      %2318 = vmatprep.subr.bf16.mxu0 0
      %2319 = vmatpush1.bf16.msra.mxu0 0
      %2320 = vmatprep.subr.bf16.mxu0 0
      %2321 = vmatpush1.bf16.msra.mxu0 0
      %2322 = vmatprep.subr.bf16.mxu0 0
      %2323 = vmatpush1.bf16.msra.mxu0 0
      %2324 = vmatprep.mubr.bf16.mxu0 0
      %2325 = vmatmul.mubr.bf16.gmra.mrb[0].mxu0 %v2242
      %v2326 = vpop.f32.mrb[0].mxu0
      %v2327 = vadd.f32 0.0, %v2326
      %v2328 = vpop.f32.mrb[0].mxu0
      %v2329 = vpop.f32.mrb[0].mxu0
      %v2330 = vadd.f32 0.0, %v2329
      %v2331 = vpop.f32.mrb[0].mxu0
      %2332 = vmatprep.mubr.bf16.mxu0 0
      %2333 = vmatmul.mubr.bf16.gmra.mrb[0].mxu0 %v2245
      %v2334 = vpop.f32.mrb[0].mxu0
      %v2335 = vadd.f32 0.0, %v2334
      %v2336 = vpop.f32.mrb[0].mxu0
      %v2337 = vpop.f32.mrb[0].mxu0
      %v2338 = vadd.f32 0.0, %v2337
      %v2339 = vpop.f32.mrb[0].mxu0
      %2340 = vmatprep.mubr.bf16.mxu0 0
      %2341 = vmatmul.mubr.bf16.gmra.mrb[0].mxu0 %v2248
      %v2342 = vpop.f32.mrb[0].mxu0
      %v2343 = vadd.f32 0.0, %v2342
      %v2344 = vpop.f32.mrb[0].mxu0
      %v2345 = vpop.f32.mrb[0].mxu0
      %v2346 = vadd.f32 0.0, %v2345
      %v2347 = vpop.f32.mrb[0].mxu0
      %2348 = vmatprep.mubr.bf16.mxu0 0
      %2349 = vmatmul.mubr.bf16.gmra.mrb[0].mxu0 %v2251
      %v2350 = vpop.f32.mrb[0].mxu0
      %v2351 = vadd.f32 0.0, %v2350
      %v2352 = vpop.f32.mrb[0].mxu0
      %v2353 = vpop.f32.mrb[0].mxu0
      %v2354 = vadd.f32 0.0, %v2353
      %v2355 = vpop.f32.mrb[0].mxu0
      %2356 = vmatprep.mubr.bf16.mxu0 0
      %2357 = vmatmul.mubr.bf16.gmra.mrb[0].mxu0 %v2254
      %v2358 = vpop.f32.mrb[0].mxu0
      %v2359 = vadd.f32 0.0, %v2358
      %v2360 = vpop.f32.mrb[0].mxu0
      %v2361 = vpop.f32.mrb[0].mxu0
      %v2362 = vadd.f32 0.0, %v2361
      %v2363 = vpop.f32.mrb[0].mxu0
      %2364 = vmatprep.mubr.bf16.mxu0 0
      %2365 = vmatmul.mubr.bf16.gmra.mrb[0].mxu0 %v2257
      %v2366 = vpop.f32.mrb[0].mxu0
      %v2367 = vadd.f32 0.0, %v2366
      %v2368 = vpop.f32.mrb[0].mxu0
      %v2369 = vpop.f32.mrb[0].mxu0
      %v2370 = vadd.f32 0.0, %v2369
      %v2371 = vpop.f32.mrb[0].mxu0
      %2372 = vmatprep.mubr.bf16.mxu0 0
      %2373 = vmatmul.mubr.bf16.gmra.mrb[0].mxu0 %v2260
      %v2374 = vpop.f32.mrb[0].mxu0
      %v2375 = vadd.f32 0.0, %v2374
      %v2376 = vpop.f32.mrb[0].mxu0
      %v2377 = vpop.f32.mrb[0].mxu0
      %v2378 = vadd.f32 0.0, %v2377
      %v2379 = vpop.f32.mrb[0].mxu0
      %2380 = vmatprep.mubr.bf16.mxu0 0
      %2381 = vmatmul.mubr.bf16.gmra.mrb[0].mxu0 %v2263
      %v2382 = vpop.f32.mrb[0].mxu0
      %v2383 = vadd.f32 0.0, %v2382
      %v2384 = vpop.f32.mrb[0].mxu0
      %v2385 = vpop.f32.mrb[0].mxu0
      %v2386 = vadd.f32 0.0, %v2385
      %v2387 = vpop.f32.mrb[0].mxu0
      %2388 = vmatprep.mubr.bf16.mxu0 0
      %2389 = vmatmul.mubr.bf16.gmra.mrb[0].mxu0 %v2266
      %v2390 = vpop.f32.mrb[0].mxu0
      %v2391 = vadd.f32 0.0, %v2390
      %v2392 = vpop.f32.mrb[0].mxu0
      %v2393 = vpop.f32.mrb[0].mxu0
      %v2394 = vadd.f32 0.0, %v2393
      %v2395 = vpop.f32.mrb[0].mxu0
      %2396 = vmatprep.mubr.bf16.mxu0 0
      %2397 = vmatmul.mubr.bf16.gmra.mrb[0].mxu0 %v2269
      %v2398 = vpop.f32.mrb[0].mxu0
      %v2399 = vadd.f32 0.0, %v2398
      %v2400 = vpop.f32.mrb[0].mxu0
      %v2401 = vpop.f32.mrb[0].mxu0
      %v2402 = vadd.f32 0.0, %v2401
      %v2403 = vpop.f32.mrb[0].mxu0
      %2404 = vmatprep.mubr.bf16.mxu0 0
      %2405 = vmatmul.mubr.bf16.gmra.mrb[0].mxu0 %v2272
      %v2406 = vpop.f32.mrb[0].mxu0
      %v2407 = vadd.f32 0.0, %v2406
      %v2408 = vpop.f32.mrb[0].mxu0
      %v2409 = vpop.f32.mrb[0].mxu0
      %v2410 = vadd.f32 0.0, %v2409
      %v2411 = vpop.f32.mrb[0].mxu0
      %2412 = vmatprep.mubr.bf16.mxu0 0
      %2413 = vmatmul.mubr.bf16.gmra.mrb[0].mxu0 %v2275
      %v2414 = vpop.f32.mrb[0].mxu0
      %v2415 = vadd.f32 0.0, %v2414
      %v2416 = vpop.f32.mrb[0].mxu0
      %v2417 = vpop.f32.mrb[0].mxu0
      %v2418 = vadd.f32 0.0, %v2417
      %v2419 = vpop.f32.mrb[0].mxu0
      %2420 = vmatprep.mubr.bf16.mxu0 0
      %2421 = vmatmul.mubr.bf16.gmra.mrb[0].mxu0 %v2278
      %v2422 = vpop.f32.mrb[0].mxu0
      %v2423 = vadd.f32 0.0, %v2422
      %v2424 = vpop.f32.mrb[0].mxu0
      %v2425 = vpop.f32.mrb[0].mxu0
      %v2426 = vadd.f32 0.0, %v2425
      %v2427 = vpop.f32.mrb[0].mxu0
      %2428 = vmatprep.mubr.bf16.mxu0 0
      %2429 = vmatmul.mubr.bf16.gmra.mrb[0].mxu0 %v2281
      %v2430 = vpop.f32.mrb[0].mxu0
      %v2431 = vadd.f32 0.0, %v2430
      %v2432 = vpop.f32.mrb[0].mxu0
      %v2433 = vpop.f32.mrb[0].mxu0
      %v2434 = vadd.f32 0.0, %v2433
      %v2435 = vpop.f32.mrb[0].mxu0
      %2436 = vmatprep.mubr.bf16.mxu0 0
      %2437 = vmatmul.mubr.bf16.gmra.mrb[0].mxu0 %v2284
      %v2438 = vpop.f32.mrb[0].mxu0
      %v2439 = vadd.f32 0.0, %v2438
      %v2440 = vpop.f32.mrb[0].mxu0
      %v2441 = vpop.f32.mrb[0].mxu0
      %v2442 = vadd.f32 0.0, %v2441
      %v2443 = vpop.f32.mrb[0].mxu0
      %2444 = vmatprep.mubr.bf16.mxu0 0
      %2445 = vmatmul.mubr.bf16.gmra.mrb[0].mxu0 %v2287
      %v2446 = vpop.f32.mrb[0].mxu0
      %v2447 = vadd.f32 0.0, %v2446
      %v2448 = vpop.f32.mrb[0].mxu0
      %v2449 = vpop.f32.mrb[0].mxu0
      %v2450 = vadd.f32 0.0, %v2449
      %v2451 = vpop.f32.mrb[0].mxu0
      %2452 = vdwg.mxu0
      %v2453 = vadd.f32 %v2158, %v2327
      %v2454 = vadd.f32 %v2159, %v2330
      %v2455 = vadd.f32 %v2160, %v2335
      %v2456 = vadd.f32 %v2161, %v2338
      %v2457 = vadd.f32 %v2162, %v2343
      %v2458 = vadd.f32 %v2163, %v2346
      %v2459 = vadd.f32 %v2164, %v2351
      %v2460 = vadd.f32 %v2165, %v2354
      %v2461 = vadd.f32 %v2166, %v2359
      %v2462 = vadd.f32 %v2167, %v2362
      %v2463 = vadd.f32 %v2168, %v2367
      %v2464 = vadd.f32 %v2169, %v2370
      %v2465 = vadd.f32 %v2170, %v2375
      %v2466 = vadd.f32 %v2171, %v2378
      %v2467 = vadd.f32 %v2172, %v2383
      %v2468 = vadd.f32 %v2173, %v2386
      %v2469 = vadd.f32 %v2174, %v2391
      %v2470 = vadd.f32 %v2175, %v2394
      %v2471 = vadd.f32 %v2176, %v2399
      %v2472 = vadd.f32 %v2177, %v2402
      %v2473 = vadd.f32 %v2178, %v2407
      %v2474 = vadd.f32 %v2179, %v2410
      %v2475 = vadd.f32 %v2180, %v2415
      %v2476 = vadd.f32 %v2181, %v2418
      %v2477 = vadd.f32 %v2182, %v2423
      %v2478 = vadd.f32 %v2183, %v2426
      %v2479 = vadd.f32 %v2184, %v2431
      %v2480 = vadd.f32 %v2185, %v2434
      %v2481 = vadd.f32 %v2186, %v2439
      %v2482 = vadd.f32 %v2187, %v2442
      %v2483 = vadd.f32 %v2188, %v2447
      %v2484 = vadd.f32 %v2189, %v2450
      %v2485 = vld [vmem:[%s2190 + $0x1] sm:$0xff]
      %v2486 = vld [vmem:[%s2190 + $0x9] sm:$0xff]
      %v2487 = vld [vmem:[%s2190 + $0x19] sm:$0xff]
      %v2488 = vld [vmem:[%s2190 + $0x21] sm:$0xff]
      %v2489 = vld [vmem:[%s2190 + $0x31] sm:$0xff]
      %v2490 = vld [vmem:[%s2190 + $0x39] sm:$0xff]
      %v2491 = vld [vmem:[%s2190 + $0x49] sm:$0xff]
      %v2492 = vld [vmem:[%s2190 + $0x51] sm:$0xff]
      %v2493 = vld [vmem:[%s2190 + $0x61] sm:$0xff]
      %v2494 = vld [vmem:[%s2190 + $0x69] sm:$0xff]
      %v2495 = vld [vmem:[%s2190 + $0x79] sm:$0xff]
      %v2496 = vld [vmem:[%s2190 + $0x81] sm:$0xff]
      %v2497 = vld [vmem:[%s2190 + $0x91] sm:$0xff]
      %v2498 = vld [vmem:[%s2190 + $0x99] sm:$0xff]
      %v2499 = vld [vmem:[%s2190 + $0xa9] sm:$0xff]
      %v2500 = vld [vmem:[%s2190 + $0xb1] sm:$0xff]
      %v2501 = vld [vmem:[%s2190 + $0xc1] sm:$0xff]
      %v2502 = vld [vmem:[%s2190 + $0xc9] sm:$0xff]
      %v2503 = vld [vmem:[%s2190 + $0xd9] sm:$0xff]
      %v2504 = vld [vmem:[%s2190 + $0xe1] sm:$0xff]
      %v2505 = vld [vmem:[%s2190 + $0xf1] sm:$0xff]
      %v2506 = vld [vmem:[%s2190 + $0xf9] sm:$0xff]
      %v2507 = vld [vmem:[%s2190 + $0x109] sm:$0xff]
      %v2508 = vld [vmem:[%s2190 + $0x111] sm:$0xff]
      %v2509 = vld [vmem:[%s2190 + $0x121] sm:$0xff]
      %v2510 = vld [vmem:[%s2190 + $0x129] sm:$0xff]
      %v2511 = vld [vmem:[%s2190 + $0x139] sm:$0xff]
      %v2512 = vld [vmem:[%s2190 + $0x141] sm:$0xff]
      %v2513 = vld [vmem:[%s2190 + $0x151] sm:$0xff]
      %v2514 = vld [vmem:[%s2190 + $0x159] sm:$0xff]
      %v2515 = vld [vmem:[%s2190 + $0x169] sm:$0xff]
      %v2516 = vld [vmem:[%s2190 + $0x171] sm:$0xff]
      %v2517 = vpack.c.bf16 %v2486, %v2485
      %v2518 = vpack.c.bf16 %v2488, %v2487
      %v2519 = vpack.c.bf16 %v2490, %v2489
      %v2520 = vpack.c.bf16 %v2492, %v2491
      %v2521 = vpack.c.bf16 %v2494, %v2493
      %v2522 = vpack.c.bf16 %v2496, %v2495
      %v2523 = vpack.c.bf16 %v2498, %v2497
      %v2524 = vpack.c.bf16 %v2500, %v2499
      %v2525 = vpack.c.bf16 %v2502, %v2501
      %v2526 = vpack.c.bf16 %v2504, %v2503
      %v2527 = vpack.c.bf16 %v2506, %v2505
      %v2528 = vpack.c.bf16 %v2508, %v2507
      %v2529 = vpack.c.bf16 %v2510, %v2509
      %v2530 = vpack.c.bf16 %v2512, %v2511
      %v2531 = vpack.c.bf16 %v2514, %v2513
      %v2532 = vpack.c.bf16 %v2516, %v2515
      %s2533 = scalar_lea.vmem %s3, 14
      %v2534 = vld [vmem:[%s2533] sm:$0x3]
      %v2536 = vsel %vm237, %v2517, 0
      %v2539 = vsel %vm237, %v2518, 0
      %v2542 = vsel %vm237, %v2519, 0
      %v2545 = vsel %vm237, %v2520, 0
      %v2548 = vsel %vm237, %v2521, 0
      %v2551 = vsel %vm237, %v2522, 0
      %v2554 = vsel %vm237, %v2523, 0
      %v2557 = vsel %vm237, %v2524, 0
      %v2560 = vsel %vm237, %v2525, 0
      %v2563 = vsel %vm237, %v2526, 0
      %v2566 = vsel %vm237, %v2527, 0
      %v2569 = vsel %vm237, %v2528, 0
      %v2572 = vsel %vm237, %v2529, 0
      %v2575 = vsel %vm237, %v2530, 0
      %v2578 = vsel %vm237, %v2531, 0
      %v2581 = vsel %vm237, %v2532, 0
      %v2584 = vsel %vm637, %v2534, 0
      %2586 = vmatprep.subr.bf16.mxu0 0
      %2587 = vmatpush1.bf16.msra.mxu0 %v2584
      %2588 = vmatprep.subr.bf16.mxu0 0
      %2589 = vmatpush1.bf16.msra.mxu0 0
      %2590 = vmatprep.subr.bf16.mxu0 0
      %2591 = vmatpush1.bf16.msra.mxu0 0
      %2592 = vmatprep.subr.bf16.mxu0 0
      %2593 = vmatpush1.bf16.msra.mxu0 0
      %2594 = vmatprep.subr.bf16.mxu0 0
      %2595 = vmatpush1.bf16.msra.mxu0 0
      %2596 = vmatprep.subr.bf16.mxu0 0
      %2597 = vmatpush1.bf16.msra.mxu0 0
      %2598 = vmatprep.subr.bf16.mxu0 0
      %2599 = vmatpush1.bf16.msra.mxu0 0
      %2600 = vmatprep.subr.bf16.mxu0 0
      %2601 = vmatpush1.bf16.msra.mxu0 0
      %2602 = vmatprep.subr.bf16.mxu0 0
      %2603 = vmatpush1.bf16.msra.mxu0 0
      %2604 = vmatprep.subr.bf16.mxu0 0
      %2605 = vmatpush1.bf16.msra.mxu0 0
      %2606 = vmatprep.subr.bf16.mxu0 0
      %2607 = vmatpush1.bf16.msra.mxu0 0
      %2608 = vmatprep.subr.bf16.mxu0 0
      %2609 = vmatpush1.bf16.msra.mxu0 0
      %2610 = vmatprep.subr.bf16.mxu0 0
      %2611 = vmatpush1.bf16.msra.mxu0 0
      %2612 = vmatprep.subr.bf16.mxu0 0
      %2613 = vmatpush1.bf16.msra.mxu0 0
      %2614 = vmatprep.subr.bf16.mxu0 0
      %2615 = vmatpush1.bf16.msra.mxu0 0
      %2616 = vmatprep.subr.bf16.mxu0 0
      %2617 = vmatpush1.bf16.msra.mxu0 0
      %2618 = vmatprep.mubr.bf16.mxu0 0
      %2619 = vmatmul.mubr.bf16.gmra.mrb[0].mxu0 %v2536
      %v2620 = vpop.f32.mrb[0].mxu0
      %v2621 = vadd.f32 0.0, %v2620
      %v2622 = vpop.f32.mrb[0].mxu0
      %v2623 = vpop.f32.mrb[0].mxu0
      %v2624 = vadd.f32 0.0, %v2623
      %v2625 = vpop.f32.mrb[0].mxu0
      %2626 = vmatprep.mubr.bf16.mxu0 0
      %2627 = vmatmul.mubr.bf16.gmra.mrb[0].mxu0 %v2539
      %v2628 = vpop.f32.mrb[0].mxu0
      %v2629 = vadd.f32 0.0, %v2628
      %v2630 = vpop.f32.mrb[0].mxu0
      %v2631 = vpop.f32.mrb[0].mxu0
      %v2632 = vadd.f32 0.0, %v2631
      %v2633 = vpop.f32.mrb[0].mxu0
      %2634 = vmatprep.mubr.bf16.mxu0 0
      %2635 = vmatmul.mubr.bf16.gmra.mrb[0].mxu0 %v2542
      %v2636 = vpop.f32.mrb[0].mxu0
      %v2637 = vadd.f32 0.0, %v2636
      %v2638 = vpop.f32.mrb[0].mxu0
      %v2639 = vpop.f32.mrb[0].mxu0
      %v2640 = vadd.f32 0.0, %v2639
      %v2641 = vpop.f32.mrb[0].mxu0
      %2642 = vmatprep.mubr.bf16.mxu0 0
      %2643 = vmatmul.mubr.bf16.gmra.mrb[0].mxu0 %v2545
      %v2644 = vpop.f32.mrb[0].mxu0
      %v2645 = vadd.f32 0.0, %v2644
      %v2646 = vpop.f32.mrb[0].mxu0
      %v2647 = vpop.f32.mrb[0].mxu0
      %v2648 = vadd.f32 0.0, %v2647
      %v2649 = vpop.f32.mrb[0].mxu0
      %2650 = vmatprep.mubr.bf16.mxu0 0
      %2651 = vmatmul.mubr.bf16.gmra.mrb[0].mxu0 %v2548
      %v2652 = vpop.f32.mrb[0].mxu0
      %v2653 = vadd.f32 0.0, %v2652
      %v2654 = vpop.f32.mrb[0].mxu0
      %v2655 = vpop.f32.mrb[0].mxu0
      %v2656 = vadd.f32 0.0, %v2655
      %v2657 = vpop.f32.mrb[0].mxu0
      %2658 = vmatprep.mubr.bf16.mxu0 0
      %2659 = vmatmul.mubr.bf16.gmra.mrb[0].mxu0 %v2551
      %v2660 = vpop.f32.mrb[0].mxu0
      %v2661 = vadd.f32 0.0, %v2660
      %v2662 = vpop.f32.mrb[0].mxu0
      %v2663 = vpop.f32.mrb[0].mxu0
      %v2664 = vadd.f32 0.0, %v2663
      %v2665 = vpop.f32.mrb[0].mxu0
      %2666 = vmatprep.mubr.bf16.mxu0 0
      %2667 = vmatmul.mubr.bf16.gmra.mrb[0].mxu0 %v2554
      %v2668 = vpop.f32.mrb[0].mxu0
      %v2669 = vadd.f32 0.0, %v2668
      %v2670 = vpop.f32.mrb[0].mxu0
      %v2671 = vpop.f32.mrb[0].mxu0
      %v2672 = vadd.f32 0.0, %v2671
      %v2673 = vpop.f32.mrb[0].mxu0
      %2674 = vmatprep.mubr.bf16.mxu0 0
      %2675 = vmatmul.mubr.bf16.gmra.mrb[0].mxu0 %v2557
      %v2676 = vpop.f32.mrb[0].mxu0
      %v2677 = vadd.f32 0.0, %v2676
      %v2678 = vpop.f32.mrb[0].mxu0
      %v2679 = vpop.f32.mrb[0].mxu0
      %v2680 = vadd.f32 0.0, %v2679
      %v2681 = vpop.f32.mrb[0].mxu0
      %2682 = vmatprep.mubr.bf16.mxu0 0
      %2683 = vmatmul.mubr.bf16.gmra.mrb[0].mxu0 %v2560
      %v2684 = vpop.f32.mrb[0].mxu0
      %v2685 = vadd.f32 0.0, %v2684
      %v2686 = vpop.f32.mrb[0].mxu0
      %v2687 = vpop.f32.mrb[0].mxu0
      %v2688 = vadd.f32 0.0, %v2687
      %v2689 = vpop.f32.mrb[0].mxu0
      %2690 = vmatprep.mubr.bf16.mxu0 0
      %2691 = vmatmul.mubr.bf16.gmra.mrb[0].mxu0 %v2563
      %v2692 = vpop.f32.mrb[0].mxu0
      %v2693 = vadd.f32 0.0, %v2692
      %v2694 = vpop.f32.mrb[0].mxu0
      %v2695 = vpop.f32.mrb[0].mxu0
      %v2696 = vadd.f32 0.0, %v2695
      %v2697 = vpop.f32.mrb[0].mxu0
      %2698 = vmatprep.mubr.bf16.mxu0 0
      %2699 = vmatmul.mubr.bf16.gmra.mrb[0].mxu0 %v2566
      %v2700 = vpop.f32.mrb[0].mxu0
      %v2701 = vadd.f32 0.0, %v2700
      %v2702 = vpop.f32.mrb[0].mxu0
      %v2703 = vpop.f32.mrb[0].mxu0
      %v2704 = vadd.f32 0.0, %v2703
      %v2705 = vpop.f32.mrb[0].mxu0
      %2706 = vmatprep.mubr.bf16.mxu0 0
      %2707 = vmatmul.mubr.bf16.gmra.mrb[0].mxu0 %v2569
      %v2708 = vpop.f32.mrb[0].mxu0
      %v2709 = vadd.f32 0.0, %v2708
      %v2710 = vpop.f32.mrb[0].mxu0
      %v2711 = vpop.f32.mrb[0].mxu0
      %v2712 = vadd.f32 0.0, %v2711
      %v2713 = vpop.f32.mrb[0].mxu0
      %2714 = vmatprep.mubr.bf16.mxu0 0
      %2715 = vmatmul.mubr.bf16.gmra.mrb[0].mxu0 %v2572
      %v2716 = vpop.f32.mrb[0].mxu0
      %v2717 = vadd.f32 0.0, %v2716
      %v2718 = vpop.f32.mrb[0].mxu0
      %v2719 = vpop.f32.mrb[0].mxu0
      %v2720 = vadd.f32 0.0, %v2719
      %v2721 = vpop.f32.mrb[0].mxu0
      %2722 = vmatprep.mubr.bf16.mxu0 0
      %2723 = vmatmul.mubr.bf16.gmra.mrb[0].mxu0 %v2575
      %v2724 = vpop.f32.mrb[0].mxu0
      %v2725 = vadd.f32 0.0, %v2724
      %v2726 = vpop.f32.mrb[0].mxu0
      %v2727 = vpop.f32.mrb[0].mxu0
      %v2728 = vadd.f32 0.0, %v2727
      %v2729 = vpop.f32.mrb[0].mxu0
      %2730 = vmatprep.mubr.bf16.mxu0 0
      %2731 = vmatmul.mubr.bf16.gmra.mrb[0].mxu0 %v2578
      %v2732 = vpop.f32.mrb[0].mxu0
      %v2733 = vadd.f32 0.0, %v2732
      %v2734 = vpop.f32.mrb[0].mxu0
      %v2735 = vpop.f32.mrb[0].mxu0
      %v2736 = vadd.f32 0.0, %v2735
      %v2737 = vpop.f32.mrb[0].mxu0
      %2738 = vmatprep.mubr.bf16.mxu0 0
      %2739 = vmatmul.mubr.bf16.gmra.mrb[0].mxu0 %v2581
      %v2740 = vpop.f32.mrb[0].mxu0
      %v2741 = vadd.f32 0.0, %v2740
      %v2742 = vpop.f32.mrb[0].mxu0
      %v2743 = vpop.f32.mrb[0].mxu0
      %v2744 = vadd.f32 0.0, %v2743
      %v2745 = vpop.f32.mrb[0].mxu0
      %2746 = vdwg.mxu0
      %v2747 = vadd.f32 %v2453, %v2621
      %v2748 = vadd.f32 %v2454, %v2624
      %v2749 = vadd.f32 %v2455, %v2629
      %v2750 = vadd.f32 %v2456, %v2632
      %v2751 = vadd.f32 %v2457, %v2637
      %v2752 = vadd.f32 %v2458, %v2640
      %v2753 = vadd.f32 %v2459, %v2645
      %v2754 = vadd.f32 %v2460, %v2648
      %v2755 = vadd.f32 %v2461, %v2653
      %v2756 = vadd.f32 %v2462, %v2656
      %v2757 = vadd.f32 %v2463, %v2661
      %v2758 = vadd.f32 %v2464, %v2664
      %v2759 = vadd.f32 %v2465, %v2669
      %v2760 = vadd.f32 %v2466, %v2672
      %v2761 = vadd.f32 %v2467, %v2677
      %v2762 = vadd.f32 %v2468, %v2680
      %v2763 = vadd.f32 %v2469, %v2685
      %v2764 = vadd.f32 %v2470, %v2688
      %v2765 = vadd.f32 %v2471, %v2693
      %v2766 = vadd.f32 %v2472, %v2696
      %v2767 = vadd.f32 %v2473, %v2701
      %v2768 = vadd.f32 %v2474, %v2704
      %v2769 = vadd.f32 %v2475, %v2709
      %v2770 = vadd.f32 %v2476, %v2712
      %v2771 = vadd.f32 %v2477, %v2717
      %v2772 = vadd.f32 %v2478, %v2720
      %v2773 = vadd.f32 %v2479, %v2725
      %v2774 = vadd.f32 %v2480, %v2728
      %v2775 = vadd.f32 %v2481, %v2733
      %v2776 = vadd.f32 %v2482, %v2736
      %v2777 = vadd.f32 %v2483, %v2741
      %v2778 = vadd.f32 %v2484, %v2744
      %v2779 = vld [vmem:[%s2190 + $0x2] sm:$0xff]
      %v2780 = vld [vmem:[%s2190 + $0xa] sm:$0xff]
      %v2781 = vld [vmem:[%s2190 + $0x1a] sm:$0xff]
      %v2782 = vld [vmem:[%s2190 + $0x22] sm:$0xff]
      %v2783 = vld [vmem:[%s2190 + $0x32] sm:$0xff]
      %v2784 = vld [vmem:[%s2190 + $0x3a] sm:$0xff]
      %v2785 = vld [vmem:[%s2190 + $0x4a] sm:$0xff]
      %v2786 = vld [vmem:[%s2190 + $0x52] sm:$0xff]
      %v2787 = vld [vmem:[%s2190 + $0x62] sm:$0xff]
      %v2788 = vld [vmem:[%s2190 + $0x6a] sm:$0xff]
      %v2789 = vld [vmem:[%s2190 + $0x7a] sm:$0xff]
      %v2790 = vld [vmem:[%s2190 + $0x82] sm:$0xff]
      %v2791 = vld [vmem:[%s2190 + $0x92] sm:$0xff]
      %v2792 = vld [vmem:[%s2190 + $0x9a] sm:$0xff]
      %v2793 = vld [vmem:[%s2190 + $0xaa] sm:$0xff]
      %v2794 = vld [vmem:[%s2190 + $0xb2] sm:$0xff]
      %v2795 = vld [vmem:[%s2190 + $0xc2] sm:$0xff]
      %v2796 = vld [vmem:[%s2190 + $0xca] sm:$0xff]
      %v2797 = vld [vmem:[%s2190 + $0xda] sm:$0xff]
      %v2798 = vld [vmem:[%s2190 + $0xe2] sm:$0xff]
      %v2799 = vld [vmem:[%s2190 + $0xf2] sm:$0xff]
      %v2800 = vld [vmem:[%s2190 + $0xfa] sm:$0xff]
      %v2801 = vld [vmem:[%s2190 + $0x10a] sm:$0xff]
      %v2802 = vld [vmem:[%s2190 + $0x112] sm:$0xff]
      %v2803 = vld [vmem:[%s2190 + $0x122] sm:$0xff]
      %v2804 = vld [vmem:[%s2190 + $0x12a] sm:$0xff]
      %v2805 = vld [vmem:[%s2190 + $0x13a] sm:$0xff]
      %v2806 = vld [vmem:[%s2190 + $0x142] sm:$0xff]
      %v2807 = vld [vmem:[%s2190 + $0x152] sm:$0xff]
      %v2808 = vld [vmem:[%s2190 + $0x15a] sm:$0xff]
      %v2809 = vld [vmem:[%s2190 + $0x16a] sm:$0xff]
      %v2810 = vld [vmem:[%s2190 + $0x172] sm:$0xff]
      %v2811 = vpack.c.bf16 %v2780, %v2779
      %v2812 = vpack.c.bf16 %v2782, %v2781
      %v2813 = vpack.c.bf16 %v2784, %v2783
      %v2814 = vpack.c.bf16 %v2786, %v2785
      %v2815 = vpack.c.bf16 %v2788, %v2787
      %v2816 = vpack.c.bf16 %v2790, %v2789
      %v2817 = vpack.c.bf16 %v2792, %v2791
      %v2818 = vpack.c.bf16 %v2794, %v2793
      %v2819 = vpack.c.bf16 %v2796, %v2795
      %v2820 = vpack.c.bf16 %v2798, %v2797
      %v2821 = vpack.c.bf16 %v2800, %v2799
      %v2822 = vpack.c.bf16 %v2802, %v2801
      %v2823 = vpack.c.bf16 %v2804, %v2803
      %v2824 = vpack.c.bf16 %v2806, %v2805
      %v2825 = vpack.c.bf16 %v2808, %v2807
      %v2826 = vpack.c.bf16 %v2810, %v2809
      %s2827 = scalar_lea.vmem %s3, 16
      %v2828 = vld [vmem:[%s2827] sm:$0x3]
      %v2830 = vsel %vm237, %v2811, 0
      %v2833 = vsel %vm237, %v2812, 0
      %v2836 = vsel %vm237, %v2813, 0
      %v2839 = vsel %vm237, %v2814, 0
      %v2842 = vsel %vm237, %v2815, 0
      %v2845 = vsel %vm237, %v2816, 0
      %v2848 = vsel %vm237, %v2817, 0
      %v2851 = vsel %vm237, %v2818, 0
      %v2854 = vsel %vm237, %v2819, 0
      %v2857 = vsel %vm237, %v2820, 0
      %v2860 = vsel %vm237, %v2821, 0
      %v2863 = vsel %vm237, %v2822, 0
      %v2866 = vsel %vm237, %v2823, 0
      %v2869 = vsel %vm237, %v2824, 0
      %v2872 = vsel %vm237, %v2825, 0
      %v2875 = vsel %vm237, %v2826, 0
      %v2878 = vsel %vm637, %v2828, 0
      %2880 = vmatprep.subr.bf16.mxu0 0
      %2881 = vmatpush1.bf16.msra.mxu0 %v2878
      %2882 = vmatprep.subr.bf16.mxu0 0
      %2883 = vmatpush1.bf16.msra.mxu0 0
      %2884 = vmatprep.subr.bf16.mxu0 0
      %2885 = vmatpush1.bf16.msra.mxu0 0
      %2886 = vmatprep.subr.bf16.mxu0 0
      %2887 = vmatpush1.bf16.msra.mxu0 0
      %2888 = vmatprep.subr.bf16.mxu0 0
      %2889 = vmatpush1.bf16.msra.mxu0 0
      %2890 = vmatprep.subr.bf16.mxu0 0
      %2891 = vmatpush1.bf16.msra.mxu0 0
      %2892 = vmatprep.subr.bf16.mxu0 0
      %2893 = vmatpush1.bf16.msra.mxu0 0
      %2894 = vmatprep.subr.bf16.mxu0 0
      %2895 = vmatpush1.bf16.msra.mxu0 0
      %2896 = vmatprep.subr.bf16.mxu0 0
      %2897 = vmatpush1.bf16.msra.mxu0 0
      %2898 = vmatprep.subr.bf16.mxu0 0
      %2899 = vmatpush1.bf16.msra.mxu0 0
      %2900 = vmatprep.subr.bf16.mxu0 0
      %2901 = vmatpush1.bf16.msra.mxu0 0
      %2902 = vmatprep.subr.bf16.mxu0 0
      %2903 = vmatpush1.bf16.msra.mxu0 0
      %2904 = vmatprep.subr.bf16.mxu0 0
      %2905 = vmatpush1.bf16.msra.mxu0 0
      %2906 = vmatprep.subr.bf16.mxu0 0
      %2907 = vmatpush1.bf16.msra.mxu0 0
      %2908 = vmatprep.subr.bf16.mxu0 0
      %2909 = vmatpush1.bf16.msra.mxu0 0
      %2910 = vmatprep.subr.bf16.mxu0 0
      %2911 = vmatpush1.bf16.msra.mxu0 0
      %2912 = vmatprep.mubr.bf16.mxu0 0
      %2913 = vmatmul.mubr.bf16.gmra.mrb[0].mxu0 %v2830
      %v2914 = vpop.f32.mrb[0].mxu0
      %v2915 = vadd.f32 0.0, %v2914
      %v2916 = vpop.f32.mrb[0].mxu0
      %v2917 = vpop.f32.mrb[0].mxu0
      %v2918 = vadd.f32 0.0, %v2917
      %v2919 = vpop.f32.mrb[0].mxu0
      %2920 = vmatprep.mubr.bf16.mxu0 0
      %2921 = vmatmul.mubr.bf16.gmra.mrb[0].mxu0 %v2833
      %v2922 = vpop.f32.mrb[0].mxu0
      %v2923 = vadd.f32 0.0, %v2922
      %v2924 = vpop.f32.mrb[0].mxu0
      %v2925 = vpop.f32.mrb[0].mxu0
      %v2926 = vadd.f32 0.0, %v2925
      %v2927 = vpop.f32.mrb[0].mxu0
      %2928 = vmatprep.mubr.bf16.mxu0 0
      %2929 = vmatmul.mubr.bf16.gmra.mrb[0].mxu0 %v2836
      %v2930 = vpop.f32.mrb[0].mxu0
      %v2931 = vadd.f32 0.0, %v2930
      %v2932 = vpop.f32.mrb[0].mxu0
      %v2933 = vpop.f32.mrb[0].mxu0
      %v2934 = vadd.f32 0.0, %v2933
      %v2935 = vpop.f32.mrb[0].mxu0
      %2936 = vmatprep.mubr.bf16.mxu0 0
      %2937 = vmatmul.mubr.bf16.gmra.mrb[0].mxu0 %v2839
      %v2938 = vpop.f32.mrb[0].mxu0
      %v2939 = vadd.f32 0.0, %v2938
      %v2940 = vpop.f32.mrb[0].mxu0
      %v2941 = vpop.f32.mrb[0].mxu0
      %v2942 = vadd.f32 0.0, %v2941
      %v2943 = vpop.f32.mrb[0].mxu0
      %2944 = vmatprep.mubr.bf16.mxu0 0
      %2945 = vmatmul.mubr.bf16.gmra.mrb[0].mxu0 %v2842
      %v2946 = vpop.f32.mrb[0].mxu0
      %v2947 = vadd.f32 0.0, %v2946
      %v2948 = vpop.f32.mrb[0].mxu0
      %v2949 = vpop.f32.mrb[0].mxu0
      %v2950 = vadd.f32 0.0, %v2949
      %v2951 = vpop.f32.mrb[0].mxu0
      %2952 = vmatprep.mubr.bf16.mxu0 0
      %2953 = vmatmul.mubr.bf16.gmra.mrb[0].mxu0 %v2845
      %v2954 = vpop.f32.mrb[0].mxu0
      %v2955 = vadd.f32 0.0, %v2954
      %v2956 = vpop.f32.mrb[0].mxu0
      %v2957 = vpop.f32.mrb[0].mxu0
      %v2958 = vadd.f32 0.0, %v2957
      %v2959 = vpop.f32.mrb[0].mxu0
      %2960 = vmatprep.mubr.bf16.mxu0 0
      %2961 = vmatmul.mubr.bf16.gmra.mrb[0].mxu0 %v2848
      %v2962 = vpop.f32.mrb[0].mxu0
      %v2963 = vadd.f32 0.0, %v2962
      %v2964 = vpop.f32.mrb[0].mxu0
      %v2965 = vpop.f32.mrb[0].mxu0
      %v2966 = vadd.f32 0.0, %v2965
      %v2967 = vpop.f32.mrb[0].mxu0
      %2968 = vmatprep.mubr.bf16.mxu0 0
      %2969 = vmatmul.mubr.bf16.gmra.mrb[0].mxu0 %v2851
      %v2970 = vpop.f32.mrb[0].mxu0
      %v2971 = vadd.f32 0.0, %v2970
      %v2972 = vpop.f32.mrb[0].mxu0
      %v2973 = vpop.f32.mrb[0].mxu0
      %v2974 = vadd.f32 0.0, %v2973
      %v2975 = vpop.f32.mrb[0].mxu0
      %2976 = vmatprep.mubr.bf16.mxu0 0
      %2977 = vmatmul.mubr.bf16.gmra.mrb[0].mxu0 %v2854
      %v2978 = vpop.f32.mrb[0].mxu0
      %v2979 = vadd.f32 0.0, %v2978
      %v2980 = vpop.f32.mrb[0].mxu0
      %v2981 = vpop.f32.mrb[0].mxu0
      %v2982 = vadd.f32 0.0, %v2981
      %v2983 = vpop.f32.mrb[0].mxu0
      %2984 = vmatprep.mubr.bf16.mxu0 0
      %2985 = vmatmul.mubr.bf16.gmra.mrb[0].mxu0 %v2857
      %v2986 = vpop.f32.mrb[0].mxu0
      %v2987 = vadd.f32 0.0, %v2986
      %v2988 = vpop.f32.mrb[0].mxu0
      %v2989 = vpop.f32.mrb[0].mxu0
      %v2990 = vadd.f32 0.0, %v2989
      %v2991 = vpop.f32.mrb[0].mxu0
      %2992 = vmatprep.mubr.bf16.mxu0 0
      %2993 = vmatmul.mubr.bf16.gmra.mrb[0].mxu0 %v2860
      %v2994 = vpop.f32.mrb[0].mxu0
      %v2995 = vadd.f32 0.0, %v2994
      %v2996 = vpop.f32.mrb[0].mxu0
      %v2997 = vpop.f32.mrb[0].mxu0
      %v2998 = vadd.f32 0.0, %v2997
      %v2999 = vpop.f32.mrb[0].mxu0
      %3000 = vmatprep.mubr.bf16.mxu0 0
      %3001 = vmatmul.mubr.bf16.gmra.mrb[0].mxu0 %v2863
      %v3002 = vpop.f32.mrb[0].mxu0
      %v3003 = vadd.f32 0.0, %v3002
      %v3004 = vpop.f32.mrb[0].mxu0
      %v3005 = vpop.f32.mrb[0].mxu0
      %v3006 = vadd.f32 0.0, %v3005
      %v3007 = vpop.f32.mrb[0].mxu0
      %3008 = vmatprep.mubr.bf16.mxu0 0
      %3009 = vmatmul.mubr.bf16.gmra.mrb[0].mxu0 %v2866
      %v3010 = vpop.f32.mrb[0].mxu0
      %v3011 = vadd.f32 0.0, %v3010
      %v3012 = vpop.f32.mrb[0].mxu0
      %v3013 = vpop.f32.mrb[0].mxu0
      %v3014 = vadd.f32 0.0, %v3013
      %v3015 = vpop.f32.mrb[0].mxu0
      %3016 = vmatprep.mubr.bf16.mxu0 0
      %3017 = vmatmul.mubr.bf16.gmra.mrb[0].mxu0 %v2869
      %v3018 = vpop.f32.mrb[0].mxu0
      %v3019 = vadd.f32 0.0, %v3018
      %v3020 = vpop.f32.mrb[0].mxu0
      %v3021 = vpop.f32.mrb[0].mxu0
      %v3022 = vadd.f32 0.0, %v3021
      %v3023 = vpop.f32.mrb[0].mxu0
      %3024 = vmatprep.mubr.bf16.mxu0 0
      %3025 = vmatmul.mubr.bf16.gmra.mrb[0].mxu0 %v2872
      %v3026 = vpop.f32.mrb[0].mxu0
      %v3027 = vadd.f32 0.0, %v3026
      %v3028 = vpop.f32.mrb[0].mxu0
      %v3029 = vpop.f32.mrb[0].mxu0
      %v3030 = vadd.f32 0.0, %v3029
      %v3031 = vpop.f32.mrb[0].mxu0
      %3032 = vmatprep.mubr.bf16.mxu0 0
      %3033 = vmatmul.mubr.bf16.gmra.mrb[0].mxu0 %v2875
      %v3034 = vpop.f32.mrb[0].mxu0
      %v3035 = vadd.f32 0.0, %v3034
      %v3036 = vpop.f32.mrb[0].mxu0
      %v3037 = vpop.f32.mrb[0].mxu0
      %v3038 = vadd.f32 0.0, %v3037
      %v3039 = vpop.f32.mrb[0].mxu0
      %3040 = vdwg.mxu0
      %v3041 = vadd.f32 %v2747, %v2915
      %v3042 = vadd.f32 %v2748, %v2918
      %v3043 = vadd.f32 %v2749, %v2923
      %v3044 = vadd.f32 %v2750, %v2926
      %v3045 = vadd.f32 %v2751, %v2931
      %v3046 = vadd.f32 %v2752, %v2934
      %v3047 = vadd.f32 %v2753, %v2939
      %v3048 = vadd.f32 %v2754, %v2942
      %v3049 = vadd.f32 %v2755, %v2947
      %v3050 = vadd.f32 %v2756, %v2950
      %v3051 = vadd.f32 %v2757, %v2955
      %v3052 = vadd.f32 %v2758, %v2958
      %v3053 = vadd.f32 %v2759, %v2963
      %v3054 = vadd.f32 %v2760, %v2966
      %v3055 = vadd.f32 %v2761, %v2971
      %v3056 = vadd.f32 %v2762, %v2974
      %v3057 = vadd.f32 %v2763, %v2979
      %v3058 = vadd.f32 %v2764, %v2982
      %v3059 = vadd.f32 %v2765, %v2987
      %v3060 = vadd.f32 %v2766, %v2990
      %v3061 = vadd.f32 %v2767, %v2995
      %v3062 = vadd.f32 %v2768, %v2998
      %v3063 = vadd.f32 %v2769, %v3003
      %v3064 = vadd.f32 %v2770, %v3006
      %v3065 = vadd.f32 %v2771, %v3011
      %v3066 = vadd.f32 %v2772, %v3014
      %v3067 = vadd.f32 %v2773, %v3019
      %v3068 = vadd.f32 %v2774, %v3022
      %v3069 = vadd.f32 %v2775, %v3027
      %v3070 = vadd.f32 %v2776, %v3030
      %v3071 = vadd.f32 %v2777, %v3035
      %v3072 = vadd.f32 %v2778, %v3038
      %vm3073 = vcmask 64512
      %v3074 = vsel %vm3073, %v3041, 0.0
      %v3075 = vsel %vm3073, %v3042, 0.0
      %v3076 = vadd.f32 %v3074, %v3075
      %v3077 = vsel %vm3073, %v3043, 0.0
      %v3078 = vadd.f32 %v3076, %v3077
      %v3079 = vsel %vm3073, %v3044, 0.0
      %v3080 = vadd.f32 %v3078, %v3079
      %v3081 = vsel %vm3073, %v3045, 0.0
      %v3082 = vadd.f32 %v3080, %v3081
      %v3083 = vsel %vm3073, %v3046, 0.0
      %v3084 = vadd.f32 %v3082, %v3083
      %v3085 = vsel %vm3073, %v3047, 0.0
      %v3086 = vadd.f32 %v3084, %v3085
      %v3087 = vsel %vm3073, %v3048, 0.0
      %v3088 = vadd.f32 %v3086, %v3087
      %v3089 = vsel %vm3073, %v3049, 0.0
      %v3090 = vadd.f32 %v3088, %v3089
      %v3091 = vsel %vm3073, %v3050, 0.0
      %v3092 = vadd.f32 %v3090, %v3091
      %v3093 = vsel %vm3073, %v3051, 0.0
      %v3094 = vadd.f32 %v3092, %v3093
      %v3095 = vsel %vm3073, %v3052, 0.0
      %v3096 = vadd.f32 %v3094, %v3095
      %v3097 = vsel %vm3073, %v3053, 0.0
      %v3098 = vadd.f32 %v3096, %v3097
      %v3099 = vsel %vm3073, %v3054, 0.0
      %v3100 = vadd.f32 %v3098, %v3099
      %v3101 = vsel %vm3073, %v3055, 0.0
      %v3102 = vadd.f32 %v3100, %v3101
      %v3103 = vsel %vm3073, %v3056, 0.0
      %v3104 = vadd.f32 %v3102, %v3103
      %v3105 = vsel %vm3073, %v3057, 0.0
      %v3106 = vadd.f32 %v3104, %v3105
      %v3107 = vsel %vm3073, %v3058, 0.0
      %v3108 = vadd.f32 %v3106, %v3107
      %v3109 = vsel %vm3073, %v3059, 0.0
      %v3110 = vadd.f32 %v3108, %v3109
      %v3111 = vsel %vm3073, %v3060, 0.0
      %v3112 = vadd.f32 %v3110, %v3111
      %v3113 = vsel %vm3073, %v3061, 0.0
      %v3114 = vadd.f32 %v3112, %v3113
      %v3115 = vsel %vm3073, %v3062, 0.0
      %v3116 = vadd.f32 %v3114, %v3115
      %v3117 = vsel %vm3073, %v3063, 0.0
      %v3118 = vadd.f32 %v3116, %v3117
      %v3119 = vsel %vm3073, %v3064, 0.0
      %v3120 = vadd.f32 %v3118, %v3119
      %v3121 = vsel %vm3073, %v3065, 0.0
      %v3122 = vadd.f32 %v3120, %v3121
      %v3123 = vsel %vm3073, %v3066, 0.0
      %v3124 = vadd.f32 %v3122, %v3123
      %v3125 = vsel %vm3073, %v3067, 0.0
      %v3126 = vadd.f32 %v3124, %v3125
      %v3127 = vsel %vm3073, %v3068, 0.0
      %v3128 = vadd.f32 %v3126, %v3127
      %v3129 = vsel %vm3073, %v3069, 0.0
      %v3130 = vadd.f32 %v3128, %v3129
      %v3131 = vsel %vm3073, %v3070, 0.0
      %v3132 = vadd.f32 %v3130, %v3131
      %v3133 = vsel %vm3073, %v3071, 0.0
      %v3134 = vadd.f32 %v3132, %v3133
      %v3135 = vsel %vm3073, %v3072, 0.0
      %v3136 = vadd.f32 %v3134, %v3135
      %v3137 = vrot.slane %v3136, 4
      %v3138 = vadd.f32 %v3136, %v3137
      %v3139 = vrot.slane %v3138, 2
      %v3140 = vadd.f32 %v3138, %v3139
      %v3141 = vrot.slane %v3140, 1
      %v3142 = vadd.f32 %v3140, %v3141
      %vm3143 = vcmask 57344
      %3144 = vst.msk [vmem:[%s235] sm:$0x1] %vm3143, %v3142
      %v3145 = vmul.f32 %v3041, %v3041
      %v3146 = vmul.f32 %v3042, %v3042
      %v3147 = vmul.f32 %v3043, %v3043
      %v3148 = vmul.f32 %v3044, %v3044
      %v3149 = vmul.f32 %v3045, %v3045
      %v3150 = vmul.f32 %v3046, %v3046
      %v3151 = vmul.f32 %v3047, %v3047
      %v3152 = vmul.f32 %v3048, %v3048
      %v3153 = vmul.f32 %v3049, %v3049
      %v3154 = vmul.f32 %v3050, %v3050
      %v3155 = vmul.f32 %v3051, %v3051
      %v3156 = vmul.f32 %v3052, %v3052
      %v3157 = vmul.f32 %v3053, %v3053
      %v3158 = vmul.f32 %v3054, %v3054
      %v3159 = vmul.f32 %v3055, %v3055
      %v3160 = vmul.f32 %v3056, %v3056
      %v3161 = vmul.f32 %v3057, %v3057
      %v3162 = vmul.f32 %v3058, %v3058
      %v3163 = vmul.f32 %v3059, %v3059
      %v3164 = vmul.f32 %v3060, %v3060
      %v3165 = vmul.f32 %v3061, %v3061
      %v3166 = vmul.f32 %v3062, %v3062
      %v3167 = vmul.f32 %v3063, %v3063
      %v3168 = vmul.f32 %v3064, %v3064
      %v3169 = vmul.f32 %v3065, %v3065
      %v3170 = vmul.f32 %v3066, %v3066
      %v3171 = vmul.f32 %v3067, %v3067
      %v3172 = vmul.f32 %v3068, %v3068
      %v3173 = vmul.f32 %v3069, %v3069
      %v3174 = vmul.f32 %v3070, %v3070
      %v3175 = vmul.f32 %v3071, %v3071
      %v3176 = vmul.f32 %v3072, %v3072
      %v3177 = vsel %vm3073, %v3145, 0.0
      %v3178 = vsel %vm3073, %v3146, 0.0
      %v3179 = vadd.f32 %v3177, %v3178
      %v3180 = vsel %vm3073, %v3147, 0.0
      %v3181 = vadd.f32 %v3179, %v3180
      %v3182 = vsel %vm3073, %v3148, 0.0
      %v3183 = vadd.f32 %v3181, %v3182
      %v3184 = vsel %vm3073, %v3149, 0.0
      %v3185 = vadd.f32 %v3183, %v3184
      %v3186 = vsel %vm3073, %v3150, 0.0
      %v3187 = vadd.f32 %v3185, %v3186
      %v3188 = vsel %vm3073, %v3151, 0.0
      %v3189 = vadd.f32 %v3187, %v3188
      %v3190 = vsel %vm3073, %v3152, 0.0
      %v3191 = vadd.f32 %v3189, %v3190
      %v3192 = vsel %vm3073, %v3153, 0.0
      %v3193 = vadd.f32 %v3191, %v3192
      %v3194 = vsel %vm3073, %v3154, 0.0
      %v3195 = vadd.f32 %v3193, %v3194
      %v3196 = vsel %vm3073, %v3155, 0.0
      %v3197 = vadd.f32 %v3195, %v3196
      %v3198 = vsel %vm3073, %v3156, 0.0
      %v3199 = vadd.f32 %v3197, %v3198
      %v3200 = vsel %vm3073, %v3157, 0.0
      %v3201 = vadd.f32 %v3199, %v3200
      %v3202 = vsel %vm3073, %v3158, 0.0
      %v3203 = vadd.f32 %v3201, %v3202
      %v3204 = vsel %vm3073, %v3159, 0.0
      %v3205 = vadd.f32 %v3203, %v3204
      %v3206 = vsel %vm3073, %v3160, 0.0
      %v3207 = vadd.f32 %v3205, %v3206
      %v3208 = vsel %vm3073, %v3161, 0.0
      %v3209 = vadd.f32 %v3207, %v3208
      %v3210 = vsel %vm3073, %v3162, 0.0
      %v3211 = vadd.f32 %v3209, %v3210
      %v3212 = vsel %vm3073, %v3163, 0.0
      %v3213 = vadd.f32 %v3211, %v3212
      %v3214 = vsel %vm3073, %v3164, 0.0
      %v3215 = vadd.f32 %v3213, %v3214
      %v3216 = vsel %vm3073, %v3165, 0.0
      %v3217 = vadd.f32 %v3215, %v3216
      %v3218 = vsel %vm3073, %v3166, 0.0
      %v3219 = vadd.f32 %v3217, %v3218
      %v3220 = vsel %vm3073, %v3167, 0.0
      %v3221 = vadd.f32 %v3219, %v3220
      %v3222 = vsel %vm3073, %v3168, 0.0
      %v3223 = vadd.f32 %v3221, %v3222
      %v3224 = vsel %vm3073, %v3169, 0.0
      %v3225 = vadd.f32 %v3223, %v3224
      %v3226 = vsel %vm3073, %v3170, 0.0
      %v3227 = vadd.f32 %v3225, %v3226
      %v3228 = vsel %vm3073, %v3171, 0.0
      %v3229 = vadd.f32 %v3227, %v3228
      %v3230 = vsel %vm3073, %v3172, 0.0
      %v3231 = vadd.f32 %v3229, %v3230
      %v3232 = vsel %vm3073, %v3173, 0.0
      %v3233 = vadd.f32 %v3231, %v3232
      %v3234 = vsel %vm3073, %v3174, 0.0
      %v3235 = vadd.f32 %v3233, %v3234
      %v3236 = vsel %vm3073, %v3175, 0.0
      %v3237 = vadd.f32 %v3235, %v3236
      %v3238 = vsel %vm3073, %v3176, 0.0
      %v3239 = vadd.f32 %v3237, %v3238
      %v3240 = vrot.slane %v3239, 4
      %v3241 = vadd.f32 %v3239, %v3240
      %v3242 = vrot.slane %v3241, 2
      %v3243 = vadd.f32 %v3241, %v3242
      %v3244 = vrot.slane %v3243, 1
      %v3245 = vadd.f32 %v3243, %v3244
      %3246 = vst.msk [vmem:[%s235 + $0x1] sm:$0x1] %vm3143, %v3245
      %v3247 = vpack.c.bf16 %v3042, %v3041
      %v3248 = vpack.c.bf16 %v3044, %v3043
      %v3249 = vpack.c.bf16 %v3046, %v3045
      %v3250 = vpack.c.bf16 %v3048, %v3047
      %v3251 = vpack.c.bf16 %v3050, %v3049
      %v3252 = vpack.c.bf16 %v3052, %v3051
      %v3253 = vpack.c.bf16 %v3054, %v3053
      %v3254 = vpack.c.bf16 %v3056, %v3055
      %v3255 = vpack.c.bf16 %v3058, %v3057
      %v3256 = vpack.c.bf16 %v3060, %v3059
      %v3257 = vpack.c.bf16 %v3062, %v3061
      %v3258 = vpack.c.bf16 %v3064, %v3063
      %v3259 = vpack.c.bf16 %v3066, %v3065
      %v3260 = vpack.c.bf16 %v3068, %v3067
      %v3261 = vpack.c.bf16 %v3070, %v3069
      %v3262 = vpack.c.bf16 %v3072, %v3071
      %v3279 = vunpack.c.l.b16 %v3247
      %v3280 = vunpack.c.h.b16 %v3247
      %v3281 = vunpack.c.l.b16 %v3248
      %v3282 = vunpack.c.h.b16 %v3248
      %v3283 = vunpack.c.l.b16 %v3249
      %v3284 = vunpack.c.h.b16 %v3249
      %v3285 = vunpack.c.l.b16 %v3250
      %v3286 = vunpack.c.h.b16 %v3250
      %v3287 = vunpack.c.l.b16 %v3251
      %v3288 = vunpack.c.h.b16 %v3251
      %v3289 = vunpack.c.l.b16 %v3252
      %v3290 = vunpack.c.h.b16 %v3252
      %v3291 = vunpack.c.l.b16 %v3253
      %v3292 = vunpack.c.h.b16 %v3253
      %v3293 = vunpack.c.l.b16 %v3254
      %v3294 = vunpack.c.h.b16 %v3254
      %v3295 = vunpack.c.l.b16 %v3255
      %v3296 = vunpack.c.h.b16 %v3255
      %v3297 = vunpack.c.l.b16 %v3256
      %v3298 = vunpack.c.h.b16 %v3256
      %v3299 = vunpack.c.l.b16 %v3257
      %v3300 = vunpack.c.h.b16 %v3257
      %v3301 = vunpack.c.l.b16 %v3258
      %v3302 = vunpack.c.h.b16 %v3258
      %v3303 = vunpack.c.l.b16 %v3259
      %v3304 = vunpack.c.h.b16 %v3259
      %v3305 = vunpack.c.l.b16 %v3260
      %v3306 = vunpack.c.h.b16 %v3260
      %v3307 = vunpack.c.l.b16 %v3261
      %v3308 = vunpack.c.h.b16 %v3261
      %v3309 = vunpack.c.l.b16 %v3262
      %v3310 = vunpack.c.h.b16 %v3262
      %v3311 = vpack.c.b16 %v3279, %v3279
      %v3312 = vpack.c.b16 %v3280, %v3280
      %v3313 = vpack.c.b16 %v3281, %v3281
      %v3314 = vpack.c.b16 %v3282, %v3282
      %v3315 = vpack.c.b16 %v3283, %v3283
      %v3316 = vpack.c.b16 %v3284, %v3284
      %v3317 = vpack.c.b16 %v3285, %v3285
      %v3318 = vpack.c.b16 %v3286, %v3286
      %v3319 = vpack.c.b16 %v3287, %v3287
      %v3320 = vpack.c.b16 %v3288, %v3288
      %v3321 = vpack.c.b16 %v3289, %v3289
      %v3322 = vpack.c.b16 %v3290, %v3290
      %v3323 = vpack.c.b16 %v3291, %v3291
      %v3324 = vpack.c.b16 %v3292, %v3292
      %v3325 = vpack.c.b16 %v3293, %v3293
      %v3326 = vpack.c.b16 %v3294, %v3294
      %v3327 = vpack.c.b16 %v3295, %v3295
      %v3328 = vpack.c.b16 %v3296, %v3296
      %v3329 = vpack.c.b16 %v3297, %v3297
      %v3330 = vpack.c.b16 %v3298, %v3298
      %v3331 = vpack.c.b16 %v3299, %v3299
      %v3332 = vpack.c.b16 %v3300, %v3300
      %v3333 = vpack.c.b16 %v3301, %v3301
      %v3334 = vpack.c.b16 %v3302, %v3302
      %v3335 = vpack.c.b16 %v3303, %v3303
      %v3336 = vpack.c.b16 %v3304, %v3304
      %v3337 = vpack.c.b16 %v3305, %v3305
      %v3338 = vpack.c.b16 %v3306, %v3306
      %v3339 = vpack.c.b16 %v3307, %v3307
      %v3340 = vpack.c.b16 %v3308, %v3308
      %v3341 = vpack.c.b16 %v3309, %v3309
      %v3342 = vpack.c.b16 %v3310, %v3310
      %vm3375 = vcmask 60416
      %3376 = vst.msk [vmem:[%s231] sm:$0xf] %vm3375, %v3311
      %3377 = vst.msk [vmem:[%s231 + $0x4] sm:$0xf] %vm3375, %v3312
      %3378 = vst.msk [vmem:[%s231 + $0x8] sm:$0xf] %vm3375, %v3313
      %3379 = vst.msk [vmem:[%s231 + $0xc] sm:$0xf] %vm3375, %v3314
      %3380 = vst.msk [vmem:[%s231 + $0x10] sm:$0xf] %vm3375, %v3315
      %3381 = vst.msk [vmem:[%s231 + $0x14] sm:$0xf] %vm3375, %v3316
      %3382 = vst.msk [vmem:[%s231 + $0x18] sm:$0xf] %vm3375, %v3317
      %3383 = vst.msk [vmem:[%s231 + $0x1c] sm:$0xf] %vm3375, %v3318
      %3384 = vst.msk [vmem:[%s231 + $0x20] sm:$0xf] %vm3375, %v3319
      %3385 = vst.msk [vmem:[%s231 + $0x24] sm:$0xf] %vm3375, %v3320
      %3386 = vst.msk [vmem:[%s231 + $0x28] sm:$0xf] %vm3375, %v3321
      %3387 = vst.msk [vmem:[%s231 + $0x2c] sm:$0xf] %vm3375, %v3322
      %3388 = vst.msk [vmem:[%s231 + $0x30] sm:$0xf] %vm3375, %v3323
      %3389 = vst.msk [vmem:[%s231 + $0x34] sm:$0xf] %vm3375, %v3324
      %3390 = vst.msk [vmem:[%s231 + $0x38] sm:$0xf] %vm3375, %v3325
      %3391 = vst.msk [vmem:[%s231 + $0x3c] sm:$0xf] %vm3375, %v3326
      %3392 = vst.msk [vmem:[%s231 + $0x40] sm:$0xf] %vm3375, %v3327
      %3393 = vst.msk [vmem:[%s231 + $0x44] sm:$0xf] %vm3375, %v3328
      %3394 = vst.msk [vmem:[%s231 + $0x48] sm:$0xf] %vm3375, %v3329
      %3395 = vst.msk [vmem:[%s231 + $0x4c] sm:$0xf] %vm3375, %v3330
      %3396 = vst.msk [vmem:[%s231 + $0x50] sm:$0xf] %vm3375, %v3331
      %3397 = vst.msk [vmem:[%s231 + $0x54] sm:$0xf] %vm3375, %v3332
      %3398 = vst.msk [vmem:[%s231 + $0x58] sm:$0xf] %vm3375, %v3333
      %3399 = vst.msk [vmem:[%s231 + $0x5c] sm:$0xf] %vm3375, %v3334
      %3400 = vst.msk [vmem:[%s231 + $0x60] sm:$0xf] %vm3375, %v3335
      %3401 = vst.msk [vmem:[%s231 + $0x64] sm:$0xf] %vm3375, %v3336
      %3402 = vst.msk [vmem:[%s231 + $0x68] sm:$0xf] %vm3375, %v3337
      %3403 = vst.msk [vmem:[%s231 + $0x6c] sm:$0xf] %vm3375, %v3338
      %3404 = vst.msk [vmem:[%s231 + $0x70] sm:$0xf] %vm3375, %v3339
      %3405 = vst.msk [vmem:[%s231 + $0x74] sm:$0xf] %vm3375, %v3340
      %3406 = vst.msk [vmem:[%s231 + $0x78] sm:$0xf] %vm3375, %v3341
      %3407 = vst.msk [vmem:[%s231 + $0x7c] sm:$0xf] %vm3375, %v3342
      %p3408 = scmp.lt.s32.totalorder %s17, 1
      %s3409 = scalar_select %p3408, %s17, 1
      %s3410 = smul.addr %s3409, 32
      %s3411 = smul.addr %s3410, 4
      %s3412 = scalar_lea.vmem %s4, %s3411
      %p3413 = scmp.lt.s32.totalorder %s17, 1
      %s3414 = scalar_select %p3413, %s17, 1
      %s3415 = smul.addr %s3414, 2
      %s3416 = scalar_lea.vmem %s5, %s3415
      // Predicated region
      $region37: #{inception_forward.6} parent=35 // pred_check
        %p3417 = pneg %p124
      $region38: #{inception_forward.6} parent=35 // pred_check_branch
        %3419 = sbr.rel (%p3417) target = $region40
      $region39: #{inception_forward.6} parent=35 // pred_region
        _
      $region40: #{inception_forward.6} parent=35 // pred_fallthru
        _
      // Predicated region
      $region41: #{inception_forward.6} parent=35 // pred_check
        %p3420 = pneg %p150
      $region42: #{inception_forward.6} parent=35 // pred_check_branch
        %3422 = sbr.rel (%p3420) target = $region44
      $region43: #{inception_forward.6} parent=35 // pred_region
        _
      $region44: #{inception_forward.6} parent=35 // pred_fallthru
        _
    $region36: #{inception_forward.6} parent=5 // pred_fallthru
      _
    %p3423 = scmp.le.s32.totalorder 2, %s12
    // Predicated region
    $region45: #{inception_forward.6} parent=5 // pred_check
      %p3424 = pneg %p3423
    $region46: #{inception_forward.6} parent=5 // pred_check_branch
      %3426 = sbr.rel (%p3424) target = $region48
    $region47: #{inception_forward.6} parent=5 // pred_region
      %s3427 = ssub.s32 %s12, 2
      // Predicated region
      $region49: #{inception_forward.6} parent=47 // pred_check
        %p3428 = pneg %p130
      $region50: #{inception_forward.6} parent=47 // pred_check_branch
        %3430 = sbr.rel (%p3428) target = $region52
      $region51: #{inception_forward.6} parent=47 // pred_region
        %p3431 = scmp.lt.s32.totalorder %s18, 1
        %s3432 = scalar_select %p3431, %s18, 1
        %s3433 = smul.addr %s3432, 32
        %s3434 = smul.addr %s3433, 4
        %s3435 = scalar_lea.vmem %s4, %s3434
      $region52: #{inception_forward.6} parent=47 // pred_fallthru
        _
      // Predicated region
      $region53: #{inception_forward.6} parent=47 // pred_check
        %p3436 = pneg %p156
      $region54: #{inception_forward.6} parent=47 // pred_check_branch
        %3438 = sbr.rel (%p3436) target = $region56
      $region55: #{inception_forward.6} parent=47 // pred_region
        %p3439 = scmp.lt.s32.totalorder %s18, 1
        %s3440 = scalar_select %p3439, %s18, 1
        %s3441 = smul.addr %s3440, 2
        %s3442 = scalar_lea.vmem %s5, %s3441
      $region56: #{inception_forward.6} parent=47 // pred_fallthru
        _
    $region48: #{inception_forward.6} parent=5 // pred_fallthru
      _
  $region6: #{inception_forward.6} parent=0 // loop_footer
    %s16 = sadd.s32 1, %s12
  $region7: #{inception_forward.6} parent=0 // loop_footer_branch
    %11 = sbr.rel target = $region3
  $region8: #{inception_forward.6} parent=0 // loop_exit
    _

// kernel: inception_forward.8
$region0: #{inception_forward.8}
  #allocation0 [shape = 'u32[]', space=smem, size = 0x4, offset = 0x4, fixed_abs, tag = 'smem constant byte address 0x4 - core index']
  #allocation1 [shape = 'u32[144,128]{1,0:T(1,128)}', space=vmem, size = 0x12000, scoped, tag = 'internal scratch']
  #allocation2 [shape = 'f32[1,18,18,8]{3,2,1,0:T(8,128)}', space=vmem, size = 0x36000, scoped, tag = 'scratch operand']
  %s0 = inlined_call_operand.vmem [shape: bf16[2,256,8], index: 0, kind: input, shape index: {}]
  %s1 = inlined_call_operand.vmem [shape: f32[1,8], index: 1, kind: input, shape index: {}]
  %s2 = inlined_call_operand.vmem [shape: f32[1,8], index: 2, kind: input, shape index: {}]
  %s3 = inlined_call_operand.vmem [shape: bf16[9,8,8], index: 3, kind: input, shape index: {}]
  %s4 = inlined_call_operand.vmem [shape: bf16[2,256,8], index: 4, kind: output, shape index: {0}]
  %s5 = inlined_call_operand.vmem [shape: f32[2,2,8], index: 5, kind: output, shape index: {1}]
  %6 = xla_tuple %s4, %s5
  %s7 = sld [smem:[#allocation0]]
  $region57: #{inception_forward.8} parent=0
    _
  %s9 = ssub.s32 1, %s7
  %s10 = scalar_select 0, %s9, %s7
  loop: start=0, step=1, limit=4
  $region2: #{inception_forward.8} parent=0 // loop_pre_header
    _
  $region3: #{inception_forward.8} parent=0 // loop_header
    %s12 = sphi 0, %s16
    %p13 = scmp.ge.s32.totalorder %s12, 4
    %s22 = sphi 0, %s24
    %s25 = sphi 0, %s22
    %s26 = sphi 0, %s25
    %s42 = sphi 0, %s26
    %s46 = sphi 0, %s46
    %s48 = sphi 0, %s46
    %s49 = sphi 0, %s48
    %s63 = sphi 0, %s49
    %s67 = sphi 0, %s67
    %s69 = sphi 0, %s67
    %s70 = sphi 0, %s69
    %s84 = sphi 0, %s70
    %s88 = sphi 0, %s88
    %s90 = sphi 0, %s88
    %s91 = sphi 0, %s90
    %s105 = sphi 0, %s91
    %s111 = sphi 0, %s113
    %s114 = sphi 0, %s111
    %s115 = sphi 0, %s114
    %s131 = sphi 0, %s115
    %s137 = sphi 0, %s139
    %s140 = sphi 0, %s137
    %s141 = sphi 0, %s140
    %s157 = sphi 0, %s141
  $region4: #{inception_forward.8} parent=0 // loop_header_branch
    %15 = sbr.rel (%p13) target = $region8
  $region5: #{inception_forward.8} parent=0 // loop_body
    %s17 = ssub.s32 %s12, 1
    %s18 = ssub.s32 %s12, 2
    %s19 = sadd.s32 %s12, 1
    %s20 = ssub.s32 %s12, %s19
    %p21 = scmp.eq.s32.totalorder %s20, 0
    %s23 = sadd.s32 %s22, 1
    %s24 = scalar_select %p21, %s22, %s23
    %p27 = pneg %p21
    %p28 = scmp.eq.s32.totalorder %s12, 1
    %p29 = por %p27, %p28
    %p30 = scmp.ne.s32.totalorder %s22, %s25
    %p31 = scmp.eq.s32.totalorder %s12, 0
    %p32 = por %p30, %p31
    %p33 = scmp.ne.s32.totalorder %s22, %s25
    %p34 = scmp.eq.s32.totalorder %s17, 1
    %p35 = por %p33, %p34
    %p36 = scmp.ne.s32.totalorder %s25, %s26
    %p37 = scmp.eq.s32.totalorder %s17, 0
    %p38 = por %p36, %p37
    %p39 = scmp.ne.s32.totalorder %s25, %s26
    %p40 = scmp.eq.s32.totalorder %s18, 1
    %p41 = por %p39, %p40
    %p43 = scmp.ne.s32.totalorder %s26, %s42
    %p44 = scmp.eq.s32.totalorder %s18, 0
    %p45 = por %p43, %p44
    %s47 = sadd.s32 %s46, 1
    %p50 = scmp.eq.s32.totalorder %s12, 1
    %p51 = scmp.ne.s32.totalorder %s46, %s48
    %p52 = scmp.eq.s32.totalorder %s12, 0
    %p53 = por %p51, %p52
    %p54 = scmp.ne.s32.totalorder %s46, %s48
    %p55 = scmp.eq.s32.totalorder %s17, 1
    %p56 = por %p54, %p55
    %p57 = scmp.ne.s32.totalorder %s48, %s49
    %p58 = scmp.eq.s32.totalorder %s17, 0
    %p59 = por %p57, %p58
    %p60 = scmp.ne.s32.totalorder %s48, %s49
    %p61 = scmp.eq.s32.totalorder %s18, 1
    %p62 = por %p60, %p61
    %p64 = scmp.ne.s32.totalorder %s49, %s63
    %p65 = scmp.eq.s32.totalorder %s18, 0
    %p66 = por %p64, %p65
    %s68 = sadd.s32 %s67, 1
    %p71 = scmp.eq.s32.totalorder %s12, 1
    %p72 = scmp.ne.s32.totalorder %s67, %s69
    %p73 = scmp.eq.s32.totalorder %s12, 0
    %p74 = por %p72, %p73
    %p75 = scmp.ne.s32.totalorder %s67, %s69
    %p76 = scmp.eq.s32.totalorder %s17, 1
    %p77 = por %p75, %p76
    %p78 = scmp.ne.s32.totalorder %s69, %s70
    %p79 = scmp.eq.s32.totalorder %s17, 0
    %p80 = por %p78, %p79
    %p81 = scmp.ne.s32.totalorder %s69, %s70
    %p82 = scmp.eq.s32.totalorder %s18, 1
    %p83 = por %p81, %p82
    %p85 = scmp.ne.s32.totalorder %s70, %s84
    %p86 = scmp.eq.s32.totalorder %s18, 0
    %p87 = por %p85, %p86
    %s89 = sadd.s32 %s88, 1
    %p92 = scmp.eq.s32.totalorder %s12, 1
    %p93 = scmp.ne.s32.totalorder %s88, %s90
    %p94 = scmp.eq.s32.totalorder %s12, 0
    %p95 = por %p93, %p94
    %p96 = scmp.ne.s32.totalorder %s88, %s90
    %p97 = scmp.eq.s32.totalorder %s17, 1
    %p98 = por %p96, %p97
    %p99 = scmp.ne.s32.totalorder %s90, %s91
    %p100 = scmp.eq.s32.totalorder %s17, 0
    %p101 = por %p99, %p100
    %p102 = scmp.ne.s32.totalorder %s90, %s91
    %p103 = scmp.eq.s32.totalorder %s18, 1
    %p104 = por %p102, %p103
    %p106 = scmp.ne.s32.totalorder %s91, %s105
    %p107 = scmp.eq.s32.totalorder %s18, 0
    %p108 = por %p106, %p107
    %s109 = ssub.s32 %s12, %s19
    %p110 = scmp.eq.s32.totalorder %s109, 0
    %s112 = sadd.s32 %s111, 1
    %s113 = scalar_select %p110, %s111, %s112
    %p116 = pneg %p110
    %p117 = scmp.eq.s32.totalorder %s12, 1
    %p118 = por %p116, %p117
    %p119 = scmp.ne.s32.totalorder %s111, %s114
    %p120 = scmp.eq.s32.totalorder %s12, 0
    %p121 = por %p119, %p120
    %p122 = scmp.ne.s32.totalorder %s111, %s114
    %p123 = scmp.eq.s32.totalorder %s17, 1
    %p124 = por %p122, %p123
    %p125 = scmp.ne.s32.totalorder %s114, %s115
    %p126 = scmp.eq.s32.totalorder %s17, 0
    %p127 = por %p125, %p126
    %p128 = scmp.ne.s32.totalorder %s114, %s115
    %p129 = scmp.eq.s32.totalorder %s18, 1
    %p130 = por %p128, %p129
    %p132 = scmp.ne.s32.totalorder %s115, %s131
    %p133 = scmp.eq.s32.totalorder %s18, 0
    %p134 = por %p132, %p133
    %s135 = ssub.s32 %s12, %s19
    %p136 = scmp.eq.s32.totalorder %s135, 0
    %s138 = sadd.s32 %s137, 1
    %s139 = scalar_select %p136, %s137, %s138
    %p142 = pneg %p136
    %p143 = scmp.eq.s32.totalorder %s12, 1
    %p144 = por %p142, %p143
    %p145 = scmp.ne.s32.totalorder %s137, %s140
    %p146 = scmp.eq.s32.totalorder %s12, 0
    %p147 = por %p145, %p146
    %p148 = scmp.ne.s32.totalorder %s137, %s140
    %p149 = scmp.eq.s32.totalorder %s17, 1
    %p150 = por %p148, %p149
    %p151 = scmp.ne.s32.totalorder %s140, %s141
    %p152 = scmp.eq.s32.totalorder %s17, 0
    %p153 = por %p151, %p152
    %p154 = scmp.ne.s32.totalorder %s140, %s141
    %p155 = scmp.eq.s32.totalorder %s18, 1
    %p156 = por %p154, %p155
    %p158 = scmp.ne.s32.totalorder %s141, %s157
    %p159 = scmp.eq.s32.totalorder %s18, 0
    %p160 = por %p158, %p159
    %p161 = scmp.le.s32.totalorder 1, %s12
    %p162 = scmp.lt.s32.totalorder %s12, 3
    %p163 = pnand %p161, %p162
    %p164 = pneg %p163
    // Predicated region
    $region9: #{inception_forward.8} parent=5 // pred_check
      _
    $region10: #{inception_forward.8} parent=5 // pred_check_branch
      %166 = sbr.rel (%p163) target = $region12
    $region11: #{inception_forward.8} parent=5 // pred_region
      %s167 = ssub.s32 %s12, 1
      // Predicated region
      $region13: #{inception_forward.8} parent=11 // pred_check
        %p168 = pneg %p59
      $region14: #{inception_forward.8} parent=11 // pred_check_branch
        %170 = sbr.rel (%p168) target = $region16
      $region15: #{inception_forward.8} parent=11 // pred_region
        _
      $region16: #{inception_forward.8} parent=11 // pred_fallthru
        _
      // Predicated region
      $region17: #{inception_forward.8} parent=11 // pred_check
        %p171 = pneg %p80
      $region18: #{inception_forward.8} parent=11 // pred_check_branch
        %173 = sbr.rel (%p171) target = $region20
      $region19: #{inception_forward.8} parent=11 // pred_region
        _
      $region20: #{inception_forward.8} parent=11 // pred_fallthru
        _
      // Predicated region
      $region21: #{inception_forward.8} parent=11 // pred_check
        %p174 = pneg %p101
      $region22: #{inception_forward.8} parent=11 // pred_check_branch
        %176 = sbr.rel (%p174) target = $region24
      $region23: #{inception_forward.8} parent=11 // pred_region
        _
      $region24: #{inception_forward.8} parent=11 // pred_fallthru
        _
    $region12: #{inception_forward.8} parent=5 // pred_fallthru
      _
    %p177 = scmp.lt.s32.totalorder %s12, 2
    // Predicated region
    $region25: #{inception_forward.8} parent=5 // pred_check
      %p178 = pneg %p177
    $region26: #{inception_forward.8} parent=5 // pred_check_branch
      %180 = sbr.rel (%p178) target = $region28
    $region27: #{inception_forward.8} parent=5 // pred_region
      // Predicated region
      $region29: #{inception_forward.8} parent=27 // pred_check
        %p181 = pneg %p32
      $region30: #{inception_forward.8} parent=27 // pred_check_branch
        %183 = sbr.rel (%p181) target = $region32
      $region31: #{inception_forward.8} parent=27 // pred_region
        %p184 = scmp.lt.s32.totalorder %s12, 1
        %s185 = scalar_select %p184, %s12, 1
        %s186 = smul.addr %s185, 32
        %s187 = smul.addr %s186, 4
        %s188 = scalar_lea.vmem %s0, %s187
      $region32: #{inception_forward.8} parent=27 // pred_fallthru
        _
    $region28: #{inception_forward.8} parent=5 // pred_fallthru
      _
    %p189 = scmp.le.s32.totalorder 1, %s12
    %p190 = scmp.lt.s32.totalorder %s12, 3
    %p191 = pnand %p189, %p190
    %p192 = pneg %p191
    // Predicated region
    $region33: #{inception_forward.8} parent=5 // pred_check
      _
    $region34: #{inception_forward.8} parent=5 // pred_check_branch
      %194 = sbr.rel (%p191) target = $region36
    $region35: #{inception_forward.8} parent=5 // pred_region
      %s195 = ssub.s32 %s12, 1
      %p196 = scmp.lt.s32.totalorder %s17, 1
      %s197 = scalar_select %p196, %s17, 1
      %s198 = smul.addr %s197, 32
      %s199 = smul.addr %s198, 4
      %s200 = scalar_lea.vmem %s0, %s199
      %p201 = pneg %p38
      %p202 = pneg %p35
      %p203 = pneg %p59
      %p204 = pneg %p56
      %p205 = pneg %p80
      %p206 = pneg %p77
      %p207 = pneg %p101
      %p208 = pneg %p98
      %p209 = pneg %p127
      %p210 = pneg %p124
      %p211 = scmp.lt.s32.totalorder %s17, 1
      %s212 = scalar_select %p211, %s17, 1
      %s213 = smul.addr %s212, 32
      %s214 = smul.addr %s213, 4
      %s215 = scalar_lea.vmem %s4, %s214
      %p216 = pneg %p153
      %p217 = pneg %p150
      %p218 = scmp.lt.s32.totalorder %s17, 1
      %s219 = scalar_select %p218, %s17, 1
      %s220 = smul.addr %s219, 2
      %s221 = scalar_lea.vmem %s5, %s220
      %p222 = scmp.lt.s32.totalorder %s17, 1
      %s223 = scalar_select %p222, %s17, 1
      %s224 = smul.addr %s223, 32
      %s225 = smul.addr %s224, 4
      %s226 = scalar_lea.vmem %s0, %s225
      %p227 = scmp.lt.s32.totalorder %s17, 1
      %s228 = scalar_select %p227, %s17, 1
      %s229 = smul.addr %s228, 32
      %s230 = smul.addr %s229, 4
      %s231 = scalar_lea.vmem %s4, %s230
      %p232 = scmp.lt.s32.totalorder %s17, 1
      %s233 = scalar_select %p232, %s17, 1
      %s234 = smul.addr %s233, 2
      %s235 = scalar_lea.vmem %s5, %s234
      %vm237 = vcmask 64512
      %238 = vst.msk [vmem:[#allocation2] sm:$0xff] %vm237, 0.0
      %239 = vst.msk [vmem:[#allocation2 + $0x8] sm:$0xff] %vm237, 0.0
      %vm240 = vcmask 58368
      %241 = vst.msk [vmem:[#allocation2 + $0x10] sm:$0x3] %vm240, 0.0
      %s242 = scalar_lea.vmem [#allocation2], 408
      %243 = vst.msk [vmem:[%s242] sm:$0xff] %vm237, 0.0
      %244 = vst.msk [vmem:[%s242 + $0x8] sm:$0xff] %vm237, 0.0
      %245 = vst.msk [vmem:[%s242 + $0x10] sm:$0x3] %vm240, 0.0
      %vm246 = vcmask 57344
      %247 = vst.msk [vmem:[#allocation2] sm:$0x1] %vm246, 0.0
      %248 = vst.msk [vmem:[#allocation2 + $0x18] sm:$0x1] %vm246, 0.0
      %249 = vst.msk [vmem:[#allocation2 + $0x30] sm:$0x1] %vm246, 0.0
      %250 = vst.msk [vmem:[#allocation2 + $0x48] sm:$0x1] %vm246, 0.0
      %251 = vst.msk [vmem:[#allocation2 + $0x60] sm:$0x1] %vm246, 0.0
      %252 = vst.msk [vmem:[#allocation2 + $0x78] sm:$0x1] %vm246, 0.0
      %253 = vst.msk [vmem:[#allocation2 + $0x90] sm:$0x1] %vm246, 0.0
      %254 = vst.msk [vmem:[#allocation2 + $0xa8] sm:$0x1] %vm246, 0.0
      %255 = vst.msk [vmem:[#allocation2 + $0xc0] sm:$0x1] %vm246, 0.0
      %256 = vst.msk [vmem:[#allocation2 + $0xd8] sm:$0x1] %vm246, 0.0
      %257 = vst.msk [vmem:[#allocation2 + $0xf0] sm:$0x1] %vm246, 0.0
      %258 = vst.msk [vmem:[#allocation2 + $0x108] sm:$0x1] %vm246, 0.0
      %259 = vst.msk [vmem:[#allocation2 + $0x120] sm:$0x1] %vm246, 0.0
      %260 = vst.msk [vmem:[#allocation2 + $0x138] sm:$0x1] %vm246, 0.0
      %261 = vst.msk [vmem:[#allocation2 + $0x150] sm:$0x1] %vm246, 0.0
      %262 = vst.msk [vmem:[#allocation2 + $0x168] sm:$0x1] %vm246, 0.0
      %263 = vst.msk [vmem:[#allocation2 + $0x180] sm:$0x1] %vm246, 0.0
      %264 = vst.msk [vmem:[#allocation2 + $0x198] sm:$0x1] %vm246, 0.0
      %265 = vst.msk [vmem:[#allocation2 + $0x11] sm:$0x1] %vm246, 0.0
      %266 = vst.msk [vmem:[#allocation2 + $0x29] sm:$0x1] %vm246, 0.0
      %267 = vst.msk [vmem:[#allocation2 + $0x41] sm:$0x1] %vm246, 0.0
      %268 = vst.msk [vmem:[#allocation2 + $0x59] sm:$0x1] %vm246, 0.0
      %269 = vst.msk [vmem:[#allocation2 + $0x71] sm:$0x1] %vm246, 0.0
      %270 = vst.msk [vmem:[#allocation2 + $0x89] sm:$0x1] %vm246, 0.0
      %271 = vst.msk [vmem:[#allocation2 + $0xa1] sm:$0x1] %vm246, 0.0
      %272 = vst.msk [vmem:[#allocation2 + $0xb9] sm:$0x1] %vm246, 0.0
      %273 = vst.msk [vmem:[#allocation2 + $0xd1] sm:$0x1] %vm246, 0.0
      %274 = vst.msk [vmem:[#allocation2 + $0xe9] sm:$0x1] %vm246, 0.0
      %275 = vst.msk [vmem:[#allocation2 + $0x101] sm:$0x1] %vm246, 0.0
      %276 = vst.msk [vmem:[#allocation2 + $0x119] sm:$0x1] %vm246, 0.0
      %277 = vst.msk [vmem:[#allocation2 + $0x131] sm:$0x1] %vm246, 0.0
      %278 = vst.msk [vmem:[#allocation2 + $0x149] sm:$0x1] %vm246, 0.0
      %279 = vst.msk [vmem:[#allocation2 + $0x161] sm:$0x1] %vm246, 0.0
      %280 = vst.msk [vmem:[#allocation2 + $0x179] sm:$0x1] %vm246, 0.0
      %281 = vst.msk [vmem:[#allocation2 + $0x191] sm:$0x1] %vm246, 0.0
      %282 = vst.msk [vmem:[#allocation2 + $0x1a9] sm:$0x1] %vm246, 0.0
      %v283 = vld [vmem:[%s226] sm:$0xf]
      %v284 = vld [vmem:[%s226 + $0x4] sm:$0xf]
      %v285 = vld [vmem:[%s226 + $0x8] sm:$0xf]
      %v286 = vld [vmem:[%s226 + $0xc] sm:$0xf]
      %v287 = vld [vmem:[%s226 + $0x10] sm:$0xf]
      %v288 = vld [vmem:[%s226 + $0x14] sm:$0xf]
      %v289 = vld [vmem:[%s226 + $0x18] sm:$0xf]
      %v290 = vld [vmem:[%s226 + $0x1c] sm:$0xf]
      %v291 = vld [vmem:[%s226 + $0x20] sm:$0xf]
      %v292 = vld [vmem:[%s226 + $0x24] sm:$0xf]
      %v293 = vld [vmem:[%s226 + $0x28] sm:$0xf]
      %v294 = vld [vmem:[%s226 + $0x2c] sm:$0xf]
      %v295 = vld [vmem:[%s226 + $0x30] sm:$0xf]
      %v296 = vld [vmem:[%s226 + $0x34] sm:$0xf]
      %v297 = vld [vmem:[%s226 + $0x38] sm:$0xf]
      %v298 = vld [vmem:[%s226 + $0x3c] sm:$0xf]
      %v299 = vld [vmem:[%s226 + $0x40] sm:$0xf]
      %v300 = vld [vmem:[%s226 + $0x44] sm:$0xf]
      %v301 = vld [vmem:[%s226 + $0x48] sm:$0xf]
      %v302 = vld [vmem:[%s226 + $0x4c] sm:$0xf]
      %v303 = vld [vmem:[%s226 + $0x50] sm:$0xf]
      %v304 = vld [vmem:[%s226 + $0x54] sm:$0xf]
      %v305 = vld [vmem:[%s226 + $0x58] sm:$0xf]
      %v306 = vld [vmem:[%s226 + $0x5c] sm:$0xf]
      %v307 = vld [vmem:[%s226 + $0x60] sm:$0xf]
      %v308 = vld [vmem:[%s226 + $0x64] sm:$0xf]
      %v309 = vld [vmem:[%s226 + $0x68] sm:$0xf]
      %v310 = vld [vmem:[%s226 + $0x6c] sm:$0xf]
      %v311 = vld [vmem:[%s226 + $0x70] sm:$0xf]
      %v312 = vld [vmem:[%s226 + $0x74] sm:$0xf]
      %v313 = vld [vmem:[%s226 + $0x78] sm:$0xf]
      %v314 = vld [vmem:[%s226 + $0x7c] sm:$0xf]
      %v315 = vunpack.c.l.bf16 %v283
      %v316 = vunpack.c.l.bf16 %v284
      %v317 = vunpack.c.l.bf16 %v285
      %v318 = vunpack.c.l.bf16 %v286
      %v319 = vunpack.c.l.bf16 %v287
      %v320 = vunpack.c.l.bf16 %v288
      %v321 = vunpack.c.l.bf16 %v289
      %v322 = vunpack.c.l.bf16 %v290
      %v323 = vunpack.c.l.bf16 %v291
      %v324 = vunpack.c.l.bf16 %v292
      %v325 = vunpack.c.l.bf16 %v293
      %v326 = vunpack.c.l.bf16 %v294
      %v327 = vunpack.c.l.bf16 %v295
      %v328 = vunpack.c.l.bf16 %v296
      %v329 = vunpack.c.l.bf16 %v297
      %v330 = vunpack.c.l.bf16 %v298
      %v331 = vunpack.c.l.bf16 %v299
      %v332 = vunpack.c.l.bf16 %v300
      %v333 = vunpack.c.l.bf16 %v301
      %v334 = vunpack.c.l.bf16 %v302
      %v335 = vunpack.c.l.bf16 %v303
      %v336 = vunpack.c.l.bf16 %v304
      %v337 = vunpack.c.l.bf16 %v305
      %v338 = vunpack.c.l.bf16 %v306
      %v339 = vunpack.c.l.bf16 %v307
      %v340 = vunpack.c.l.bf16 %v308
      %v341 = vunpack.c.l.bf16 %v309
      %v342 = vunpack.c.l.bf16 %v310
      %v343 = vunpack.c.l.bf16 %v311
      %v344 = vunpack.c.l.bf16 %v312
      %v345 = vunpack.c.l.bf16 %v313
      %v346 = vunpack.c.l.bf16 %v314
      %v347 = vld [vmem:[%s1] sm:$0x1]
      %v349 = vlaneseq
      %v350 = vshrl.u32 %v349, 7
      %v351 = vsub.s32 0, %v350
      %v352 = vrot.slane %v347, %v351
      %v354 = vmul.f32 %v315, %v352
      %v355 = vmul.f32 %v316, %v352
      %v356 = vmul.f32 %v317, %v352
      %v357 = vmul.f32 %v318, %v352
      %v358 = vmul.f32 %v319, %v352
      %v359 = vmul.f32 %v320, %v352
      %v360 = vmul.f32 %v321, %v352
      %v361 = vmul.f32 %v322, %v352
      %v362 = vmul.f32 %v323, %v352
      %v363 = vmul.f32 %v324, %v352
      %v364 = vmul.f32 %v325, %v352
      %v365 = vmul.f32 %v326, %v352
      %v366 = vmul.f32 %v327, %v352
      %v367 = vmul.f32 %v328, %v352
      %v368 = vmul.f32 %v329, %v352
      %v369 = vmul.f32 %v330, %v352
      %v370 = vmul.f32 %v331, %v352
      %v371 = vmul.f32 %v332, %v352
      %v372 = vmul.f32 %v333, %v352
      %v373 = vmul.f32 %v334, %v352
      %v374 = vmul.f32 %v335, %v352
      %v375 = vmul.f32 %v336, %v352
      %v376 = vmul.f32 %v337, %v352
      %v377 = vmul.f32 %v338, %v352
      %v378 = vmul.f32 %v339, %v352
      %v379 = vmul.f32 %v340, %v352
      %v380 = vmul.f32 %v341, %v352
      %v381 = vmul.f32 %v342, %v352
      %v382 = vmul.f32 %v343, %v352
      %v383 = vmul.f32 %v344, %v352
      %v384 = vmul.f32 %v345, %v352
      %v385 = vmul.f32 %v346, %v352
      %v386 = vld [vmem:[%s2] sm:$0x1]
      %v388 = vlaneseq
      %v389 = vshrl.u32 %v388, 7
      %v390 = vsub.s32 0, %v389
      %v391 = vrot.slane %v386, %v390
      %v393 = vadd.f32 %v354, %v391
      %v394 = vadd.f32 %v355, %v391
      %v395 = vadd.f32 %v356, %v391
      %v396 = vadd.f32 %v357, %v391
      %v397 = vadd.f32 %v358, %v391
      %v398 = vadd.f32 %v359, %v391
      %v399 = vadd.f32 %v360, %v391
      %v400 = vadd.f32 %v361, %v391
      %v401 = vadd.f32 %v362, %v391
      %v402 = vadd.f32 %v363, %v391
      %v403 = vadd.f32 %v364, %v391
      %v404 = vadd.f32 %v365, %v391
      %v405 = vadd.f32 %v366, %v391
      %v406 = vadd.f32 %v367, %v391
      %v407 = vadd.f32 %v368, %v391
      %v408 = vadd.f32 %v369, %v391
      %v409 = vadd.f32 %v370, %v391
      %v410 = vadd.f32 %v371, %v391
      %v411 = vadd.f32 %v372, %v391
      %v412 = vadd.f32 %v373, %v391
      %v413 = vadd.f32 %v374, %v391
      %v414 = vadd.f32 %v375, %v391
      %v415 = vadd.f32 %v376, %v391
      %v416 = vadd.f32 %v377, %v391
      %v417 = vadd.f32 %v378, %v391
      %v418 = vadd.f32 %v379, %v391
      %v419 = vadd.f32 %v380, %v391
      %v420 = vadd.f32 %v381, %v391
      %v421 = vadd.f32 %v382, %v391
      %v422 = vadd.f32 %v383, %v391
      %v423 = vadd.f32 %v384, %v391
      %v424 = vadd.f32 %v385, %v391
      %v425 = vmax.f32 %v393, 0.0
      %v426 = vmax.f32 %v394, 0.0
      %v427 = vmax.f32 %v395, 0.0
      %v428 = vmax.f32 %v396, 0.0
      %v429 = vmax.f32 %v397, 0.0
      %v430 = vmax.f32 %v398, 0.0
      %v431 = vmax.f32 %v399, 0.0
      %v432 = vmax.f32 %v400, 0.0
      %v433 = vmax.f32 %v401, 0.0
      %v434 = vmax.f32 %v402, 0.0
      %v435 = vmax.f32 %v403, 0.0
      %v436 = vmax.f32 %v404, 0.0
      %v437 = vmax.f32 %v405, 0.0
      %v438 = vmax.f32 %v406, 0.0
      %v439 = vmax.f32 %v407, 0.0
      %v440 = vmax.f32 %v408, 0.0
      %v441 = vmax.f32 %v409, 0.0
      %v442 = vmax.f32 %v410, 0.0
      %v443 = vmax.f32 %v411, 0.0
      %v444 = vmax.f32 %v412, 0.0
      %v445 = vmax.f32 %v413, 0.0
      %v446 = vmax.f32 %v414, 0.0
      %v447 = vmax.f32 %v415, 0.0
      %v448 = vmax.f32 %v416, 0.0
      %v449 = vmax.f32 %v417, 0.0
      %v450 = vmax.f32 %v418, 0.0
      %v451 = vmax.f32 %v419, 0.0
      %v452 = vmax.f32 %v420, 0.0
      %v453 = vmax.f32 %v421, 0.0
      %v454 = vmax.f32 %v422, 0.0
      %v455 = vmax.f32 %v423, 0.0
      %v456 = vmax.f32 %v424, 0.0
      %s457 = scalar_lea.vmem [#allocation2], 24
      %458 = vst.msk [vmem:[%s457 + $0x1] sm:$0xff] %vm237, %v425
      %459 = vst.msk [vmem:[%s457 + $0x9] sm:$0xff] %vm237, %v426
      %460 = vst.msk [vmem:[%s457 + $0x19] sm:$0xff] %vm237, %v427
      %461 = vst.msk [vmem:[%s457 + $0x21] sm:$0xff] %vm237, %v428
      %462 = vst.msk [vmem:[%s457 + $0x31] sm:$0xff] %vm237, %v429
      %463 = vst.msk [vmem:[%s457 + $0x39] sm:$0xff] %vm237, %v430
      %464 = vst.msk [vmem:[%s457 + $0x49] sm:$0xff] %vm237, %v431
      %465 = vst.msk [vmem:[%s457 + $0x51] sm:$0xff] %vm237, %v432
      %466 = vst.msk [vmem:[%s457 + $0x61] sm:$0xff] %vm237, %v433
      %467 = vst.msk [vmem:[%s457 + $0x69] sm:$0xff] %vm237, %v434
      %468 = vst.msk [vmem:[%s457 + $0x79] sm:$0xff] %vm237, %v435
      %469 = vst.msk [vmem:[%s457 + $0x81] sm:$0xff] %vm237, %v436
      %470 = vst.msk [vmem:[%s457 + $0x91] sm:$0xff] %vm237, %v437
      %471 = vst.msk [vmem:[%s457 + $0x99] sm:$0xff] %vm237, %v438
      %472 = vst.msk [vmem:[%s457 + $0xa9] sm:$0xff] %vm237, %v439
      %473 = vst.msk [vmem:[%s457 + $0xb1] sm:$0xff] %vm237, %v440
      %474 = vst.msk [vmem:[%s457 + $0xc1] sm:$0xff] %vm237, %v441
      %475 = vst.msk [vmem:[%s457 + $0xc9] sm:$0xff] %vm237, %v442
      %476 = vst.msk [vmem:[%s457 + $0xd9] sm:$0xff] %vm237, %v443
      %477 = vst.msk [vmem:[%s457 + $0xe1] sm:$0xff] %vm237, %v444
      %478 = vst.msk [vmem:[%s457 + $0xf1] sm:$0xff] %vm237, %v445
      %479 = vst.msk [vmem:[%s457 + $0xf9] sm:$0xff] %vm237, %v446
      %480 = vst.msk [vmem:[%s457 + $0x109] sm:$0xff] %vm237, %v447
      %481 = vst.msk [vmem:[%s457 + $0x111] sm:$0xff] %vm237, %v448
      %482 = vst.msk [vmem:[%s457 + $0x121] sm:$0xff] %vm237, %v449
      %483 = vst.msk [vmem:[%s457 + $0x129] sm:$0xff] %vm237, %v450
      %484 = vst.msk [vmem:[%s457 + $0x139] sm:$0xff] %vm237, %v451
      %485 = vst.msk [vmem:[%s457 + $0x141] sm:$0xff] %vm237, %v452
      %486 = vst.msk [vmem:[%s457 + $0x151] sm:$0xff] %vm237, %v453
      %487 = vst.msk [vmem:[%s457 + $0x159] sm:$0xff] %vm237, %v454
      %488 = vst.msk [vmem:[%s457 + $0x169] sm:$0xff] %vm237, %v455
      %489 = vst.msk [vmem:[%s457 + $0x171] sm:$0xff] %vm237, %v456
      %v490 = vld [vmem:[#allocation2] sm:$0xff]
      %v491 = vld [vmem:[#allocation2 + $0x8] sm:$0xff]
      %v492 = vld [vmem:[#allocation2 + $0x18] sm:$0xff]
      %v493 = vld [vmem:[#allocation2 + $0x20] sm:$0xff]
      %v494 = vld [vmem:[#allocation2 + $0x30] sm:$0xff]
      %v495 = vld [vmem:[#allocation2 + $0x38] sm:$0xff]
      %v496 = vld [vmem:[#allocation2 + $0x48] sm:$0xff]
      %v497 = vld [vmem:[#allocation2 + $0x50] sm:$0xff]
      %v498 = vld [vmem:[#allocation2 + $0x60] sm:$0xff]
      %v499 = vld [vmem:[#allocation2 + $0x68] sm:$0xff]
      %v500 = vld [vmem:[#allocation2 + $0x78] sm:$0xff]
      %v501 = vld [vmem:[#allocation2 + $0x80] sm:$0xff]
      %v502 = vld [vmem:[#allocation2 + $0x90] sm:$0xff]
      %v503 = vld [vmem:[#allocation2 + $0x98] sm:$0xff]
      %v504 = vld [vmem:[#allocation2 + $0xa8] sm:$0xff]
      %v505 = vld [vmem:[#allocation2 + $0xb0] sm:$0xff]
      %v506 = vld [vmem:[#allocation2 + $0xc0] sm:$0xff]
      %v507 = vld [vmem:[#allocation2 + $0xc8] sm:$0xff]
      %v508 = vld [vmem:[#allocation2 + $0xd8] sm:$0xff]
      %v509 = vld [vmem:[#allocation2 + $0xe0] sm:$0xff]
      %v510 = vld [vmem:[#allocation2 + $0xf0] sm:$0xff]
      %v511 = vld [vmem:[#allocation2 + $0xf8] sm:$0xff]
      %v512 = vld [vmem:[#allocation2 + $0x108] sm:$0xff]
      %v513 = vld [vmem:[#allocation2 + $0x110] sm:$0xff]
      %v514 = vld [vmem:[#allocation2 + $0x120] sm:$0xff]
      %v515 = vld [vmem:[#allocation2 + $0x128] sm:$0xff]
      %v516 = vld [vmem:[#allocation2 + $0x138] sm:$0xff]
      %v517 = vld [vmem:[#allocation2 + $0x140] sm:$0xff]
      %v518 = vld [vmem:[#allocation2 + $0x150] sm:$0xff]
      %v519 = vld [vmem:[#allocation2 + $0x158] sm:$0xff]
      %v520 = vld [vmem:[#allocation2 + $0x168] sm:$0xff]
      %v521 = vld [vmem:[#allocation2 + $0x170] sm:$0xff]
      %v522 = vpack.c.bf16 %v491, %v490
      %v523 = vpack.c.bf16 %v493, %v492
      %v524 = vpack.c.bf16 %v495, %v494
      %v525 = vpack.c.bf16 %v497, %v496
      %v526 = vpack.c.bf16 %v499, %v498
      %v527 = vpack.c.bf16 %v501, %v500
      %v528 = vpack.c.bf16 %v503, %v502
      %v529 = vpack.c.bf16 %v505, %v504
      %v530 = vpack.c.bf16 %v507, %v506
      %v531 = vpack.c.bf16 %v509, %v508
      %v532 = vpack.c.bf16 %v511, %v510
      %v533 = vpack.c.bf16 %v513, %v512
      %v534 = vpack.c.bf16 %v515, %v514
      %v535 = vpack.c.bf16 %v517, %v516
      %v536 = vpack.c.bf16 %v519, %v518
      %v537 = vpack.c.bf16 %v521, %v520
      %v538 = vld [vmem:[%s3] sm:$0xf]
      %v539 = vld [vmem:[#allocation2 + $0x1] sm:$0xff]
      %v540 = vld [vmem:[#allocation2 + $0x9] sm:$0xff]
      %v541 = vld [vmem:[#allocation2 + $0x19] sm:$0xff]
      %v542 = vld [vmem:[#allocation2 + $0x21] sm:$0xff]
      %v543 = vld [vmem:[#allocation2 + $0x31] sm:$0xff]
      %v544 = vld [vmem:[#allocation2 + $0x39] sm:$0xff]
      %v545 = vld [vmem:[#allocation2 + $0x49] sm:$0xff]
      %v546 = vld [vmem:[#allocation2 + $0x51] sm:$0xff]
      %v547 = vld [vmem:[#allocation2 + $0x61] sm:$0xff]
      %v548 = vld [vmem:[#allocation2 + $0x69] sm:$0xff]
      %v549 = vld [vmem:[#allocation2 + $0x79] sm:$0xff]
      %v550 = vld [vmem:[#allocation2 + $0x81] sm:$0xff]
      %v551 = vld [vmem:[#allocation2 + $0x91] sm:$0xff]
      %v552 = vld [vmem:[#allocation2 + $0x99] sm:$0xff]
      %v553 = vld [vmem:[#allocation2 + $0xa9] sm:$0xff]
      %v554 = vld [vmem:[#allocation2 + $0xb1] sm:$0xff]
      %v555 = vld [vmem:[#allocation2 + $0xc1] sm:$0xff]
      %v556 = vld [vmem:[#allocation2 + $0xc9] sm:$0xff]
      %v557 = vld [vmem:[#allocation2 + $0xd9] sm:$0xff]
      %v558 = vld [vmem:[#allocation2 + $0xe1] sm:$0xff]
      %v559 = vld [vmem:[#allocation2 + $0xf1] sm:$0xff]
      %v560 = vld [vmem:[#allocation2 + $0xf9] sm:$0xff]
      %v561 = vld [vmem:[#allocation2 + $0x109] sm:$0xff]
      %v562 = vld [vmem:[#allocation2 + $0x111] sm:$0xff]
      %v563 = vld [vmem:[#allocation2 + $0x121] sm:$0xff]
      %v564 = vld [vmem:[#allocation2 + $0x129] sm:$0xff]
      %v565 = vld [vmem:[#allocation2 + $0x139] sm:$0xff]
      %v566 = vld [vmem:[#allocation2 + $0x141] sm:$0xff]
      %v567 = vld [vmem:[#allocation2 + $0x151] sm:$0xff]
      %v568 = vld [vmem:[#allocation2 + $0x159] sm:$0xff]
      %v569 = vld [vmem:[#allocation2 + $0x169] sm:$0xff]
      %v570 = vld [vmem:[#allocation2 + $0x171] sm:$0xff]
      %v571 = vpack.c.bf16 %v540, %v539
      %v572 = vpack.c.bf16 %v542, %v541
      %v573 = vpack.c.bf16 %v544, %v543
      %v574 = vpack.c.bf16 %v546, %v545
      %v575 = vpack.c.bf16 %v548, %v547
      %v576 = vpack.c.bf16 %v550, %v549
      %v577 = vpack.c.bf16 %v552, %v551
      %v578 = vpack.c.bf16 %v554, %v553
      %v579 = vpack.c.bf16 %v556, %v555
      %v580 = vpack.c.bf16 %v558, %v557
      %v581 = vpack.c.bf16 %v560, %v559
      %v582 = vpack.c.bf16 %v562, %v561
      %v583 = vpack.c.bf16 %v564, %v563
      %v584 = vpack.c.bf16 %v566, %v565
      %v585 = vpack.c.bf16 %v568, %v567
      %v586 = vpack.c.bf16 %v570, %v569
      %s587 = scalar_lea.vmem %s3, 4
      %v588 = vld [vmem:[%s587] sm:$0xf]
      %v590 = vsel %vm237, %v571, 0
      %v593 = vsel %vm237, %v572, 0
      %v596 = vsel %vm237, %v573, 0
      %v599 = vsel %vm237, %v574, 0
      %v602 = vsel %vm237, %v575, 0
      %v605 = vsel %vm237, %v576, 0
      %v608 = vsel %vm237, %v577, 0
      %v611 = vsel %vm237, %v578, 0
      %v614 = vsel %vm237, %v579, 0
      %v617 = vsel %vm237, %v580, 0
      %v620 = vsel %vm237, %v581, 0
      %v623 = vsel %vm237, %v582, 0
      %v626 = vsel %vm237, %v583, 0
      %v629 = vsel %vm237, %v584, 0
      %v632 = vsel %vm237, %v585, 0
      %v635 = vsel %vm237, %v586, 0
      %vm637 = vcmask 1043456
      %v639 = vsel %vm637, %v588, 0
      %641 = vmatprep.subr.bf16.mxu0 0
      %642 = vmatpush1.bf16.msra.mxu0 %v639
      %643 = vmatprep.subr.bf16.mxu0 0
      %644 = vmatpush1.bf16.msra.mxu0 0
      %645 = vmatprep.subr.bf16.mxu0 0
      %646 = vmatpush1.bf16.msra.mxu0 0
      %647 = vmatprep.subr.bf16.mxu0 0
      %648 = vmatpush1.bf16.msra.mxu0 0
      %649 = vmatprep.subr.bf16.mxu0 0
      %650 = vmatpush1.bf16.msra.mxu0 0
      %651 = vmatprep.subr.bf16.mxu0 0
      %652 = vmatpush1.bf16.msra.mxu0 0
      %653 = vmatprep.subr.bf16.mxu0 0
      %654 = vmatpush1.bf16.msra.mxu0 0
      %655 = vmatprep.subr.bf16.mxu0 0
      %656 = vmatpush1.bf16.msra.mxu0 0
      %657 = vmatprep.subr.bf16.mxu0 0
      %658 = vmatpush1.bf16.msra.mxu0 0
      %659 = vmatprep.subr.bf16.mxu0 0
      %660 = vmatpush1.bf16.msra.mxu0 0
      %661 = vmatprep.subr.bf16.mxu0 0
      %662 = vmatpush1.bf16.msra.mxu0 0
      %663 = vmatprep.subr.bf16.mxu0 0
      %664 = vmatpush1.bf16.msra.mxu0 0
      %665 = vmatprep.subr.bf16.mxu0 0
      %666 = vmatpush1.bf16.msra.mxu0 0
      %667 = vmatprep.subr.bf16.mxu0 0
      %668 = vmatpush1.bf16.msra.mxu0 0
      %669 = vmatprep.subr.bf16.mxu0 0
      %670 = vmatpush1.bf16.msra.mxu0 0
      %671 = vmatprep.subr.bf16.mxu0 0
      %672 = vmatpush1.bf16.msra.mxu0 0
      %673 = vmatprep.mubr.bf16.mxu0 0
      %674 = vmatmul.mubr.bf16.gmra.mrb[0].mxu0 %v590
      %v675 = vpop.f32.mrb[0].mxu0
      %v676 = vadd.f32 0.0, %v675
      %v677 = vpop.f32.mrb[0].mxu0
      %v678 = vpop.f32.mrb[0].mxu0
      %v679 = vadd.f32 0.0, %v678
      %v680 = vpop.f32.mrb[0].mxu0
      %681 = vmatprep.mubr.bf16.mxu0 0
      %682 = vmatmul.mubr.bf16.gmra.mrb[0].mxu0 %v593
      %v683 = vpop.f32.mrb[0].mxu0
      %v684 = vadd.f32 0.0, %v683
      %v685 = vpop.f32.mrb[0].mxu0
      %v686 = vpop.f32.mrb[0].mxu0
      %v687 = vadd.f32 0.0, %v686
      %v688 = vpop.f32.mrb[0].mxu0
      %689 = vmatprep.mubr.bf16.mxu0 0
      %690 = vmatmul.mubr.bf16.gmra.mrb[0].mxu0 %v596
      %v691 = vpop.f32.mrb[0].mxu0
      %v692 = vadd.f32 0.0, %v691
      %v693 = vpop.f32.mrb[0].mxu0
      %v694 = vpop.f32.mrb[0].mxu0
      %v695 = vadd.f32 0.0, %v694
      %v696 = vpop.f32.mrb[0].mxu0
      %697 = vmatprep.mubr.bf16.mxu0 0
      %698 = vmatmul.mubr.bf16.gmra.mrb[0].mxu0 %v599
      %v699 = vpop.f32.mrb[0].mxu0
      %v700 = vadd.f32 0.0, %v699
      %v701 = vpop.f32.mrb[0].mxu0
      %v702 = vpop.f32.mrb[0].mxu0
      %v703 = vadd.f32 0.0, %v702
      %v704 = vpop.f32.mrb[0].mxu0
      %705 = vmatprep.mubr.bf16.mxu0 0
      %706 = vmatmul.mubr.bf16.gmra.mrb[0].mxu0 %v602
      %v707 = vpop.f32.mrb[0].mxu0
      %v708 = vadd.f32 0.0, %v707
      %v709 = vpop.f32.mrb[0].mxu0
      %v710 = vpop.f32.mrb[0].mxu0
      %v711 = vadd.f32 0.0, %v710
      %v712 = vpop.f32.mrb[0].mxu0
      %713 = vmatprep.mubr.bf16.mxu0 0
      %714 = vmatmul.mubr.bf16.gmra.mrb[0].mxu0 %v605
      %v715 = vpop.f32.mrb[0].mxu0
      %v716 = vadd.f32 0.0, %v715
      %v717 = vpop.f32.mrb[0].mxu0
      %v718 = vpop.f32.mrb[0].mxu0
      %v719 = vadd.f32 0.0, %v718
      %v720 = vpop.f32.mrb[0].mxu0
      %721 = vmatprep.mubr.bf16.mxu0 0
      %722 = vmatmul.mubr.bf16.gmra.mrb[0].mxu0 %v608
      %v723 = vpop.f32.mrb[0].mxu0
      %v724 = vadd.f32 0.0, %v723
      %v725 = vpop.f32.mrb[0].mxu0
      %v726 = vpop.f32.mrb[0].mxu0
      %v727 = vadd.f32 0.0, %v726
      %v728 = vpop.f32.mrb[0].mxu0
      %729 = vmatprep.mubr.bf16.mxu0 0
      %730 = vmatmul.mubr.bf16.gmra.mrb[0].mxu0 %v611
      %v731 = vpop.f32.mrb[0].mxu0
      %v732 = vadd.f32 0.0, %v731
      %v733 = vpop.f32.mrb[0].mxu0
      %v734 = vpop.f32.mrb[0].mxu0
      %v735 = vadd.f32 0.0, %v734
      %v736 = vpop.f32.mrb[0].mxu0
      %737 = vmatprep.mubr.bf16.mxu0 0
      %738 = vmatmul.mubr.bf16.gmra.mrb[0].mxu0 %v614
      %v739 = vpop.f32.mrb[0].mxu0
      %v740 = vadd.f32 0.0, %v739
      %v741 = vpop.f32.mrb[0].mxu0
      %v742 = vpop.f32.mrb[0].mxu0
      %v743 = vadd.f32 0.0, %v742
      %v744 = vpop.f32.mrb[0].mxu0
      %745 = vmatprep.mubr.bf16.mxu0 0
      %746 = vmatmul.mubr.bf16.gmra.mrb[0].mxu0 %v617
      %v747 = vpop.f32.mrb[0].mxu0
      %v748 = vadd.f32 0.0, %v747
      %v749 = vpop.f32.mrb[0].mxu0
      %v750 = vpop.f32.mrb[0].mxu0
      %v751 = vadd.f32 0.0, %v750
      %v752 = vpop.f32.mrb[0].mxu0
      %753 = vmatprep.mubr.bf16.mxu0 0
      %754 = vmatmul.mubr.bf16.gmra.mrb[0].mxu0 %v620
      %v755 = vpop.f32.mrb[0].mxu0
      %v756 = vadd.f32 0.0, %v755
      %v757 = vpop.f32.mrb[0].mxu0
      %v758 = vpop.f32.mrb[0].mxu0
      %v759 = vadd.f32 0.0, %v758
      %v760 = vpop.f32.mrb[0].mxu0
      %761 = vmatprep.mubr.bf16.mxu0 0
      %762 = vmatmul.mubr.bf16.gmra.mrb[0].mxu0 %v623
      %v763 = vpop.f32.mrb[0].mxu0
      %v764 = vadd.f32 0.0, %v763
      %v765 = vpop.f32.mrb[0].mxu0
      %v766 = vpop.f32.mrb[0].mxu0
      %v767 = vadd.f32 0.0, %v766
      %v768 = vpop.f32.mrb[0].mxu0
      %769 = vmatprep.mubr.bf16.mxu0 0
      %770 = vmatmul.mubr.bf16.gmra.mrb[0].mxu0 %v626
      %v771 = vpop.f32.mrb[0].mxu0
      %v772 = vadd.f32 0.0, %v771
      %v773 = vpop.f32.mrb[0].mxu0
      %v774 = vpop.f32.mrb[0].mxu0
      %v775 = vadd.f32 0.0, %v774
      %v776 = vpop.f32.mrb[0].mxu0
      %777 = vmatprep.mubr.bf16.mxu0 0
      %778 = vmatmul.mubr.bf16.gmra.mrb[0].mxu0 %v629
      %v779 = vpop.f32.mrb[0].mxu0
      %v780 = vadd.f32 0.0, %v779
      %v781 = vpop.f32.mrb[0].mxu0
      %v782 = vpop.f32.mrb[0].mxu0
      %v783 = vadd.f32 0.0, %v782
      %v784 = vpop.f32.mrb[0].mxu0
      %785 = vmatprep.mubr.bf16.mxu0 0
      %786 = vmatmul.mubr.bf16.gmra.mrb[0].mxu0 %v632
      %v787 = vpop.f32.mrb[0].mxu0
      %v788 = vadd.f32 0.0, %v787
      %v789 = vpop.f32.mrb[0].mxu0
      %v790 = vpop.f32.mrb[0].mxu0
      %v791 = vadd.f32 0.0, %v790
      %v792 = vpop.f32.mrb[0].mxu0
      %793 = vmatprep.mubr.bf16.mxu0 0
      %794 = vmatmul.mubr.bf16.gmra.mrb[0].mxu0 %v635
      %v795 = vpop.f32.mrb[0].mxu0
      %v796 = vadd.f32 0.0, %v795
      %v797 = vpop.f32.mrb[0].mxu0
      %v798 = vpop.f32.mrb[0].mxu0
      %v799 = vadd.f32 0.0, %v798
      %v800 = vpop.f32.mrb[0].mxu0
      %801 = vdwg.mxu0
      %v803 = vsel %vm237, %v522, 0
      %v806 = vsel %vm237, %v523, 0
      %v809 = vsel %vm237, %v524, 0
      %v812 = vsel %vm237, %v525, 0
      %v815 = vsel %vm237, %v526, 0
      %v818 = vsel %vm237, %v527, 0
      %v821 = vsel %vm237, %v528, 0
      %v824 = vsel %vm237, %v529, 0
      %v827 = vsel %vm237, %v530, 0
      %v830 = vsel %vm237, %v531, 0
      %v833 = vsel %vm237, %v532, 0
      %v836 = vsel %vm237, %v533, 0
      %v839 = vsel %vm237, %v534, 0
      %v842 = vsel %vm237, %v535, 0
      %v845 = vsel %vm237, %v536, 0
      %v848 = vsel %vm237, %v537, 0
      %v851 = vsel %vm637, %v538, 0
      %853 = vmatprep.subr.bf16.mxu0 0
      %854 = vmatpush1.bf16.msra.mxu0 %v851
      %855 = vmatprep.subr.bf16.mxu0 0
      %856 = vmatpush1.bf16.msra.mxu0 0
      %857 = vmatprep.subr.bf16.mxu0 0
      %858 = vmatpush1.bf16.msra.mxu0 0
      %859 = vmatprep.subr.bf16.mxu0 0
      %860 = vmatpush1.bf16.msra.mxu0 0
      %861 = vmatprep.subr.bf16.mxu0 0
      %862 = vmatpush1.bf16.msra.mxu0 0
      %863 = vmatprep.subr.bf16.mxu0 0
      %864 = vmatpush1.bf16.msra.mxu0 0
      %865 = vmatprep.subr.bf16.mxu0 0
      %866 = vmatpush1.bf16.msra.mxu0 0
      %867 = vmatprep.subr.bf16.mxu0 0
      %868 = vmatpush1.bf16.msra.mxu0 0
      %869 = vmatprep.subr.bf16.mxu0 0
      %870 = vmatpush1.bf16.msra.mxu0 0
      %871 = vmatprep.subr.bf16.mxu0 0
      %872 = vmatpush1.bf16.msra.mxu0 0
      %873 = vmatprep.subr.bf16.mxu0 0
      %874 = vmatpush1.bf16.msra.mxu0 0
      %875 = vmatprep.subr.bf16.mxu0 0
      %876 = vmatpush1.bf16.msra.mxu0 0
      %877 = vmatprep.subr.bf16.mxu0 0
      %878 = vmatpush1.bf16.msra.mxu0 0
      %879 = vmatprep.subr.bf16.mxu0 0
      %880 = vmatpush1.bf16.msra.mxu0 0
      %881 = vmatprep.subr.bf16.mxu0 0
      %882 = vmatpush1.bf16.msra.mxu0 0
      %883 = vmatprep.subr.bf16.mxu0 0
      %884 = vmatpush1.bf16.msra.mxu0 0
      %885 = vmatprep.mubr.bf16.mxu0 0
      %886 = vmatmul.mubr.bf16.gmra.mrb[0].mxu0 %v803
      %v887 = vpop.f32.mrb[0].mxu0
      %v888 = vadd.f32 %v676, %v887
      %v889 = vpop.f32.mrb[0].mxu0
      %v890 = vpop.f32.mrb[0].mxu0
      %v891 = vadd.f32 %v679, %v890
      %v892 = vpop.f32.mrb[0].mxu0
      %893 = vmatprep.mubr.bf16.mxu0 0
      %894 = vmatmul.mubr.bf16.gmra.mrb[0].mxu0 %v806
      %v895 = vpop.f32.mrb[0].mxu0
      %v896 = vadd.f32 %v684, %v895
      %v897 = vpop.f32.mrb[0].mxu0
      %v898 = vpop.f32.mrb[0].mxu0
      %v899 = vadd.f32 %v687, %v898
      %v900 = vpop.f32.mrb[0].mxu0
      %901 = vmatprep.mubr.bf16.mxu0 0
      %902 = vmatmul.mubr.bf16.gmra.mrb[0].mxu0 %v809
      %v903 = vpop.f32.mrb[0].mxu0
      %v904 = vadd.f32 %v692, %v903
      %v905 = vpop.f32.mrb[0].mxu0
      %v906 = vpop.f32.mrb[0].mxu0
      %v907 = vadd.f32 %v695, %v906
      %v908 = vpop.f32.mrb[0].mxu0
      %909 = vmatprep.mubr.bf16.mxu0 0
      %910 = vmatmul.mubr.bf16.gmra.mrb[0].mxu0 %v812
      %v911 = vpop.f32.mrb[0].mxu0
      %v912 = vadd.f32 %v700, %v911
      %v913 = vpop.f32.mrb[0].mxu0
      %v914 = vpop.f32.mrb[0].mxu0
      %v915 = vadd.f32 %v703, %v914
      %v916 = vpop.f32.mrb[0].mxu0
      %917 = vmatprep.mubr.bf16.mxu0 0
      %918 = vmatmul.mubr.bf16.gmra.mrb[0].mxu0 %v815
      %v919 = vpop.f32.mrb[0].mxu0
      %v920 = vadd.f32 %v708, %v919
      %v921 = vpop.f32.mrb[0].mxu0
      %v922 = vpop.f32.mrb[0].mxu0
      %v923 = vadd.f32 %v711, %v922
      %v924 = vpop.f32.mrb[0].mxu0
      %925 = vmatprep.mubr.bf16.mxu0 0
      %926 = vmatmul.mubr.bf16.gmra.mrb[0].mxu0 %v818
      %v927 = vpop.f32.mrb[0].mxu0
      %v928 = vadd.f32 %v716, %v927
      %v929 = vpop.f32.mrb[0].mxu0
      %v930 = vpop.f32.mrb[0].mxu0
      %v931 = vadd.f32 %v719, %v930
      %v932 = vpop.f32.mrb[0].mxu0
      %933 = vmatprep.mubr.bf16.mxu0 0
      %934 = vmatmul.mubr.bf16.gmra.mrb[0].mxu0 %v821
      %v935 = vpop.f32.mrb[0].mxu0
      %v936 = vadd.f32 %v724, %v935
      %v937 = vpop.f32.mrb[0].mxu0
      %v938 = vpop.f32.mrb[0].mxu0
      %v939 = vadd.f32 %v727, %v938
      %v940 = vpop.f32.mrb[0].mxu0
      %941 = vmatprep.mubr.bf16.mxu0 0
      %942 = vmatmul.mubr.bf16.gmra.mrb[0].mxu0 %v824
      %v943 = vpop.f32.mrb[0].mxu0
      %v944 = vadd.f32 %v732, %v943
      %v945 = vpop.f32.mrb[0].mxu0
      %v946 = vpop.f32.mrb[0].mxu0
      %v947 = vadd.f32 %v735, %v946
      %v948 = vpop.f32.mrb[0].mxu0
      %949 = vmatprep.mubr.bf16.mxu0 0
      %950 = vmatmul.mubr.bf16.gmra.mrb[0].mxu0 %v827
      %v951 = vpop.f32.mrb[0].mxu0
      %v952 = vadd.f32 %v740, %v951
      %v953 = vpop.f32.mrb[0].mxu0
      %v954 = vpop.f32.mrb[0].mxu0
      %v955 = vadd.f32 %v743, %v954
      %v956 = vpop.f32.mrb[0].mxu0
      %957 = vmatprep.mubr.bf16.mxu0 0
      %958 = vmatmul.mubr.bf16.gmra.mrb[0].mxu0 %v830
      %v959 = vpop.f32.mrb[0].mxu0
      %v960 = vadd.f32 %v748, %v959
      %v961 = vpop.f32.mrb[0].mxu0
      %v962 = vpop.f32.mrb[0].mxu0
      %v963 = vadd.f32 %v751, %v962
      %v964 = vpop.f32.mrb[0].mxu0
      %965 = vmatprep.mubr.bf16.mxu0 0
      %966 = vmatmul.mubr.bf16.gmra.mrb[0].mxu0 %v833
      %v967 = vpop.f32.mrb[0].mxu0
      %v968 = vadd.f32 %v756, %v967
      %v969 = vpop.f32.mrb[0].mxu0
      %v970 = vpop.f32.mrb[0].mxu0
      %v971 = vadd.f32 %v759, %v970
      %v972 = vpop.f32.mrb[0].mxu0
      %973 = vmatprep.mubr.bf16.mxu0 0
      %974 = vmatmul.mubr.bf16.gmra.mrb[0].mxu0 %v836
      %v975 = vpop.f32.mrb[0].mxu0
      %v976 = vadd.f32 %v764, %v975
      %v977 = vpop.f32.mrb[0].mxu0
      %v978 = vpop.f32.mrb[0].mxu0
      %v979 = vadd.f32 %v767, %v978
      %v980 = vpop.f32.mrb[0].mxu0
      %981 = vmatprep.mubr.bf16.mxu0 0
      %982 = vmatmul.mubr.bf16.gmra.mrb[0].mxu0 %v839
      %v983 = vpop.f32.mrb[0].mxu0
      %v984 = vadd.f32 %v772, %v983
      %v985 = vpop.f32.mrb[0].mxu0
      %v986 = vpop.f32.mrb[0].mxu0
      %v987 = vadd.f32 %v775, %v986
      %v988 = vpop.f32.mrb[0].mxu0
      %989 = vmatprep.mubr.bf16.mxu0 0
      %990 = vmatmul.mubr.bf16.gmra.mrb[0].mxu0 %v842
      %v991 = vpop.f32.mrb[0].mxu0
      %v992 = vadd.f32 %v780, %v991
      %v993 = vpop.f32.mrb[0].mxu0
      %v994 = vpop.f32.mrb[0].mxu0
      %v995 = vadd.f32 %v783, %v994
      %v996 = vpop.f32.mrb[0].mxu0
      %997 = vmatprep.mubr.bf16.mxu0 0
      %998 = vmatmul.mubr.bf16.gmra.mrb[0].mxu0 %v845
      %v999 = vpop.f32.mrb[0].mxu0
      %v1000 = vadd.f32 %v788, %v999
      %v1001 = vpop.f32.mrb[0].mxu0
      %v1002 = vpop.f32.mrb[0].mxu0
      %v1003 = vadd.f32 %v791, %v1002
      %v1004 = vpop.f32.mrb[0].mxu0
      %1005 = vmatprep.mubr.bf16.mxu0 0
      %1006 = vmatmul.mubr.bf16.gmra.mrb[0].mxu0 %v848
      %v1007 = vpop.f32.mrb[0].mxu0
      %v1008 = vadd.f32 %v796, %v1007
      %v1009 = vpop.f32.mrb[0].mxu0
      %v1010 = vpop.f32.mrb[0].mxu0
      %v1011 = vadd.f32 %v799, %v1010
      %v1012 = vpop.f32.mrb[0].mxu0
      %1013 = vdwg.mxu0
      %v1014 = vld [vmem:[#allocation2 + $0x2] sm:$0xff]
      %v1015 = vld [vmem:[#allocation2 + $0xa] sm:$0xff]
      %v1016 = vld [vmem:[#allocation2 + $0x1a] sm:$0xff]
      %v1017 = vld [vmem:[#allocation2 + $0x22] sm:$0xff]
      %v1018 = vld [vmem:[#allocation2 + $0x32] sm:$0xff]
      %v1019 = vld [vmem:[#allocation2 + $0x3a] sm:$0xff]
      %v1020 = vld [vmem:[#allocation2 + $0x4a] sm:$0xff]
      %v1021 = vld [vmem:[#allocation2 + $0x52] sm:$0xff]
      %v1022 = vld [vmem:[#allocation2 + $0x62] sm:$0xff]
      %v1023 = vld [vmem:[#allocation2 + $0x6a] sm:$0xff]
      %v1024 = vld [vmem:[#allocation2 + $0x7a] sm:$0xff]
      %v1025 = vld [vmem:[#allocation2 + $0x82] sm:$0xff]
      %v1026 = vld [vmem:[#allocation2 + $0x92] sm:$0xff]
      %v1027 = vld [vmem:[#allocation2 + $0x9a] sm:$0xff]
      %v1028 = vld [vmem:[#allocation2 + $0xaa] sm:$0xff]
      %v1029 = vld [vmem:[#allocation2 + $0xb2] sm:$0xff]
      %v1030 = vld [vmem:[#allocation2 + $0xc2] sm:$0xff]
      %v1031 = vld [vmem:[#allocation2 + $0xca] sm:$0xff]
      %v1032 = vld [vmem:[#allocation2 + $0xda] sm:$0xff]
      %v1033 = vld [vmem:[#allocation2 + $0xe2] sm:$0xff]
      %v1034 = vld [vmem:[#allocation2 + $0xf2] sm:$0xff]
      %v1035 = vld [vmem:[#allocation2 + $0xfa] sm:$0xff]
      %v1036 = vld [vmem:[#allocation2 + $0x10a] sm:$0xff]
      %v1037 = vld [vmem:[#allocation2 + $0x112] sm:$0xff]
      %v1038 = vld [vmem:[#allocation2 + $0x122] sm:$0xff]
      %v1039 = vld [vmem:[#allocation2 + $0x12a] sm:$0xff]
      %v1040 = vld [vmem:[#allocation2 + $0x13a] sm:$0xff]
      %v1041 = vld [vmem:[#allocation2 + $0x142] sm:$0xff]
      %v1042 = vld [vmem:[#allocation2 + $0x152] sm:$0xff]
      %v1043 = vld [vmem:[#allocation2 + $0x15a] sm:$0xff]
      %v1044 = vld [vmem:[#allocation2 + $0x16a] sm:$0xff]
      %v1045 = vld [vmem:[#allocation2 + $0x172] sm:$0xff]
      %v1046 = vpack.c.bf16 %v1015, %v1014
      %v1047 = vpack.c.bf16 %v1017, %v1016
      %v1048 = vpack.c.bf16 %v1019, %v1018
      %v1049 = vpack.c.bf16 %v1021, %v1020
      %v1050 = vpack.c.bf16 %v1023, %v1022
      %v1051 = vpack.c.bf16 %v1025, %v1024
      %v1052 = vpack.c.bf16 %v1027, %v1026
      %v1053 = vpack.c.bf16 %v1029, %v1028
      %v1054 = vpack.c.bf16 %v1031, %v1030
      %v1055 = vpack.c.bf16 %v1033, %v1032
      %v1056 = vpack.c.bf16 %v1035, %v1034
      %v1057 = vpack.c.bf16 %v1037, %v1036
      %v1058 = vpack.c.bf16 %v1039, %v1038
      %v1059 = vpack.c.bf16 %v1041, %v1040
      %v1060 = vpack.c.bf16 %v1043, %v1042
      %v1061 = vpack.c.bf16 %v1045, %v1044
      %s1062 = scalar_lea.vmem %s3, 8
      %v1063 = vld [vmem:[%s1062] sm:$0xf]
      %v1065 = vsel %vm237, %v1046, 0
      %v1068 = vsel %vm237, %v1047, 0
      %v1071 = vsel %vm237, %v1048, 0
      %v1074 = vsel %vm237, %v1049, 0
      %v1077 = vsel %vm237, %v1050, 0
      %v1080 = vsel %vm237, %v1051, 0
      %v1083 = vsel %vm237, %v1052, 0
      %v1086 = vsel %vm237, %v1053, 0
      %v1089 = vsel %vm237, %v1054, 0
      %v1092 = vsel %vm237, %v1055, 0
      %v1095 = vsel %vm237, %v1056, 0
      %v1098 = vsel %vm237, %v1057, 0
      %v1101 = vsel %vm237, %v1058, 0
      %v1104 = vsel %vm237, %v1059, 0
      %v1107 = vsel %vm237, %v1060, 0
      %v1110 = vsel %vm237, %v1061, 0
      %v1113 = vsel %vm637, %v1063, 0
      %1115 = vmatprep.subr.bf16.mxu0 0
      %1116 = vmatpush1.bf16.msra.mxu0 %v1113
      %1117 = vmatprep.subr.bf16.mxu0 0
      %1118 = vmatpush1.bf16.msra.mxu0 0
      %1119 = vmatprep.subr.bf16.mxu0 0
      %1120 = vmatpush1.bf16.msra.mxu0 0
      %1121 = vmatprep.subr.bf16.mxu0 0
      %1122 = vmatpush1.bf16.msra.mxu0 0
      %1123 = vmatprep.subr.bf16.mxu0 0
      %1124 = vmatpush1.bf16.msra.mxu0 0
      %1125 = vmatprep.subr.bf16.mxu0 0
      %1126 = vmatpush1.bf16.msra.mxu0 0
      %1127 = vmatprep.subr.bf16.mxu0 0
      %1128 = vmatpush1.bf16.msra.mxu0 0
      %1129 = vmatprep.subr.bf16.mxu0 0
      %1130 = vmatpush1.bf16.msra.mxu0 0
      %1131 = vmatprep.subr.bf16.mxu0 0
      %1132 = vmatpush1.bf16.msra.mxu0 0
      %1133 = vmatprep.subr.bf16.mxu0 0
      %1134 = vmatpush1.bf16.msra.mxu0 0
      %1135 = vmatprep.subr.bf16.mxu0 0
      %1136 = vmatpush1.bf16.msra.mxu0 0
      %1137 = vmatprep.subr.bf16.mxu0 0
      %1138 = vmatpush1.bf16.msra.mxu0 0
      %1139 = vmatprep.subr.bf16.mxu0 0
      %1140 = vmatpush1.bf16.msra.mxu0 0
      %1141 = vmatprep.subr.bf16.mxu0 0
      %1142 = vmatpush1.bf16.msra.mxu0 0
      %1143 = vmatprep.subr.bf16.mxu0 0
      %1144 = vmatpush1.bf16.msra.mxu0 0
      %1145 = vmatprep.subr.bf16.mxu0 0
      %1146 = vmatpush1.bf16.msra.mxu0 0
      %1147 = vmatprep.mubr.bf16.mxu0 0
      %1148 = vmatmul.mubr.bf16.gmra.mrb[0].mxu0 %v1065
      %v1149 = vpop.f32.mrb[0].mxu0
      %v1150 = vadd.f32 0.0, %v1149
      %v1151 = vpop.f32.mrb[0].mxu0
      %v1152 = vpop.f32.mrb[0].mxu0
      %v1153 = vadd.f32 0.0, %v1152
      %v1154 = vpop.f32.mrb[0].mxu0
      %1155 = vmatprep.mubr.bf16.mxu0 0
      %1156 = vmatmul.mubr.bf16.gmra.mrb[0].mxu0 %v1068
      %v1157 = vpop.f32.mrb[0].mxu0
      %v1158 = vadd.f32 0.0, %v1157
      %v1159 = vpop.f32.mrb[0].mxu0
      %v1160 = vpop.f32.mrb[0].mxu0
      %v1161 = vadd.f32 0.0, %v1160
      %v1162 = vpop.f32.mrb[0].mxu0
      %1163 = vmatprep.mubr.bf16.mxu0 0
      %1164 = vmatmul.mubr.bf16.gmra.mrb[0].mxu0 %v1071
      %v1165 = vpop.f32.mrb[0].mxu0
      %v1166 = vadd.f32 0.0, %v1165
      %v1167 = vpop.f32.mrb[0].mxu0
      %v1168 = vpop.f32.mrb[0].mxu0
      %v1169 = vadd.f32 0.0, %v1168
      %v1170 = vpop.f32.mrb[0].mxu0
      %1171 = vmatprep.mubr.bf16.mxu0 0
      %1172 = vmatmul.mubr.bf16.gmra.mrb[0].mxu0 %v1074
      %v1173 = vpop.f32.mrb[0].mxu0
      %v1174 = vadd.f32 0.0, %v1173
      %v1175 = vpop.f32.mrb[0].mxu0
      %v1176 = vpop.f32.mrb[0].mxu0
      %v1177 = vadd.f32 0.0, %v1176
      %v1178 = vpop.f32.mrb[0].mxu0
      %1179 = vmatprep.mubr.bf16.mxu0 0
      %1180 = vmatmul.mubr.bf16.gmra.mrb[0].mxu0 %v1077
      %v1181 = vpop.f32.mrb[0].mxu0
      %v1182 = vadd.f32 0.0, %v1181
      %v1183 = vpop.f32.mrb[0].mxu0
      %v1184 = vpop.f32.mrb[0].mxu0
      %v1185 = vadd.f32 0.0, %v1184
      %v1186 = vpop.f32.mrb[0].mxu0
      %1187 = vmatprep.mubr.bf16.mxu0 0
      %1188 = vmatmul.mubr.bf16.gmra.mrb[0].mxu0 %v1080
      %v1189 = vpop.f32.mrb[0].mxu0
      %v1190 = vadd.f32 0.0, %v1189
      %v1191 = vpop.f32.mrb[0].mxu0
      %v1192 = vpop.f32.mrb[0].mxu0
      %v1193 = vadd.f32 0.0, %v1192
      %v1194 = vpop.f32.mrb[0].mxu0
      %1195 = vmatprep.mubr.bf16.mxu0 0
      %1196 = vmatmul.mubr.bf16.gmra.mrb[0].mxu0 %v1083
      %v1197 = vpop.f32.mrb[0].mxu0
      %v1198 = vadd.f32 0.0, %v1197
      %v1199 = vpop.f32.mrb[0].mxu0
      %v1200 = vpop.f32.mrb[0].mxu0
      %v1201 = vadd.f32 0.0, %v1200
      %v1202 = vpop.f32.mrb[0].mxu0
      %1203 = vmatprep.mubr.bf16.mxu0 0
      %1204 = vmatmul.mubr.bf16.gmra.mrb[0].mxu0 %v1086
      %v1205 = vpop.f32.mrb[0].mxu0
      %v1206 = vadd.f32 0.0, %v1205
      %v1207 = vpop.f32.mrb[0].mxu0
      %v1208 = vpop.f32.mrb[0].mxu0
      %v1209 = vadd.f32 0.0, %v1208
      %v1210 = vpop.f32.mrb[0].mxu0
      %1211 = vmatprep.mubr.bf16.mxu0 0
      %1212 = vmatmul.mubr.bf16.gmra.mrb[0].mxu0 %v1089
      %v1213 = vpop.f32.mrb[0].mxu0
      %v1214 = vadd.f32 0.0, %v1213
      %v1215 = vpop.f32.mrb[0].mxu0
      %v1216 = vpop.f32.mrb[0].mxu0
      %v1217 = vadd.f32 0.0, %v1216
      %v1218 = vpop.f32.mrb[0].mxu0
      %1219 = vmatprep.mubr.bf16.mxu0 0
      %1220 = vmatmul.mubr.bf16.gmra.mrb[0].mxu0 %v1092
      %v1221 = vpop.f32.mrb[0].mxu0
      %v1222 = vadd.f32 0.0, %v1221
      %v1223 = vpop.f32.mrb[0].mxu0
      %v1224 = vpop.f32.mrb[0].mxu0
      %v1225 = vadd.f32 0.0, %v1224
      %v1226 = vpop.f32.mrb[0].mxu0
      %1227 = vmatprep.mubr.bf16.mxu0 0
      %1228 = vmatmul.mubr.bf16.gmra.mrb[0].mxu0 %v1095
      %v1229 = vpop.f32.mrb[0].mxu0
      %v1230 = vadd.f32 0.0, %v1229
      %v1231 = vpop.f32.mrb[0].mxu0
      %v1232 = vpop.f32.mrb[0].mxu0
      %v1233 = vadd.f32 0.0, %v1232
      %v1234 = vpop.f32.mrb[0].mxu0
      %1235 = vmatprep.mubr.bf16.mxu0 0
      %1236 = vmatmul.mubr.bf16.gmra.mrb[0].mxu0 %v1098
      %v1237 = vpop.f32.mrb[0].mxu0
      %v1238 = vadd.f32 0.0, %v1237
      %v1239 = vpop.f32.mrb[0].mxu0
      %v1240 = vpop.f32.mrb[0].mxu0
      %v1241 = vadd.f32 0.0, %v1240
      %v1242 = vpop.f32.mrb[0].mxu0
      %1243 = vmatprep.mubr.bf16.mxu0 0
      %1244 = vmatmul.mubr.bf16.gmra.mrb[0].mxu0 %v1101
      %v1245 = vpop.f32.mrb[0].mxu0
      %v1246 = vadd.f32 0.0, %v1245
      %v1247 = vpop.f32.mrb[0].mxu0
      %v1248 = vpop.f32.mrb[0].mxu0
      %v1249 = vadd.f32 0.0, %v1248
      %v1250 = vpop.f32.mrb[0].mxu0
      %1251 = vmatprep.mubr.bf16.mxu0 0
      %1252 = vmatmul.mubr.bf16.gmra.mrb[0].mxu0 %v1104
      %v1253 = vpop.f32.mrb[0].mxu0
      %v1254 = vadd.f32 0.0, %v1253
      %v1255 = vpop.f32.mrb[0].mxu0
      %v1256 = vpop.f32.mrb[0].mxu0
      %v1257 = vadd.f32 0.0, %v1256
      %v1258 = vpop.f32.mrb[0].mxu0
      %1259 = vmatprep.mubr.bf16.mxu0 0
      %1260 = vmatmul.mubr.bf16.gmra.mrb[0].mxu0 %v1107
      %v1261 = vpop.f32.mrb[0].mxu0
      %v1262 = vadd.f32 0.0, %v1261
      %v1263 = vpop.f32.mrb[0].mxu0
      %v1264 = vpop.f32.mrb[0].mxu0
      %v1265 = vadd.f32 0.0, %v1264
      %v1266 = vpop.f32.mrb[0].mxu0
      %1267 = vmatprep.mubr.bf16.mxu0 0
      %1268 = vmatmul.mubr.bf16.gmra.mrb[0].mxu0 %v1110
      %v1269 = vpop.f32.mrb[0].mxu0
      %v1270 = vadd.f32 0.0, %v1269
      %v1271 = vpop.f32.mrb[0].mxu0
      %v1272 = vpop.f32.mrb[0].mxu0
      %v1273 = vadd.f32 0.0, %v1272
      %v1274 = vpop.f32.mrb[0].mxu0
      %1275 = vdwg.mxu0
      %v1276 = vadd.f32 %v888, %v1150
      %v1277 = vadd.f32 %v891, %v1153
      %v1278 = vadd.f32 %v896, %v1158
      %v1279 = vadd.f32 %v899, %v1161
      %v1280 = vadd.f32 %v904, %v1166
      %v1281 = vadd.f32 %v907, %v1169
      %v1282 = vadd.f32 %v912, %v1174
      %v1283 = vadd.f32 %v915, %v1177
      %v1284 = vadd.f32 %v920, %v1182
      %v1285 = vadd.f32 %v923, %v1185
      %v1286 = vadd.f32 %v928, %v1190
      %v1287 = vadd.f32 %v931, %v1193
      %v1288 = vadd.f32 %v936, %v1198
      %v1289 = vadd.f32 %v939, %v1201
      %v1290 = vadd.f32 %v944, %v1206
      %v1291 = vadd.f32 %v947, %v1209
      %v1292 = vadd.f32 %v952, %v1214
      %v1293 = vadd.f32 %v955, %v1217
      %v1294 = vadd.f32 %v960, %v1222
      %v1295 = vadd.f32 %v963, %v1225
      %v1296 = vadd.f32 %v968, %v1230
      %v1297 = vadd.f32 %v971, %v1233
      %v1298 = vadd.f32 %v976, %v1238
      %v1299 = vadd.f32 %v979, %v1241
      %v1300 = vadd.f32 %v984, %v1246
      %v1301 = vadd.f32 %v987, %v1249
      %v1302 = vadd.f32 %v992, %v1254
      %v1303 = vadd.f32 %v995, %v1257
      %v1304 = vadd.f32 %v1000, %v1262
      %v1305 = vadd.f32 %v1003, %v1265
      %v1306 = vadd.f32 %v1008, %v1270
      %v1307 = vadd.f32 %v1011, %v1273
      %v1308 = vld [vmem:[%s457] sm:$0xff]
      %v1309 = vld [vmem:[%s457 + $0x8] sm:$0xff]
      %v1310 = vld [vmem:[%s457 + $0x18] sm:$0xff]
      %v1311 = vld [vmem:[%s457 + $0x20] sm:$0xff]
      %v1312 = vld [vmem:[%s457 + $0x30] sm:$0xff]
      %v1313 = vld [vmem:[%s457 + $0x38] sm:$0xff]
      %v1314 = vld [vmem:[%s457 + $0x48] sm:$0xff]
      %v1315 = vld [vmem:[%s457 + $0x50] sm:$0xff]
      %v1316 = vld [vmem:[%s457 + $0x60] sm:$0xff]
      %v1317 = vld [vmem:[%s457 + $0x68] sm:$0xff]
      %v1318 = vld [vmem:[%s457 + $0x78] sm:$0xff]
      %v1319 = vld [vmem:[%s457 + $0x80] sm:$0xff]
      %v1320 = vld [vmem:[%s457 + $0x90] sm:$0xff]
      %v1321 = vld [vmem:[%s457 + $0x98] sm:$0xff]
      %v1322 = vld [vmem:[%s457 + $0xa8] sm:$0xff]
      %v1323 = vld [vmem:[%s457 + $0xb0] sm:$0xff]
      %v1324 = vld [vmem:[%s457 + $0xc0] sm:$0xff]
      %v1325 = vld [vmem:[%s457 + $0xc8] sm:$0xff]
      %v1326 = vld [vmem:[%s457 + $0xd8] sm:$0xff]
      %v1327 = vld [vmem:[%s457 + $0xe0] sm:$0xff]
      %v1328 = vld [vmem:[%s457 + $0xf0] sm:$0xff]
      %v1329 = vld [vmem:[%s457 + $0xf8] sm:$0xff]
      %v1330 = vld [vmem:[%s457 + $0x108] sm:$0xff]
      %v1331 = vld [vmem:[%s457 + $0x110] sm:$0xff]
      %v1332 = vld [vmem:[%s457 + $0x120] sm:$0xff]
      %v1333 = vld [vmem:[%s457 + $0x128] sm:$0xff]
      %v1334 = vld [vmem:[%s457 + $0x138] sm:$0xff]
      %v1335 = vld [vmem:[%s457 + $0x140] sm:$0xff]
      %v1336 = vld [vmem:[%s457 + $0x150] sm:$0xff]
      %v1337 = vld [vmem:[%s457 + $0x158] sm:$0xff]
      %v1338 = vld [vmem:[%s457 + $0x168] sm:$0xff]
      %v1339 = vld [vmem:[%s457 + $0x170] sm:$0xff]
      %v1340 = vpack.c.bf16 %v1309, %v1308
      %v1341 = vpack.c.bf16 %v1311, %v1310
      %v1342 = vpack.c.bf16 %v1313, %v1312
      %v1343 = vpack.c.bf16 %v1315, %v1314
      %v1344 = vpack.c.bf16 %v1317, %v1316
      %v1345 = vpack.c.bf16 %v1319, %v1318
      %v1346 = vpack.c.bf16 %v1321, %v1320
      %v1347 = vpack.c.bf16 %v1323, %v1322
      %v1348 = vpack.c.bf16 %v1325, %v1324
      %v1349 = vpack.c.bf16 %v1327, %v1326
      %v1350 = vpack.c.bf16 %v1329, %v1328
      %v1351 = vpack.c.bf16 %v1331, %v1330
      %v1352 = vpack.c.bf16 %v1333, %v1332
      %v1353 = vpack.c.bf16 %v1335, %v1334
      %v1354 = vpack.c.bf16 %v1337, %v1336
      %v1355 = vpack.c.bf16 %v1339, %v1338
      %s1356 = scalar_lea.vmem %s3, 12
      %v1357 = vld [vmem:[%s1356] sm:$0xf]
      %v1359 = vsel %vm237, %v1340, 0
      %v1362 = vsel %vm237, %v1341, 0
      %v1365 = vsel %vm237, %v1342, 0
      %v1368 = vsel %vm237, %v1343, 0
      %v1371 = vsel %vm237, %v1344, 0
      %v1374 = vsel %vm237, %v1345, 0
      %v1377 = vsel %vm237, %v1346, 0
      %v1380 = vsel %vm237, %v1347, 0
      %v1383 = vsel %vm237, %v1348, 0
      %v1386 = vsel %vm237, %v1349, 0
      %v1389 = vsel %vm237, %v1350, 0
      %v1392 = vsel %vm237, %v1351, 0
      %v1395 = vsel %vm237, %v1352, 0
      %v1398 = vsel %vm237, %v1353, 0
      %v1401 = vsel %vm237, %v1354, 0
      %v1404 = vsel %vm237, %v1355, 0
      %v1407 = vsel %vm637, %v1357, 0
      %1409 = vmatprep.subr.bf16.mxu0 0
      %1410 = vmatpush1.bf16.msra.mxu0 %v1407
      %1411 = vmatprep.subr.bf16.mxu0 0
      %1412 = vmatpush1.bf16.msra.mxu0 0
      %1413 = vmatprep.subr.bf16.mxu0 0
      %1414 = vmatpush1.bf16.msra.mxu0 0
      %1415 = vmatprep.subr.bf16.mxu0 0
      %1416 = vmatpush1.bf16.msra.mxu0 0
      %1417 = vmatprep.subr.bf16.mxu0 0
      %1418 = vmatpush1.bf16.msra.mxu0 0
      %1419 = vmatprep.subr.bf16.mxu0 0
      %1420 = vmatpush1.bf16.msra.mxu0 0
      %1421 = vmatprep.subr.bf16.mxu0 0
      %1422 = vmatpush1.bf16.msra.mxu0 0
      %1423 = vmatprep.subr.bf16.mxu0 0
      %1424 = vmatpush1.bf16.msra.mxu0 0
      %1425 = vmatprep.subr.bf16.mxu0 0
      %1426 = vmatpush1.bf16.msra.mxu0 0
      %1427 = vmatprep.subr.bf16.mxu0 0
      %1428 = vmatpush1.bf16.msra.mxu0 0
      %1429 = vmatprep.subr.bf16.mxu0 0
      %1430 = vmatpush1.bf16.msra.mxu0 0
      %1431 = vmatprep.subr.bf16.mxu0 0
      %1432 = vmatpush1.bf16.msra.mxu0 0
      %1433 = vmatprep.subr.bf16.mxu0 0
      %1434 = vmatpush1.bf16.msra.mxu0 0
      %1435 = vmatprep.subr.bf16.mxu0 0
      %1436 = vmatpush1.bf16.msra.mxu0 0
      %1437 = vmatprep.subr.bf16.mxu0 0
      %1438 = vmatpush1.bf16.msra.mxu0 0
      %1439 = vmatprep.subr.bf16.mxu0 0
      %1440 = vmatpush1.bf16.msra.mxu0 0
      %1441 = vmatprep.mubr.bf16.mxu0 0
      %1442 = vmatmul.mubr.bf16.gmra.mrb[0].mxu0 %v1359
      %v1443 = vpop.f32.mrb[0].mxu0
      %v1444 = vadd.f32 0.0, %v1443
      %v1445 = vpop.f32.mrb[0].mxu0
      %v1446 = vpop.f32.mrb[0].mxu0
      %v1447 = vadd.f32 0.0, %v1446
      %v1448 = vpop.f32.mrb[0].mxu0
      %1449 = vmatprep.mubr.bf16.mxu0 0
      %1450 = vmatmul.mubr.bf16.gmra.mrb[0].mxu0 %v1362
      %v1451 = vpop.f32.mrb[0].mxu0
      %v1452 = vadd.f32 0.0, %v1451
      %v1453 = vpop.f32.mrb[0].mxu0
      %v1454 = vpop.f32.mrb[0].mxu0
      %v1455 = vadd.f32 0.0, %v1454
      %v1456 = vpop.f32.mrb[0].mxu0
      %1457 = vmatprep.mubr.bf16.mxu0 0
      %1458 = vmatmul.mubr.bf16.gmra.mrb[0].mxu0 %v1365
      %v1459 = vpop.f32.mrb[0].mxu0
      %v1460 = vadd.f32 0.0, %v1459
      %v1461 = vpop.f32.mrb[0].mxu0
      %v1462 = vpop.f32.mrb[0].mxu0
      %v1463 = vadd.f32 0.0, %v1462
      %v1464 = vpop.f32.mrb[0].mxu0
      %1465 = vmatprep.mubr.bf16.mxu0 0
      %1466 = vmatmul.mubr.bf16.gmra.mrb[0].mxu0 %v1368
      %v1467 = vpop.f32.mrb[0].mxu0
      %v1468 = vadd.f32 0.0, %v1467
      %v1469 = vpop.f32.mrb[0].mxu0
      %v1470 = vpop.f32.mrb[0].mxu0
      %v1471 = vadd.f32 0.0, %v1470
      %v1472 = vpop.f32.mrb[0].mxu0
      %1473 = vmatprep.mubr.bf16.mxu0 0
      %1474 = vmatmul.mubr.bf16.gmra.mrb[0].mxu0 %v1371
      %v1475 = vpop.f32.mrb[0].mxu0
      %v1476 = vadd.f32 0.0, %v1475
      %v1477 = vpop.f32.mrb[0].mxu0
      %v1478 = vpop.f32.mrb[0].mxu0
      %v1479 = vadd.f32 0.0, %v1478
      %v1480 = vpop.f32.mrb[0].mxu0
      %1481 = vmatprep.mubr.bf16.mxu0 0
      %1482 = vmatmul.mubr.bf16.gmra.mrb[0].mxu0 %v1374
      %v1483 = vpop.f32.mrb[0].mxu0
      %v1484 = vadd.f32 0.0, %v1483
      %v1485 = vpop.f32.mrb[0].mxu0
      %v1486 = vpop.f32.mrb[0].mxu0
      %v1487 = vadd.f32 0.0, %v1486
      %v1488 = vpop.f32.mrb[0].mxu0
      %1489 = vmatprep.mubr.bf16.mxu0 0
      %1490 = vmatmul.mubr.bf16.gmra.mrb[0].mxu0 %v1377
      %v1491 = vpop.f32.mrb[0].mxu0
      %v1492 = vadd.f32 0.0, %v1491
      %v1493 = vpop.f32.mrb[0].mxu0
      %v1494 = vpop.f32.mrb[0].mxu0
      %v1495 = vadd.f32 0.0, %v1494
      %v1496 = vpop.f32.mrb[0].mxu0
      %1497 = vmatprep.mubr.bf16.mxu0 0
      %1498 = vmatmul.mubr.bf16.gmra.mrb[0].mxu0 %v1380
      %v1499 = vpop.f32.mrb[0].mxu0
      %v1500 = vadd.f32 0.0, %v1499
      %v1501 = vpop.f32.mrb[0].mxu0
      %v1502 = vpop.f32.mrb[0].mxu0
      %v1503 = vadd.f32 0.0, %v1502
      %v1504 = vpop.f32.mrb[0].mxu0
      %1505 = vmatprep.mubr.bf16.mxu0 0
      %1506 = vmatmul.mubr.bf16.gmra.mrb[0].mxu0 %v1383
      %v1507 = vpop.f32.mrb[0].mxu0
      %v1508 = vadd.f32 0.0, %v1507
      %v1509 = vpop.f32.mrb[0].mxu0
      %v1510 = vpop.f32.mrb[0].mxu0
      %v1511 = vadd.f32 0.0, %v1510
      %v1512 = vpop.f32.mrb[0].mxu0
      %1513 = vmatprep.mubr.bf16.mxu0 0
      %1514 = vmatmul.mubr.bf16.gmra.mrb[0].mxu0 %v1386
      %v1515 = vpop.f32.mrb[0].mxu0
      %v1516 = vadd.f32 0.0, %v1515
      %v1517 = vpop.f32.mrb[0].mxu0
      %v1518 = vpop.f32.mrb[0].mxu0
      %v1519 = vadd.f32 0.0, %v1518
      %v1520 = vpop.f32.mrb[0].mxu0
      %1521 = vmatprep.mubr.bf16.mxu0 0
      %1522 = vmatmul.mubr.bf16.gmra.mrb[0].mxu0 %v1389
      %v1523 = vpop.f32.mrb[0].mxu0
      %v1524 = vadd.f32 0.0, %v1523
      %v1525 = vpop.f32.mrb[0].mxu0
      %v1526 = vpop.f32.mrb[0].mxu0
      %v1527 = vadd.f32 0.0, %v1526
      %v1528 = vpop.f32.mrb[0].mxu0
      %1529 = vmatprep.mubr.bf16.mxu0 0
      %1530 = vmatmul.mubr.bf16.gmra.mrb[0].mxu0 %v1392
      %v1531 = vpop.f32.mrb[0].mxu0
      %v1532 = vadd.f32 0.0, %v1531
      %v1533 = vpop.f32.mrb[0].mxu0
      %v1534 = vpop.f32.mrb[0].mxu0
      %v1535 = vadd.f32 0.0, %v1534
      %v1536 = vpop.f32.mrb[0].mxu0
      %1537 = vmatprep.mubr.bf16.mxu0 0
      %1538 = vmatmul.mubr.bf16.gmra.mrb[0].mxu0 %v1395
      %v1539 = vpop.f32.mrb[0].mxu0
      %v1540 = vadd.f32 0.0, %v1539
      %v1541 = vpop.f32.mrb[0].mxu0
      %v1542 = vpop.f32.mrb[0].mxu0
      %v1543 = vadd.f32 0.0, %v1542
      %v1544 = vpop.f32.mrb[0].mxu0
      %1545 = vmatprep.mubr.bf16.mxu0 0
      %1546 = vmatmul.mubr.bf16.gmra.mrb[0].mxu0 %v1398
      %v1547 = vpop.f32.mrb[0].mxu0
      %v1548 = vadd.f32 0.0, %v1547
      %v1549 = vpop.f32.mrb[0].mxu0
      %v1550 = vpop.f32.mrb[0].mxu0
      %v1551 = vadd.f32 0.0, %v1550
      %v1552 = vpop.f32.mrb[0].mxu0
      %1553 = vmatprep.mubr.bf16.mxu0 0
      %1554 = vmatmul.mubr.bf16.gmra.mrb[0].mxu0 %v1401
      %v1555 = vpop.f32.mrb[0].mxu0
      %v1556 = vadd.f32 0.0, %v1555
      %v1557 = vpop.f32.mrb[0].mxu0
      %v1558 = vpop.f32.mrb[0].mxu0
      %v1559 = vadd.f32 0.0, %v1558
      %v1560 = vpop.f32.mrb[0].mxu0
      %1561 = vmatprep.mubr.bf16.mxu0 0
      %1562 = vmatmul.mubr.bf16.gmra.mrb[0].mxu0 %v1404
      %v1563 = vpop.f32.mrb[0].mxu0
      %v1564 = vadd.f32 0.0, %v1563
      %v1565 = vpop.f32.mrb[0].mxu0
      %v1566 = vpop.f32.mrb[0].mxu0
      %v1567 = vadd.f32 0.0, %v1566
      %v1568 = vpop.f32.mrb[0].mxu0
      %1569 = vdwg.mxu0
      %v1570 = vadd.f32 %v1276, %v1444
      %v1571 = vadd.f32 %v1277, %v1447
      %v1572 = vadd.f32 %v1278, %v1452
      %v1573 = vadd.f32 %v1279, %v1455
      %v1574 = vadd.f32 %v1280, %v1460
      %v1575 = vadd.f32 %v1281, %v1463
      %v1576 = vadd.f32 %v1282, %v1468
      %v1577 = vadd.f32 %v1283, %v1471
      %v1578 = vadd.f32 %v1284, %v1476
      %v1579 = vadd.f32 %v1285, %v1479
      %v1580 = vadd.f32 %v1286, %v1484
      %v1581 = vadd.f32 %v1287, %v1487
      %v1582 = vadd.f32 %v1288, %v1492
      %v1583 = vadd.f32 %v1289, %v1495
      %v1584 = vadd.f32 %v1290, %v1500
      %v1585 = vadd.f32 %v1291, %v1503
      %v1586 = vadd.f32 %v1292, %v1508
      %v1587 = vadd.f32 %v1293, %v1511
      %v1588 = vadd.f32 %v1294, %v1516
      %v1589 = vadd.f32 %v1295, %v1519
      %v1590 = vadd.f32 %v1296, %v1524
      %v1591 = vadd.f32 %v1297, %v1527
      %v1592 = vadd.f32 %v1298, %v1532
      %v1593 = vadd.f32 %v1299, %v1535
      %v1594 = vadd.f32 %v1300, %v1540
      %v1595 = vadd.f32 %v1301, %v1543
      %v1596 = vadd.f32 %v1302, %v1548
      %v1597 = vadd.f32 %v1303, %v1551
      %v1598 = vadd.f32 %v1304, %v1556
      %v1599 = vadd.f32 %v1305, %v1559
      %v1600 = vadd.f32 %v1306, %v1564
      %v1601 = vadd.f32 %v1307, %v1567
      %v1602 = vld [vmem:[%s457 + $0x1] sm:$0xff]
      %v1603 = vld [vmem:[%s457 + $0x9] sm:$0xff]
      %v1604 = vld [vmem:[%s457 + $0x19] sm:$0xff]
      %v1605 = vld [vmem:[%s457 + $0x21] sm:$0xff]
      %v1606 = vld [vmem:[%s457 + $0x31] sm:$0xff]
      %v1607 = vld [vmem:[%s457 + $0x39] sm:$0xff]
      %v1608 = vld [vmem:[%s457 + $0x49] sm:$0xff]
      %v1609 = vld [vmem:[%s457 + $0x51] sm:$0xff]
      %v1610 = vld [vmem:[%s457 + $0x61] sm:$0xff]
      %v1611 = vld [vmem:[%s457 + $0x69] sm:$0xff]
      %v1612 = vld [vmem:[%s457 + $0x79] sm:$0xff]
      %v1613 = vld [vmem:[%s457 + $0x81] sm:$0xff]
      %v1614 = vld [vmem:[%s457 + $0x91] sm:$0xff]
      %v1615 = vld [vmem:[%s457 + $0x99] sm:$0xff]
      %v1616 = vld [vmem:[%s457 + $0xa9] sm:$0xff]
      %v1617 = vld [vmem:[%s457 + $0xb1] sm:$0xff]
      %v1618 = vld [vmem:[%s457 + $0xc1] sm:$0xff]
      %v1619 = vld [vmem:[%s457 + $0xc9] sm:$0xff]
      %v1620 = vld [vmem:[%s457 + $0xd9] sm:$0xff]
      %v1621 = vld [vmem:[%s457 + $0xe1] sm:$0xff]
      %v1622 = vld [vmem:[%s457 + $0xf1] sm:$0xff]
      %v1623 = vld [vmem:[%s457 + $0xf9] sm:$0xff]
      %v1624 = vld [vmem:[%s457 + $0x109] sm:$0xff]
      %v1625 = vld [vmem:[%s457 + $0x111] sm:$0xff]
      %v1626 = vld [vmem:[%s457 + $0x121] sm:$0xff]
      %v1627 = vld [vmem:[%s457 + $0x129] sm:$0xff]
      %v1628 = vld [vmem:[%s457 + $0x139] sm:$0xff]
      %v1629 = vld [vmem:[%s457 + $0x141] sm:$0xff]
      %v1630 = vld [vmem:[%s457 + $0x151] sm:$0xff]
      %v1631 = vld [vmem:[%s457 + $0x159] sm:$0xff]
      %v1632 = vld [vmem:[%s457 + $0x169] sm:$0xff]
      %v1633 = vld [vmem:[%s457 + $0x171] sm:$0xff]
      %v1634 = vpack.c.bf16 %v1603, %v1602
      %v1635 = vpack.c.bf16 %v1605, %v1604
      %v1636 = vpack.c.bf16 %v1607, %v1606
      %v1637 = vpack.c.bf16 %v1609, %v1608
      %v1638 = vpack.c.bf16 %v1611, %v1610
      %v1639 = vpack.c.bf16 %v1613, %v1612
      %v1640 = vpack.c.bf16 %v1615, %v1614
      %v1641 = vpack.c.bf16 %v1617, %v1616
      %v1642 = vpack.c.bf16 %v1619, %v1618
      %v1643 = vpack.c.bf16 %v1621, %v1620
      %v1644 = vpack.c.bf16 %v1623, %v1622
      %v1645 = vpack.c.bf16 %v1625, %v1624
      %v1646 = vpack.c.bf16 %v1627, %v1626
      %v1647 = vpack.c.bf16 %v1629, %v1628
      %v1648 = vpack.c.bf16 %v1631, %v1630
      %v1649 = vpack.c.bf16 %v1633, %v1632
      %s1650 = scalar_lea.vmem %s3, 16
      %v1651 = vld [vmem:[%s1650] sm:$0xf]
      %v1653 = vsel %vm237, %v1634, 0
      %v1656 = vsel %vm237, %v1635, 0
      %v1659 = vsel %vm237, %v1636, 0
      %v1662 = vsel %vm237, %v1637, 0
      %v1665 = vsel %vm237, %v1638, 0
      %v1668 = vsel %vm237, %v1639, 0
      %v1671 = vsel %vm237, %v1640, 0
      %v1674 = vsel %vm237, %v1641, 0
      %v1677 = vsel %vm237, %v1642, 0
      %v1680 = vsel %vm237, %v1643, 0
      %v1683 = vsel %vm237, %v1644, 0
      %v1686 = vsel %vm237, %v1645, 0
      %v1689 = vsel %vm237, %v1646, 0
      %v1692 = vsel %vm237, %v1647, 0
      %v1695 = vsel %vm237, %v1648, 0
      %v1698 = vsel %vm237, %v1649, 0
      %v1701 = vsel %vm637, %v1651, 0
      %1703 = vmatprep.subr.bf16.mxu0 0
      %1704 = vmatpush1.bf16.msra.mxu0 %v1701
      %1705 = vmatprep.subr.bf16.mxu0 0
      %1706 = vmatpush1.bf16.msra.mxu0 0
      %1707 = vmatprep.subr.bf16.mxu0 0
      %1708 = vmatpush1.bf16.msra.mxu0 0
      %1709 = vmatprep.subr.bf16.mxu0 0
      %1710 = vmatpush1.bf16.msra.mxu0 0
      %1711 = vmatprep.subr.bf16.mxu0 0
      %1712 = vmatpush1.bf16.msra.mxu0 0
      %1713 = vmatprep.subr.bf16.mxu0 0
      %1714 = vmatpush1.bf16.msra.mxu0 0
      %1715 = vmatprep.subr.bf16.mxu0 0
      %1716 = vmatpush1.bf16.msra.mxu0 0
      %1717 = vmatprep.subr.bf16.mxu0 0
      %1718 = vmatpush1.bf16.msra.mxu0 0
      %1719 = vmatprep.subr.bf16.mxu0 0
      %1720 = vmatpush1.bf16.msra.mxu0 0
      %1721 = vmatprep.subr.bf16.mxu0 0
      %1722 = vmatpush1.bf16.msra.mxu0 0
      %1723 = vmatprep.subr.bf16.mxu0 0
      %1724 = vmatpush1.bf16.msra.mxu0 0
      %1725 = vmatprep.subr.bf16.mxu0 0
      %1726 = vmatpush1.bf16.msra.mxu0 0
      %1727 = vmatprep.subr.bf16.mxu0 0
      %1728 = vmatpush1.bf16.msra.mxu0 0
      %1729 = vmatprep.subr.bf16.mxu0 0
      %1730 = vmatpush1.bf16.msra.mxu0 0
      %1731 = vmatprep.subr.bf16.mxu0 0
      %1732 = vmatpush1.bf16.msra.mxu0 0
      %1733 = vmatprep.subr.bf16.mxu0 0
      %1734 = vmatpush1.bf16.msra.mxu0 0
      %1735 = vmatprep.mubr.bf16.mxu0 0
      %1736 = vmatmul.mubr.bf16.gmra.mrb[0].mxu0 %v1653
      %v1737 = vpop.f32.mrb[0].mxu0
      %v1738 = vadd.f32 0.0, %v1737
      %v1739 = vpop.f32.mrb[0].mxu0
      %v1740 = vpop.f32.mrb[0].mxu0
      %v1741 = vadd.f32 0.0, %v1740
      %v1742 = vpop.f32.mrb[0].mxu0
      %1743 = vmatprep.mubr.bf16.mxu0 0
      %1744 = vmatmul.mubr.bf16.gmra.mrb[0].mxu0 %v1656
      %v1745 = vpop.f32.mrb[0].mxu0
      %v1746 = vadd.f32 0.0, %v1745
      %v1747 = vpop.f32.mrb[0].mxu0
      %v1748 = vpop.f32.mrb[0].mxu0
      %v1749 = vadd.f32 0.0, %v1748
      %v1750 = vpop.f32.mrb[0].mxu0
      %1751 = vmatprep.mubr.bf16.mxu0 0
      %1752 = vmatmul.mubr.bf16.gmra.mrb[0].mxu0 %v1659
      %v1753 = vpop.f32.mrb[0].mxu0
      %v1754 = vadd.f32 0.0, %v1753
      %v1755 = vpop.f32.mrb[0].mxu0
      %v1756 = vpop.f32.mrb[0].mxu0
      %v1757 = vadd.f32 0.0, %v1756
      %v1758 = vpop.f32.mrb[0].mxu0
      %1759 = vmatprep.mubr.bf16.mxu0 0
      %1760 = vmatmul.mubr.bf16.gmra.mrb[0].mxu0 %v1662
      %v1761 = vpop.f32.mrb[0].mxu0
      %v1762 = vadd.f32 0.0, %v1761
      %v1763 = vpop.f32.mrb[0].mxu0
      %v1764 = vpop.f32.mrb[0].mxu0
      %v1765 = vadd.f32 0.0, %v1764
      %v1766 = vpop.f32.mrb[0].mxu0
      %1767 = vmatprep.mubr.bf16.mxu0 0
      %1768 = vmatmul.mubr.bf16.gmra.mrb[0].mxu0 %v1665
      %v1769 = vpop.f32.mrb[0].mxu0
      %v1770 = vadd.f32 0.0, %v1769
      %v1771 = vpop.f32.mrb[0].mxu0
      %v1772 = vpop.f32.mrb[0].mxu0
      %v1773 = vadd.f32 0.0, %v1772
      %v1774 = vpop.f32.mrb[0].mxu0
      %1775 = vmatprep.mubr.bf16.mxu0 0
      %1776 = vmatmul.mubr.bf16.gmra.mrb[0].mxu0 %v1668
      %v1777 = vpop.f32.mrb[0].mxu0
      %v1778 = vadd.f32 0.0, %v1777
      %v1779 = vpop.f32.mrb[0].mxu0
      %v1780 = vpop.f32.mrb[0].mxu0
      %v1781 = vadd.f32 0.0, %v1780
      %v1782 = vpop.f32.mrb[0].mxu0
      %1783 = vmatprep.mubr.bf16.mxu0 0
      %1784 = vmatmul.mubr.bf16.gmra.mrb[0].mxu0 %v1671
      %v1785 = vpop.f32.mrb[0].mxu0
      %v1786 = vadd.f32 0.0, %v1785
      %v1787 = vpop.f32.mrb[0].mxu0
      %v1788 = vpop.f32.mrb[0].mxu0
      %v1789 = vadd.f32 0.0, %v1788
      %v1790 = vpop.f32.mrb[0].mxu0
      %1791 = vmatprep.mubr.bf16.mxu0 0
      %1792 = vmatmul.mubr.bf16.gmra.mrb[0].mxu0 %v1674
      %v1793 = vpop.f32.mrb[0].mxu0
      %v1794 = vadd.f32 0.0, %v1793
      %v1795 = vpop.f32.mrb[0].mxu0
      %v1796 = vpop.f32.mrb[0].mxu0
      %v1797 = vadd.f32 0.0, %v1796
      %v1798 = vpop.f32.mrb[0].mxu0
      %1799 = vmatprep.mubr.bf16.mxu0 0
      %1800 = vmatmul.mubr.bf16.gmra.mrb[0].mxu0 %v1677
      %v1801 = vpop.f32.mrb[0].mxu0
      %v1802 = vadd.f32 0.0, %v1801
      %v1803 = vpop.f32.mrb[0].mxu0
      %v1804 = vpop.f32.mrb[0].mxu0
      %v1805 = vadd.f32 0.0, %v1804
      %v1806 = vpop.f32.mrb[0].mxu0
      %1807 = vmatprep.mubr.bf16.mxu0 0
      %1808 = vmatmul.mubr.bf16.gmra.mrb[0].mxu0 %v1680
      %v1809 = vpop.f32.mrb[0].mxu0
      %v1810 = vadd.f32 0.0, %v1809
      %v1811 = vpop.f32.mrb[0].mxu0
      %v1812 = vpop.f32.mrb[0].mxu0
      %v1813 = vadd.f32 0.0, %v1812
      %v1814 = vpop.f32.mrb[0].mxu0
      %1815 = vmatprep.mubr.bf16.mxu0 0
      %1816 = vmatmul.mubr.bf16.gmra.mrb[0].mxu0 %v1683
      %v1817 = vpop.f32.mrb[0].mxu0
      %v1818 = vadd.f32 0.0, %v1817
      %v1819 = vpop.f32.mrb[0].mxu0
      %v1820 = vpop.f32.mrb[0].mxu0
      %v1821 = vadd.f32 0.0, %v1820
      %v1822 = vpop.f32.mrb[0].mxu0
      %1823 = vmatprep.mubr.bf16.mxu0 0
      %1824 = vmatmul.mubr.bf16.gmra.mrb[0].mxu0 %v1686
      %v1825 = vpop.f32.mrb[0].mxu0
      %v1826 = vadd.f32 0.0, %v1825
      %v1827 = vpop.f32.mrb[0].mxu0
      %v1828 = vpop.f32.mrb[0].mxu0
      %v1829 = vadd.f32 0.0, %v1828
      %v1830 = vpop.f32.mrb[0].mxu0
      %1831 = vmatprep.mubr.bf16.mxu0 0
      %1832 = vmatmul.mubr.bf16.gmra.mrb[0].mxu0 %v1689
      %v1833 = vpop.f32.mrb[0].mxu0
      %v1834 = vadd.f32 0.0, %v1833
      %v1835 = vpop.f32.mrb[0].mxu0
      %v1836 = vpop.f32.mrb[0].mxu0
      %v1837 = vadd.f32 0.0, %v1836
      %v1838 = vpop.f32.mrb[0].mxu0
      %1839 = vmatprep.mubr.bf16.mxu0 0
      %1840 = vmatmul.mubr.bf16.gmra.mrb[0].mxu0 %v1692
      %v1841 = vpop.f32.mrb[0].mxu0
      %v1842 = vadd.f32 0.0, %v1841
      %v1843 = vpop.f32.mrb[0].mxu0
      %v1844 = vpop.f32.mrb[0].mxu0
      %v1845 = vadd.f32 0.0, %v1844
      %v1846 = vpop.f32.mrb[0].mxu0
      %1847 = vmatprep.mubr.bf16.mxu0 0
      %1848 = vmatmul.mubr.bf16.gmra.mrb[0].mxu0 %v1695
      %v1849 = vpop.f32.mrb[0].mxu0
      %v1850 = vadd.f32 0.0, %v1849
      %v1851 = vpop.f32.mrb[0].mxu0
      %v1852 = vpop.f32.mrb[0].mxu0
      %v1853 = vadd.f32 0.0, %v1852
      %v1854 = vpop.f32.mrb[0].mxu0
      %1855 = vmatprep.mubr.bf16.mxu0 0
      %1856 = vmatmul.mubr.bf16.gmra.mrb[0].mxu0 %v1698
      %v1857 = vpop.f32.mrb[0].mxu0
      %v1858 = vadd.f32 0.0, %v1857
      %v1859 = vpop.f32.mrb[0].mxu0
      %v1860 = vpop.f32.mrb[0].mxu0
      %v1861 = vadd.f32 0.0, %v1860
      %v1862 = vpop.f32.mrb[0].mxu0
      %1863 = vdwg.mxu0
      %v1864 = vadd.f32 %v1570, %v1738
      %v1865 = vadd.f32 %v1571, %v1741
      %v1866 = vadd.f32 %v1572, %v1746
      %v1867 = vadd.f32 %v1573, %v1749
      %v1868 = vadd.f32 %v1574, %v1754
      %v1869 = vadd.f32 %v1575, %v1757
      %v1870 = vadd.f32 %v1576, %v1762
      %v1871 = vadd.f32 %v1577, %v1765
      %v1872 = vadd.f32 %v1578, %v1770
      %v1873 = vadd.f32 %v1579, %v1773
      %v1874 = vadd.f32 %v1580, %v1778
      %v1875 = vadd.f32 %v1581, %v1781
      %v1876 = vadd.f32 %v1582, %v1786
      %v1877 = vadd.f32 %v1583, %v1789
      %v1878 = vadd.f32 %v1584, %v1794
      %v1879 = vadd.f32 %v1585, %v1797
      %v1880 = vadd.f32 %v1586, %v1802
      %v1881 = vadd.f32 %v1587, %v1805
      %v1882 = vadd.f32 %v1588, %v1810
      %v1883 = vadd.f32 %v1589, %v1813
      %v1884 = vadd.f32 %v1590, %v1818
      %v1885 = vadd.f32 %v1591, %v1821
      %v1886 = vadd.f32 %v1592, %v1826
      %v1887 = vadd.f32 %v1593, %v1829
      %v1888 = vadd.f32 %v1594, %v1834
      %v1889 = vadd.f32 %v1595, %v1837
      %v1890 = vadd.f32 %v1596, %v1842
      %v1891 = vadd.f32 %v1597, %v1845
      %v1892 = vadd.f32 %v1598, %v1850
      %v1893 = vadd.f32 %v1599, %v1853
      %v1894 = vadd.f32 %v1600, %v1858
      %v1895 = vadd.f32 %v1601, %v1861
      %v1896 = vld [vmem:[%s457 + $0x2] sm:$0xff]
      %v1897 = vld [vmem:[%s457 + $0xa] sm:$0xff]
      %v1898 = vld [vmem:[%s457 + $0x1a] sm:$0xff]
      %v1899 = vld [vmem:[%s457 + $0x22] sm:$0xff]
      %v1900 = vld [vmem:[%s457 + $0x32] sm:$0xff]
      %v1901 = vld [vmem:[%s457 + $0x3a] sm:$0xff]
      %v1902 = vld [vmem:[%s457 + $0x4a] sm:$0xff]
      %v1903 = vld [vmem:[%s457 + $0x52] sm:$0xff]
      %v1904 = vld [vmem:[%s457 + $0x62] sm:$0xff]
      %v1905 = vld [vmem:[%s457 + $0x6a] sm:$0xff]
      %v1906 = vld [vmem:[%s457 + $0x7a] sm:$0xff]
      %v1907 = vld [vmem:[%s457 + $0x82] sm:$0xff]
      %v1908 = vld [vmem:[%s457 + $0x92] sm:$0xff]
      %v1909 = vld [vmem:[%s457 + $0x9a] sm:$0xff]
      %v1910 = vld [vmem:[%s457 + $0xaa] sm:$0xff]
      %v1911 = vld [vmem:[%s457 + $0xb2] sm:$0xff]
      %v1912 = vld [vmem:[%s457 + $0xc2] sm:$0xff]
      %v1913 = vld [vmem:[%s457 + $0xca] sm:$0xff]
      %v1914 = vld [vmem:[%s457 + $0xda] sm:$0xff]
      %v1915 = vld [vmem:[%s457 + $0xe2] sm:$0xff]
      %v1916 = vld [vmem:[%s457 + $0xf2] sm:$0xff]
      %v1917 = vld [vmem:[%s457 + $0xfa] sm:$0xff]
      %v1918 = vld [vmem:[%s457 + $0x10a] sm:$0xff]
      %v1919 = vld [vmem:[%s457 + $0x112] sm:$0xff]
      %v1920 = vld [vmem:[%s457 + $0x122] sm:$0xff]
      %v1921 = vld [vmem:[%s457 + $0x12a] sm:$0xff]
      %v1922 = vld [vmem:[%s457 + $0x13a] sm:$0xff]
      %v1923 = vld [vmem:[%s457 + $0x142] sm:$0xff]
      %v1924 = vld [vmem:[%s457 + $0x152] sm:$0xff]
      %v1925 = vld [vmem:[%s457 + $0x15a] sm:$0xff]
      %v1926 = vld [vmem:[%s457 + $0x16a] sm:$0xff]
      %v1927 = vld [vmem:[%s457 + $0x172] sm:$0xff]
      %v1928 = vpack.c.bf16 %v1897, %v1896
      %v1929 = vpack.c.bf16 %v1899, %v1898
      %v1930 = vpack.c.bf16 %v1901, %v1900
      %v1931 = vpack.c.bf16 %v1903, %v1902
      %v1932 = vpack.c.bf16 %v1905, %v1904
      %v1933 = vpack.c.bf16 %v1907, %v1906
      %v1934 = vpack.c.bf16 %v1909, %v1908
      %v1935 = vpack.c.bf16 %v1911, %v1910
      %v1936 = vpack.c.bf16 %v1913, %v1912
      %v1937 = vpack.c.bf16 %v1915, %v1914
      %v1938 = vpack.c.bf16 %v1917, %v1916
      %v1939 = vpack.c.bf16 %v1919, %v1918
      %v1940 = vpack.c.bf16 %v1921, %v1920
      %v1941 = vpack.c.bf16 %v1923, %v1922
      %v1942 = vpack.c.bf16 %v1925, %v1924
      %v1943 = vpack.c.bf16 %v1927, %v1926
      %s1944 = scalar_lea.vmem %s3, 20
      %v1945 = vld [vmem:[%s1944] sm:$0xf]
      %v1947 = vsel %vm237, %v1928, 0
      %v1950 = vsel %vm237, %v1929, 0
      %v1953 = vsel %vm237, %v1930, 0
      %v1956 = vsel %vm237, %v1931, 0
      %v1959 = vsel %vm237, %v1932, 0
      %v1962 = vsel %vm237, %v1933, 0
      %v1965 = vsel %vm237, %v1934, 0
      %v1968 = vsel %vm237, %v1935, 0
      %v1971 = vsel %vm237, %v1936, 0
      %v1974 = vsel %vm237, %v1937, 0
      %v1977 = vsel %vm237, %v1938, 0
      %v1980 = vsel %vm237, %v1939, 0
      %v1983 = vsel %vm237, %v1940, 0
      %v1986 = vsel %vm237, %v1941, 0
      %v1989 = vsel %vm237, %v1942, 0
      %v1992 = vsel %vm237, %v1943, 0
      %v1995 = vsel %vm637, %v1945, 0
      %1997 = vmatprep.subr.bf16.mxu0 0
      %1998 = vmatpush1.bf16.msra.mxu0 %v1995
      %1999 = vmatprep.subr.bf16.mxu0 0
      %2000 = vmatpush1.bf16.msra.mxu0 0
      %2001 = vmatprep.subr.bf16.mxu0 0
      %2002 = vmatpush1.bf16.msra.mxu0 0
      %2003 = vmatprep.subr.bf16.mxu0 0
      %2004 = vmatpush1.bf16.msra.mxu0 0
      %2005 = vmatprep.subr.bf16.mxu0 0
      %2006 = vmatpush1.bf16.msra.mxu0 0
      %2007 = vmatprep.subr.bf16.mxu0 0
      %2008 = vmatpush1.bf16.msra.mxu0 0
      %2009 = vmatprep.subr.bf16.mxu0 0
      %2010 = vmatpush1.bf16.msra.mxu0 0
      %2011 = vmatprep.subr.bf16.mxu0 0
      %2012 = vmatpush1.bf16.msra.mxu0 0
      %2013 = vmatprep.subr.bf16.mxu0 0
      %2014 = vmatpush1.bf16.msra.mxu0 0
      %2015 = vmatprep.subr.bf16.mxu0 0
      %2016 = vmatpush1.bf16.msra.mxu0 0
      %2017 = vmatprep.subr.bf16.mxu0 0
      %2018 = vmatpush1.bf16.msra.mxu0 0
      %2019 = vmatprep.subr.bf16.mxu0 0
      %2020 = vmatpush1.bf16.msra.mxu0 0
      %2021 = vmatprep.subr.bf16.mxu0 0
      %2022 = vmatpush1.bf16.msra.mxu0 0
      %2023 = vmatprep.subr.bf16.mxu0 0
      %2024 = vmatpush1.bf16.msra.mxu0 0
      %2025 = vmatprep.subr.bf16.mxu0 0
      %2026 = vmatpush1.bf16.msra.mxu0 0
      %2027 = vmatprep.subr.bf16.mxu0 0
      %2028 = vmatpush1.bf16.msra.mxu0 0
      %2029 = vmatprep.mubr.bf16.mxu0 0
      %2030 = vmatmul.mubr.bf16.gmra.mrb[0].mxu0 %v1947
      %v2031 = vpop.f32.mrb[0].mxu0
      %v2032 = vadd.f32 0.0, %v2031
      %v2033 = vpop.f32.mrb[0].mxu0
      %v2034 = vpop.f32.mrb[0].mxu0
      %v2035 = vadd.f32 0.0, %v2034
      %v2036 = vpop.f32.mrb[0].mxu0
      %2037 = vmatprep.mubr.bf16.mxu0 0
      %2038 = vmatmul.mubr.bf16.gmra.mrb[0].mxu0 %v1950
      %v2039 = vpop.f32.mrb[0].mxu0
      %v2040 = vadd.f32 0.0, %v2039
      %v2041 = vpop.f32.mrb[0].mxu0
      %v2042 = vpop.f32.mrb[0].mxu0
      %v2043 = vadd.f32 0.0, %v2042
      %v2044 = vpop.f32.mrb[0].mxu0
      %2045 = vmatprep.mubr.bf16.mxu0 0
      %2046 = vmatmul.mubr.bf16.gmra.mrb[0].mxu0 %v1953
      %v2047 = vpop.f32.mrb[0].mxu0
      %v2048 = vadd.f32 0.0, %v2047
      %v2049 = vpop.f32.mrb[0].mxu0
      %v2050 = vpop.f32.mrb[0].mxu0
      %v2051 = vadd.f32 0.0, %v2050
      %v2052 = vpop.f32.mrb[0].mxu0
      %2053 = vmatprep.mubr.bf16.mxu0 0
      %2054 = vmatmul.mubr.bf16.gmra.mrb[0].mxu0 %v1956
      %v2055 = vpop.f32.mrb[0].mxu0
      %v2056 = vadd.f32 0.0, %v2055
      %v2057 = vpop.f32.mrb[0].mxu0
      %v2058 = vpop.f32.mrb[0].mxu0
      %v2059 = vadd.f32 0.0, %v2058
      %v2060 = vpop.f32.mrb[0].mxu0
      %2061 = vmatprep.mubr.bf16.mxu0 0
      %2062 = vmatmul.mubr.bf16.gmra.mrb[0].mxu0 %v1959
      %v2063 = vpop.f32.mrb[0].mxu0
      %v2064 = vadd.f32 0.0, %v2063
      %v2065 = vpop.f32.mrb[0].mxu0
      %v2066 = vpop.f32.mrb[0].mxu0
      %v2067 = vadd.f32 0.0, %v2066
      %v2068 = vpop.f32.mrb[0].mxu0
      %2069 = vmatprep.mubr.bf16.mxu0 0
      %2070 = vmatmul.mubr.bf16.gmra.mrb[0].mxu0 %v1962
      %v2071 = vpop.f32.mrb[0].mxu0
      %v2072 = vadd.f32 0.0, %v2071
      %v2073 = vpop.f32.mrb[0].mxu0
      %v2074 = vpop.f32.mrb[0].mxu0
      %v2075 = vadd.f32 0.0, %v2074
      %v2076 = vpop.f32.mrb[0].mxu0
      %2077 = vmatprep.mubr.bf16.mxu0 0
      %2078 = vmatmul.mubr.bf16.gmra.mrb[0].mxu0 %v1965
      %v2079 = vpop.f32.mrb[0].mxu0
      %v2080 = vadd.f32 0.0, %v2079
      %v2081 = vpop.f32.mrb[0].mxu0
      %v2082 = vpop.f32.mrb[0].mxu0
      %v2083 = vadd.f32 0.0, %v2082
      %v2084 = vpop.f32.mrb[0].mxu0
      %2085 = vmatprep.mubr.bf16.mxu0 0
      %2086 = vmatmul.mubr.bf16.gmra.mrb[0].mxu0 %v1968
      %v2087 = vpop.f32.mrb[0].mxu0
      %v2088 = vadd.f32 0.0, %v2087
      %v2089 = vpop.f32.mrb[0].mxu0
      %v2090 = vpop.f32.mrb[0].mxu0
      %v2091 = vadd.f32 0.0, %v2090
      %v2092 = vpop.f32.mrb[0].mxu0
      %2093 = vmatprep.mubr.bf16.mxu0 0
      %2094 = vmatmul.mubr.bf16.gmra.mrb[0].mxu0 %v1971
      %v2095 = vpop.f32.mrb[0].mxu0
      %v2096 = vadd.f32 0.0, %v2095
      %v2097 = vpop.f32.mrb[0].mxu0
      %v2098 = vpop.f32.mrb[0].mxu0
      %v2099 = vadd.f32 0.0, %v2098
      %v2100 = vpop.f32.mrb[0].mxu0
      %2101 = vmatprep.mubr.bf16.mxu0 0
      %2102 = vmatmul.mubr.bf16.gmra.mrb[0].mxu0 %v1974
      %v2103 = vpop.f32.mrb[0].mxu0
      %v2104 = vadd.f32 0.0, %v2103
      %v2105 = vpop.f32.mrb[0].mxu0
      %v2106 = vpop.f32.mrb[0].mxu0
      %v2107 = vadd.f32 0.0, %v2106
      %v2108 = vpop.f32.mrb[0].mxu0
      %2109 = vmatprep.mubr.bf16.mxu0 0
      %2110 = vmatmul.mubr.bf16.gmra.mrb[0].mxu0 %v1977
      %v2111 = vpop.f32.mrb[0].mxu0
      %v2112 = vadd.f32 0.0, %v2111
      %v2113 = vpop.f32.mrb[0].mxu0
      %v2114 = vpop.f32.mrb[0].mxu0
      %v2115 = vadd.f32 0.0, %v2114
      %v2116 = vpop.f32.mrb[0].mxu0
      %2117 = vmatprep.mubr.bf16.mxu0 0
      %2118 = vmatmul.mubr.bf16.gmra.mrb[0].mxu0 %v1980
      %v2119 = vpop.f32.mrb[0].mxu0
      %v2120 = vadd.f32 0.0, %v2119
      %v2121 = vpop.f32.mrb[0].mxu0
      %v2122 = vpop.f32.mrb[0].mxu0
      %v2123 = vadd.f32 0.0, %v2122
      %v2124 = vpop.f32.mrb[0].mxu0
      %2125 = vmatprep.mubr.bf16.mxu0 0
      %2126 = vmatmul.mubr.bf16.gmra.mrb[0].mxu0 %v1983
      %v2127 = vpop.f32.mrb[0].mxu0
      %v2128 = vadd.f32 0.0, %v2127
      %v2129 = vpop.f32.mrb[0].mxu0
      %v2130 = vpop.f32.mrb[0].mxu0
      %v2131 = vadd.f32 0.0, %v2130
      %v2132 = vpop.f32.mrb[0].mxu0
      %2133 = vmatprep.mubr.bf16.mxu0 0
      %2134 = vmatmul.mubr.bf16.gmra.mrb[0].mxu0 %v1986
      %v2135 = vpop.f32.mrb[0].mxu0
      %v2136 = vadd.f32 0.0, %v2135
      %v2137 = vpop.f32.mrb[0].mxu0
      %v2138 = vpop.f32.mrb[0].mxu0
      %v2139 = vadd.f32 0.0, %v2138
      %v2140 = vpop.f32.mrb[0].mxu0
      %2141 = vmatprep.mubr.bf16.mxu0 0
      %2142 = vmatmul.mubr.bf16.gmra.mrb[0].mxu0 %v1989
      %v2143 = vpop.f32.mrb[0].mxu0
      %v2144 = vadd.f32 0.0, %v2143
      %v2145 = vpop.f32.mrb[0].mxu0
      %v2146 = vpop.f32.mrb[0].mxu0
      %v2147 = vadd.f32 0.0, %v2146
      %v2148 = vpop.f32.mrb[0].mxu0
      %2149 = vmatprep.mubr.bf16.mxu0 0
      %2150 = vmatmul.mubr.bf16.gmra.mrb[0].mxu0 %v1992
      %v2151 = vpop.f32.mrb[0].mxu0
      %v2152 = vadd.f32 0.0, %v2151
      %v2153 = vpop.f32.mrb[0].mxu0
      %v2154 = vpop.f32.mrb[0].mxu0
      %v2155 = vadd.f32 0.0, %v2154
      %v2156 = vpop.f32.mrb[0].mxu0
      %2157 = vdwg.mxu0
      %v2158 = vadd.f32 %v1864, %v2032
      %v2159 = vadd.f32 %v1865, %v2035
      %v2160 = vadd.f32 %v1866, %v2040
      %v2161 = vadd.f32 %v1867, %v2043
      %v2162 = vadd.f32 %v1868, %v2048
      %v2163 = vadd.f32 %v1869, %v2051
      %v2164 = vadd.f32 %v1870, %v2056
      %v2165 = vadd.f32 %v1871, %v2059
      %v2166 = vadd.f32 %v1872, %v2064
      %v2167 = vadd.f32 %v1873, %v2067
      %v2168 = vadd.f32 %v1874, %v2072
      %v2169 = vadd.f32 %v1875, %v2075
      %v2170 = vadd.f32 %v1876, %v2080
      %v2171 = vadd.f32 %v1877, %v2083
      %v2172 = vadd.f32 %v1878, %v2088
      %v2173 = vadd.f32 %v1879, %v2091
      %v2174 = vadd.f32 %v1880, %v2096
      %v2175 = vadd.f32 %v1881, %v2099
      %v2176 = vadd.f32 %v1882, %v2104
      %v2177 = vadd.f32 %v1883, %v2107
      %v2178 = vadd.f32 %v1884, %v2112
      %v2179 = vadd.f32 %v1885, %v2115
      %v2180 = vadd.f32 %v1886, %v2120
      %v2181 = vadd.f32 %v1887, %v2123
      %v2182 = vadd.f32 %v1888, %v2128
      %v2183 = vadd.f32 %v1889, %v2131
      %v2184 = vadd.f32 %v1890, %v2136
      %v2185 = vadd.f32 %v1891, %v2139
      %v2186 = vadd.f32 %v1892, %v2144
      %v2187 = vadd.f32 %v1893, %v2147
      %v2188 = vadd.f32 %v1894, %v2152
      %v2189 = vadd.f32 %v1895, %v2155
      %s2190 = scalar_lea.vmem [#allocation2], 48
      %v2191 = vld [vmem:[%s2190] sm:$0xff]
      %v2192 = vld [vmem:[%s2190 + $0x8] sm:$0xff]
      %v2193 = vld [vmem:[%s2190 + $0x18] sm:$0xff]
      %v2194 = vld [vmem:[%s2190 + $0x20] sm:$0xff]
      %v2195 = vld [vmem:[%s2190 + $0x30] sm:$0xff]
      %v2196 = vld [vmem:[%s2190 + $0x38] sm:$0xff]
      %v2197 = vld [vmem:[%s2190 + $0x48] sm:$0xff]
      %v2198 = vld [vmem:[%s2190 + $0x50] sm:$0xff]
      %v2199 = vld [vmem:[%s2190 + $0x60] sm:$0xff]
      %v2200 = vld [vmem:[%s2190 + $0x68] sm:$0xff]
      %v2201 = vld [vmem:[%s2190 + $0x78] sm:$0xff]
      %v2202 = vld [vmem:[%s2190 + $0x80] sm:$0xff]
      %v2203 = vld [vmem:[%s2190 + $0x90] sm:$0xff]
      %v2204 = vld [vmem:[%s2190 + $0x98] sm:$0xff]
      %v2205 = vld [vmem:[%s2190 + $0xa8] sm:$0xff]
      %v2206 = vld [vmem:[%s2190 + $0xb0] sm:$0xff]
      %v2207 = vld [vmem:[%s2190 + $0xc0] sm:$0xff]
      %v2208 = vld [vmem:[%s2190 + $0xc8] sm:$0xff]
      %v2209 = vld [vmem:[%s2190 + $0xd8] sm:$0xff]
      %v2210 = vld [vmem:[%s2190 + $0xe0] sm:$0xff]
      %v2211 = vld [vmem:[%s2190 + $0xf0] sm:$0xff]
      %v2212 = vld [vmem:[%s2190 + $0xf8] sm:$0xff]
      %v2213 = vld [vmem:[%s2190 + $0x108] sm:$0xff]
      %v2214 = vld [vmem:[%s2190 + $0x110] sm:$0xff]
      %v2215 = vld [vmem:[%s2190 + $0x120] sm:$0xff]
      %v2216 = vld [vmem:[%s2190 + $0x128] sm:$0xff]
      %v2217 = vld [vmem:[%s2190 + $0x138] sm:$0xff]
      %v2218 = vld [vmem:[%s2190 + $0x140] sm:$0xff]
      %v2219 = vld [vmem:[%s2190 + $0x150] sm:$0xff]
      %v2220 = vld [vmem:[%s2190 + $0x158] sm:$0xff]
      %v2221 = vld [vmem:[%s2190 + $0x168] sm:$0xff]
      %v2222 = vld [vmem:[%s2190 + $0x170] sm:$0xff]
      %v2223 = vpack.c.bf16 %v2192, %v2191
      %v2224 = vpack.c.bf16 %v2194, %v2193
      %v2225 = vpack.c.bf16 %v2196, %v2195
      %v2226 = vpack.c.bf16 %v2198, %v2197
      %v2227 = vpack.c.bf16 %v2200, %v2199
      %v2228 = vpack.c.bf16 %v2202, %v2201
      %v2229 = vpack.c.bf16 %v2204, %v2203
      %v2230 = vpack.c.bf16 %v2206, %v2205
      %v2231 = vpack.c.bf16 %v2208, %v2207
      %v2232 = vpack.c.bf16 %v2210, %v2209
      %v2233 = vpack.c.bf16 %v2212, %v2211
      %v2234 = vpack.c.bf16 %v2214, %v2213
      %v2235 = vpack.c.bf16 %v2216, %v2215
      %v2236 = vpack.c.bf16 %v2218, %v2217
      %v2237 = vpack.c.bf16 %v2220, %v2219
      %v2238 = vpack.c.bf16 %v2222, %v2221
      %s2239 = scalar_lea.vmem %s3, 24
      %v2240 = vld [vmem:[%s2239] sm:$0xf]
      %v2242 = vsel %vm237, %v2223, 0
      %v2245 = vsel %vm237, %v2224, 0
      %v2248 = vsel %vm237, %v2225, 0
      %v2251 = vsel %vm237, %v2226, 0
      %v2254 = vsel %vm237, %v2227, 0
      %v2257 = vsel %vm237, %v2228, 0
      %v2260 = vsel %vm237, %v2229, 0
      %v2263 = vsel %vm237, %v2230, 0
      %v2266 = vsel %vm237, %v2231, 0
      %v2269 = vsel %vm237, %v2232, 0
      %v2272 = vsel %vm237, %v2233, 0
      %v2275 = vsel %vm237, %v2234, 0
      %v2278 = vsel %vm237, %v2235, 0
      %v2281 = vsel %vm237, %v2236, 0
      %v2284 = vsel %vm237, %v2237, 0
      %v2287 = vsel %vm237, %v2238, 0
      %v2290 = vsel %vm637, %v2240, 0
      %2292 = vmatprep.subr.bf16.mxu0 0
      %2293 = vmatpush1.bf16.msra.mxu0 %v2290
      %2294 = vmatprep.subr.bf16.mxu0 0
      %2295 = vmatpush1.bf16.msra.mxu0 0
      %2296 = vmatprep.subr.bf16.mxu0 0
      %2297 = vmatpush1.bf16.msra.mxu0 0
      %2298 = vmatprep.subr.bf16.mxu0 0
      %2299 = vmatpush1.bf16.msra.mxu0 0
      %2300 = vmatprep.subr.bf16.mxu0 0
      %2301 = vmatpush1.bf16.msra.mxu0 0
      %2302 = vmatprep.subr.bf16.mxu0 0
      %2303 = vmatpush1.bf16.msra.mxu0 0
      %2304 = vmatprep.subr.bf16.mxu0 0
      %2305 = vmatpush1.bf16.msra.mxu0 0
      %2306 = vmatprep.subr.bf16.mxu0 0
      %2307 = vmatpush1.bf16.msra.mxu0 0
      %2308 = vmatprep.subr.bf16.mxu0 0
      %2309 = vmatpush1.bf16.msra.mxu0 0
      %2310 = vmatprep.subr.bf16.mxu0 0
      %2311 = vmatpush1.bf16.msra.mxu0 0
      %2312 = vmatprep.subr.bf16.mxu0 0
      %2313 = vmatpush1.bf16.msra.mxu0 0
      %2314 = vmatprep.subr.bf16.mxu0 0
      %2315 = vmatpush1.bf16.msra.mxu0 0
      %2316 = vmatprep.subr.bf16.mxu0 0
      %2317 = vmatpush1.bf16.msra.mxu0 0
      %2318 = vmatprep.subr.bf16.mxu0 0
      %2319 = vmatpush1.bf16.msra.mxu0 0
      %2320 = vmatprep.subr.bf16.mxu0 0
      %2321 = vmatpush1.bf16.msra.mxu0 0
      %2322 = vmatprep.subr.bf16.mxu0 0
      %2323 = vmatpush1.bf16.msra.mxu0 0
      %2324 = vmatprep.mubr.bf16.mxu0 0
      %2325 = vmatmul.mubr.bf16.gmra.mrb[0].mxu0 %v2242
      %v2326 = vpop.f32.mrb[0].mxu0
      %v2327 = vadd.f32 0.0, %v2326
      %v2328 = vpop.f32.mrb[0].mxu0
      %v2329 = vpop.f32.mrb[0].mxu0
      %v2330 = vadd.f32 0.0, %v2329
      %v2331 = vpop.f32.mrb[0].mxu0
      %2332 = vmatprep.mubr.bf16.mxu0 0
      %2333 = vmatmul.mubr.bf16.gmra.mrb[0].mxu0 %v2245
      %v2334 = vpop.f32.mrb[0].mxu0
      %v2335 = vadd.f32 0.0, %v2334
      %v2336 = vpop.f32.mrb[0].mxu0
      %v2337 = vpop.f32.mrb[0].mxu0
      %v2338 = vadd.f32 0.0, %v2337
      %v2339 = vpop.f32.mrb[0].mxu0
      %2340 = vmatprep.mubr.bf16.mxu0 0
      %2341 = vmatmul.mubr.bf16.gmra.mrb[0].mxu0 %v2248
      %v2342 = vpop.f32.mrb[0].mxu0
      %v2343 = vadd.f32 0.0, %v2342
      %v2344 = vpop.f32.mrb[0].mxu0
      %v2345 = vpop.f32.mrb[0].mxu0
      %v2346 = vadd.f32 0.0, %v2345
      %v2347 = vpop.f32.mrb[0].mxu0
      %2348 = vmatprep.mubr.bf16.mxu0 0
      %2349 = vmatmul.mubr.bf16.gmra.mrb[0].mxu0 %v2251
      %v2350 = vpop.f32.mrb[0].mxu0
      %v2351 = vadd.f32 0.0, %v2350
      %v2352 = vpop.f32.mrb[0].mxu0
      %v2353 = vpop.f32.mrb[0].mxu0
      %v2354 = vadd.f32 0.0, %v2353
      %v2355 = vpop.f32.mrb[0].mxu0
      %2356 = vmatprep.mubr.bf16.mxu0 0
      %2357 = vmatmul.mubr.bf16.gmra.mrb[0].mxu0 %v2254
      %v2358 = vpop.f32.mrb[0].mxu0
      %v2359 = vadd.f32 0.0, %v2358
      %v2360 = vpop.f32.mrb[0].mxu0
      %v2361 = vpop.f32.mrb[0].mxu0
      %v2362 = vadd.f32 0.0, %v2361
      %v2363 = vpop.f32.mrb[0].mxu0
      %2364 = vmatprep.mubr.bf16.mxu0 0
      %2365 = vmatmul.mubr.bf16.gmra.mrb[0].mxu0 %v2257
      %v2366 = vpop.f32.mrb[0].mxu0
      %v2367 = vadd.f32 0.0, %v2366
      %v2368 = vpop.f32.mrb[0].mxu0
      %v2369 = vpop.f32.mrb[0].mxu0
      %v2370 = vadd.f32 0.0, %v2369
      %v2371 = vpop.f32.mrb[0].mxu0
      %2372 = vmatprep.mubr.bf16.mxu0 0
      %2373 = vmatmul.mubr.bf16.gmra.mrb[0].mxu0 %v2260
      %v2374 = vpop.f32.mrb[0].mxu0
      %v2375 = vadd.f32 0.0, %v2374
      %v2376 = vpop.f32.mrb[0].mxu0
      %v2377 = vpop.f32.mrb[0].mxu0
      %v2378 = vadd.f32 0.0, %v2377
      %v2379 = vpop.f32.mrb[0].mxu0
      %2380 = vmatprep.mubr.bf16.mxu0 0
      %2381 = vmatmul.mubr.bf16.gmra.mrb[0].mxu0 %v2263
      %v2382 = vpop.f32.mrb[0].mxu0
      %v2383 = vadd.f32 0.0, %v2382
      %v2384 = vpop.f32.mrb[0].mxu0
      %v2385 = vpop.f32.mrb[0].mxu0
      %v2386 = vadd.f32 0.0, %v2385
      %v2387 = vpop.f32.mrb[0].mxu0
      %2388 = vmatprep.mubr.bf16.mxu0 0
      %2389 = vmatmul.mubr.bf16.gmra.mrb[0].mxu0 %v2266
      %v2390 = vpop.f32.mrb[0].mxu0
      %v2391 = vadd.f32 0.0, %v2390
      %v2392 = vpop.f32.mrb[0].mxu0
      %v2393 = vpop.f32.mrb[0].mxu0
      %v2394 = vadd.f32 0.0, %v2393
      %v2395 = vpop.f32.mrb[0].mxu0
      %2396 = vmatprep.mubr.bf16.mxu0 0
      %2397 = vmatmul.mubr.bf16.gmra.mrb[0].mxu0 %v2269
      %v2398 = vpop.f32.mrb[0].mxu0
      %v2399 = vadd.f32 0.0, %v2398
      %v2400 = vpop.f32.mrb[0].mxu0
      %v2401 = vpop.f32.mrb[0].mxu0
      %v2402 = vadd.f32 0.0, %v2401
      %v2403 = vpop.f32.mrb[0].mxu0
      %2404 = vmatprep.mubr.bf16.mxu0 0
      %2405 = vmatmul.mubr.bf16.gmra.mrb[0].mxu0 %v2272
      %v2406 = vpop.f32.mrb[0].mxu0
      %v2407 = vadd.f32 0.0, %v2406
      %v2408 = vpop.f32.mrb[0].mxu0
      %v2409 = vpop.f32.mrb[0].mxu0
      %v2410 = vadd.f32 0.0, %v2409
      %v2411 = vpop.f32.mrb[0].mxu0
      %2412 = vmatprep.mubr.bf16.mxu0 0
      %2413 = vmatmul.mubr.bf16.gmra.mrb[0].mxu0 %v2275
      %v2414 = vpop.f32.mrb[0].mxu0
      %v2415 = vadd.f32 0.0, %v2414
      %v2416 = vpop.f32.mrb[0].mxu0
      %v2417 = vpop.f32.mrb[0].mxu0
      %v2418 = vadd.f32 0.0, %v2417
      %v2419 = vpop.f32.mrb[0].mxu0
      %2420 = vmatprep.mubr.bf16.mxu0 0
      %2421 = vmatmul.mubr.bf16.gmra.mrb[0].mxu0 %v2278
      %v2422 = vpop.f32.mrb[0].mxu0
      %v2423 = vadd.f32 0.0, %v2422
      %v2424 = vpop.f32.mrb[0].mxu0
      %v2425 = vpop.f32.mrb[0].mxu0
      %v2426 = vadd.f32 0.0, %v2425
      %v2427 = vpop.f32.mrb[0].mxu0
      %2428 = vmatprep.mubr.bf16.mxu0 0
      %2429 = vmatmul.mubr.bf16.gmra.mrb[0].mxu0 %v2281
      %v2430 = vpop.f32.mrb[0].mxu0
      %v2431 = vadd.f32 0.0, %v2430
      %v2432 = vpop.f32.mrb[0].mxu0
      %v2433 = vpop.f32.mrb[0].mxu0
      %v2434 = vadd.f32 0.0, %v2433
      %v2435 = vpop.f32.mrb[0].mxu0
      %2436 = vmatprep.mubr.bf16.mxu0 0
      %2437 = vmatmul.mubr.bf16.gmra.mrb[0].mxu0 %v2284
      %v2438 = vpop.f32.mrb[0].mxu0
      %v2439 = vadd.f32 0.0, %v2438
      %v2440 = vpop.f32.mrb[0].mxu0
      %v2441 = vpop.f32.mrb[0].mxu0
      %v2442 = vadd.f32 0.0, %v2441
      %v2443 = vpop.f32.mrb[0].mxu0
      %2444 = vmatprep.mubr.bf16.mxu0 0
      %2445 = vmatmul.mubr.bf16.gmra.mrb[0].mxu0 %v2287
      %v2446 = vpop.f32.mrb[0].mxu0
      %v2447 = vadd.f32 0.0, %v2446
      %v2448 = vpop.f32.mrb[0].mxu0
      %v2449 = vpop.f32.mrb[0].mxu0
      %v2450 = vadd.f32 0.0, %v2449
      %v2451 = vpop.f32.mrb[0].mxu0
      %2452 = vdwg.mxu0
      %v2453 = vadd.f32 %v2158, %v2327
      %v2454 = vadd.f32 %v2159, %v2330
      %v2455 = vadd.f32 %v2160, %v2335
      %v2456 = vadd.f32 %v2161, %v2338
      %v2457 = vadd.f32 %v2162, %v2343
      %v2458 = vadd.f32 %v2163, %v2346
      %v2459 = vadd.f32 %v2164, %v2351
      %v2460 = vadd.f32 %v2165, %v2354
      %v2461 = vadd.f32 %v2166, %v2359
      %v2462 = vadd.f32 %v2167, %v2362
      %v2463 = vadd.f32 %v2168, %v2367
      %v2464 = vadd.f32 %v2169, %v2370
      %v2465 = vadd.f32 %v2170, %v2375
      %v2466 = vadd.f32 %v2171, %v2378
      %v2467 = vadd.f32 %v2172, %v2383
      %v2468 = vadd.f32 %v2173, %v2386
      %v2469 = vadd.f32 %v2174, %v2391
      %v2470 = vadd.f32 %v2175, %v2394
      %v2471 = vadd.f32 %v2176, %v2399
      %v2472 = vadd.f32 %v2177, %v2402
      %v2473 = vadd.f32 %v2178, %v2407
      %v2474 = vadd.f32 %v2179, %v2410
      %v2475 = vadd.f32 %v2180, %v2415
      %v2476 = vadd.f32 %v2181, %v2418
      %v2477 = vadd.f32 %v2182, %v2423
      %v2478 = vadd.f32 %v2183, %v2426
      %v2479 = vadd.f32 %v2184, %v2431
      %v2480 = vadd.f32 %v2185, %v2434
      %v2481 = vadd.f32 %v2186, %v2439
      %v2482 = vadd.f32 %v2187, %v2442
      %v2483 = vadd.f32 %v2188, %v2447
      %v2484 = vadd.f32 %v2189, %v2450
      %v2485 = vld [vmem:[%s2190 + $0x1] sm:$0xff]
      %v2486 = vld [vmem:[%s2190 + $0x9] sm:$0xff]
      %v2487 = vld [vmem:[%s2190 + $0x19] sm:$0xff]
      %v2488 = vld [vmem:[%s2190 + $0x21] sm:$0xff]
      %v2489 = vld [vmem:[%s2190 + $0x31] sm:$0xff]
      %v2490 = vld [vmem:[%s2190 + $0x39] sm:$0xff]
      %v2491 = vld [vmem:[%s2190 + $0x49] sm:$0xff]
      %v2492 = vld [vmem:[%s2190 + $0x51] sm:$0xff]
      %v2493 = vld [vmem:[%s2190 + $0x61] sm:$0xff]
      %v2494 = vld [vmem:[%s2190 + $0x69] sm:$0xff]
      %v2495 = vld [vmem:[%s2190 + $0x79] sm:$0xff]
      %v2496 = vld [vmem:[%s2190 + $0x81] sm:$0xff]
      %v2497 = vld [vmem:[%s2190 + $0x91] sm:$0xff]
      %v2498 = vld [vmem:[%s2190 + $0x99] sm:$0xff]
      %v2499 = vld [vmem:[%s2190 + $0xa9] sm:$0xff]
      %v2500 = vld [vmem:[%s2190 + $0xb1] sm:$0xff]
      %v2501 = vld [vmem:[%s2190 + $0xc1] sm:$0xff]
      %v2502 = vld [vmem:[%s2190 + $0xc9] sm:$0xff]
      %v2503 = vld [vmem:[%s2190 + $0xd9] sm:$0xff]
      %v2504 = vld [vmem:[%s2190 + $0xe1] sm:$0xff]
      %v2505 = vld [vmem:[%s2190 + $0xf1] sm:$0xff]
      %v2506 = vld [vmem:[%s2190 + $0xf9] sm:$0xff]
      %v2507 = vld [vmem:[%s2190 + $0x109] sm:$0xff]
      %v2508 = vld [vmem:[%s2190 + $0x111] sm:$0xff]
      %v2509 = vld [vmem:[%s2190 + $0x121] sm:$0xff]
      %v2510 = vld [vmem:[%s2190 + $0x129] sm:$0xff]
      %v2511 = vld [vmem:[%s2190 + $0x139] sm:$0xff]
      %v2512 = vld [vmem:[%s2190 + $0x141] sm:$0xff]
      %v2513 = vld [vmem:[%s2190 + $0x151] sm:$0xff]
      %v2514 = vld [vmem:[%s2190 + $0x159] sm:$0xff]
      %v2515 = vld [vmem:[%s2190 + $0x169] sm:$0xff]
      %v2516 = vld [vmem:[%s2190 + $0x171] sm:$0xff]
      %v2517 = vpack.c.bf16 %v2486, %v2485
      %v2518 = vpack.c.bf16 %v2488, %v2487
      %v2519 = vpack.c.bf16 %v2490, %v2489
      %v2520 = vpack.c.bf16 %v2492, %v2491
      %v2521 = vpack.c.bf16 %v2494, %v2493
      %v2522 = vpack.c.bf16 %v2496, %v2495
      %v2523 = vpack.c.bf16 %v2498, %v2497
      %v2524 = vpack.c.bf16 %v2500, %v2499
      %v2525 = vpack.c.bf16 %v2502, %v2501
      %v2526 = vpack.c.bf16 %v2504, %v2503
      %v2527 = vpack.c.bf16 %v2506, %v2505
      %v2528 = vpack.c.bf16 %v2508, %v2507
      %v2529 = vpack.c.bf16 %v2510, %v2509
      %v2530 = vpack.c.bf16 %v2512, %v2511
      %v2531 = vpack.c.bf16 %v2514, %v2513
      %v2532 = vpack.c.bf16 %v2516, %v2515
      %s2533 = scalar_lea.vmem %s3, 28
      %v2534 = vld [vmem:[%s2533] sm:$0xf]
      %v2536 = vsel %vm237, %v2517, 0
      %v2539 = vsel %vm237, %v2518, 0
      %v2542 = vsel %vm237, %v2519, 0
      %v2545 = vsel %vm237, %v2520, 0
      %v2548 = vsel %vm237, %v2521, 0
      %v2551 = vsel %vm237, %v2522, 0
      %v2554 = vsel %vm237, %v2523, 0
      %v2557 = vsel %vm237, %v2524, 0
      %v2560 = vsel %vm237, %v2525, 0
      %v2563 = vsel %vm237, %v2526, 0
      %v2566 = vsel %vm237, %v2527, 0
      %v2569 = vsel %vm237, %v2528, 0
      %v2572 = vsel %vm237, %v2529, 0
      %v2575 = vsel %vm237, %v2530, 0
      %v2578 = vsel %vm237, %v2531, 0
      %v2581 = vsel %vm237, %v2532, 0
      %v2584 = vsel %vm637, %v2534, 0
      %2586 = vmatprep.subr.bf16.mxu0 0
      %2587 = vmatpush1.bf16.msra.mxu0 %v2584
      %2588 = vmatprep.subr.bf16.mxu0 0
      %2589 = vmatpush1.bf16.msra.mxu0 0
      %2590 = vmatprep.subr.bf16.mxu0 0
      %2591 = vmatpush1.bf16.msra.mxu0 0
      %2592 = vmatprep.subr.bf16.mxu0 0
      %2593 = vmatpush1.bf16.msra.mxu0 0
      %2594 = vmatprep.subr.bf16.mxu0 0
      %2595 = vmatpush1.bf16.msra.mxu0 0
      %2596 = vmatprep.subr.bf16.mxu0 0
      %2597 = vmatpush1.bf16.msra.mxu0 0
      %2598 = vmatprep.subr.bf16.mxu0 0
      %2599 = vmatpush1.bf16.msra.mxu0 0
      %2600 = vmatprep.subr.bf16.mxu0 0
      %2601 = vmatpush1.bf16.msra.mxu0 0
      %2602 = vmatprep.subr.bf16.mxu0 0
      %2603 = vmatpush1.bf16.msra.mxu0 0
      %2604 = vmatprep.subr.bf16.mxu0 0
      %2605 = vmatpush1.bf16.msra.mxu0 0
      %2606 = vmatprep.subr.bf16.mxu0 0
      %2607 = vmatpush1.bf16.msra.mxu0 0
      %2608 = vmatprep.subr.bf16.mxu0 0
      %2609 = vmatpush1.bf16.msra.mxu0 0
      %2610 = vmatprep.subr.bf16.mxu0 0
      %2611 = vmatpush1.bf16.msra.mxu0 0
      %2612 = vmatprep.subr.bf16.mxu0 0
      %2613 = vmatpush1.bf16.msra.mxu0 0
      %2614 = vmatprep.subr.bf16.mxu0 0
      %2615 = vmatpush1.bf16.msra.mxu0 0
      %2616 = vmatprep.subr.bf16.mxu0 0
      %2617 = vmatpush1.bf16.msra.mxu0 0
      %2618 = vmatprep.mubr.bf16.mxu0 0
      %2619 = vmatmul.mubr.bf16.gmra.mrb[0].mxu0 %v2536
      %v2620 = vpop.f32.mrb[0].mxu0
      %v2621 = vadd.f32 0.0, %v2620
      %v2622 = vpop.f32.mrb[0].mxu0
      %v2623 = vpop.f32.mrb[0].mxu0
      %v2624 = vadd.f32 0.0, %v2623
      %v2625 = vpop.f32.mrb[0].mxu0
      %2626 = vmatprep.mubr.bf16.mxu0 0
      %2627 = vmatmul.mubr.bf16.gmra.mrb[0].mxu0 %v2539
      %v2628 = vpop.f32.mrb[0].mxu0
      %v2629 = vadd.f32 0.0, %v2628
      %v2630 = vpop.f32.mrb[0].mxu0
      %v2631 = vpop.f32.mrb[0].mxu0
      %v2632 = vadd.f32 0.0, %v2631
      %v2633 = vpop.f32.mrb[0].mxu0
      %2634 = vmatprep.mubr.bf16.mxu0 0
      %2635 = vmatmul.mubr.bf16.gmra.mrb[0].mxu0 %v2542
      %v2636 = vpop.f32.mrb[0].mxu0
      %v2637 = vadd.f32 0.0, %v2636
      %v2638 = vpop.f32.mrb[0].mxu0
      %v2639 = vpop.f32.mrb[0].mxu0
      %v2640 = vadd.f32 0.0, %v2639
      %v2641 = vpop.f32.mrb[0].mxu0
      %2642 = vmatprep.mubr.bf16.mxu0 0
      %2643 = vmatmul.mubr.bf16.gmra.mrb[0].mxu0 %v2545
      %v2644 = vpop.f32.mrb[0].mxu0
      %v2645 = vadd.f32 0.0, %v2644
      %v2646 = vpop.f32.mrb[0].mxu0
      %v2647 = vpop.f32.mrb[0].mxu0
      %v2648 = vadd.f32 0.0, %v2647
      %v2649 = vpop.f32.mrb[0].mxu0
      %2650 = vmatprep.mubr.bf16.mxu0 0
      %2651 = vmatmul.mubr.bf16.gmra.mrb[0].mxu0 %v2548
      %v2652 = vpop.f32.mrb[0].mxu0
      %v2653 = vadd.f32 0.0, %v2652
      %v2654 = vpop.f32.mrb[0].mxu0
      %v2655 = vpop.f32.mrb[0].mxu0
      %v2656 = vadd.f32 0.0, %v2655
      %v2657 = vpop.f32.mrb[0].mxu0
      %2658 = vmatprep.mubr.bf16.mxu0 0
      %2659 = vmatmul.mubr.bf16.gmra.mrb[0].mxu0 %v2551
      %v2660 = vpop.f32.mrb[0].mxu0
      %v2661 = vadd.f32 0.0, %v2660
      %v2662 = vpop.f32.mrb[0].mxu0
      %v2663 = vpop.f32.mrb[0].mxu0
      %v2664 = vadd.f32 0.0, %v2663
      %v2665 = vpop.f32.mrb[0].mxu0
      %2666 = vmatprep.mubr.bf16.mxu0 0
      %2667 = vmatmul.mubr.bf16.gmra.mrb[0].mxu0 %v2554
      %v2668 = vpop.f32.mrb[0].mxu0
      %v2669 = vadd.f32 0.0, %v2668
      %v2670 = vpop.f32.mrb[0].mxu0
      %v2671 = vpop.f32.mrb[0].mxu0
      %v2672 = vadd.f32 0.0, %v2671
      %v2673 = vpop.f32.mrb[0].mxu0
      %2674 = vmatprep.mubr.bf16.mxu0 0
      %2675 = vmatmul.mubr.bf16.gmra.mrb[0].mxu0 %v2557
      %v2676 = vpop.f32.mrb[0].mxu0
      %v2677 = vadd.f32 0.0, %v2676
      %v2678 = vpop.f32.mrb[0].mxu0
      %v2679 = vpop.f32.mrb[0].mxu0
      %v2680 = vadd.f32 0.0, %v2679
      %v2681 = vpop.f32.mrb[0].mxu0
      %2682 = vmatprep.mubr.bf16.mxu0 0
      %2683 = vmatmul.mubr.bf16.gmra.mrb[0].mxu0 %v2560
      %v2684 = vpop.f32.mrb[0].mxu0
      %v2685 = vadd.f32 0.0, %v2684
      %v2686 = vpop.f32.mrb[0].mxu0
      %v2687 = vpop.f32.mrb[0].mxu0
      %v2688 = vadd.f32 0.0, %v2687
      %v2689 = vpop.f32.mrb[0].mxu0
      %2690 = vmatprep.mubr.bf16.mxu0 0
      %2691 = vmatmul.mubr.bf16.gmra.mrb[0].mxu0 %v2563
      %v2692 = vpop.f32.mrb[0].mxu0
      %v2693 = vadd.f32 0.0, %v2692
      %v2694 = vpop.f32.mrb[0].mxu0
      %v2695 = vpop.f32.mrb[0].mxu0
      %v2696 = vadd.f32 0.0, %v2695
      %v2697 = vpop.f32.mrb[0].mxu0
      %2698 = vmatprep.mubr.bf16.mxu0 0
      %2699 = vmatmul.mubr.bf16.gmra.mrb[0].mxu0 %v2566
      %v2700 = vpop.f32.mrb[0].mxu0
      %v2701 = vadd.f32 0.0, %v2700
      %v2702 = vpop.f32.mrb[0].mxu0
      %v2703 = vpop.f32.mrb[0].mxu0
      %v2704 = vadd.f32 0.0, %v2703
      %v2705 = vpop.f32.mrb[0].mxu0
      %2706 = vmatprep.mubr.bf16.mxu0 0
      %2707 = vmatmul.mubr.bf16.gmra.mrb[0].mxu0 %v2569
      %v2708 = vpop.f32.mrb[0].mxu0
      %v2709 = vadd.f32 0.0, %v2708
      %v2710 = vpop.f32.mrb[0].mxu0
      %v2711 = vpop.f32.mrb[0].mxu0
      %v2712 = vadd.f32 0.0, %v2711
      %v2713 = vpop.f32.mrb[0].mxu0
      %2714 = vmatprep.mubr.bf16.mxu0 0
      %2715 = vmatmul.mubr.bf16.gmra.mrb[0].mxu0 %v2572
      %v2716 = vpop.f32.mrb[0].mxu0
      %v2717 = vadd.f32 0.0, %v2716
      %v2718 = vpop.f32.mrb[0].mxu0
      %v2719 = vpop.f32.mrb[0].mxu0
      %v2720 = vadd.f32 0.0, %v2719
      %v2721 = vpop.f32.mrb[0].mxu0
      %2722 = vmatprep.mubr.bf16.mxu0 0
      %2723 = vmatmul.mubr.bf16.gmra.mrb[0].mxu0 %v2575
      %v2724 = vpop.f32.mrb[0].mxu0
      %v2725 = vadd.f32 0.0, %v2724
      %v2726 = vpop.f32.mrb[0].mxu0
      %v2727 = vpop.f32.mrb[0].mxu0
      %v2728 = vadd.f32 0.0, %v2727
      %v2729 = vpop.f32.mrb[0].mxu0
      %2730 = vmatprep.mubr.bf16.mxu0 0
      %2731 = vmatmul.mubr.bf16.gmra.mrb[0].mxu0 %v2578
      %v2732 = vpop.f32.mrb[0].mxu0
      %v2733 = vadd.f32 0.0, %v2732
      %v2734 = vpop.f32.mrb[0].mxu0
      %v2735 = vpop.f32.mrb[0].mxu0
      %v2736 = vadd.f32 0.0, %v2735
      %v2737 = vpop.f32.mrb[0].mxu0
      %2738 = vmatprep.mubr.bf16.mxu0 0
      %2739 = vmatmul.mubr.bf16.gmra.mrb[0].mxu0 %v2581
      %v2740 = vpop.f32.mrb[0].mxu0
      %v2741 = vadd.f32 0.0, %v2740
      %v2742 = vpop.f32.mrb[0].mxu0
      %v2743 = vpop.f32.mrb[0].mxu0
      %v2744 = vadd.f32 0.0, %v2743
      %v2745 = vpop.f32.mrb[0].mxu0
      %2746 = vdwg.mxu0
      %v2747 = vadd.f32 %v2453, %v2621
      %v2748 = vadd.f32 %v2454, %v2624
      %v2749 = vadd.f32 %v2455, %v2629
      %v2750 = vadd.f32 %v2456, %v2632
      %v2751 = vadd.f32 %v2457, %v2637
      %v2752 = vadd.f32 %v2458, %v2640
      %v2753 = vadd.f32 %v2459, %v2645
      %v2754 = vadd.f32 %v2460, %v2648
      %v2755 = vadd.f32 %v2461, %v2653
      %v2756 = vadd.f32 %v2462, %v2656
      %v2757 = vadd.f32 %v2463, %v2661
      %v2758 = vadd.f32 %v2464, %v2664
      %v2759 = vadd.f32 %v2465, %v2669
      %v2760 = vadd.f32 %v2466, %v2672
      %v2761 = vadd.f32 %v2467, %v2677
      %v2762 = vadd.f32 %v2468, %v2680
      %v2763 = vadd.f32 %v2469, %v2685
      %v2764 = vadd.f32 %v2470, %v2688
      %v2765 = vadd.f32 %v2471, %v2693
      %v2766 = vadd.f32 %v2472, %v2696
      %v2767 = vadd.f32 %v2473, %v2701
      %v2768 = vadd.f32 %v2474, %v2704
      %v2769 = vadd.f32 %v2475, %v2709
      %v2770 = vadd.f32 %v2476, %v2712
      %v2771 = vadd.f32 %v2477, %v2717
      %v2772 = vadd.f32 %v2478, %v2720
      %v2773 = vadd.f32 %v2479, %v2725
      %v2774 = vadd.f32 %v2480, %v2728
      %v2775 = vadd.f32 %v2481, %v2733
      %v2776 = vadd.f32 %v2482, %v2736
      %v2777 = vadd.f32 %v2483, %v2741
      %v2778 = vadd.f32 %v2484, %v2744
      %v2779 = vld [vmem:[%s2190 + $0x2] sm:$0xff]
      %v2780 = vld [vmem:[%s2190 + $0xa] sm:$0xff]
      %v2781 = vld [vmem:[%s2190 + $0x1a] sm:$0xff]
      %v2782 = vld [vmem:[%s2190 + $0x22] sm:$0xff]
      %v2783 = vld [vmem:[%s2190 + $0x32] sm:$0xff]
      %v2784 = vld [vmem:[%s2190 + $0x3a] sm:$0xff]
      %v2785 = vld [vmem:[%s2190 + $0x4a] sm:$0xff]
      %v2786 = vld [vmem:[%s2190 + $0x52] sm:$0xff]
      %v2787 = vld [vmem:[%s2190 + $0x62] sm:$0xff]
      %v2788 = vld [vmem:[%s2190 + $0x6a] sm:$0xff]
      %v2789 = vld [vmem:[%s2190 + $0x7a] sm:$0xff]
      %v2790 = vld [vmem:[%s2190 + $0x82] sm:$0xff]
      %v2791 = vld [vmem:[%s2190 + $0x92] sm:$0xff]
      %v2792 = vld [vmem:[%s2190 + $0x9a] sm:$0xff]
      %v2793 = vld [vmem:[%s2190 + $0xaa] sm:$0xff]
      %v2794 = vld [vmem:[%s2190 + $0xb2] sm:$0xff]
      %v2795 = vld [vmem:[%s2190 + $0xc2] sm:$0xff]
      %v2796 = vld [vmem:[%s2190 + $0xca] sm:$0xff]
      %v2797 = vld [vmem:[%s2190 + $0xda] sm:$0xff]
      %v2798 = vld [vmem:[%s2190 + $0xe2] sm:$0xff]
      %v2799 = vld [vmem:[%s2190 + $0xf2] sm:$0xff]
      %v2800 = vld [vmem:[%s2190 + $0xfa] sm:$0xff]
      %v2801 = vld [vmem:[%s2190 + $0x10a] sm:$0xff]
      %v2802 = vld [vmem:[%s2190 + $0x112] sm:$0xff]
      %v2803 = vld [vmem:[%s2190 + $0x122] sm:$0xff]
      %v2804 = vld [vmem:[%s2190 + $0x12a] sm:$0xff]
      %v2805 = vld [vmem:[%s2190 + $0x13a] sm:$0xff]
      %v2806 = vld [vmem:[%s2190 + $0x142] sm:$0xff]
      %v2807 = vld [vmem:[%s2190 + $0x152] sm:$0xff]
      %v2808 = vld [vmem:[%s2190 + $0x15a] sm:$0xff]
      %v2809 = vld [vmem:[%s2190 + $0x16a] sm:$0xff]
      %v2810 = vld [vmem:[%s2190 + $0x172] sm:$0xff]
      %v2811 = vpack.c.bf16 %v2780, %v2779
      %v2812 = vpack.c.bf16 %v2782, %v2781
      %v2813 = vpack.c.bf16 %v2784, %v2783
      %v2814 = vpack.c.bf16 %v2786, %v2785
      %v2815 = vpack.c.bf16 %v2788, %v2787
      %v2816 = vpack.c.bf16 %v2790, %v2789
      %v2817 = vpack.c.bf16 %v2792, %v2791
      %v2818 = vpack.c.bf16 %v2794, %v2793
      %v2819 = vpack.c.bf16 %v2796, %v2795
      %v2820 = vpack.c.bf16 %v2798, %v2797
      %v2821 = vpack.c.bf16 %v2800, %v2799
      %v2822 = vpack.c.bf16 %v2802, %v2801
      %v2823 = vpack.c.bf16 %v2804, %v2803
      %v2824 = vpack.c.bf16 %v2806, %v2805
      %v2825 = vpack.c.bf16 %v2808, %v2807
      %v2826 = vpack.c.bf16 %v2810, %v2809
      %s2827 = scalar_lea.vmem %s3, 32
      %v2828 = vld [vmem:[%s2827] sm:$0xf]
      %v2830 = vsel %vm237, %v2811, 0
      %v2833 = vsel %vm237, %v2812, 0
      %v2836 = vsel %vm237, %v2813, 0
      %v2839 = vsel %vm237, %v2814, 0
      %v2842 = vsel %vm237, %v2815, 0
      %v2845 = vsel %vm237, %v2816, 0
      %v2848 = vsel %vm237, %v2817, 0
      %v2851 = vsel %vm237, %v2818, 0
      %v2854 = vsel %vm237, %v2819, 0
      %v2857 = vsel %vm237, %v2820, 0
      %v2860 = vsel %vm237, %v2821, 0
      %v2863 = vsel %vm237, %v2822, 0
      %v2866 = vsel %vm237, %v2823, 0
      %v2869 = vsel %vm237, %v2824, 0
      %v2872 = vsel %vm237, %v2825, 0
      %v2875 = vsel %vm237, %v2826, 0
      %v2878 = vsel %vm637, %v2828, 0
      %2880 = vmatprep.subr.bf16.mxu0 0
      %2881 = vmatpush1.bf16.msra.mxu0 %v2878
      %2882 = vmatprep.subr.bf16.mxu0 0
      %2883 = vmatpush1.bf16.msra.mxu0 0
      %2884 = vmatprep.subr.bf16.mxu0 0
      %2885 = vmatpush1.bf16.msra.mxu0 0
      %2886 = vmatprep.subr.bf16.mxu0 0
      %2887 = vmatpush1.bf16.msra.mxu0 0
      %2888 = vmatprep.subr.bf16.mxu0 0
      %2889 = vmatpush1.bf16.msra.mxu0 0
      %2890 = vmatprep.subr.bf16.mxu0 0
      %2891 = vmatpush1.bf16.msra.mxu0 0
      %2892 = vmatprep.subr.bf16.mxu0 0
      %2893 = vmatpush1.bf16.msra.mxu0 0
      %2894 = vmatprep.subr.bf16.mxu0 0
      %2895 = vmatpush1.bf16.msra.mxu0 0
      %2896 = vmatprep.subr.bf16.mxu0 0
      %2897 = vmatpush1.bf16.msra.mxu0 0
      %2898 = vmatprep.subr.bf16.mxu0 0
      %2899 = vmatpush1.bf16.msra.mxu0 0
      %2900 = vmatprep.subr.bf16.mxu0 0
      %2901 = vmatpush1.bf16.msra.mxu0 0
      %2902 = vmatprep.subr.bf16.mxu0 0
      %2903 = vmatpush1.bf16.msra.mxu0 0
      %2904 = vmatprep.subr.bf16.mxu0 0
      %2905 = vmatpush1.bf16.msra.mxu0 0
      %2906 = vmatprep.subr.bf16.mxu0 0
      %2907 = vmatpush1.bf16.msra.mxu0 0
      %2908 = vmatprep.subr.bf16.mxu0 0
      %2909 = vmatpush1.bf16.msra.mxu0 0
      %2910 = vmatprep.subr.bf16.mxu0 0
      %2911 = vmatpush1.bf16.msra.mxu0 0
      %2912 = vmatprep.mubr.bf16.mxu0 0
      %2913 = vmatmul.mubr.bf16.gmra.mrb[0].mxu0 %v2830
      %v2914 = vpop.f32.mrb[0].mxu0
      %v2915 = vadd.f32 0.0, %v2914
      %v2916 = vpop.f32.mrb[0].mxu0
      %v2917 = vpop.f32.mrb[0].mxu0
      %v2918 = vadd.f32 0.0, %v2917
      %v2919 = vpop.f32.mrb[0].mxu0
      %2920 = vmatprep.mubr.bf16.mxu0 0
      %2921 = vmatmul.mubr.bf16.gmra.mrb[0].mxu0 %v2833
      %v2922 = vpop.f32.mrb[0].mxu0
      %v2923 = vadd.f32 0.0, %v2922
      %v2924 = vpop.f32.mrb[0].mxu0
      %v2925 = vpop.f32.mrb[0].mxu0
      %v2926 = vadd.f32 0.0, %v2925
      %v2927 = vpop.f32.mrb[0].mxu0
      %2928 = vmatprep.mubr.bf16.mxu0 0
      %2929 = vmatmul.mubr.bf16.gmra.mrb[0].mxu0 %v2836
      %v2930 = vpop.f32.mrb[0].mxu0
      %v2931 = vadd.f32 0.0, %v2930
      %v2932 = vpop.f32.mrb[0].mxu0
      %v2933 = vpop.f32.mrb[0].mxu0
      %v2934 = vadd.f32 0.0, %v2933
      %v2935 = vpop.f32.mrb[0].mxu0
      %2936 = vmatprep.mubr.bf16.mxu0 0
      %2937 = vmatmul.mubr.bf16.gmra.mrb[0].mxu0 %v2839
      %v2938 = vpop.f32.mrb[0].mxu0
      %v2939 = vadd.f32 0.0, %v2938
      %v2940 = vpop.f32.mrb[0].mxu0
      %v2941 = vpop.f32.mrb[0].mxu0
      %v2942 = vadd.f32 0.0, %v2941
      %v2943 = vpop.f32.mrb[0].mxu0
      %2944 = vmatprep.mubr.bf16.mxu0 0
      %2945 = vmatmul.mubr.bf16.gmra.mrb[0].mxu0 %v2842
      %v2946 = vpop.f32.mrb[0].mxu0
      %v2947 = vadd.f32 0.0, %v2946
      %v2948 = vpop.f32.mrb[0].mxu0
      %v2949 = vpop.f32.mrb[0].mxu0
      %v2950 = vadd.f32 0.0, %v2949
      %v2951 = vpop.f32.mrb[0].mxu0
      %2952 = vmatprep.mubr.bf16.mxu0 0
      %2953 = vmatmul.mubr.bf16.gmra.mrb[0].mxu0 %v2845
      %v2954 = vpop.f32.mrb[0].mxu0
      %v2955 = vadd.f32 0.0, %v2954
      %v2956 = vpop.f32.mrb[0].mxu0
      %v2957 = vpop.f32.mrb[0].mxu0
      %v2958 = vadd.f32 0.0, %v2957
      %v2959 = vpop.f32.mrb[0].mxu0
      %2960 = vmatprep.mubr.bf16.mxu0 0
      %2961 = vmatmul.mubr.bf16.gmra.mrb[0].mxu0 %v2848
      %v2962 = vpop.f32.mrb[0].mxu0
      %v2963 = vadd.f32 0.0, %v2962
      %v2964 = vpop.f32.mrb[0].mxu0
      %v2965 = vpop.f32.mrb[0].mxu0
      %v2966 = vadd.f32 0.0, %v2965
      %v2967 = vpop.f32.mrb[0].mxu0
      %2968 = vmatprep.mubr.bf16.mxu0 0
      %2969 = vmatmul.mubr.bf16.gmra.mrb[0].mxu0 %v2851
      %v2970 = vpop.f32.mrb[0].mxu0
      %v2971 = vadd.f32 0.0, %v2970
      %v2972 = vpop.f32.mrb[0].mxu0
      %v2973 = vpop.f32.mrb[0].mxu0
      %v2974 = vadd.f32 0.0, %v2973
      %v2975 = vpop.f32.mrb[0].mxu0
      %2976 = vmatprep.mubr.bf16.mxu0 0
      %2977 = vmatmul.mubr.bf16.gmra.mrb[0].mxu0 %v2854
      %v2978 = vpop.f32.mrb[0].mxu0
      %v2979 = vadd.f32 0.0, %v2978
      %v2980 = vpop.f32.mrb[0].mxu0
      %v2981 = vpop.f32.mrb[0].mxu0
      %v2982 = vadd.f32 0.0, %v2981
      %v2983 = vpop.f32.mrb[0].mxu0
      %2984 = vmatprep.mubr.bf16.mxu0 0
      %2985 = vmatmul.mubr.bf16.gmra.mrb[0].mxu0 %v2857
      %v2986 = vpop.f32.mrb[0].mxu0
      %v2987 = vadd.f32 0.0, %v2986
      %v2988 = vpop.f32.mrb[0].mxu0
      %v2989 = vpop.f32.mrb[0].mxu0
      %v2990 = vadd.f32 0.0, %v2989
      %v2991 = vpop.f32.mrb[0].mxu0
      %2992 = vmatprep.mubr.bf16.mxu0 0
      %2993 = vmatmul.mubr.bf16.gmra.mrb[0].mxu0 %v2860
      %v2994 = vpop.f32.mrb[0].mxu0
      %v2995 = vadd.f32 0.0, %v2994
      %v2996 = vpop.f32.mrb[0].mxu0
      %v2997 = vpop.f32.mrb[0].mxu0
      %v2998 = vadd.f32 0.0, %v2997
      %v2999 = vpop.f32.mrb[0].mxu0
      %3000 = vmatprep.mubr.bf16.mxu0 0
      %3001 = vmatmul.mubr.bf16.gmra.mrb[0].mxu0 %v2863
      %v3002 = vpop.f32.mrb[0].mxu0
      %v3003 = vadd.f32 0.0, %v3002
      %v3004 = vpop.f32.mrb[0].mxu0
      %v3005 = vpop.f32.mrb[0].mxu0
      %v3006 = vadd.f32 0.0, %v3005
      %v3007 = vpop.f32.mrb[0].mxu0
      %3008 = vmatprep.mubr.bf16.mxu0 0
      %3009 = vmatmul.mubr.bf16.gmra.mrb[0].mxu0 %v2866
      %v3010 = vpop.f32.mrb[0].mxu0
      %v3011 = vadd.f32 0.0, %v3010
      %v3012 = vpop.f32.mrb[0].mxu0
      %v3013 = vpop.f32.mrb[0].mxu0
      %v3014 = vadd.f32 0.0, %v3013
      %v3015 = vpop.f32.mrb[0].mxu0
      %3016 = vmatprep.mubr.bf16.mxu0 0
      %3017 = vmatmul.mubr.bf16.gmra.mrb[0].mxu0 %v2869
      %v3018 = vpop.f32.mrb[0].mxu0
      %v3019 = vadd.f32 0.0, %v3018
      %v3020 = vpop.f32.mrb[0].mxu0
      %v3021 = vpop.f32.mrb[0].mxu0
      %v3022 = vadd.f32 0.0, %v3021
      %v3023 = vpop.f32.mrb[0].mxu0
      %3024 = vmatprep.mubr.bf16.mxu0 0
      %3025 = vmatmul.mubr.bf16.gmra.mrb[0].mxu0 %v2872
      %v3026 = vpop.f32.mrb[0].mxu0
      %v3027 = vadd.f32 0.0, %v3026
      %v3028 = vpop.f32.mrb[0].mxu0
      %v3029 = vpop.f32.mrb[0].mxu0
      %v3030 = vadd.f32 0.0, %v3029
      %v3031 = vpop.f32.mrb[0].mxu0
      %3032 = vmatprep.mubr.bf16.mxu0 0
      %3033 = vmatmul.mubr.bf16.gmra.mrb[0].mxu0 %v2875
      %v3034 = vpop.f32.mrb[0].mxu0
      %v3035 = vadd.f32 0.0, %v3034
      %v3036 = vpop.f32.mrb[0].mxu0
      %v3037 = vpop.f32.mrb[0].mxu0
      %v3038 = vadd.f32 0.0, %v3037
      %v3039 = vpop.f32.mrb[0].mxu0
      %3040 = vdwg.mxu0
      %v3041 = vadd.f32 %v2747, %v2915
      %v3042 = vadd.f32 %v2748, %v2918
      %v3043 = vadd.f32 %v2749, %v2923
      %v3044 = vadd.f32 %v2750, %v2926
      %v3045 = vadd.f32 %v2751, %v2931
      %v3046 = vadd.f32 %v2752, %v2934
      %v3047 = vadd.f32 %v2753, %v2939
      %v3048 = vadd.f32 %v2754, %v2942
      %v3049 = vadd.f32 %v2755, %v2947
      %v3050 = vadd.f32 %v2756, %v2950
      %v3051 = vadd.f32 %v2757, %v2955
      %v3052 = vadd.f32 %v2758, %v2958
      %v3053 = vadd.f32 %v2759, %v2963
      %v3054 = vadd.f32 %v2760, %v2966
      %v3055 = vadd.f32 %v2761, %v2971
      %v3056 = vadd.f32 %v2762, %v2974
      %v3057 = vadd.f32 %v2763, %v2979
      %v3058 = vadd.f32 %v2764, %v2982
      %v3059 = vadd.f32 %v2765, %v2987
      %v3060 = vadd.f32 %v2766, %v2990
      %v3061 = vadd.f32 %v2767, %v2995
      %v3062 = vadd.f32 %v2768, %v2998
      %v3063 = vadd.f32 %v2769, %v3003
      %v3064 = vadd.f32 %v2770, %v3006
      %v3065 = vadd.f32 %v2771, %v3011
      %v3066 = vadd.f32 %v2772, %v3014
      %v3067 = vadd.f32 %v2773, %v3019
      %v3068 = vadd.f32 %v2774, %v3022
      %v3069 = vadd.f32 %v2775, %v3027
      %v3070 = vadd.f32 %v2776, %v3030
      %v3071 = vadd.f32 %v2777, %v3035
      %v3072 = vadd.f32 %v2778, %v3038
      %v3073 = vsel %vm237, %v3041, 0.0
      %v3074 = vsel %vm237, %v3042, 0.0
      %v3075 = vadd.f32 %v3073, %v3074
      %v3076 = vsel %vm237, %v3043, 0.0
      %v3077 = vadd.f32 %v3075, %v3076
      %v3078 = vsel %vm237, %v3044, 0.0
      %v3079 = vadd.f32 %v3077, %v3078
      %v3080 = vsel %vm237, %v3045, 0.0
      %v3081 = vadd.f32 %v3079, %v3080
      %v3082 = vsel %vm237, %v3046, 0.0
      %v3083 = vadd.f32 %v3081, %v3082
      %v3084 = vsel %vm237, %v3047, 0.0
      %v3085 = vadd.f32 %v3083, %v3084
      %v3086 = vsel %vm237, %v3048, 0.0
      %v3087 = vadd.f32 %v3085, %v3086
      %v3088 = vsel %vm237, %v3049, 0.0
      %v3089 = vadd.f32 %v3087, %v3088
      %v3090 = vsel %vm237, %v3050, 0.0
      %v3091 = vadd.f32 %v3089, %v3090
      %v3092 = vsel %vm237, %v3051, 0.0
      %v3093 = vadd.f32 %v3091, %v3092
      %v3094 = vsel %vm237, %v3052, 0.0
      %v3095 = vadd.f32 %v3093, %v3094
      %v3096 = vsel %vm237, %v3053, 0.0
      %v3097 = vadd.f32 %v3095, %v3096
      %v3098 = vsel %vm237, %v3054, 0.0
      %v3099 = vadd.f32 %v3097, %v3098
      %v3100 = vsel %vm237, %v3055, 0.0
      %v3101 = vadd.f32 %v3099, %v3100
      %v3102 = vsel %vm237, %v3056, 0.0
      %v3103 = vadd.f32 %v3101, %v3102
      %v3104 = vsel %vm237, %v3057, 0.0
      %v3105 = vadd.f32 %v3103, %v3104
      %v3106 = vsel %vm237, %v3058, 0.0
      %v3107 = vadd.f32 %v3105, %v3106
      %v3108 = vsel %vm237, %v3059, 0.0
      %v3109 = vadd.f32 %v3107, %v3108
      %v3110 = vsel %vm237, %v3060, 0.0
      %v3111 = vadd.f32 %v3109, %v3110
      %v3112 = vsel %vm237, %v3061, 0.0
      %v3113 = vadd.f32 %v3111, %v3112
      %v3114 = vsel %vm237, %v3062, 0.0
      %v3115 = vadd.f32 %v3113, %v3114
      %v3116 = vsel %vm237, %v3063, 0.0
      %v3117 = vadd.f32 %v3115, %v3116
      %v3118 = vsel %vm237, %v3064, 0.0
      %v3119 = vadd.f32 %v3117, %v3118
      %v3120 = vsel %vm237, %v3065, 0.0
      %v3121 = vadd.f32 %v3119, %v3120
      %v3122 = vsel %vm237, %v3066, 0.0
      %v3123 = vadd.f32 %v3121, %v3122
      %v3124 = vsel %vm237, %v3067, 0.0
      %v3125 = vadd.f32 %v3123, %v3124
      %v3126 = vsel %vm237, %v3068, 0.0
      %v3127 = vadd.f32 %v3125, %v3126
      %v3128 = vsel %vm237, %v3069, 0.0
      %v3129 = vadd.f32 %v3127, %v3128
      %v3130 = vsel %vm237, %v3070, 0.0
      %v3131 = vadd.f32 %v3129, %v3130
      %v3132 = vsel %vm237, %v3071, 0.0
      %v3133 = vadd.f32 %v3131, %v3132
      %v3134 = vsel %vm237, %v3072, 0.0
      %v3135 = vadd.f32 %v3133, %v3134
      %v3136 = vrot.slane %v3135, 4
      %v3137 = vadd.f32 %v3135, %v3136
      %v3138 = vrot.slane %v3137, 2
      %v3139 = vadd.f32 %v3137, %v3138
      %v3140 = vrot.slane %v3139, 1
      %v3141 = vadd.f32 %v3139, %v3140
      %3142 = vst.msk [vmem:[%s235] sm:$0x1] %vm246, %v3141
      %v3143 = vmul.f32 %v3041, %v3041
      %v3144 = vmul.f32 %v3042, %v3042
      %v3145 = vmul.f32 %v3043, %v3043
      %v3146 = vmul.f32 %v3044, %v3044
      %v3147 = vmul.f32 %v3045, %v3045
      %v3148 = vmul.f32 %v3046, %v3046
      %v3149 = vmul.f32 %v3047, %v3047
      %v3150 = vmul.f32 %v3048, %v3048
      %v3151 = vmul.f32 %v3049, %v3049
      %v3152 = vmul.f32 %v3050, %v3050
      %v3153 = vmul.f32 %v3051, %v3051
      %v3154 = vmul.f32 %v3052, %v3052
      %v3155 = vmul.f32 %v3053, %v3053
      %v3156 = vmul.f32 %v3054, %v3054
      %v3157 = vmul.f32 %v3055, %v3055
      %v3158 = vmul.f32 %v3056, %v3056
      %v3159 = vmul.f32 %v3057, %v3057
      %v3160 = vmul.f32 %v3058, %v3058
      %v3161 = vmul.f32 %v3059, %v3059
      %v3162 = vmul.f32 %v3060, %v3060
      %v3163 = vmul.f32 %v3061, %v3061
      %v3164 = vmul.f32 %v3062, %v3062
      %v3165 = vmul.f32 %v3063, %v3063
      %v3166 = vmul.f32 %v3064, %v3064
      %v3167 = vmul.f32 %v3065, %v3065
      %v3168 = vmul.f32 %v3066, %v3066
      %v3169 = vmul.f32 %v3067, %v3067
      %v3170 = vmul.f32 %v3068, %v3068
      %v3171 = vmul.f32 %v3069, %v3069
      %v3172 = vmul.f32 %v3070, %v3070
      %v3173 = vmul.f32 %v3071, %v3071
      %v3174 = vmul.f32 %v3072, %v3072
      %v3175 = vsel %vm237, %v3143, 0.0
      %v3176 = vsel %vm237, %v3144, 0.0
      %v3177 = vadd.f32 %v3175, %v3176
      %v3178 = vsel %vm237, %v3145, 0.0
      %v3179 = vadd.f32 %v3177, %v3178
      %v3180 = vsel %vm237, %v3146, 0.0
      %v3181 = vadd.f32 %v3179, %v3180
      %v3182 = vsel %vm237, %v3147, 0.0
      %v3183 = vadd.f32 %v3181, %v3182
      %v3184 = vsel %vm237, %v3148, 0.0
      %v3185 = vadd.f32 %v3183, %v3184
      %v3186 = vsel %vm237, %v3149, 0.0
      %v3187 = vadd.f32 %v3185, %v3186
      %v3188 = vsel %vm237, %v3150, 0.0
      %v3189 = vadd.f32 %v3187, %v3188
      %v3190 = vsel %vm237, %v3151, 0.0
      %v3191 = vadd.f32 %v3189, %v3190
      %v3192 = vsel %vm237, %v3152, 0.0
      %v3193 = vadd.f32 %v3191, %v3192
      %v3194 = vsel %vm237, %v3153, 0.0
      %v3195 = vadd.f32 %v3193, %v3194
      %v3196 = vsel %vm237, %v3154, 0.0
      %v3197 = vadd.f32 %v3195, %v3196
      %v3198 = vsel %vm237, %v3155, 0.0
      %v3199 = vadd.f32 %v3197, %v3198
      %v3200 = vsel %vm237, %v3156, 0.0
      %v3201 = vadd.f32 %v3199, %v3200
      %v3202 = vsel %vm237, %v3157, 0.0
      %v3203 = vadd.f32 %v3201, %v3202
      %v3204 = vsel %vm237, %v3158, 0.0
      %v3205 = vadd.f32 %v3203, %v3204
      %v3206 = vsel %vm237, %v3159, 0.0
      %v3207 = vadd.f32 %v3205, %v3206
      %v3208 = vsel %vm237, %v3160, 0.0
      %v3209 = vadd.f32 %v3207, %v3208
      %v3210 = vsel %vm237, %v3161, 0.0
      %v3211 = vadd.f32 %v3209, %v3210
      %v3212 = vsel %vm237, %v3162, 0.0
      %v3213 = vadd.f32 %v3211, %v3212
      %v3214 = vsel %vm237, %v3163, 0.0
      %v3215 = vadd.f32 %v3213, %v3214
      %v3216 = vsel %vm237, %v3164, 0.0
      %v3217 = vadd.f32 %v3215, %v3216
      %v3218 = vsel %vm237, %v3165, 0.0
      %v3219 = vadd.f32 %v3217, %v3218
      %v3220 = vsel %vm237, %v3166, 0.0
      %v3221 = vadd.f32 %v3219, %v3220
      %v3222 = vsel %vm237, %v3167, 0.0
      %v3223 = vadd.f32 %v3221, %v3222
      %v3224 = vsel %vm237, %v3168, 0.0
      %v3225 = vadd.f32 %v3223, %v3224
      %v3226 = vsel %vm237, %v3169, 0.0
      %v3227 = vadd.f32 %v3225, %v3226
      %v3228 = vsel %vm237, %v3170, 0.0
      %v3229 = vadd.f32 %v3227, %v3228
      %v3230 = vsel %vm237, %v3171, 0.0
      %v3231 = vadd.f32 %v3229, %v3230
      %v3232 = vsel %vm237, %v3172, 0.0
      %v3233 = vadd.f32 %v3231, %v3232
      %v3234 = vsel %vm237, %v3173, 0.0
      %v3235 = vadd.f32 %v3233, %v3234
      %v3236 = vsel %vm237, %v3174, 0.0
      %v3237 = vadd.f32 %v3235, %v3236
      %v3238 = vrot.slane %v3237, 4
      %v3239 = vadd.f32 %v3237, %v3238
      %v3240 = vrot.slane %v3239, 2
      %v3241 = vadd.f32 %v3239, %v3240
      %v3242 = vrot.slane %v3241, 1
      %v3243 = vadd.f32 %v3241, %v3242
      %3244 = vst.msk [vmem:[%s235 + $0x1] sm:$0x1] %vm246, %v3243
      %v3245 = vpack.c.bf16 %v3042, %v3041
      %v3246 = vpack.c.bf16 %v3044, %v3043
      %v3247 = vpack.c.bf16 %v3046, %v3045
      %v3248 = vpack.c.bf16 %v3048, %v3047
      %v3249 = vpack.c.bf16 %v3050, %v3049
      %v3250 = vpack.c.bf16 %v3052, %v3051
      %v3251 = vpack.c.bf16 %v3054, %v3053
      %v3252 = vpack.c.bf16 %v3056, %v3055
      %v3253 = vpack.c.bf16 %v3058, %v3057
      %v3254 = vpack.c.bf16 %v3060, %v3059
      %v3255 = vpack.c.bf16 %v3062, %v3061
      %v3256 = vpack.c.bf16 %v3064, %v3063
      %v3257 = vpack.c.bf16 %v3066, %v3065
      %v3258 = vpack.c.bf16 %v3068, %v3067
      %v3259 = vpack.c.bf16 %v3070, %v3069
      %v3260 = vpack.c.bf16 %v3072, %v3071
      %v3277 = vunpack.c.l.b16 %v3245
      %v3278 = vunpack.c.h.b16 %v3245
      %v3279 = vunpack.c.l.b16 %v3246
      %v3280 = vunpack.c.h.b16 %v3246
      %v3281 = vunpack.c.l.b16 %v3247
      %v3282 = vunpack.c.h.b16 %v3247
      %v3283 = vunpack.c.l.b16 %v3248
      %v3284 = vunpack.c.h.b16 %v3248
      %v3285 = vunpack.c.l.b16 %v3249
      %v3286 = vunpack.c.h.b16 %v3249
      %v3287 = vunpack.c.l.b16 %v3250
      %v3288 = vunpack.c.h.b16 %v3250
      %v3289 = vunpack.c.l.b16 %v3251
      %v3290 = vunpack.c.h.b16 %v3251
      %v3291 = vunpack.c.l.b16 %v3252
      %v3292 = vunpack.c.h.b16 %v3252
      %v3293 = vunpack.c.l.b16 %v3253
      %v3294 = vunpack.c.h.b16 %v3253
      %v3295 = vunpack.c.l.b16 %v3254
      %v3296 = vunpack.c.h.b16 %v3254
      %v3297 = vunpack.c.l.b16 %v3255
      %v3298 = vunpack.c.h.b16 %v3255
      %v3299 = vunpack.c.l.b16 %v3256
      %v3300 = vunpack.c.h.b16 %v3256
      %v3301 = vunpack.c.l.b16 %v3257
      %v3302 = vunpack.c.h.b16 %v3257
      %v3303 = vunpack.c.l.b16 %v3258
      %v3304 = vunpack.c.h.b16 %v3258
      %v3305 = vunpack.c.l.b16 %v3259
      %v3306 = vunpack.c.h.b16 %v3259
      %v3307 = vunpack.c.l.b16 %v3260
      %v3308 = vunpack.c.h.b16 %v3260
      %v3309 = vpack.c.b16 %v3277, %v3277
      %v3310 = vpack.c.b16 %v3278, %v3278
      %v3311 = vpack.c.b16 %v3279, %v3279
      %v3312 = vpack.c.b16 %v3280, %v3280
      %v3313 = vpack.c.b16 %v3281, %v3281
      %v3314 = vpack.c.b16 %v3282, %v3282
      %v3315 = vpack.c.b16 %v3283, %v3283
      %v3316 = vpack.c.b16 %v3284, %v3284
      %v3317 = vpack.c.b16 %v3285, %v3285
      %v3318 = vpack.c.b16 %v3286, %v3286
      %v3319 = vpack.c.b16 %v3287, %v3287
      %v3320 = vpack.c.b16 %v3288, %v3288
      %v3321 = vpack.c.b16 %v3289, %v3289
      %v3322 = vpack.c.b16 %v3290, %v3290
      %v3323 = vpack.c.b16 %v3291, %v3291
      %v3324 = vpack.c.b16 %v3292, %v3292
      %v3325 = vpack.c.b16 %v3293, %v3293
      %v3326 = vpack.c.b16 %v3294, %v3294
      %v3327 = vpack.c.b16 %v3295, %v3295
      %v3328 = vpack.c.b16 %v3296, %v3296
      %v3329 = vpack.c.b16 %v3297, %v3297
      %v3330 = vpack.c.b16 %v3298, %v3298
      %v3331 = vpack.c.b16 %v3299, %v3299
      %v3332 = vpack.c.b16 %v3300, %v3300
      %v3333 = vpack.c.b16 %v3301, %v3301
      %v3334 = vpack.c.b16 %v3302, %v3302
      %v3335 = vpack.c.b16 %v3303, %v3303
      %v3336 = vpack.c.b16 %v3304, %v3304
      %v3337 = vpack.c.b16 %v3305, %v3305
      %v3338 = vpack.c.b16 %v3306, %v3306
      %v3339 = vpack.c.b16 %v3307, %v3307
      %v3340 = vpack.c.b16 %v3308, %v3308
      %vm3373 = vcmask 60416
      %3374 = vst.msk [vmem:[%s231] sm:$0xf] %vm3373, %v3309
      %3375 = vst.msk [vmem:[%s231 + $0x4] sm:$0xf] %vm3373, %v3310
      %3376 = vst.msk [vmem:[%s231 + $0x8] sm:$0xf] %vm3373, %v3311
      %3377 = vst.msk [vmem:[%s231 + $0xc] sm:$0xf] %vm3373, %v3312
      %3378 = vst.msk [vmem:[%s231 + $0x10] sm:$0xf] %vm3373, %v3313
      %3379 = vst.msk [vmem:[%s231 + $0x14] sm:$0xf] %vm3373, %v3314
      %3380 = vst.msk [vmem:[%s231 + $0x18] sm:$0xf] %vm3373, %v3315
      %3381 = vst.msk [vmem:[%s231 + $0x1c] sm:$0xf] %vm3373, %v3316
      %3382 = vst.msk [vmem:[%s231 + $0x20] sm:$0xf] %vm3373, %v3317
      %3383 = vst.msk [vmem:[%s231 + $0x24] sm:$0xf] %vm3373, %v3318
      %3384 = vst.msk [vmem:[%s231 + $0x28] sm:$0xf] %vm3373, %v3319
      %3385 = vst.msk [vmem:[%s231 + $0x2c] sm:$0xf] %vm3373, %v3320
      %3386 = vst.msk [vmem:[%s231 + $0x30] sm:$0xf] %vm3373, %v3321
      %3387 = vst.msk [vmem:[%s231 + $0x34] sm:$0xf] %vm3373, %v3322
      %3388 = vst.msk [vmem:[%s231 + $0x38] sm:$0xf] %vm3373, %v3323
      %3389 = vst.msk [vmem:[%s231 + $0x3c] sm:$0xf] %vm3373, %v3324
      %3390 = vst.msk [vmem:[%s231 + $0x40] sm:$0xf] %vm3373, %v3325
      %3391 = vst.msk [vmem:[%s231 + $0x44] sm:$0xf] %vm3373, %v3326
      %3392 = vst.msk [vmem:[%s231 + $0x48] sm:$0xf] %vm3373, %v3327
      %3393 = vst.msk [vmem:[%s231 + $0x4c] sm:$0xf] %vm3373, %v3328
      %3394 = vst.msk [vmem:[%s231 + $0x50] sm:$0xf] %vm3373, %v3329
      %3395 = vst.msk [vmem:[%s231 + $0x54] sm:$0xf] %vm3373, %v3330
      %3396 = vst.msk [vmem:[%s231 + $0x58] sm:$0xf] %vm3373, %v3331
      %3397 = vst.msk [vmem:[%s231 + $0x5c] sm:$0xf] %vm3373, %v3332
      %3398 = vst.msk [vmem:[%s231 + $0x60] sm:$0xf] %vm3373, %v3333
      %3399 = vst.msk [vmem:[%s231 + $0x64] sm:$0xf] %vm3373, %v3334
      %3400 = vst.msk [vmem:[%s231 + $0x68] sm:$0xf] %vm3373, %v3335
      %3401 = vst.msk [vmem:[%s231 + $0x6c] sm:$0xf] %vm3373, %v3336
      %3402 = vst.msk [vmem:[%s231 + $0x70] sm:$0xf] %vm3373, %v3337
      %3403 = vst.msk [vmem:[%s231 + $0x74] sm:$0xf] %vm3373, %v3338
      %3404 = vst.msk [vmem:[%s231 + $0x78] sm:$0xf] %vm3373, %v3339
      %3405 = vst.msk [vmem:[%s231 + $0x7c] sm:$0xf] %vm3373, %v3340
      %p3406 = scmp.lt.s32.totalorder %s17, 1
      %s3407 = scalar_select %p3406, %s17, 1
      %s3408 = smul.addr %s3407, 32
      %s3409 = smul.addr %s3408, 4
      %s3410 = scalar_lea.vmem %s4, %s3409
      %p3411 = scmp.lt.s32.totalorder %s17, 1
      %s3412 = scalar_select %p3411, %s17, 1
      %s3413 = smul.addr %s3412, 2
      %s3414 = scalar_lea.vmem %s5, %s3413
      // Predicated region
      $region37: #{inception_forward.8} parent=35 // pred_check
        %p3415 = pneg %p124
      $region38: #{inception_forward.8} parent=35 // pred_check_branch
        %3417 = sbr.rel (%p3415) target = $region40
      $region39: #{inception_forward.8} parent=35 // pred_region
        _
      $region40: #{inception_forward.8} parent=35 // pred_fallthru
        _
      // Predicated region
      $region41: #{inception_forward.8} parent=35 // pred_check
        %p3418 = pneg %p150
      $region42: #{inception_forward.8} parent=35 // pred_check_branch
        %3420 = sbr.rel (%p3418) target = $region44
      $region43: #{inception_forward.8} parent=35 // pred_region
        _
      $region44: #{inception_forward.8} parent=35 // pred_fallthru
        _
    $region36: #{inception_forward.8} parent=5 // pred_fallthru
      _
    %p3421 = scmp.le.s32.totalorder 2, %s12
    // Predicated region
    $region45: #{inception_forward.8} parent=5 // pred_check
      %p3422 = pneg %p3421
    $region46: #{inception_forward.8} parent=5 // pred_check_branch
      %3424 = sbr.rel (%p3422) target = $region48
    $region47: #{inception_forward.8} parent=5 // pred_region
      %s3425 = ssub.s32 %s12, 2
      // Predicated region
      $region49: #{inception_forward.8} parent=47 // pred_check
        %p3426 = pneg %p130
      $region50: #{inception_forward.8} parent=47 // pred_check_branch
        %3428 = sbr.rel (%p3426) target = $region52
      $region51: #{inception_forward.8} parent=47 // pred_region
        %p3429 = scmp.lt.s32.totalorder %s18, 1
        %s3430 = scalar_select %p3429, %s18, 1
        %s3431 = smul.addr %s3430, 32
        %s3432 = smul.addr %s3431, 4
        %s3433 = scalar_lea.vmem %s4, %s3432
      $region52: #{inception_forward.8} parent=47 // pred_fallthru
        _
      // Predicated region
      $region53: #{inception_forward.8} parent=47 // pred_check
        %p3434 = pneg %p156
      $region54: #{inception_forward.8} parent=47 // pred_check_branch
        %3436 = sbr.rel (%p3434) target = $region56
      $region55: #{inception_forward.8} parent=47 // pred_region
        %p3437 = scmp.lt.s32.totalorder %s18, 1
        %s3438 = scalar_select %p3437, %s18, 1
        %s3439 = smul.addr %s3438, 2
        %s3440 = scalar_lea.vmem %s5, %s3439
      $region56: #{inception_forward.8} parent=47 // pred_fallthru
        _
    $region48: #{inception_forward.8} parent=5 // pred_fallthru
      _
  $region6: #{inception_forward.8} parent=0 // loop_footer
    %s16 = sadd.s32 1, %s12
  $region7: #{inception_forward.8} parent=0 // loop_footer_branch
    %11 = sbr.rel target = $region3
  $region8: #{inception_forward.8} parent=0 // loop_exit
    _

</llo_original>
